<compile_context>
chip_gen: v5e
topology: v5e:2x2
jax: 0.10.0
libtpu: 0.0.40
codegen_flags: <defaults>
</compile_context>

<pallas_src>
import functools
import math

import numpy as np

import jax
import jax.numpy as jnp
from jax.experimental import pallas as pl
from jax.experimental.pallas import tpu as pltpu

_BN_EPS = 1e-5
_MARGIN = 128   # lane margin so every tap shift is an in-bounds, static slice


def _fused_kernel(x_ref, mask_ref, w1_ref, b1_ref, w2_ref, b2_ref,
                  gamma_ref, beta_ref, out_ref, wide_ref, patch_ref,
                  *, N, H, W, K, pad, c1, c2):
    """Two fused (conv2d + bias + ReLU + train-mode BatchNorm2d) stages.

    x_ref    : (c1, M)        f32   input, channels zero-padded to c1, M=N*H*W
    mask_ref : (K*K, M)       f32   1.0 where tap (kh,kw) reads inside the image
    w1_ref   : (Cout, K*K*c1) bf16  conv1 weights, column order (kh, kw, ci)
    w2_ref   : (Cout, K*K*c2) bf16  conv2 weights, column order (kh, kw, ci)
    b*_ref / gamma_ref / beta_ref : (Cout, 1) f32
    out_ref  : (Cout, M)      f32   lane-dense output
    wide_ref : (max(c1,c2), M + 2*_MARGIN) f32 scratch (zero margins)
    patch_ref: (K*K*max(c1,c2), M) f32 scratch (im2col matrix)
    """
    M = N * H * W
    taps = [(kh * K + kw, kh - pad, kw - pad)
            for kh in range(K) for kw in range(K)]

    # Zero once: only the margins matter; the centre is overwritten per stage.
    wide_ref[...] = jnp.zeros_like(wide_ref)

    def conv(x2d, w_ref, b_ref, c):
        # x2d: (c, M) f32 activations of this stage, flattened (n, h, w) on lanes.
        wide_ref[:c, _MARGIN:_MARGIN + M] = x2d
        for t, dh, dw in taps:
            shift = dh * W + dw                       # flat offset of this tap
            piece = wide_ref[:c, _MARGIN + shift:_MARGIN + shift + M]
            # zero taps that fall outside the image / cross rows or images
            patch_ref[t * c:(t + 1) * c, :] = piece * mask_ref[t:t + 1, :]
        patches = patch_ref[:K * K * c, :].astype(jnp.bfloat16)
        y = jnp.dot(w_ref[...], patches, preferred_element_type=jnp.float32)
        return y + b_ref[...]                         # (Cout, M) f32

    def relu_bn(y):
        y = jnp.maximum(y, 0.0)                       # ReLU
        mean = jnp.mean(y, axis=1, keepdims=True)     # per-channel (lane reduce)
        d = y - mean
        var = jnp.mean(d * d, axis=1, keepdims=True)  # biased variance
        return d * jax.lax.rsqrt(var + _BN_EPS) * gamma_ref[...] + beta_ref[...]

    y1 = relu_bn(conv(x_ref[...], w1_ref, b1_ref, c1))   # bn(relu(conv1(x)))
    y2 = relu_bn(conv(y1, w2_ref, b2_ref, c2))            # bn(relu(conv2(.)))
    out_ref[...] = y2.astype(out_ref.dtype)


def _round_up(x, m):
    return (x + m - 1) // m * m


def _prep_weight(w_oikk, c_pad):
    """(Cout, Cin, K, K) -> (Cout, K*K*c_pad) bf16, column order (kh, kw, ci)."""
    Cout, Cin, K, _ = w_oikk.shape
    w = jnp.transpose(w_oikk, (0, 2, 3, 1))                       # (Cout,K,K,Cin)
    w = jnp.pad(w, ((0, 0), (0, 0), (0, 0), (0, c_pad - Cin)))
    return w.reshape(Cout, K * K * c_pad).astype(jnp.bfloat16)


def _boundary_masks(N, H, W, K, pad):
    """(K*K, N*H*W) f32: 1.0 where tap (kh, kw) reads a valid pixel (static)."""
    m = np.arange(N * H * W)
    h = (m // W) % H
    w = m % W
    masks = []
    for kh in range(K):
        for kw in range(K):
            dh, dw = kh - pad, kw - pad
            masks.append((h + dh >= 0) & (h + dh < H) &
                         (w + dw >= 0) & (w + dw < W))
    return jnp.asarray(np.stack(masks), dtype=jnp.float32)


def basic_layer_forward(x_nchw, params, padding=3):
    """Matches BasicLayer.forward: x = bn(relu(conv1(x))); x = bn(relu(conv2(x)))."""
    N, Cin, H, W = x_nchw.shape
    Cout, _, K, _ = params["w1"].shape
    assert K == 2 * padding + 1, "flat-shift im2col assumes 'same' convolutions"
    M = N * H * W

    c1 = _round_up(Cin, 8)        # stage-1 input channels, sublane aligned
    c2 = _round_up(Cout, 8)       # stage-2 input channels (= Cout)
    assert c2 == Cout, "Cout must be a multiple of 8 for this kernel"
    cmax = max(c1, c2)

    # Layout-only glue: NCHW -> (C, N*H*W), zero-pad channels to c1.
    x2d = jnp.transpose(x_nchw, (1, 0, 2, 3)).reshape(Cin, M)
    x2d = jnp.pad(x2d, ((0, c1 - Cin), (0, 0)))

    kernel = functools.partial(_fused_kernel, N=N, H=H, W=W, K=K, pad=padding,
                               c1=c1, c2=c2)
    vmem = pl.BlockSpec(memory_space=pltpu.MemorySpace.VMEM)
    out2d = pl.pallas_call(
        kernel,
        out_shape=jax.ShapeDtypeStruct((Cout, M), jnp.float32),
        in_specs=[vmem] * 8,
        out_specs=vmem,
        scratch_shapes=[
            pltpu.VMEM((cmax, M + 2 * _MARGIN), jnp.float32),   # margined input
            pltpu.VMEM((K * K * cmax, M), jnp.float32),         # im2col matrix
        ],
    )(x2d,
      _boundary_masks(N, H, W, K, padding),
      _prep_weight(params["w1"], c1),
      params["b1"].reshape(Cout, 1),
      _prep_weight(params["w2"], c2),
      params["b2"].reshape(Cout, 1),
      params["gamma"].reshape(Cout, 1),
      params["beta"].reshape(Cout, 1))

    return jnp.transpose(out2d.reshape(Cout, N, H, W), (1, 0, 2, 3))  # -> NCHW


def init_params(key, in_features, out_features, kernel_size):
    """Deterministic init matching the PyTorch parameter shapes."""
    k1, k2, k3, k4 = jax.random.split(key, 4)
    fan_in1 = in_features * kernel_size * kernel_size
    fan_in2 = out_features * kernel_size * kernel_size
    bnd1 = 1.0 / math.sqrt(fan_in1)
    bnd2 = 1.0 / math.sqrt(fan_in2)
    return {
        "w1": jax.random.uniform(k1, (out_features, in_features,
                                      kernel_size, kernel_size),
                                 jnp.float32, -bnd1, bnd1),
        "b1": jax.random.uniform(k2, (out_features,), jnp.float32, -bnd1, bnd1),
        "w2": jax.random.uniform(k3, (out_features, out_features,
                                      kernel_size, kernel_size),
                                 jnp.float32, -bnd2, bnd2),
        "b2": jax.random.uniform(k4, (out_features,), jnp.float32, -bnd2, bnd2),
        "gamma": jnp.ones((out_features,), jnp.float32),   # BN weight
        "beta": jnp.zeros((out_features,), jnp.float32),   # BN bias
    }


def _reference(x_nchw, params, padding=3):
    """Pure-JAX (f32) reference of the same math, for a correctness check."""
    def stage(x, w, b, gamma, beta):
        y = jax.lax.conv_general_dilated(
            x, w, window_strides=(1, 1),
            padding=[(padding, padding), (padding, padding)],
            dimension_numbers=("NCHW", "OIHW", "NCHW"),
            precision=jax.lax.Precision.HIGHEST)
        y = y + b[None, :, None, None]
        y = jnp.maximum(y, 0.0)
        mean = jnp.mean(y, axis=(0, 2, 3), keepdims=True)
        var = jnp.mean((y - mean) ** 2, axis=(0, 2, 3), keepdims=True)
        return ((y - mean) * jax.lax.rsqrt(var + _BN_EPS)
                * gamma[None, :, None, None] + beta[None, :, None, None])

    y = stage(x_nchw, params["w1"], params["b1"], params["gamma"], params["beta"])
    y = stage(y, params["w2"], params["b2"], params["gamma"], params["beta"])
    return y


if __name__ == "__main__":
    # Small shapes consistent with the module: kernel_size=7 with padding=3
    # keeps spatial dims fixed (as intended by the padding choice).
    in_features, out_features, kernel_size = 4, 8, 7
    N, H, W = 2, 16, 16

    key = jax.random.PRNGKey(0)
    pkey, xkey = jax.random.split(key)
    params = init_params(pkey, in_features, out_features, kernel_size)
    x = jax.random.normal(xkey, (N, in_features, H, W), jnp.float32)

    out = basic_layer_forward(x, params, padding=3)
    out = jax.block_until_ready(out)

    ref = _reference(x, params, padding=3)
    assert out.shape == ref.shape == (N, out_features, H, W)
    max_err = float(jnp.max(jnp.abs(out - ref)))
    # bf16 MXU operands (f32 accumulation) -> a few e-3 typical error after BN.
    if not bool(jnp.allclose(out, ref, atol=5e-2, rtol=5e-2)):
        raise SystemExit(f"mismatch vs reference, max abs err = {max_err}")

    print("KERNEL_OK")
</pallas_src>

<mosaic_0001>
module attributes {stable_mosaic.version = 11 : i64} {
  func.func @_fused_kernel(%arg0: memref<8x512xf32, #tpu.memory_space<vmem>>, %arg1: memref<49x512xf32, #tpu.memory_space<vmem>>, %arg2: memref<8x392xbf16, #tpu.memory_space<vmem>>, %arg3: memref<8x1xf32, #tpu.memory_space<vmem>>, %arg4: memref<8x392xbf16, #tpu.memory_space<vmem>>, %arg5: memref<8x1xf32, #tpu.memory_space<vmem>>, %arg6: memref<8x1xf32, #tpu.memory_space<vmem>>, %arg7: memref<8x1xf32, #tpu.memory_space<vmem>>, %arg8: memref<8x512xf32, #tpu.memory_space<vmem>>, %arg9: memref<8x768xf32, #tpu.memory_space<vmem>>, %arg10: memref<392x512xf32, #tpu.memory_space<vmem>>) attributes {dimension_semantics = [], scalar_prefetch = 0 : i64, scratch_operands = 2 : i64, tpu.core_type = #tpu.core_type<tc>} {
    %cst = arith.constant 0.000000e+00 : f32
    %0 = vector.broadcast %cst : f32 to vector<8x768xf32>
    %c0 = arith.constant 0 : index
    %c0_0 = arith.constant 0 : index
    %1 = vector.load %arg9[%c0, %c0_0] : memref<8x768xf32, #tpu.memory_space<vmem>>, vector<8x768xf32>
    tpu.vector_store %arg9[%c0, %c0_0], %0 {strides = array<i32>} : memref<8x768xf32, #tpu.memory_space<vmem>>, vector<8x768xf32>,
    %c0_1 = arith.constant 0 : index
    %c0_2 = arith.constant 0 : index
    %2 = vector.load %arg0[%c0_1, %c0_2] : memref<8x512xf32, #tpu.memory_space<vmem>>, vector<8x512xf32>
    %c0_3 = arith.constant 0 : index
    %c128 = arith.constant 128 : index
    %3 = vector.load %arg9[%c0_3, %c128] : memref<8x768xf32, #tpu.memory_space<vmem>>, vector<8x512xf32>
    tpu.vector_store %arg9[%c0_3, %c128], %2 {strides = array<i32>} : memref<8x768xf32, #tpu.memory_space<vmem>>, vector<8x512xf32>,
    %c0_4 = arith.constant 0 : index
    %c77 = arith.constant 77 : index
    %4 = vector.load %arg9[%c0_4, %c77] : memref<8x768xf32, #tpu.memory_space<vmem>>, vector<8x512xf32>
    %c0_5 = arith.constant 0 : index
    %c0_6 = arith.constant 0 : index
    %5 = vector.load %arg1[%c0_5, %c0_6] : memref<49x512xf32, #tpu.memory_space<vmem>>, vector<1x512xf32>
    %6 = vector.broadcast %5 : vector<1x512xf32> to vector<8x512xf32>
    %7 = arith.mulf %4, %6 : vector<8x512xf32>
    %c0_7 = arith.constant 0 : index
    %c0_8 = arith.constant 0 : index
    %8 = vector.load %arg10[%c0_7, %c0_8] : memref<392x512xf32, #tpu.memory_space<vmem>>, vector<8x512xf32>
    tpu.vector_store %arg10[%c0_7, %c0_8], %7 {strides = array<i32>} : memref<392x512xf32, #tpu.memory_space<vmem>>, vector<8x512xf32>,
    %c0_9 = arith.constant 0 : index
    %c78 = arith.constant 78 : index
    %9 = vector.load %arg9[%c0_9, %c78] : memref<8x768xf32, #tpu.memory_space<vmem>>, vector<8x512xf32>
    %c1 = arith.constant 1 : index
    %c0_10 = arith.constant 0 : index
    %10 = vector.load %arg1[%c1, %c0_10] : memref<49x512xf32, #tpu.memory_space<vmem>>, vector<1x512xf32>
    %11 = vector.broadcast %10 : vector<1x512xf32> to vector<8x512xf32>
    %12 = arith.mulf %9, %11 : vector<8x512xf32>
    %c8 = arith.constant 8 : index
    %c0_11 = arith.constant 0 : index
    %13 = vector.load %arg10[%c8, %c0_11] : memref<392x512xf32, #tpu.memory_space<vmem>>, vector<8x512xf32>
    tpu.vector_store %arg10[%c8, %c0_11], %12 {strides = array<i32>} : memref<392x512xf32, #tpu.memory_space<vmem>>, vector<8x512xf32>,
    %c0_12 = arith.constant 0 : index
    %c79 = arith.constant 79 : index
    %14 = vector.load %arg9[%c0_12, %c79] : memref<8x768xf32, #tpu.memory_space<vmem>>, vector<8x512xf32>
    %c2 = arith.constant 2 : index
    %c0_13 = arith.constant 0 : index
    %15 = vector.load %arg1[%c2, %c0_13] : memref<49x512xf32, #tpu.memory_space<vmem>>, vector<1x512xf32>
    %16 = vector.broadcast %15 : vector<1x512xf32> to vector<8x512xf32>
    %17 = arith.mulf %14, %16 : vector<8x512xf32>
    %c16 = arith.constant 16 : index
    %c0_14 = arith.constant 0 : index
    %18 = vector.load %arg10[%c16, %c0_14] : memref<392x512xf32, #tpu.memory_space<vmem>>, vector<8x512xf32>
    tpu.vector_store %arg10[%c16, %c0_14], %17 {strides = array<i32>} : memref<392x512xf32, #tpu.memory_space<vmem>>, vector<8x512xf32>,
    %c0_15 = arith.constant 0 : index
    %c80 = arith.constant 80 : index
    %19 = vector.load %arg9[%c0_15, %c80] : memref<8x768xf32, #tpu.memory_space<vmem>>, vector<8x512xf32>
    %c3 = arith.constant 3 : index
    %c0_16 = arith.constant 0 : index
    %20 = vector.load %arg1[%c3, %c0_16] : memref<49x512xf32, #tpu.memory_space<vmem>>, vector<1x512xf32>
    %21 = vector.broadcast %20 : vector<1x512xf32> to vector<8x512xf32>
    %22 = arith.mulf %19, %21 : vector<8x512xf32>
    %c24 = arith.constant 24 : index
    %c0_17 = arith.constant 0 : index
    %23 = vector.load %arg10[%c24, %c0_17] : memref<392x512xf32, #tpu.memory_space<vmem>>, vector<8x512xf32>
    tpu.vector_store %arg10[%c24, %c0_17], %22 {strides = array<i32>} : memref<392x512xf32, #tpu.memory_space<vmem>>, vector<8x512xf32>,
    %c0_18 = arith.constant 0 : index
    %c81 = arith.constant 81 : index
    %24 = vector.load %arg9[%c0_18, %c81] : memref<8x768xf32, #tpu.memory_space<vmem>>, vector<8x512xf32>
    %c4 = arith.constant 4 : index
    %c0_19 = arith.constant 0 : index
    %25 = vector.load %arg1[%c4, %c0_19] : memref<49x512xf32, #tpu.memory_space<vmem>>, vector<1x512xf32>
    %26 = vector.broadcast %25 : vector<1x512xf32> to vector<8x512xf32>
    %27 = arith.mulf %24, %26 : vector<8x512xf32>
    %c32 = arith.constant 32 : index
    %c0_20 = arith.constant 0 : index
    %28 = vector.load %arg10[%c32, %c0_20] : memref<392x512xf32, #tpu.memory_space<vmem>>, vector<8x512xf32>
    tpu.vector_store %arg10[%c32, %c0_20], %27 {strides = array<i32>} : memref<392x512xf32, #tpu.memory_space<vmem>>, vector<8x512xf32>,
    %c0_21 = arith.constant 0 : index
    %c82 = arith.constant 82 : index
    %29 = vector.load %arg9[%c0_21, %c82] : memref<8x768xf32, #tpu.memory_space<vmem>>, vector<8x512xf32>
    %c5 = arith.constant 5 : index
    %c0_22 = arith.constant 0 : index
    %30 = vector.load %arg1[%c5, %c0_22] : memref<49x512xf32, #tpu.memory_space<vmem>>, vector<1x512xf32>
    %31 = vector.broadcast %30 : vector<1x512xf32> to vector<8x512xf32>
    %32 = arith.mulf %29, %31 : vector<8x512xf32>
    %c40 = arith.constant 40 : index
    %c0_23 = arith.constant 0 : index
    %33 = vector.load %arg10[%c40, %c0_23] : memref<392x512xf32, #tpu.memory_space<vmem>>, vector<8x512xf32>
    tpu.vector_store %arg10[%c40, %c0_23], %32 {strides = array<i32>} : memref<392x512xf32, #tpu.memory_space<vmem>>, vector<8x512xf32>,
    %c0_24 = arith.constant 0 : index
    %c83 = arith.constant 83 : index
    %34 = vector.load %arg9[%c0_24, %c83] : memref<8x768xf32, #tpu.memory_space<vmem>>, vector<8x512xf32>
    %c6 = arith.constant 6 : index
    %c0_25 = arith.constant 0 : index
    %35 = vector.load %arg1[%c6, %c0_25] : memref<49x512xf32, #tpu.memory_space<vmem>>, vector<1x512xf32>
    %36 = vector.broadcast %35 : vector<1x512xf32> to vector<8x512xf32>
    %37 = arith.mulf %34, %36 : vector<8x512xf32>
    %c48 = arith.constant 48 : index
    %c0_26 = arith.constant 0 : index
    %38 = vector.load %arg10[%c48, %c0_26] : memref<392x512xf32, #tpu.memory_space<vmem>>, vector<8x512xf32>
    tpu.vector_store %arg10[%c48, %c0_26], %37 {strides = array<i32>} : memref<392x512xf32, #tpu.memory_space<vmem>>, vector<8x512xf32>,
    %c0_27 = arith.constant 0 : index
    %c93 = arith.constant 93 : index
    %39 = vector.load %arg9[%c0_27, %c93] : memref<8x768xf32, #tpu.memory_space<vmem>>, vector<8x512xf32>
    %c7 = arith.constant 7 : index
    %c0_28 = arith.constant 0 : index
    %40 = vector.load %arg1[%c7, %c0_28] : memref<49x512xf32, #tpu.memory_space<vmem>>, vector<1x512xf32>
    %41 = vector.broadcast %40 : vector<1x512xf32> to vector<8x512xf32>
    %42 = arith.mulf %39, %41 : vector<8x512xf32>
    %c56 = arith.constant 56 : index
    %c0_29 = arith.constant 0 : index
    %43 = vector.load %arg10[%c56, %c0_29] : memref<392x512xf32, #tpu.memory_space<vmem>>, vector<8x512xf32>
    tpu.vector_store %arg10[%c56, %c0_29], %42 {strides = array<i32>} : memref<392x512xf32, #tpu.memory_space<vmem>>, vector<8x512xf32>,
    %c0_30 = arith.constant 0 : index
    %c94 = arith.constant 94 : index
    %44 = vector.load %arg9[%c0_30, %c94] : memref<8x768xf32, #tpu.memory_space<vmem>>, vector<8x512xf32>
    %c8_31 = arith.constant 8 : index
    %c0_32 = arith.constant 0 : index
    %45 = vector.load %arg1[%c8_31, %c0_32] : memref<49x512xf32, #tpu.memory_space<vmem>>, vector<1x512xf32>
    %46 = vector.broadcast %45 : vector<1x512xf32> to vector<8x512xf32>
    %47 = arith.mulf %44, %46 : vector<8x512xf32>
    %c64 = arith.constant 64 : index
    %c0_33 = arith.constant 0 : index
    %48 = vector.load %arg10[%c64, %c0_33] : memref<392x512xf32, #tpu.memory_space<vmem>>, vector<8x512xf32>
    tpu.vector_store %arg10[%c64, %c0_33], %47 {strides = array<i32>} : memref<392x512xf32, #tpu.memory_space<vmem>>, vector<8x512xf32>,
    %c0_34 = arith.constant 0 : index
    %c95 = arith.constant 95 : index
    %49 = vector.load %arg9[%c0_34, %c95] : memref<8x768xf32, #tpu.memory_space<vmem>>, vector<8x512xf32>
    %c9 = arith.constant 9 : index
    %c0_35 = arith.constant 0 : index
    %50 = vector.load %arg1[%c9, %c0_35] : memref<49x512xf32, #tpu.memory_space<vmem>>, vector<1x512xf32>
    %51 = vector.broadcast %50 : vector<1x512xf32> to vector<8x512xf32>
    %52 = arith.mulf %49, %51 : vector<8x512xf32>
    %c72 = arith.constant 72 : index
    %c0_36 = arith.constant 0 : index
    %53 = vector.load %arg10[%c72, %c0_36] : memref<392x512xf32, #tpu.memory_space<vmem>>, vector<8x512xf32>
    tpu.vector_store %arg10[%c72, %c0_36], %52 {strides = array<i32>} : memref<392x512xf32, #tpu.memory_space<vmem>>, vector<8x512xf32>,
    %c0_37 = arith.constant 0 : index
    %c96 = arith.constant 96 : index
    %54 = vector.load %arg9[%c0_37, %c96] : memref<8x768xf32, #tpu.memory_space<vmem>>, vector<8x512xf32>
    %c10 = arith.constant 10 : index
    %c0_38 = arith.constant 0 : index
    %55 = vector.load %arg1[%c10, %c0_38] : memref<49x512xf32, #tpu.memory_space<vmem>>, vector<1x512xf32>
    %56 = vector.broadcast %55 : vector<1x512xf32> to vector<8x512xf32>
    %57 = arith.mulf %54, %56 : vector<8x512xf32>
    %c80_39 = arith.constant 80 : index
    %c0_40 = arith.constant 0 : index
    %58 = vector.load %arg10[%c80_39, %c0_40] : memref<392x512xf32, #tpu.memory_space<vmem>>, vector<8x512xf32>
    tpu.vector_store %arg10[%c80_39, %c0_40], %57 {strides = array<i32>} : memref<392x512xf32, #tpu.memory_space<vmem>>, vector<8x512xf32>,
    %c0_41 = arith.constant 0 : index
    %c97 = arith.constant 97 : index
    %59 = vector.load %arg9[%c0_41, %c97] : memref<8x768xf32, #tpu.memory_space<vmem>>, vector<8x512xf32>
    %c11 = arith.constant 11 : index
    %c0_42 = arith.constant 0 : index
    %60 = vector.load %arg1[%c11, %c0_42] : memref<49x512xf32, #tpu.memory_space<vmem>>, vector<1x512xf32>
    %61 = vector.broadcast %60 : vector<1x512xf32> to vector<8x512xf32>
    %62 = arith.mulf %59, %61 : vector<8x512xf32>
    %c88 = arith.constant 88 : index
    %c0_43 = arith.constant 0 : index
    %63 = vector.load %arg10[%c88, %c0_43] : memref<392x512xf32, #tpu.memory_space<vmem>>, vector<8x512xf32>
    tpu.vector_store %arg10[%c88, %c0_43], %62 {strides = array<i32>} : memref<392x512xf32, #tpu.memory_space<vmem>>, vector<8x512xf32>,
    %c0_44 = arith.constant 0 : index
    %c98 = arith.constant 98 : index
    %64 = vector.load %arg9[%c0_44, %c98] : memref<8x768xf32, #tpu.memory_space<vmem>>, vector<8x512xf32>
    %c12 = arith.constant 12 : index
    %c0_45 = arith.constant 0 : index
    %65 = vector.load %arg1[%c12, %c0_45] : memref<49x512xf32, #tpu.memory_space<vmem>>, vector<1x512xf32>
    %66 = vector.broadcast %65 : vector<1x512xf32> to vector<8x512xf32>
    %67 = arith.mulf %64, %66 : vector<8x512xf32>
    %c96_46 = arith.constant 96 : index
    %c0_47 = arith.constant 0 : index
    %68 = vector.load %arg10[%c96_46, %c0_47] : memref<392x512xf32, #tpu.memory_space<vmem>>, vector<8x512xf32>
    tpu.vector_store %arg10[%c96_46, %c0_47], %67 {strides = array<i32>} : memref<392x512xf32, #tpu.memory_space<vmem>>, vector<8x512xf32>,
    %c0_48 = arith.constant 0 : index
    %c99 = arith.constant 99 : index
    %69 = vector.load %arg9[%c0_48, %c99] : memref<8x768xf32, #tpu.memory_space<vmem>>, vector<8x512xf32>
    %c13 = arith.constant 13 : index
    %c0_49 = arith.constant 0 : index
    %70 = vector.load %arg1[%c13, %c0_49] : memref<49x512xf32, #tpu.memory_space<vmem>>, vector<1x512xf32>
    %71 = vector.broadcast %70 : vector<1x512xf32> to vector<8x512xf32>
    %72 = arith.mulf %69, %71 : vector<8x512xf32>
    %c104 = arith.constant 104 : index
    %c0_50 = arith.constant 0 : index
    %73 = vector.load %arg10[%c104, %c0_50] : memref<392x512xf32, #tpu.memory_space<vmem>>, vector<8x512xf32>
    tpu.vector_store %arg10[%c104, %c0_50], %72 {strides = array<i32>} : memref<392x512xf32, #tpu.memory_space<vmem>>, vector<8x512xf32>,
    %c0_51 = arith.constant 0 : index
    %c109 = arith.constant 109 : index
    %74 = vector.load %arg9[%c0_51, %c109] : memref<8x768xf32, #tpu.memory_space<vmem>>, vector<8x512xf32>
    %c14 = arith.constant 14 : index
    %c0_52 = arith.constant 0 : index
    %75 = vector.load %arg1[%c14, %c0_52] : memref<49x512xf32, #tpu.memory_space<vmem>>, vector<1x512xf32>
    %76 = vector.broadcast %75 : vector<1x512xf32> to vector<8x512xf32>
    %77 = arith.mulf %74, %76 : vector<8x512xf32>
    %c112 = arith.constant 112 : index
    %c0_53 = arith.constant 0 : index
    %78 = vector.load %arg10[%c112, %c0_53] : memref<392x512xf32, #tpu.memory_space<vmem>>, vector<8x512xf32>
    tpu.vector_store %arg10[%c112, %c0_53], %77 {strides = array<i32>} : memref<392x512xf32, #tpu.memory_space<vmem>>, vector<8x512xf32>,
    %c0_54 = arith.constant 0 : index
    %c110 = arith.constant 110 : index
    %79 = vector.load %arg9[%c0_54, %c110] : memref<8x768xf32, #tpu.memory_space<vmem>>, vector<8x512xf32>
    %c15 = arith.constant 15 : index
    %c0_55 = arith.constant 0 : index
    %80 = vector.load %arg1[%c15, %c0_55] : memref<49x512xf32, #tpu.memory_space<vmem>>, vector<1x512xf32>
    %81 = vector.broadcast %80 : vector<1x512xf32> to vector<8x512xf32>
    %82 = arith.mulf %79, %81 : vector<8x512xf32>
    %c120 = arith.constant 120 : index
    %c0_56 = arith.constant 0 : index
    %83 = vector.load %arg10[%c120, %c0_56] : memref<392x512xf32, #tpu.memory_space<vmem>>, vector<8x512xf32>
    tpu.vector_store %arg10[%c120, %c0_56], %82 {strides = array<i32>} : memref<392x512xf32, #tpu.memory_space<vmem>>, vector<8x512xf32>,
    %c0_57 = arith.constant 0 : index
    %c111 = arith.constant 111 : index
    %84 = vector.load %arg9[%c0_57, %c111] : memref<8x768xf32, #tpu.memory_space<vmem>>, vector<8x512xf32>
    %c16_58 = arith.constant 16 : index
    %c0_59 = arith.constant 0 : index
    %85 = vector.load %arg1[%c16_58, %c0_59] : memref<49x512xf32, #tpu.memory_space<vmem>>, vector<1x512xf32>
    %86 = vector.broadcast %85 : vector<1x512xf32> to vector<8x512xf32>
    %87 = arith.mulf %84, %86 : vector<8x512xf32>
    %c128_60 = arith.constant 128 : index
    %c0_61 = arith.constant 0 : index
    %88 = vector.load %arg10[%c128_60, %c0_61] : memref<392x512xf32, #tpu.memory_space<vmem>>, vector<8x512xf32>
    tpu.vector_store %arg10[%c128_60, %c0_61], %87 {strides = array<i32>} : memref<392x512xf32, #tpu.memory_space<vmem>>, vector<8x512xf32>,
    %c0_62 = arith.constant 0 : index
    %c112_63 = arith.constant 112 : index
    %89 = vector.load %arg9[%c0_62, %c112_63] : memref<8x768xf32, #tpu.memory_space<vmem>>, vector<8x512xf32>
    %c17 = arith.constant 17 : index
    %c0_64 = arith.constant 0 : index
    %90 = vector.load %arg1[%c17, %c0_64] : memref<49x512xf32, #tpu.memory_space<vmem>>, vector<1x512xf32>
    %91 = vector.broadcast %90 : vector<1x512xf32> to vector<8x512xf32>
    %92 = arith.mulf %89, %91 : vector<8x512xf32>
    %c136 = arith.constant 136 : index
    %c0_65 = arith.constant 0 : index
    %93 = vector.load %arg10[%c136, %c0_65] : memref<392x512xf32, #tpu.memory_space<vmem>>, vector<8x512xf32>
    tpu.vector_store %arg10[%c136, %c0_65], %92 {strides = array<i32>} : memref<392x512xf32, #tpu.memory_space<vmem>>, vector<8x512xf32>,
    %c0_66 = arith.constant 0 : index
    %c113 = arith.constant 113 : index
    %94 = vector.load %arg9[%c0_66, %c113] : memref<8x768xf32, #tpu.memory_space<vmem>>, vector<8x512xf32>
    %c18 = arith.constant 18 : index
    %c0_67 = arith.constant 0 : index
    %95 = vector.load %arg1[%c18, %c0_67] : memref<49x512xf32, #tpu.memory_space<vmem>>, vector<1x512xf32>
    %96 = vector.broadcast %95 : vector<1x512xf32> to vector<8x512xf32>
    %97 = arith.mulf %94, %96 : vector<8x512xf32>
    %c144 = arith.constant 144 : index
    %c0_68 = arith.constant 0 : index
    %98 = vector.load %arg10[%c144, %c0_68] : memref<392x512xf32, #tpu.memory_space<vmem>>, vector<8x512xf32>
    tpu.vector_store %arg10[%c144, %c0_68], %97 {strides = array<i32>} : memref<392x512xf32, #tpu.memory_space<vmem>>, vector<8x512xf32>,
    %c0_69 = arith.constant 0 : index
    %c114 = arith.constant 114 : index
    %99 = vector.load %arg9[%c0_69, %c114] : memref<8x768xf32, #tpu.memory_space<vmem>>, vector<8x512xf32>
    %c19 = arith.constant 19 : index
    %c0_70 = arith.constant 0 : index
    %100 = vector.load %arg1[%c19, %c0_70] : memref<49x512xf32, #tpu.memory_space<vmem>>, vector<1x512xf32>
    %101 = vector.broadcast %100 : vector<1x512xf32> to vector<8x512xf32>
    %102 = arith.mulf %99, %101 : vector<8x512xf32>
    %c152 = arith.constant 152 : index
    %c0_71 = arith.constant 0 : index
    %103 = vector.load %arg10[%c152, %c0_71] : memref<392x512xf32, #tpu.memory_space<vmem>>, vector<8x512xf32>
    tpu.vector_store %arg10[%c152, %c0_71], %102 {strides = array<i32>} : memref<392x512xf32, #tpu.memory_space<vmem>>, vector<8x512xf32>,
    %c0_72 = arith.constant 0 : index
    %c115 = arith.constant 115 : index
    %104 = vector.load %arg9[%c0_72, %c115] : memref<8x768xf32, #tpu.memory_space<vmem>>, vector<8x512xf32>
    %c20 = arith.constant 20 : index
    %c0_73 = arith.constant 0 : index
    %105 = vector.load %arg1[%c20, %c0_73] : memref<49x512xf32, #tpu.memory_space<vmem>>, vector<1x512xf32>
    %106 = vector.broadcast %105 : vector<1x512xf32> to vector<8x512xf32>
    %107 = arith.mulf %104, %106 : vector<8x512xf32>
    %c160 = arith.constant 160 : index
    %c0_74 = arith.constant 0 : index
    %108 = vector.load %arg10[%c160, %c0_74] : memref<392x512xf32, #tpu.memory_space<vmem>>, vector<8x512xf32>
    tpu.vector_store %arg10[%c160, %c0_74], %107 {strides = array<i32>} : memref<392x512xf32, #tpu.memory_space<vmem>>, vector<8x512xf32>,
    %c0_75 = arith.constant 0 : index
    %c125 = arith.constant 125 : index
    %109 = vector.load %arg9[%c0_75, %c125] : memref<8x768xf32, #tpu.memory_space<vmem>>, vector<8x512xf32>
    %c21 = arith.constant 21 : index
    %c0_76 = arith.constant 0 : index
    %110 = vector.load %arg1[%c21, %c0_76] : memref<49x512xf32, #tpu.memory_space<vmem>>, vector<1x512xf32>
    %111 = vector.broadcast %110 : vector<1x512xf32> to vector<8x512xf32>
    %112 = arith.mulf %109, %111 : vector<8x512xf32>
    %c168 = arith.constant 168 : index
    %c0_77 = arith.constant 0 : index
    %113 = vector.load %arg10[%c168, %c0_77] : memref<392x512xf32, #tpu.memory_space<vmem>>, vector<8x512xf32>
    tpu.vector_store %arg10[%c168, %c0_77], %112 {strides = array<i32>} : memref<392x512xf32, #tpu.memory_space<vmem>>, vector<8x512xf32>,
    %c0_78 = arith.constant 0 : index
    %c126 = arith.constant 126 : index
    %114 = vector.load %arg9[%c0_78, %c126] : memref<8x768xf32, #tpu.memory_space<vmem>>, vector<8x512xf32>
    %c22 = arith.constant 22 : index
    %c0_79 = arith.constant 0 : index
    %115 = vector.load %arg1[%c22, %c0_79] : memref<49x512xf32, #tpu.memory_space<vmem>>, vector<1x512xf32>
    %116 = vector.broadcast %115 : vector<1x512xf32> to vector<8x512xf32>
    %117 = arith.mulf %114, %116 : vector<8x512xf32>
    %c176 = arith.constant 176 : index
    %c0_80 = arith.constant 0 : index
    %118 = vector.load %arg10[%c176, %c0_80] : memref<392x512xf32, #tpu.memory_space<vmem>>, vector<8x512xf32>
    tpu.vector_store %arg10[%c176, %c0_80], %117 {strides = array<i32>} : memref<392x512xf32, #tpu.memory_space<vmem>>, vector<8x512xf32>,
    %c0_81 = arith.constant 0 : index
    %c127 = arith.constant 127 : index
    %119 = vector.load %arg9[%c0_81, %c127] : memref<8x768xf32, #tpu.memory_space<vmem>>, vector<8x512xf32>
    %c23 = arith.constant 23 : index
    %c0_82 = arith.constant 0 : index
    %120 = vector.load %arg1[%c23, %c0_82] : memref<49x512xf32, #tpu.memory_space<vmem>>, vector<1x512xf32>
    %121 = vector.broadcast %120 : vector<1x512xf32> to vector<8x512xf32>
    %122 = arith.mulf %119, %121 : vector<8x512xf32>
    %c184 = arith.constant 184 : index
    %c0_83 = arith.constant 0 : index
    %123 = vector.load %arg10[%c184, %c0_83] : memref<392x512xf32, #tpu.memory_space<vmem>>, vector<8x512xf32>
    tpu.vector_store %arg10[%c184, %c0_83], %122 {strides = array<i32>} : memref<392x512xf32, #tpu.memory_space<vmem>>, vector<8x512xf32>,
    %c0_84 = arith.constant 0 : index
    %c128_85 = arith.constant 128 : index
    %124 = vector.load %arg9[%c0_84, %c128_85] : memref<8x768xf32, #tpu.memory_space<vmem>>, vector<8x512xf32>
    %c24_86 = arith.constant 24 : index
    %c0_87 = arith.constant 0 : index
    %125 = vector.load %arg1[%c24_86, %c0_87] : memref<49x512xf32, #tpu.memory_space<vmem>>, vector<1x512xf32>
    %126 = vector.broadcast %125 : vector<1x512xf32> to vector<8x512xf32>
    %127 = arith.mulf %124, %126 : vector<8x512xf32>
    %c192 = arith.constant 192 : index
    %c0_88 = arith.constant 0 : index
    %128 = vector.load %arg10[%c192, %c0_88] : memref<392x512xf32, #tpu.memory_space<vmem>>, vector<8x512xf32>
    tpu.vector_store %arg10[%c192, %c0_88], %127 {strides = array<i32>} : memref<392x512xf32, #tpu.memory_space<vmem>>, vector<8x512xf32>,
    %c0_89 = arith.constant 0 : index
    %c129 = arith.constant 129 : index
    %129 = vector.load %arg9[%c0_89, %c129] : memref<8x768xf32, #tpu.memory_space<vmem>>, vector<8x512xf32>
    %c25 = arith.constant 25 : index
    %c0_90 = arith.constant 0 : index
    %130 = vector.load %arg1[%c25, %c0_90] : memref<49x512xf32, #tpu.memory_space<vmem>>, vector<1x512xf32>
    %131 = vector.broadcast %130 : vector<1x512xf32> to vector<8x512xf32>
    %132 = arith.mulf %129, %131 : vector<8x512xf32>
    %c200 = arith.constant 200 : index
    %c0_91 = arith.constant 0 : index
    %133 = vector.load %arg10[%c200, %c0_91] : memref<392x512xf32, #tpu.memory_space<vmem>>, vector<8x512xf32>
    tpu.vector_store %arg10[%c200, %c0_91], %132 {strides = array<i32>} : memref<392x512xf32, #tpu.memory_space<vmem>>, vector<8x512xf32>,
    %c0_92 = arith.constant 0 : index
    %c130 = arith.constant 130 : index
    %134 = vector.load %arg9[%c0_92, %c130] : memref<8x768xf32, #tpu.memory_space<vmem>>, vector<8x512xf32>
    %c26 = arith.constant 26 : index
    %c0_93 = arith.constant 0 : index
    %135 = vector.load %arg1[%c26, %c0_93] : memref<49x512xf32, #tpu.memory_space<vmem>>, vector<1x512xf32>
    %136 = vector.broadcast %135 : vector<1x512xf32> to vector<8x512xf32>
    %137 = arith.mulf %134, %136 : vector<8x512xf32>
    %c208 = arith.constant 208 : index
    %c0_94 = arith.constant 0 : index
    %138 = vector.load %arg10[%c208, %c0_94] : memref<392x512xf32, #tpu.memory_space<vmem>>, vector<8x512xf32>
    tpu.vector_store %arg10[%c208, %c0_94], %137 {strides = array<i32>} : memref<392x512xf32, #tpu.memory_space<vmem>>, vector<8x512xf32>,
    %c0_95 = arith.constant 0 : index
    %c131 = arith.constant 131 : index
    %139 = vector.load %arg9[%c0_95, %c131] : memref<8x768xf32, #tpu.memory_space<vmem>>, vector<8x512xf32>
    %c27 = arith.constant 27 : index
    %c0_96 = arith.constant 0 : index
    %140 = vector.load %arg1[%c27, %c0_96] : memref<49x512xf32, #tpu.memory_space<vmem>>, vector<1x512xf32>
    %141 = vector.broadcast %140 : vector<1x512xf32> to vector<8x512xf32>
    %142 = arith.mulf %139, %141 : vector<8x512xf32>
    %c216 = arith.constant 216 : index
    %c0_97 = arith.constant 0 : index
    %143 = vector.load %arg10[%c216, %c0_97] : memref<392x512xf32, #tpu.memory_space<vmem>>, vector<8x512xf32>
    tpu.vector_store %arg10[%c216, %c0_97], %142 {strides = array<i32>} : memref<392x512xf32, #tpu.memory_space<vmem>>, vector<8x512xf32>,
    %c0_98 = arith.constant 0 : index
    %c141 = arith.constant 141 : index
    %144 = vector.load %arg9[%c0_98, %c141] : memref<8x768xf32, #tpu.memory_space<vmem>>, vector<8x512xf32>
    %c28 = arith.constant 28 : index
    %c0_99 = arith.constant 0 : index
    %145 = vector.load %arg1[%c28, %c0_99] : memref<49x512xf32, #tpu.memory_space<vmem>>, vector<1x512xf32>
    %146 = vector.broadcast %145 : vector<1x512xf32> to vector<8x512xf32>
    %147 = arith.mulf %144, %146 : vector<8x512xf32>
    %c224 = arith.constant 224 : index
    %c0_100 = arith.constant 0 : index
    %148 = vector.load %arg10[%c224, %c0_100] : memref<392x512xf32, #tpu.memory_space<vmem>>, vector<8x512xf32>
    tpu.vector_store %arg10[%c224, %c0_100], %147 {strides = array<i32>} : memref<392x512xf32, #tpu.memory_space<vmem>>, vector<8x512xf32>,
    %c0_101 = arith.constant 0 : index
    %c142 = arith.constant 142 : index
    %149 = vector.load %arg9[%c0_101, %c142] : memref<8x768xf32, #tpu.memory_space<vmem>>, vector<8x512xf32>
    %c29 = arith.constant 29 : index
    %c0_102 = arith.constant 0 : index
    %150 = vector.load %arg1[%c29, %c0_102] : memref<49x512xf32, #tpu.memory_space<vmem>>, vector<1x512xf32>
    %151 = vector.broadcast %150 : vector<1x512xf32> to vector<8x512xf32>
    %152 = arith.mulf %149, %151 : vector<8x512xf32>
    %c232 = arith.constant 232 : index
    %c0_103 = arith.constant 0 : index
    %153 = vector.load %arg10[%c232, %c0_103] : memref<392x512xf32, #tpu.memory_space<vmem>>, vector<8x512xf32>
    tpu.vector_store %arg10[%c232, %c0_103], %152 {strides = array<i32>} : memref<392x512xf32, #tpu.memory_space<vmem>>, vector<8x512xf32>,
    %c0_104 = arith.constant 0 : index
    %c143 = arith.constant 143 : index
    %154 = vector.load %arg9[%c0_104, %c143] : memref<8x768xf32, #tpu.memory_space<vmem>>, vector<8x512xf32>
    %c30 = arith.constant 30 : index
    %c0_105 = arith.constant 0 : index
    %155 = vector.load %arg1[%c30, %c0_105] : memref<49x512xf32, #tpu.memory_space<vmem>>, vector<1x512xf32>
    %156 = vector.broadcast %155 : vector<1x512xf32> to vector<8x512xf32>
    %157 = arith.mulf %154, %156 : vector<8x512xf32>
    %c240 = arith.constant 240 : index
    %c0_106 = arith.constant 0 : index
    %158 = vector.load %arg10[%c240, %c0_106] : memref<392x512xf32, #tpu.memory_space<vmem>>, vector<8x512xf32>
    tpu.vector_store %arg10[%c240, %c0_106], %157 {strides = array<i32>} : memref<392x512xf32, #tpu.memory_space<vmem>>, vector<8x512xf32>,
    %c0_107 = arith.constant 0 : index
    %c144_108 = arith.constant 144 : index
    %159 = vector.load %arg9[%c0_107, %c144_108] : memref<8x768xf32, #tpu.memory_space<vmem>>, vector<8x512xf32>
    %c31 = arith.constant 31 : index
    %c0_109 = arith.constant 0 : index
    %160 = vector.load %arg1[%c31, %c0_109] : memref<49x512xf32, #tpu.memory_space<vmem>>, vector<1x512xf32>
    %161 = vector.broadcast %160 : vector<1x512xf32> to vector<8x512xf32>
    %162 = arith.mulf %159, %161 : vector<8x512xf32>
    %c248 = arith.constant 248 : index
    %c0_110 = arith.constant 0 : index
    %163 = vector.load %arg10[%c248, %c0_110] : memref<392x512xf32, #tpu.memory_space<vmem>>, vector<8x512xf32>
    tpu.vector_store %arg10[%c248, %c0_110], %162 {strides = array<i32>} : memref<392x512xf32, #tpu.memory_space<vmem>>, vector<8x512xf32>,
    %c0_111 = arith.constant 0 : index
    %c145 = arith.constant 145 : index
    %164 = vector.load %arg9[%c0_111, %c145] : memref<8x768xf32, #tpu.memory_space<vmem>>, vector<8x512xf32>
    %c32_112 = arith.constant 32 : index
    %c0_113 = arith.constant 0 : index
    %165 = vector.load %arg1[%c32_112, %c0_113] : memref<49x512xf32, #tpu.memory_space<vmem>>, vector<1x512xf32>
    %166 = vector.broadcast %165 : vector<1x512xf32> to vector<8x512xf32>
    %167 = arith.mulf %164, %166 : vector<8x512xf32>
    %c256 = arith.constant 256 : index
    %c0_114 = arith.constant 0 : index
    %168 = vector.load %arg10[%c256, %c0_114] : memref<392x512xf32, #tpu.memory_space<vmem>>, vector<8x512xf32>
    tpu.vector_store %arg10[%c256, %c0_114], %167 {strides = array<i32>} : memref<392x512xf32, #tpu.memory_space<vmem>>, vector<8x512xf32>,
    %c0_115 = arith.constant 0 : index
    %c146 = arith.constant 146 : index
    %169 = vector.load %arg9[%c0_115, %c146] : memref<8x768xf32, #tpu.memory_space<vmem>>, vector<8x512xf32>
    %c33 = arith.constant 33 : index
    %c0_116 = arith.constant 0 : index
    %170 = vector.load %arg1[%c33, %c0_116] : memref<49x512xf32, #tpu.memory_space<vmem>>, vector<1x512xf32>
    %171 = vector.broadcast %170 : vector<1x512xf32> to vector<8x512xf32>
    %172 = arith.mulf %169, %171 : vector<8x512xf32>
    %c264 = arith.constant 264 : index
    %c0_117 = arith.constant 0 : index
    %173 = vector.load %arg10[%c264, %c0_117] : memref<392x512xf32, #tpu.memory_space<vmem>>, vector<8x512xf32>
    tpu.vector_store %arg10[%c264, %c0_117], %172 {strides = array<i32>} : memref<392x512xf32, #tpu.memory_space<vmem>>, vector<8x512xf32>,
    %c0_118 = arith.constant 0 : index
    %c147 = arith.constant 147 : index
    %174 = vector.load %arg9[%c0_118, %c147] : memref<8x768xf32, #tpu.memory_space<vmem>>, vector<8x512xf32>
    %c34 = arith.constant 34 : index
    %c0_119 = arith.constant 0 : index
    %175 = vector.load %arg1[%c34, %c0_119] : memref<49x512xf32, #tpu.memory_space<vmem>>, vector<1x512xf32>
    %176 = vector.broadcast %175 : vector<1x512xf32> to vector<8x512xf32>
    %177 = arith.mulf %174, %176 : vector<8x512xf32>
    %c272 = arith.constant 272 : index
    %c0_120 = arith.constant 0 : index
    %178 = vector.load %arg10[%c272, %c0_120] : memref<392x512xf32, #tpu.memory_space<vmem>>, vector<8x512xf32>
    tpu.vector_store %arg10[%c272, %c0_120], %177 {strides = array<i32>} : memref<392x512xf32, #tpu.memory_space<vmem>>, vector<8x512xf32>,
    %c0_121 = arith.constant 0 : index
    %c157 = arith.constant 157 : index
    %179 = vector.load %arg9[%c0_121, %c157] : memref<8x768xf32, #tpu.memory_space<vmem>>, vector<8x512xf32>
    %c35 = arith.constant 35 : index
    %c0_122 = arith.constant 0 : index
    %180 = vector.load %arg1[%c35, %c0_122] : memref<49x512xf32, #tpu.memory_space<vmem>>, vector<1x512xf32>
    %181 = vector.broadcast %180 : vector<1x512xf32> to vector<8x512xf32>
    %182 = arith.mulf %179, %181 : vector<8x512xf32>
    %c280 = arith.constant 280 : index
    %c0_123 = arith.constant 0 : index
    %183 = vector.load %arg10[%c280, %c0_123] : memref<392x512xf32, #tpu.memory_space<vmem>>, vector<8x512xf32>
    tpu.vector_store %arg10[%c280, %c0_123], %182 {strides = array<i32>} : memref<392x512xf32, #tpu.memory_space<vmem>>, vector<8x512xf32>,
    %c0_124 = arith.constant 0 : index
    %c158 = arith.constant 158 : index
    %184 = vector.load %arg9[%c0_124, %c158] : memref<8x768xf32, #tpu.memory_space<vmem>>, vector<8x512xf32>
    %c36 = arith.constant 36 : index
    %c0_125 = arith.constant 0 : index
    %185 = vector.load %arg1[%c36, %c0_125] : memref<49x512xf32, #tpu.memory_space<vmem>>, vector<1x512xf32>
    %186 = vector.broadcast %185 : vector<1x512xf32> to vector<8x512xf32>
    %187 = arith.mulf %184, %186 : vector<8x512xf32>
    %c288 = arith.constant 288 : index
    %c0_126 = arith.constant 0 : index
    %188 = vector.load %arg10[%c288, %c0_126] : memref<392x512xf32, #tpu.memory_space<vmem>>, vector<8x512xf32>
    tpu.vector_store %arg10[%c288, %c0_126], %187 {strides = array<i32>} : memref<392x512xf32, #tpu.memory_space<vmem>>, vector<8x512xf32>,
    %c0_127 = arith.constant 0 : index
    %c159 = arith.constant 159 : index
    %189 = vector.load %arg9[%c0_127, %c159] : memref<8x768xf32, #tpu.memory_space<vmem>>, vector<8x512xf32>
    %c37 = arith.constant 37 : index
    %c0_128 = arith.constant 0 : index
    %190 = vector.load %arg1[%c37, %c0_128] : memref<49x512xf32, #tpu.memory_space<vmem>>, vector<1x512xf32>
    %191 = vector.broadcast %190 : vector<1x512xf32> to vector<8x512xf32>
    %192 = arith.mulf %189, %191 : vector<8x512xf32>
    %c296 = arith.constant 296 : index
    %c0_129 = arith.constant 0 : index
    %193 = vector.load %arg10[%c296, %c0_129] : memref<392x512xf32, #tpu.memory_space<vmem>>, vector<8x512xf32>
    tpu.vector_store %arg10[%c296, %c0_129], %192 {strides = array<i32>} : memref<392x512xf32, #tpu.memory_space<vmem>>, vector<8x512xf32>,
    %c0_130 = arith.constant 0 : index
    %c160_131 = arith.constant 160 : index
    %194 = vector.load %arg9[%c0_130, %c160_131] : memref<8x768xf32, #tpu.memory_space<vmem>>, vector<8x512xf32>
    %c38 = arith.constant 38 : index
    %c0_132 = arith.constant 0 : index
    %195 = vector.load %arg1[%c38, %c0_132] : memref<49x512xf32, #tpu.memory_space<vmem>>, vector<1x512xf32>
    %196 = vector.broadcast %195 : vector<1x512xf32> to vector<8x512xf32>
    %197 = arith.mulf %194, %196 : vector<8x512xf32>
    %c304 = arith.constant 304 : index
    %c0_133 = arith.constant 0 : index
    %198 = vector.load %arg10[%c304, %c0_133] : memref<392x512xf32, #tpu.memory_space<vmem>>, vector<8x512xf32>
    tpu.vector_store %arg10[%c304, %c0_133], %197 {strides = array<i32>} : memref<392x512xf32, #tpu.memory_space<vmem>>, vector<8x512xf32>,
    %c0_134 = arith.constant 0 : index
    %c161 = arith.constant 161 : index
    %199 = vector.load %arg9[%c0_134, %c161] : memref<8x768xf32, #tpu.memory_space<vmem>>, vector<8x512xf32>
    %c39 = arith.constant 39 : index
    %c0_135 = arith.constant 0 : index
    %200 = vector.load %arg1[%c39, %c0_135] : memref<49x512xf32, #tpu.memory_space<vmem>>, vector<1x512xf32>
    %201 = vector.broadcast %200 : vector<1x512xf32> to vector<8x512xf32>
    %202 = arith.mulf %199, %201 : vector<8x512xf32>
    %c312 = arith.constant 312 : index
    %c0_136 = arith.constant 0 : index
    %203 = vector.load %arg10[%c312, %c0_136] : memref<392x512xf32, #tpu.memory_space<vmem>>, vector<8x512xf32>
    tpu.vector_store %arg10[%c312, %c0_136], %202 {strides = array<i32>} : memref<392x512xf32, #tpu.memory_space<vmem>>, vector<8x512xf32>,
    %c0_137 = arith.constant 0 : index
    %c162 = arith.constant 162 : index
    %204 = vector.load %arg9[%c0_137, %c162] : memref<8x768xf32, #tpu.memory_space<vmem>>, vector<8x512xf32>
    %c40_138 = arith.constant 40 : index
    %c0_139 = arith.constant 0 : index
    %205 = vector.load %arg1[%c40_138, %c0_139] : memref<49x512xf32, #tpu.memory_space<vmem>>, vector<1x512xf32>
    %206 = vector.broadcast %205 : vector<1x512xf32> to vector<8x512xf32>
    %207 = arith.mulf %204, %206 : vector<8x512xf32>
    %c320 = arith.constant 320 : index
    %c0_140 = arith.constant 0 : index
    %208 = vector.load %arg10[%c320, %c0_140] : memref<392x512xf32, #tpu.memory_space<vmem>>, vector<8x512xf32>
    tpu.vector_store %arg10[%c320, %c0_140], %207 {strides = array<i32>} : memref<392x512xf32, #tpu.memory_space<vmem>>, vector<8x512xf32>,
    %c0_141 = arith.constant 0 : index
    %c163 = arith.constant 163 : index
    %209 = vector.load %arg9[%c0_141, %c163] : memref<8x768xf32, #tpu.memory_space<vmem>>, vector<8x512xf32>
    %c41 = arith.constant 41 : index
    %c0_142 = arith.constant 0 : index
    %210 = vector.load %arg1[%c41, %c0_142] : memref<49x512xf32, #tpu.memory_space<vmem>>, vector<1x512xf32>
    %211 = vector.broadcast %210 : vector<1x512xf32> to vector<8x512xf32>
    %212 = arith.mulf %209, %211 : vector<8x512xf32>
    %c328 = arith.constant 328 : index
    %c0_143 = arith.constant 0 : index
    %213 = vector.load %arg10[%c328, %c0_143] : memref<392x512xf32, #tpu.memory_space<vmem>>, vector<8x512xf32>
    tpu.vector_store %arg10[%c328, %c0_143], %212 {strides = array<i32>} : memref<392x512xf32, #tpu.memory_space<vmem>>, vector<8x512xf32>,
    %c0_144 = arith.constant 0 : index
    %c173 = arith.constant 173 : index
    %214 = vector.load %arg9[%c0_144, %c173] : memref<8x768xf32, #tpu.memory_space<vmem>>, vector<8x512xf32>
    %c42 = arith.constant 42 : index
    %c0_145 = arith.constant 0 : index
    %215 = vector.load %arg1[%c42, %c0_145] : memref<49x512xf32, #tpu.memory_space<vmem>>, vector<1x512xf32>
    %216 = vector.broadcast %215 : vector<1x512xf32> to vector<8x512xf32>
    %217 = arith.mulf %214, %216 : vector<8x512xf32>
    %c336 = arith.constant 336 : index
    %c0_146 = arith.constant 0 : index
    %218 = vector.load %arg10[%c336, %c0_146] : memref<392x512xf32, #tpu.memory_space<vmem>>, vector<8x512xf32>
    tpu.vector_store %arg10[%c336, %c0_146], %217 {strides = array<i32>} : memref<392x512xf32, #tpu.memory_space<vmem>>, vector<8x512xf32>,
    %c0_147 = arith.constant 0 : index
    %c174 = arith.constant 174 : index
    %219 = vector.load %arg9[%c0_147, %c174] : memref<8x768xf32, #tpu.memory_space<vmem>>, vector<8x512xf32>
    %c43 = arith.constant 43 : index
    %c0_148 = arith.constant 0 : index
    %220 = vector.load %arg1[%c43, %c0_148] : memref<49x512xf32, #tpu.memory_space<vmem>>, vector<1x512xf32>
    %221 = vector.broadcast %220 : vector<1x512xf32> to vector<8x512xf32>
    %222 = arith.mulf %219, %221 : vector<8x512xf32>
    %c344 = arith.constant 344 : index
    %c0_149 = arith.constant 0 : index
    %223 = vector.load %arg10[%c344, %c0_149] : memref<392x512xf32, #tpu.memory_space<vmem>>, vector<8x512xf32>
    tpu.vector_store %arg10[%c344, %c0_149], %222 {strides = array<i32>} : memref<392x512xf32, #tpu.memory_space<vmem>>, vector<8x512xf32>,
    %c0_150 = arith.constant 0 : index
    %c175 = arith.constant 175 : index
    %224 = vector.load %arg9[%c0_150, %c175] : memref<8x768xf32, #tpu.memory_space<vmem>>, vector<8x512xf32>
    %c44 = arith.constant 44 : index
    %c0_151 = arith.constant 0 : index
    %225 = vector.load %arg1[%c44, %c0_151] : memref<49x512xf32, #tpu.memory_space<vmem>>, vector<1x512xf32>
    %226 = vector.broadcast %225 : vector<1x512xf32> to vector<8x512xf32>
    %227 = arith.mulf %224, %226 : vector<8x512xf32>
    %c352 = arith.constant 352 : index
    %c0_152 = arith.constant 0 : index
    %228 = vector.load %arg10[%c352, %c0_152] : memref<392x512xf32, #tpu.memory_space<vmem>>, vector<8x512xf32>
    tpu.vector_store %arg10[%c352, %c0_152], %227 {strides = array<i32>} : memref<392x512xf32, #tpu.memory_space<vmem>>, vector<8x512xf32>,
    %c0_153 = arith.constant 0 : index
    %c176_154 = arith.constant 176 : index
    %229 = vector.load %arg9[%c0_153, %c176_154] : memref<8x768xf32, #tpu.memory_space<vmem>>, vector<8x512xf32>
    %c45 = arith.constant 45 : index
    %c0_155 = arith.constant 0 : index
    %230 = vector.load %arg1[%c45, %c0_155] : memref<49x512xf32, #tpu.memory_space<vmem>>, vector<1x512xf32>
    %231 = vector.broadcast %230 : vector<1x512xf32> to vector<8x512xf32>
    %232 = arith.mulf %229, %231 : vector<8x512xf32>
    %c360 = arith.constant 360 : index
    %c0_156 = arith.constant 0 : index
    %233 = vector.load %arg10[%c360, %c0_156] : memref<392x512xf32, #tpu.memory_space<vmem>>, vector<8x512xf32>
    tpu.vector_store %arg10[%c360, %c0_156], %232 {strides = array<i32>} : memref<392x512xf32, #tpu.memory_space<vmem>>, vector<8x512xf32>,
    %c0_157 = arith.constant 0 : index
    %c177 = arith.constant 177 : index
    %234 = vector.load %arg9[%c0_157, %c177] : memref<8x768xf32, #tpu.memory_space<vmem>>, vector<8x512xf32>
    %c46 = arith.constant 46 : index
    %c0_158 = arith.constant 0 : index
    %235 = vector.load %arg1[%c46, %c0_158] : memref<49x512xf32, #tpu.memory_space<vmem>>, vector<1x512xf32>
    %236 = vector.broadcast %235 : vector<1x512xf32> to vector<8x512xf32>
    %237 = arith.mulf %234, %236 : vector<8x512xf32>
    %c368 = arith.constant 368 : index
    %c0_159 = arith.constant 0 : index
    %238 = vector.load %arg10[%c368, %c0_159] : memref<392x512xf32, #tpu.memory_space<vmem>>, vector<8x512xf32>
    tpu.vector_store %arg10[%c368, %c0_159], %237 {strides = array<i32>} : memref<392x512xf32, #tpu.memory_space<vmem>>, vector<8x512xf32>,
    %c0_160 = arith.constant 0 : index
    %c178 = arith.constant 178 : index
    %239 = vector.load %arg9[%c0_160, %c178] : memref<8x768xf32, #tpu.memory_space<vmem>>, vector<8x512xf32>
    %c47 = arith.constant 47 : index
    %c0_161 = arith.constant 0 : index
    %240 = vector.load %arg1[%c47, %c0_161] : memref<49x512xf32, #tpu.memory_space<vmem>>, vector<1x512xf32>
    %241 = vector.broadcast %240 : vector<1x512xf32> to vector<8x512xf32>
    %242 = arith.mulf %239, %241 : vector<8x512xf32>
    %c376 = arith.constant 376 : index
    %c0_162 = arith.constant 0 : index
    %243 = vector.load %arg10[%c376, %c0_162] : memref<392x512xf32, #tpu.memory_space<vmem>>, vector<8x512xf32>
    tpu.vector_store %arg10[%c376, %c0_162], %242 {strides = array<i32>} : memref<392x512xf32, #tpu.memory_space<vmem>>, vector<8x512xf32>,
    %c0_163 = arith.constant 0 : index
    %c179 = arith.constant 179 : index
    %244 = vector.load %arg9[%c0_163, %c179] : memref<8x768xf32, #tpu.memory_space<vmem>>, vector<8x512xf32>
    %c48_164 = arith.constant 48 : index
    %c0_165 = arith.constant 0 : index
    %245 = vector.load %arg1[%c48_164, %c0_165] : memref<49x512xf32, #tpu.memory_space<vmem>>, vector<1x512xf32>
    %246 = vector.broadcast %245 : vector<1x512xf32> to vector<8x512xf32>
    %247 = arith.mulf %244, %246 : vector<8x512xf32>
    %c384 = arith.constant 384 : index
    %c0_166 = arith.constant 0 : index
    %248 = vector.load %arg10[%c384, %c0_166] : memref<392x512xf32, #tpu.memory_space<vmem>>, vector<8x512xf32>
    tpu.vector_store %arg10[%c384, %c0_166], %247 {strides = array<i32>} : memref<392x512xf32, #tpu.memory_space<vmem>>, vector<8x512xf32>,
    %c0_167 = arith.constant 0 : index
    %c0_168 = arith.constant 0 : index
    %249 = vector.load %arg10[%c0_167, %c0_168] : memref<392x512xf32, #tpu.memory_space<vmem>>, vector<392x512xf32>
    %250 = arith.truncf %249 : vector<392x512xf32> to vector<392x512xbf16>
    %c0_169 = arith.constant 0 : index
    %c0_170 = arith.constant 0 : index
    %251 = vector.load %arg2[%c0_169, %c0_170] : memref<8x392xbf16, #tpu.memory_space<vmem>>, vector<8x392xbf16>
    %cst_171 = arith.constant dense<0.000000e+00> : vector<8x512xf32>
    %252 = tpu.matmul %251, %250, %cst_171 {dimension_numbers = #tpu.dot_dimension_numbers<[1], [0], [0], [1], [0, 0, 1, 1], [], []>} : vector<8x392xbf16>, vector<392x512xbf16>, vector<8x512xf32> -> vector<8x512xf32>
    %c0_172 = arith.constant 0 : index
    %c0_173 = arith.constant 0 : index
    %253 = vector.load %arg3[%c0_172, %c0_173] : memref<8x1xf32, #tpu.memory_space<vmem>>, vector<8x1xf32>
    %254 = vector.broadcast %253 : vector<8x1xf32> to vector<8x512xf32>
    %255 = arith.addf %252, %254 : vector<8x512xf32>
    %cst_174 = arith.constant 0.000000e+00 : f32
    %256 = vector.broadcast %cst_174 : f32 to vector<8x512xf32>
    %257 = arith.maximumf %255, %256 : vector<8x512xf32>
    %cst_175 = arith.constant dense<0.000000e+00> : vector<8xf32>
    %258 = vector.multi_reduction <add>, %257, %cst_175 [1] : vector<8x512xf32> to vector<8xf32>
    %259 = vector.shape_cast %258 : vector<8xf32> to vector<8x1xf32>
    %cst_176 = arith.constant 5.120000e+02 : f32
    %260 = vector.broadcast %cst_176 : f32 to vector<8x1xf32>
    %261 = arith.divf %259, %260 : vector<8x1xf32>
    %262 = vector.broadcast %261 : vector<8x1xf32> to vector<8x512xf32>
    %263 = arith.subf %257, %262 : vector<8x512xf32>
    %264 = arith.mulf %263, %263 : vector<8x512xf32>
    %cst_177 = arith.constant dense<0.000000e+00> : vector<8xf32>
    %265 = vector.multi_reduction <add>, %264, %cst_177 [1] : vector<8x512xf32> to vector<8xf32>
    %266 = vector.shape_cast %265 : vector<8xf32> to vector<8x1xf32>
    %cst_178 = arith.constant 5.120000e+02 : f32
    %267 = vector.broadcast %cst_178 : f32 to vector<8x1xf32>
    %268 = arith.divf %266, %267 : vector<8x1xf32>
    %cst_179 = arith.constant 9.99999974E-6 : f32
    %269 = vector.broadcast %cst_179 : f32 to vector<8x1xf32>
    %270 = arith.addf %268, %269 : vector<8x1xf32>
    %271 = math.rsqrt %270 : vector<8x1xf32>
    %272 = vector.broadcast %271 : vector<8x1xf32> to vector<8x512xf32>
    %273 = arith.mulf %263, %272 : vector<8x512xf32>
    %c0_180 = arith.constant 0 : index
    %c0_181 = arith.constant 0 : index
    %274 = vector.load %arg6[%c0_180, %c0_181] : memref<8x1xf32, #tpu.memory_space<vmem>>, vector<8x1xf32>
    %275 = vector.broadcast %274 : vector<8x1xf32> to vector<8x512xf32>
    %276 = arith.mulf %273, %275 : vector<8x512xf32>
    %c0_182 = arith.constant 0 : index
    %c0_183 = arith.constant 0 : index
    %277 = vector.load %arg7[%c0_182, %c0_183] : memref<8x1xf32, #tpu.memory_space<vmem>>, vector<8x1xf32>
    %278 = vector.broadcast %277 : vector<8x1xf32> to vector<8x512xf32>
    %279 = arith.addf %276, %278 : vector<8x512xf32>
    %c0_184 = arith.constant 0 : index
    %c128_185 = arith.constant 128 : index
    %280 = vector.load %arg9[%c0_184, %c128_185] : memref<8x768xf32, #tpu.memory_space<vmem>>, vector<8x512xf32>
    tpu.vector_store %arg9[%c0_184, %c128_185], %279 {strides = array<i32>} : memref<8x768xf32, #tpu.memory_space<vmem>>, vector<8x512xf32>,
    %c0_186 = arith.constant 0 : index
    %c77_187 = arith.constant 77 : index
    %281 = vector.load %arg9[%c0_186, %c77_187] : memref<8x768xf32, #tpu.memory_space<vmem>>, vector<8x512xf32>
    %c0_188 = arith.constant 0 : index
    %c0_189 = arith.constant 0 : index
    %282 = vector.load %arg1[%c0_188, %c0_189] : memref<49x512xf32, #tpu.memory_space<vmem>>, vector<1x512xf32>
    %283 = vector.broadcast %282 : vector<1x512xf32> to vector<8x512xf32>
    %284 = arith.mulf %281, %283 : vector<8x512xf32>
    %c0_190 = arith.constant 0 : index
    %c0_191 = arith.constant 0 : index
    %285 = vector.load %arg10[%c0_190, %c0_191] : memref<392x512xf32, #tpu.memory_space<vmem>>, vector<8x512xf32>
    tpu.vector_store %arg10[%c0_190, %c0_191], %284 {strides = array<i32>} : memref<392x512xf32, #tpu.memory_space<vmem>>, vector<8x512xf32>,
    %c0_192 = arith.constant 0 : index
    %c78_193 = arith.constant 78 : index
    %286 = vector.load %arg9[%c0_192, %c78_193] : memref<8x768xf32, #tpu.memory_space<vmem>>, vector<8x512xf32>
    %c1_194 = arith.constant 1 : index
    %c0_195 = arith.constant 0 : index
    %287 = vector.load %arg1[%c1_194, %c0_195] : memref<49x512xf32, #tpu.memory_space<vmem>>, vector<1x512xf32>
    %288 = vector.broadcast %287 : vector<1x512xf32> to vector<8x512xf32>
    %289 = arith.mulf %286, %288 : vector<8x512xf32>
    %c8_196 = arith.constant 8 : index
    %c0_197 = arith.constant 0 : index
    %290 = vector.load %arg10[%c8_196, %c0_197] : memref<392x512xf32, #tpu.memory_space<vmem>>, vector<8x512xf32>
    tpu.vector_store %arg10[%c8_196, %c0_197], %289 {strides = array<i32>} : memref<392x512xf32, #tpu.memory_space<vmem>>, vector<8x512xf32>,
    %c0_198 = arith.constant 0 : index
    %c79_199 = arith.constant 79 : index
    %291 = vector.load %arg9[%c0_198, %c79_199] : memref<8x768xf32, #tpu.memory_space<vmem>>, vector<8x512xf32>
    %c2_200 = arith.constant 2 : index
    %c0_201 = arith.constant 0 : index
    %292 = vector.load %arg1[%c2_200, %c0_201] : memref<49x512xf32, #tpu.memory_space<vmem>>, vector<1x512xf32>
    %293 = vector.broadcast %292 : vector<1x512xf32> to vector<8x512xf32>
    %294 = arith.mulf %291, %293 : vector<8x512xf32>
    %c16_202 = arith.constant 16 : index
    %c0_203 = arith.constant 0 : index
    %295 = vector.load %arg10[%c16_202, %c0_203] : memref<392x512xf32, #tpu.memory_space<vmem>>, vector<8x512xf32>
    tpu.vector_store %arg10[%c16_202, %c0_203], %294 {strides = array<i32>} : memref<392x512xf32, #tpu.memory_space<vmem>>, vector<8x512xf32>,
    %c0_204 = arith.constant 0 : index
    %c80_205 = arith.constant 80 : index
    %296 = vector.load %arg9[%c0_204, %c80_205] : memref<8x768xf32, #tpu.memory_space<vmem>>, vector<8x512xf32>
    %c3_206 = arith.constant 3 : index
    %c0_207 = arith.constant 0 : index
    %297 = vector.load %arg1[%c3_206, %c0_207] : memref<49x512xf32, #tpu.memory_space<vmem>>, vector<1x512xf32>
    %298 = vector.broadcast %297 : vector<1x512xf32> to vector<8x512xf32>
    %299 = arith.mulf %296, %298 : vector<8x512xf32>
    %c24_208 = arith.constant 24 : index
    %c0_209 = arith.constant 0 : index
    %300 = vector.load %arg10[%c24_208, %c0_209] : memref<392x512xf32, #tpu.memory_space<vmem>>, vector<8x512xf32>
    tpu.vector_store %arg10[%c24_208, %c0_209], %299 {strides = array<i32>} : memref<392x512xf32, #tpu.memory_space<vmem>>, vector<8x512xf32>,
    %c0_210 = arith.constant 0 : index
    %c81_211 = arith.constant 81 : index
    %301 = vector.load %arg9[%c0_210, %c81_211] : memref<8x768xf32, #tpu.memory_space<vmem>>, vector<8x512xf32>
    %c4_212 = arith.constant 4 : index
    %c0_213 = arith.constant 0 : index
    %302 = vector.load %arg1[%c4_212, %c0_213] : memref<49x512xf32, #tpu.memory_space<vmem>>, vector<1x512xf32>
    %303 = vector.broadcast %302 : vector<1x512xf32> to vector<8x512xf32>
    %304 = arith.mulf %301, %303 : vector<8x512xf32>
    %c32_214 = arith.constant 32 : index
    %c0_215 = arith.constant 0 : index
    %305 = vector.load %arg10[%c32_214, %c0_215] : memref<392x512xf32, #tpu.memory_space<vmem>>, vector<8x512xf32>
    tpu.vector_store %arg10[%c32_214, %c0_215], %304 {strides = array<i32>} : memref<392x512xf32, #tpu.memory_space<vmem>>, vector<8x512xf32>,
    %c0_216 = arith.constant 0 : index
    %c82_217 = arith.constant 82 : index
    %306 = vector.load %arg9[%c0_216, %c82_217] : memref<8x768xf32, #tpu.memory_space<vmem>>, vector<8x512xf32>
    %c5_218 = arith.constant 5 : index
    %c0_219 = arith.constant 0 : index
    %307 = vector.load %arg1[%c5_218, %c0_219] : memref<49x512xf32, #tpu.memory_space<vmem>>, vector<1x512xf32>
    %308 = vector.broadcast %307 : vector<1x512xf32> to vector<8x512xf32>
    %309 = arith.mulf %306, %308 : vector<8x512xf32>
    %c40_220 = arith.constant 40 : index
    %c0_221 = arith.constant 0 : index
    %310 = vector.load %arg10[%c40_220, %c0_221] : memref<392x512xf32, #tpu.memory_space<vmem>>, vector<8x512xf32>
    tpu.vector_store %arg10[%c40_220, %c0_221], %309 {strides = array<i32>} : memref<392x512xf32, #tpu.memory_space<vmem>>, vector<8x512xf32>,
    %c0_222 = arith.constant 0 : index
    %c83_223 = arith.constant 83 : index
    %311 = vector.load %arg9[%c0_222, %c83_223] : memref<8x768xf32, #tpu.memory_space<vmem>>, vector<8x512xf32>
    %c6_224 = arith.constant 6 : index
    %c0_225 = arith.constant 0 : index
    %312 = vector.load %arg1[%c6_224, %c0_225] : memref<49x512xf32, #tpu.memory_space<vmem>>, vector<1x512xf32>
    %313 = vector.broadcast %312 : vector<1x512xf32> to vector<8x512xf32>
    %314 = arith.mulf %311, %313 : vector<8x512xf32>
    %c48_226 = arith.constant 48 : index
    %c0_227 = arith.constant 0 : index
    %315 = vector.load %arg10[%c48_226, %c0_227] : memref<392x512xf32, #tpu.memory_space<vmem>>, vector<8x512xf32>
    tpu.vector_store %arg10[%c48_226, %c0_227], %314 {strides = array<i32>} : memref<392x512xf32, #tpu.memory_space<vmem>>, vector<8x512xf32>,
    %c0_228 = arith.constant 0 : index
    %c93_229 = arith.constant 93 : index
    %316 = vector.load %arg9[%c0_228, %c93_229] : memref<8x768xf32, #tpu.memory_space<vmem>>, vector<8x512xf32>
    %c7_230 = arith.constant 7 : index
    %c0_231 = arith.constant 0 : index
    %317 = vector.load %arg1[%c7_230, %c0_231] : memref<49x512xf32, #tpu.memory_space<vmem>>, vector<1x512xf32>
    %318 = vector.broadcast %317 : vector<1x512xf32> to vector<8x512xf32>
    %319 = arith.mulf %316, %318 : vector<8x512xf32>
    %c56_232 = arith.constant 56 : index
    %c0_233 = arith.constant 0 : index
    %320 = vector.load %arg10[%c56_232, %c0_233] : memref<392x512xf32, #tpu.memory_space<vmem>>, vector<8x512xf32>
    tpu.vector_store %arg10[%c56_232, %c0_233], %319 {strides = array<i32>} : memref<392x512xf32, #tpu.memory_space<vmem>>, vector<8x512xf32>,
    %c0_234 = arith.constant 0 : index
    %c94_235 = arith.constant 94 : index
    %321 = vector.load %arg9[%c0_234, %c94_235] : memref<8x768xf32, #tpu.memory_space<vmem>>, vector<8x512xf32>
    %c8_236 = arith.constant 8 : index
    %c0_237 = arith.constant 0 : index
    %322 = vector.load %arg1[%c8_236, %c0_237] : memref<49x512xf32, #tpu.memory_space<vmem>>, vector<1x512xf32>
    %323 = vector.broadcast %322 : vector<1x512xf32> to vector<8x512xf32>
    %324 = arith.mulf %321, %323 : vector<8x512xf32>
    %c64_238 = arith.constant 64 : index
    %c0_239 = arith.constant 0 : index
    %325 = vector.load %arg10[%c64_238, %c0_239] : memref<392x512xf32, #tpu.memory_space<vmem>>, vector<8x512xf32>
    tpu.vector_store %arg10[%c64_238, %c0_239], %324 {strides = array<i32>} : memref<392x512xf32, #tpu.memory_space<vmem>>, vector<8x512xf32>,
    %c0_240 = arith.constant 0 : index
    %c95_241 = arith.constant 95 : index
    %326 = vector.load %arg9[%c0_240, %c95_241] : memref<8x768xf32, #tpu.memory_space<vmem>>, vector<8x512xf32>
    %c9_242 = arith.constant 9 : index
    %c0_243 = arith.constant 0 : index
    %327 = vector.load %arg1[%c9_242, %c0_243] : memref<49x512xf32, #tpu.memory_space<vmem>>, vector<1x512xf32>
    %328 = vector.broadcast %327 : vector<1x512xf32> to vector<8x512xf32>
    %329 = arith.mulf %326, %328 : vector<8x512xf32>
    %c72_244 = arith.constant 72 : index
    %c0_245 = arith.constant 0 : index
    %330 = vector.load %arg10[%c72_244, %c0_245] : memref<392x512xf32, #tpu.memory_space<vmem>>, vector<8x512xf32>
    tpu.vector_store %arg10[%c72_244, %c0_245], %329 {strides = array<i32>} : memref<392x512xf32, #tpu.memory_space<vmem>>, vector<8x512xf32>,
    %c0_246 = arith.constant 0 : index
    %c96_247 = arith.constant 96 : index
    %331 = vector.load %arg9[%c0_246, %c96_247] : memref<8x768xf32, #tpu.memory_space<vmem>>, vector<8x512xf32>
    %c10_248 = arith.constant 10 : index
    %c0_249 = arith.constant 0 : index
    %332 = vector.load %arg1[%c10_248, %c0_249] : memref<49x512xf32, #tpu.memory_space<vmem>>, vector<1x512xf32>
    %333 = vector.broadcast %332 : vector<1x512xf32> to vector<8x512xf32>
    %334 = arith.mulf %331, %333 : vector<8x512xf32>
    %c80_250 = arith.constant 80 : index
    %c0_251 = arith.constant 0 : index
    %335 = vector.load %arg10[%c80_250, %c0_251] : memref<392x512xf32, #tpu.memory_space<vmem>>, vector<8x512xf32>
    tpu.vector_store %arg10[%c80_250, %c0_251], %334 {strides = array<i32>} : memref<392x512xf32, #tpu.memory_space<vmem>>, vector<8x512xf32>,
    %c0_252 = arith.constant 0 : index
    %c97_253 = arith.constant 97 : index
    %336 = vector.load %arg9[%c0_252, %c97_253] : memref<8x768xf32, #tpu.memory_space<vmem>>, vector<8x512xf32>
    %c11_254 = arith.constant 11 : index
    %c0_255 = arith.constant 0 : index
    %337 = vector.load %arg1[%c11_254, %c0_255] : memref<49x512xf32, #tpu.memory_space<vmem>>, vector<1x512xf32>
    %338 = vector.broadcast %337 : vector<1x512xf32> to vector<8x512xf32>
    %339 = arith.mulf %336, %338 : vector<8x512xf32>
    %c88_256 = arith.constant 88 : index
    %c0_257 = arith.constant 0 : index
    %340 = vector.load %arg10[%c88_256, %c0_257] : memref<392x512xf32, #tpu.memory_space<vmem>>, vector<8x512xf32>
    tpu.vector_store %arg10[%c88_256, %c0_257], %339 {strides = array<i32>} : memref<392x512xf32, #tpu.memory_space<vmem>>, vector<8x512xf32>,
    %c0_258 = arith.constant 0 : index
    %c98_259 = arith.constant 98 : index
    %341 = vector.load %arg9[%c0_258, %c98_259] : memref<8x768xf32, #tpu.memory_space<vmem>>, vector<8x512xf32>
    %c12_260 = arith.constant 12 : index
    %c0_261 = arith.constant 0 : index
    %342 = vector.load %arg1[%c12_260, %c0_261] : memref<49x512xf32, #tpu.memory_space<vmem>>, vector<1x512xf32>
    %343 = vector.broadcast %342 : vector<1x512xf32> to vector<8x512xf32>
    %344 = arith.mulf %341, %343 : vector<8x512xf32>
    %c96_262 = arith.constant 96 : index
    %c0_263 = arith.constant 0 : index
    %345 = vector.load %arg10[%c96_262, %c0_263] : memref<392x512xf32, #tpu.memory_space<vmem>>, vector<8x512xf32>
    tpu.vector_store %arg10[%c96_262, %c0_263], %344 {strides = array<i32>} : memref<392x512xf32, #tpu.memory_space<vmem>>, vector<8x512xf32>,
    %c0_264 = arith.constant 0 : index
    %c99_265 = arith.constant 99 : index
    %346 = vector.load %arg9[%c0_264, %c99_265] : memref<8x768xf32, #tpu.memory_space<vmem>>, vector<8x512xf32>
    %c13_266 = arith.constant 13 : index
    %c0_267 = arith.constant 0 : index
    %347 = vector.load %arg1[%c13_266, %c0_267] : memref<49x512xf32, #tpu.memory_space<vmem>>, vector<1x512xf32>
    %348 = vector.broadcast %347 : vector<1x512xf32> to vector<8x512xf32>
    %349 = arith.mulf %346, %348 : vector<8x512xf32>
    %c104_268 = arith.constant 104 : index
    %c0_269 = arith.constant 0 : index
    %350 = vector.load %arg10[%c104_268, %c0_269] : memref<392x512xf32, #tpu.memory_space<vmem>>, vector<8x512xf32>
    tpu.vector_store %arg10[%c104_268, %c0_269], %349 {strides = array<i32>} : memref<392x512xf32, #tpu.memory_space<vmem>>, vector<8x512xf32>,
    %c0_270 = arith.constant 0 : index
    %c109_271 = arith.constant 109 : index
    %351 = vector.load %arg9[%c0_270, %c109_271] : memref<8x768xf32, #tpu.memory_space<vmem>>, vector<8x512xf32>
    %c14_272 = arith.constant 14 : index
    %c0_273 = arith.constant 0 : index
    %352 = vector.load %arg1[%c14_272, %c0_273] : memref<49x512xf32, #tpu.memory_space<vmem>>, vector<1x512xf32>
    %353 = vector.broadcast %352 : vector<1x512xf32> to vector<8x512xf32>
    %354 = arith.mulf %351, %353 : vector<8x512xf32>
    %c112_274 = arith.constant 112 : index
    %c0_275 = arith.constant 0 : index
    %355 = vector.load %arg10[%c112_274, %c0_275] : memref<392x512xf32, #tpu.memory_space<vmem>>, vector<8x512xf32>
    tpu.vector_store %arg10[%c112_274, %c0_275], %354 {strides = array<i32>} : memref<392x512xf32, #tpu.memory_space<vmem>>, vector<8x512xf32>,
    %c0_276 = arith.constant 0 : index
    %c110_277 = arith.constant 110 : index
    %356 = vector.load %arg9[%c0_276, %c110_277] : memref<8x768xf32, #tpu.memory_space<vmem>>, vector<8x512xf32>
    %c15_278 = arith.constant 15 : index
    %c0_279 = arith.constant 0 : index
    %357 = vector.load %arg1[%c15_278, %c0_279] : memref<49x512xf32, #tpu.memory_space<vmem>>, vector<1x512xf32>
    %358 = vector.broadcast %357 : vector<1x512xf32> to vector<8x512xf32>
    %359 = arith.mulf %356, %358 : vector<8x512xf32>
    %c120_280 = arith.constant 120 : index
    %c0_281 = arith.constant 0 : index
    %360 = vector.load %arg10[%c120_280, %c0_281] : memref<392x512xf32, #tpu.memory_space<vmem>>, vector<8x512xf32>
    tpu.vector_store %arg10[%c120_280, %c0_281], %359 {strides = array<i32>} : memref<392x512xf32, #tpu.memory_space<vmem>>, vector<8x512xf32>,
    %c0_282 = arith.constant 0 : index
    %c111_283 = arith.constant 111 : index
    %361 = vector.load %arg9[%c0_282, %c111_283] : memref<8x768xf32, #tpu.memory_space<vmem>>, vector<8x512xf32>
    %c16_284 = arith.constant 16 : index
    %c0_285 = arith.constant 0 : index
    %362 = vector.load %arg1[%c16_284, %c0_285] : memref<49x512xf32, #tpu.memory_space<vmem>>, vector<1x512xf32>
    %363 = vector.broadcast %362 : vector<1x512xf32> to vector<8x512xf32>
    %364 = arith.mulf %361, %363 : vector<8x512xf32>
    %c128_286 = arith.constant 128 : index
    %c0_287 = arith.constant 0 : index
    %365 = vector.load %arg10[%c128_286, %c0_287] : memref<392x512xf32, #tpu.memory_space<vmem>>, vector<8x512xf32>
    tpu.vector_store %arg10[%c128_286, %c0_287], %364 {strides = array<i32>} : memref<392x512xf32, #tpu.memory_space<vmem>>, vector<8x512xf32>,
    %c0_288 = arith.constant 0 : index
    %c112_289 = arith.constant 112 : index
    %366 = vector.load %arg9[%c0_288, %c112_289] : memref<8x768xf32, #tpu.memory_space<vmem>>, vector<8x512xf32>
    %c17_290 = arith.constant 17 : index
    %c0_291 = arith.constant 0 : index
    %367 = vector.load %arg1[%c17_290, %c0_291] : memref<49x512xf32, #tpu.memory_space<vmem>>, vector<1x512xf32>
    %368 = vector.broadcast %367 : vector<1x512xf32> to vector<8x512xf32>
    %369 = arith.mulf %366, %368 : vector<8x512xf32>
    %c136_292 = arith.constant 136 : index
    %c0_293 = arith.constant 0 : index
    %370 = vector.load %arg10[%c136_292, %c0_293] : memref<392x512xf32, #tpu.memory_space<vmem>>, vector<8x512xf32>
    tpu.vector_store %arg10[%c136_292, %c0_293], %369 {strides = array<i32>} : memref<392x512xf32, #tpu.memory_space<vmem>>, vector<8x512xf32>,
    %c0_294 = arith.constant 0 : index
    %c113_295 = arith.constant 113 : index
    %371 = vector.load %arg9[%c0_294, %c113_295] : memref<8x768xf32, #tpu.memory_space<vmem>>, vector<8x512xf32>
    %c18_296 = arith.constant 18 : index
    %c0_297 = arith.constant 0 : index
    %372 = vector.load %arg1[%c18_296, %c0_297] : memref<49x512xf32, #tpu.memory_space<vmem>>, vector<1x512xf32>
    %373 = vector.broadcast %372 : vector<1x512xf32> to vector<8x512xf32>
    %374 = arith.mulf %371, %373 : vector<8x512xf32>
    %c144_298 = arith.constant 144 : index
    %c0_299 = arith.constant 0 : index
    %375 = vector.load %arg10[%c144_298, %c0_299] : memref<392x512xf32, #tpu.memory_space<vmem>>, vector<8x512xf32>
    tpu.vector_store %arg10[%c144_298, %c0_299], %374 {strides = array<i32>} : memref<392x512xf32, #tpu.memory_space<vmem>>, vector<8x512xf32>,
    %c0_300 = arith.constant 0 : index
    %c114_301 = arith.constant 114 : index
    %376 = vector.load %arg9[%c0_300, %c114_301] : memref<8x768xf32, #tpu.memory_space<vmem>>, vector<8x512xf32>
    %c19_302 = arith.constant 19 : index
    %c0_303 = arith.constant 0 : index
    %377 = vector.load %arg1[%c19_302, %c0_303] : memref<49x512xf32, #tpu.memory_space<vmem>>, vector<1x512xf32>
    %378 = vector.broadcast %377 : vector<1x512xf32> to vector<8x512xf32>
    %379 = arith.mulf %376, %378 : vector<8x512xf32>
    %c152_304 = arith.constant 152 : index
    %c0_305 = arith.constant 0 : index
    %380 = vector.load %arg10[%c152_304, %c0_305] : memref<392x512xf32, #tpu.memory_space<vmem>>, vector<8x512xf32>
    tpu.vector_store %arg10[%c152_304, %c0_305], %379 {strides = array<i32>} : memref<392x512xf32, #tpu.memory_space<vmem>>, vector<8x512xf32>,
    %c0_306 = arith.constant 0 : index
    %c115_307 = arith.constant 115 : index
    %381 = vector.load %arg9[%c0_306, %c115_307] : memref<8x768xf32, #tpu.memory_space<vmem>>, vector<8x512xf32>
    %c20_308 = arith.constant 20 : index
    %c0_309 = arith.constant 0 : index
    %382 = vector.load %arg1[%c20_308, %c0_309] : memref<49x512xf32, #tpu.memory_space<vmem>>, vector<1x512xf32>
    %383 = vector.broadcast %382 : vector<1x512xf32> to vector<8x512xf32>
    %384 = arith.mulf %381, %383 : vector<8x512xf32>
    %c160_310 = arith.constant 160 : index
    %c0_311 = arith.constant 0 : index
    %385 = vector.load %arg10[%c160_310, %c0_311] : memref<392x512xf32, #tpu.memory_space<vmem>>, vector<8x512xf32>
    tpu.vector_store %arg10[%c160_310, %c0_311], %384 {strides = array<i32>} : memref<392x512xf32, #tpu.memory_space<vmem>>, vector<8x512xf32>,
    %c0_312 = arith.constant 0 : index
    %c125_313 = arith.constant 125 : index
    %386 = vector.load %arg9[%c0_312, %c125_313] : memref<8x768xf32, #tpu.memory_space<vmem>>, vector<8x512xf32>
    %c21_314 = arith.constant 21 : index
    %c0_315 = arith.constant 0 : index
    %387 = vector.load %arg1[%c21_314, %c0_315] : memref<49x512xf32, #tpu.memory_space<vmem>>, vector<1x512xf32>
    %388 = vector.broadcast %387 : vector<1x512xf32> to vector<8x512xf32>
    %389 = arith.mulf %386, %388 : vector<8x512xf32>
    %c168_316 = arith.constant 168 : index
    %c0_317 = arith.constant 0 : index
    %390 = vector.load %arg10[%c168_316, %c0_317] : memref<392x512xf32, #tpu.memory_space<vmem>>, vector<8x512xf32>
    tpu.vector_store %arg10[%c168_316, %c0_317], %389 {strides = array<i32>} : memref<392x512xf32, #tpu.memory_space<vmem>>, vector<8x512xf32>,
    %c0_318 = arith.constant 0 : index
    %c126_319 = arith.constant 126 : index
    %391 = vector.load %arg9[%c0_318, %c126_319] : memref<8x768xf32, #tpu.memory_space<vmem>>, vector<8x512xf32>
    %c22_320 = arith.constant 22 : index
    %c0_321 = arith.constant 0 : index
    %392 = vector.load %arg1[%c22_320, %c0_321] : memref<49x512xf32, #tpu.memory_space<vmem>>, vector<1x512xf32>
    %393 = vector.broadcast %392 : vector<1x512xf32> to vector<8x512xf32>
    %394 = arith.mulf %391, %393 : vector<8x512xf32>
    %c176_322 = arith.constant 176 : index
    %c0_323 = arith.constant 0 : index
    %395 = vector.load %arg10[%c176_322, %c0_323] : memref<392x512xf32, #tpu.memory_space<vmem>>, vector<8x512xf32>
    tpu.vector_store %arg10[%c176_322, %c0_323], %394 {strides = array<i32>} : memref<392x512xf32, #tpu.memory_space<vmem>>, vector<8x512xf32>,
    %c0_324 = arith.constant 0 : index
    %c127_325 = arith.constant 127 : index
    %396 = vector.load %arg9[%c0_324, %c127_325] : memref<8x768xf32, #tpu.memory_space<vmem>>, vector<8x512xf32>
    %c23_326 = arith.constant 23 : index
    %c0_327 = arith.constant 0 : index
    %397 = vector.load %arg1[%c23_326, %c0_327] : memref<49x512xf32, #tpu.memory_space<vmem>>, vector<1x512xf32>
    %398 = vector.broadcast %397 : vector<1x512xf32> to vector<8x512xf32>
    %399 = arith.mulf %396, %398 : vector<8x512xf32>
    %c184_328 = arith.constant 184 : index
    %c0_329 = arith.constant 0 : index
    %400 = vector.load %arg10[%c184_328, %c0_329] : memref<392x512xf32, #tpu.memory_space<vmem>>, vector<8x512xf32>
    tpu.vector_store %arg10[%c184_328, %c0_329], %399 {strides = array<i32>} : memref<392x512xf32, #tpu.memory_space<vmem>>, vector<8x512xf32>,
    %c0_330 = arith.constant 0 : index
    %c128_331 = arith.constant 128 : index
    %401 = vector.load %arg9[%c0_330, %c128_331] : memref<8x768xf32, #tpu.memory_space<vmem>>, vector<8x512xf32>
    %c24_332 = arith.constant 24 : index
    %c0_333 = arith.constant 0 : index
    %402 = vector.load %arg1[%c24_332, %c0_333] : memref<49x512xf32, #tpu.memory_space<vmem>>, vector<1x512xf32>
    %403 = vector.broadcast %402 : vector<1x512xf32> to vector<8x512xf32>
    %404 = arith.mulf %401, %403 : vector<8x512xf32>
    %c192_334 = arith.constant 192 : index
    %c0_335 = arith.constant 0 : index
    %405 = vector.load %arg10[%c192_334, %c0_335] : memref<392x512xf32, #tpu.memory_space<vmem>>, vector<8x512xf32>
    tpu.vector_store %arg10[%c192_334, %c0_335], %404 {strides = array<i32>} : memref<392x512xf32, #tpu.memory_space<vmem>>, vector<8x512xf32>,
    %c0_336 = arith.constant 0 : index
    %c129_337 = arith.constant 129 : index
    %406 = vector.load %arg9[%c0_336, %c129_337] : memref<8x768xf32, #tpu.memory_space<vmem>>, vector<8x512xf32>
    %c25_338 = arith.constant 25 : index
    %c0_339 = arith.constant 0 : index
    %407 = vector.load %arg1[%c25_338, %c0_339] : memref<49x512xf32, #tpu.memory_space<vmem>>, vector<1x512xf32>
    %408 = vector.broadcast %407 : vector<1x512xf32> to vector<8x512xf32>
    %409 = arith.mulf %406, %408 : vector<8x512xf32>
    %c200_340 = arith.constant 200 : index
    %c0_341 = arith.constant 0 : index
    %410 = vector.load %arg10[%c200_340, %c0_341] : memref<392x512xf32, #tpu.memory_space<vmem>>, vector<8x512xf32>
    tpu.vector_store %arg10[%c200_340, %c0_341], %409 {strides = array<i32>} : memref<392x512xf32, #tpu.memory_space<vmem>>, vector<8x512xf32>,
    %c0_342 = arith.constant 0 : index
    %c130_343 = arith.constant 130 : index
    %411 = vector.load %arg9[%c0_342, %c130_343] : memref<8x768xf32, #tpu.memory_space<vmem>>, vector<8x512xf32>
    %c26_344 = arith.constant 26 : index
    %c0_345 = arith.constant 0 : index
    %412 = vector.load %arg1[%c26_344, %c0_345] : memref<49x512xf32, #tpu.memory_space<vmem>>, vector<1x512xf32>
    %413 = vector.broadcast %412 : vector<1x512xf32> to vector<8x512xf32>
    %414 = arith.mulf %411, %413 : vector<8x512xf32>
    %c208_346 = arith.constant 208 : index
    %c0_347 = arith.constant 0 : index
    %415 = vector.load %arg10[%c208_346, %c0_347] : memref<392x512xf32, #tpu.memory_space<vmem>>, vector<8x512xf32>
    tpu.vector_store %arg10[%c208_346, %c0_347], %414 {strides = array<i32>} : memref<392x512xf32, #tpu.memory_space<vmem>>, vector<8x512xf32>,
    %c0_348 = arith.constant 0 : index
    %c131_349 = arith.constant 131 : index
    %416 = vector.load %arg9[%c0_348, %c131_349] : memref<8x768xf32, #tpu.memory_space<vmem>>, vector<8x512xf32>
    %c27_350 = arith.constant 27 : index
    %c0_351 = arith.constant 0 : index
    %417 = vector.load %arg1[%c27_350, %c0_351] : memref<49x512xf32, #tpu.memory_space<vmem>>, vector<1x512xf32>
    %418 = vector.broadcast %417 : vector<1x512xf32> to vector<8x512xf32>
    %419 = arith.mulf %416, %418 : vector<8x512xf32>
    %c216_352 = arith.constant 216 : index
    %c0_353 = arith.constant 0 : index
    %420 = vector.load %arg10[%c216_352, %c0_353] : memref<392x512xf32, #tpu.memory_space<vmem>>, vector<8x512xf32>
    tpu.vector_store %arg10[%c216_352, %c0_353], %419 {strides = array<i32>} : memref<392x512xf32, #tpu.memory_space<vmem>>, vector<8x512xf32>,
    %c0_354 = arith.constant 0 : index
    %c141_355 = arith.constant 141 : index
    %421 = vector.load %arg9[%c0_354, %c141_355] : memref<8x768xf32, #tpu.memory_space<vmem>>, vector<8x512xf32>
    %c28_356 = arith.constant 28 : index
    %c0_357 = arith.constant 0 : index
    %422 = vector.load %arg1[%c28_356, %c0_357] : memref<49x512xf32, #tpu.memory_space<vmem>>, vector<1x512xf32>
    %423 = vector.broadcast %422 : vector<1x512xf32> to vector<8x512xf32>
    %424 = arith.mulf %421, %423 : vector<8x512xf32>
    %c224_358 = arith.constant 224 : index
    %c0_359 = arith.constant 0 : index
    %425 = vector.load %arg10[%c224_358, %c0_359] : memref<392x512xf32, #tpu.memory_space<vmem>>, vector<8x512xf32>
    tpu.vector_store %arg10[%c224_358, %c0_359], %424 {strides = array<i32>} : memref<392x512xf32, #tpu.memory_space<vmem>>, vector<8x512xf32>,
    %c0_360 = arith.constant 0 : index
    %c142_361 = arith.constant 142 : index
    %426 = vector.load %arg9[%c0_360, %c142_361] : memref<8x768xf32, #tpu.memory_space<vmem>>, vector<8x512xf32>
    %c29_362 = arith.constant 29 : index
    %c0_363 = arith.constant 0 : index
    %427 = vector.load %arg1[%c29_362, %c0_363] : memref<49x512xf32, #tpu.memory_space<vmem>>, vector<1x512xf32>
    %428 = vector.broadcast %427 : vector<1x512xf32> to vector<8x512xf32>
    %429 = arith.mulf %426, %428 : vector<8x512xf32>
    %c232_364 = arith.constant 232 : index
    %c0_365 = arith.constant 0 : index
    %430 = vector.load %arg10[%c232_364, %c0_365] : memref<392x512xf32, #tpu.memory_space<vmem>>, vector<8x512xf32>
    tpu.vector_store %arg10[%c232_364, %c0_365], %429 {strides = array<i32>} : memref<392x512xf32, #tpu.memory_space<vmem>>, vector<8x512xf32>,
    %c0_366 = arith.constant 0 : index
    %c143_367 = arith.constant 143 : index
    %431 = vector.load %arg9[%c0_366, %c143_367] : memref<8x768xf32, #tpu.memory_space<vmem>>, vector<8x512xf32>
    %c30_368 = arith.constant 30 : index
    %c0_369 = arith.constant 0 : index
    %432 = vector.load %arg1[%c30_368, %c0_369] : memref<49x512xf32, #tpu.memory_space<vmem>>, vector<1x512xf32>
    %433 = vector.broadcast %432 : vector<1x512xf32> to vector<8x512xf32>
    %434 = arith.mulf %431, %433 : vector<8x512xf32>
    %c240_370 = arith.constant 240 : index
    %c0_371 = arith.constant 0 : index
    %435 = vector.load %arg10[%c240_370, %c0_371] : memref<392x512xf32, #tpu.memory_space<vmem>>, vector<8x512xf32>
    tpu.vector_store %arg10[%c240_370, %c0_371], %434 {strides = array<i32>} : memref<392x512xf32, #tpu.memory_space<vmem>>, vector<8x512xf32>,
    %c0_372 = arith.constant 0 : index
    %c144_373 = arith.constant 144 : index
    %436 = vector.load %arg9[%c0_372, %c144_373] : memref<8x768xf32, #tpu.memory_space<vmem>>, vector<8x512xf32>
    %c31_374 = arith.constant 31 : index
    %c0_375 = arith.constant 0 : index
    %437 = vector.load %arg1[%c31_374, %c0_375] : memref<49x512xf32, #tpu.memory_space<vmem>>, vector<1x512xf32>
    %438 = vector.broadcast %437 : vector<1x512xf32> to vector<8x512xf32>
    %439 = arith.mulf %436, %438 : vector<8x512xf32>
    %c248_376 = arith.constant 248 : index
    %c0_377 = arith.constant 0 : index
    %440 = vector.load %arg10[%c248_376, %c0_377] : memref<392x512xf32, #tpu.memory_space<vmem>>, vector<8x512xf32>
    tpu.vector_store %arg10[%c248_376, %c0_377], %439 {strides = array<i32>} : memref<392x512xf32, #tpu.memory_space<vmem>>, vector<8x512xf32>,
    %c0_378 = arith.constant 0 : index
    %c145_379 = arith.constant 145 : index
    %441 = vector.load %arg9[%c0_378, %c145_379] : memref<8x768xf32, #tpu.memory_space<vmem>>, vector<8x512xf32>
    %c32_380 = arith.constant 32 : index
    %c0_381 = arith.constant 0 : index
    %442 = vector.load %arg1[%c32_380, %c0_381] : memref<49x512xf32, #tpu.memory_space<vmem>>, vector<1x512xf32>
    %443 = vector.broadcast %442 : vector<1x512xf32> to vector<8x512xf32>
    %444 = arith.mulf %441, %443 : vector<8x512xf32>
    %c256_382 = arith.constant 256 : index
    %c0_383 = arith.constant 0 : index
    %445 = vector.load %arg10[%c256_382, %c0_383] : memref<392x512xf32, #tpu.memory_space<vmem>>, vector<8x512xf32>
    tpu.vector_store %arg10[%c256_382, %c0_383], %444 {strides = array<i32>} : memref<392x512xf32, #tpu.memory_space<vmem>>, vector<8x512xf32>,
    %c0_384 = arith.constant 0 : index
    %c146_385 = arith.constant 146 : index
    %446 = vector.load %arg9[%c0_384, %c146_385] : memref<8x768xf32, #tpu.memory_space<vmem>>, vector<8x512xf32>
    %c33_386 = arith.constant 33 : index
    %c0_387 = arith.constant 0 : index
    %447 = vector.load %arg1[%c33_386, %c0_387] : memref<49x512xf32, #tpu.memory_space<vmem>>, vector<1x512xf32>
    %448 = vector.broadcast %447 : vector<1x512xf32> to vector<8x512xf32>
    %449 = arith.mulf %446, %448 : vector<8x512xf32>
    %c264_388 = arith.constant 264 : index
    %c0_389 = arith.constant 0 : index
    %450 = vector.load %arg10[%c264_388, %c0_389] : memref<392x512xf32, #tpu.memory_space<vmem>>, vector<8x512xf32>
    tpu.vector_store %arg10[%c264_388, %c0_389], %449 {strides = array<i32>} : memref<392x512xf32, #tpu.memory_space<vmem>>, vector<8x512xf32>,
    %c0_390 = arith.constant 0 : index
    %c147_391 = arith.constant 147 : index
    %451 = vector.load %arg9[%c0_390, %c147_391] : memref<8x768xf32, #tpu.memory_space<vmem>>, vector<8x512xf32>
    %c34_392 = arith.constant 34 : index
    %c0_393 = arith.constant 0 : index
    %452 = vector.load %arg1[%c34_392, %c0_393] : memref<49x512xf32, #tpu.memory_space<vmem>>, vector<1x512xf32>
    %453 = vector.broadcast %452 : vector<1x512xf32> to vector<8x512xf32>
    %454 = arith.mulf %451, %453 : vector<8x512xf32>
    %c272_394 = arith.constant 272 : index
    %c0_395 = arith.constant 0 : index
    %455 = vector.load %arg10[%c272_394, %c0_395] : memref<392x512xf32, #tpu.memory_space<vmem>>, vector<8x512xf32>
    tpu.vector_store %arg10[%c272_394, %c0_395], %454 {strides = array<i32>} : memref<392x512xf32, #tpu.memory_space<vmem>>, vector<8x512xf32>,
    %c0_396 = arith.constant 0 : index
    %c157_397 = arith.constant 157 : index
    %456 = vector.load %arg9[%c0_396, %c157_397] : memref<8x768xf32, #tpu.memory_space<vmem>>, vector<8x512xf32>
    %c35_398 = arith.constant 35 : index
    %c0_399 = arith.constant 0 : index
    %457 = vector.load %arg1[%c35_398, %c0_399] : memref<49x512xf32, #tpu.memory_space<vmem>>, vector<1x512xf32>
    %458 = vector.broadcast %457 : vector<1x512xf32> to vector<8x512xf32>
    %459 = arith.mulf %456, %458 : vector<8x512xf32>
    %c280_400 = arith.constant 280 : index
    %c0_401 = arith.constant 0 : index
    %460 = vector.load %arg10[%c280_400, %c0_401] : memref<392x512xf32, #tpu.memory_space<vmem>>, vector<8x512xf32>
    tpu.vector_store %arg10[%c280_400, %c0_401], %459 {strides = array<i32>} : memref<392x512xf32, #tpu.memory_space<vmem>>, vector<8x512xf32>,
    %c0_402 = arith.constant 0 : index
    %c158_403 = arith.constant 158 : index
    %461 = vector.load %arg9[%c0_402, %c158_403] : memref<8x768xf32, #tpu.memory_space<vmem>>, vector<8x512xf32>
    %c36_404 = arith.constant 36 : index
    %c0_405 = arith.constant 0 : index
    %462 = vector.load %arg1[%c36_404, %c0_405] : memref<49x512xf32, #tpu.memory_space<vmem>>, vector<1x512xf32>
    %463 = vector.broadcast %462 : vector<1x512xf32> to vector<8x512xf32>
    %464 = arith.mulf %461, %463 : vector<8x512xf32>
    %c288_406 = arith.constant 288 : index
    %c0_407 = arith.constant 0 : index
    %465 = vector.load %arg10[%c288_406, %c0_407] : memref<392x512xf32, #tpu.memory_space<vmem>>, vector<8x512xf32>
    tpu.vector_store %arg10[%c288_406, %c0_407], %464 {strides = array<i32>} : memref<392x512xf32, #tpu.memory_space<vmem>>, vector<8x512xf32>,
    %c0_408 = arith.constant 0 : index
    %c159_409 = arith.constant 159 : index
    %466 = vector.load %arg9[%c0_408, %c159_409] : memref<8x768xf32, #tpu.memory_space<vmem>>, vector<8x512xf32>
    %c37_410 = arith.constant 37 : index
    %c0_411 = arith.constant 0 : index
    %467 = vector.load %arg1[%c37_410, %c0_411] : memref<49x512xf32, #tpu.memory_space<vmem>>, vector<1x512xf32>
    %468 = vector.broadcast %467 : vector<1x512xf32> to vector<8x512xf32>
    %469 = arith.mulf %466, %468 : vector<8x512xf32>
    %c296_412 = arith.constant 296 : index
    %c0_413 = arith.constant 0 : index
    %470 = vector.load %arg10[%c296_412, %c0_413] : memref<392x512xf32, #tpu.memory_space<vmem>>, vector<8x512xf32>
    tpu.vector_store %arg10[%c296_412, %c0_413], %469 {strides = array<i32>} : memref<392x512xf32, #tpu.memory_space<vmem>>, vector<8x512xf32>,
    %c0_414 = arith.constant 0 : index
    %c160_415 = arith.constant 160 : index
    %471 = vector.load %arg9[%c0_414, %c160_415] : memref<8x768xf32, #tpu.memory_space<vmem>>, vector<8x512xf32>
    %c38_416 = arith.constant 38 : index
    %c0_417 = arith.constant 0 : index
    %472 = vector.load %arg1[%c38_416, %c0_417] : memref<49x512xf32, #tpu.memory_space<vmem>>, vector<1x512xf32>
    %473 = vector.broadcast %472 : vector<1x512xf32> to vector<8x512xf32>
    %474 = arith.mulf %471, %473 : vector<8x512xf32>
    %c304_418 = arith.constant 304 : index
    %c0_419 = arith.constant 0 : index
    %475 = vector.load %arg10[%c304_418, %c0_419] : memref<392x512xf32, #tpu.memory_space<vmem>>, vector<8x512xf32>
    tpu.vector_store %arg10[%c304_418, %c0_419], %474 {strides = array<i32>} : memref<392x512xf32, #tpu.memory_space<vmem>>, vector<8x512xf32>,
    %c0_420 = arith.constant 0 : index
    %c161_421 = arith.constant 161 : index
    %476 = vector.load %arg9[%c0_420, %c161_421] : memref<8x768xf32, #tpu.memory_space<vmem>>, vector<8x512xf32>
    %c39_422 = arith.constant 39 : index
    %c0_423 = arith.constant 0 : index
    %477 = vector.load %arg1[%c39_422, %c0_423] : memref<49x512xf32, #tpu.memory_space<vmem>>, vector<1x512xf32>
    %478 = vector.broadcast %477 : vector<1x512xf32> to vector<8x512xf32>
    %479 = arith.mulf %476, %478 : vector<8x512xf32>
    %c312_424 = arith.constant 312 : index
    %c0_425 = arith.constant 0 : index
    %480 = vector.load %arg10[%c312_424, %c0_425] : memref<392x512xf32, #tpu.memory_space<vmem>>, vector<8x512xf32>
    tpu.vector_store %arg10[%c312_424, %c0_425], %479 {strides = array<i32>} : memref<392x512xf32, #tpu.memory_space<vmem>>, vector<8x512xf32>,
    %c0_426 = arith.constant 0 : index
    %c162_427 = arith.constant 162 : index
    %481 = vector.load %arg9[%c0_426, %c162_427] : memref<8x768xf32, #tpu.memory_space<vmem>>, vector<8x512xf32>
    %c40_428 = arith.constant 40 : index
    %c0_429 = arith.constant 0 : index
    %482 = vector.load %arg1[%c40_428, %c0_429] : memref<49x512xf32, #tpu.memory_space<vmem>>, vector<1x512xf32>
    %483 = vector.broadcast %482 : vector<1x512xf32> to vector<8x512xf32>
    %484 = arith.mulf %481, %483 : vector<8x512xf32>
    %c320_430 = arith.constant 320 : index
    %c0_431 = arith.constant 0 : index
    %485 = vector.load %arg10[%c320_430, %c0_431] : memref<392x512xf32, #tpu.memory_space<vmem>>, vector<8x512xf32>
    tpu.vector_store %arg10[%c320_430, %c0_431], %484 {strides = array<i32>} : memref<392x512xf32, #tpu.memory_space<vmem>>, vector<8x512xf32>,
    %c0_432 = arith.constant 0 : index
    %c163_433 = arith.constant 163 : index
    %486 = vector.load %arg9[%c0_432, %c163_433] : memref<8x768xf32, #tpu.memory_space<vmem>>, vector<8x512xf32>
    %c41_434 = arith.constant 41 : index
    %c0_435 = arith.constant 0 : index
    %487 = vector.load %arg1[%c41_434, %c0_435] : memref<49x512xf32, #tpu.memory_space<vmem>>, vector<1x512xf32>
    %488 = vector.broadcast %487 : vector<1x512xf32> to vector<8x512xf32>
    %489 = arith.mulf %486, %488 : vector<8x512xf32>
    %c328_436 = arith.constant 328 : index
    %c0_437 = arith.constant 0 : index
    %490 = vector.load %arg10[%c328_436, %c0_437] : memref<392x512xf32, #tpu.memory_space<vmem>>, vector<8x512xf32>
    tpu.vector_store %arg10[%c328_436, %c0_437], %489 {strides = array<i32>} : memref<392x512xf32, #tpu.memory_space<vmem>>, vector<8x512xf32>,
    %c0_438 = arith.constant 0 : index
    %c173_439 = arith.constant 173 : index
    %491 = vector.load %arg9[%c0_438, %c173_439] : memref<8x768xf32, #tpu.memory_space<vmem>>, vector<8x512xf32>
    %c42_440 = arith.constant 42 : index
    %c0_441 = arith.constant 0 : index
    %492 = vector.load %arg1[%c42_440, %c0_441] : memref<49x512xf32, #tpu.memory_space<vmem>>, vector<1x512xf32>
    %493 = vector.broadcast %492 : vector<1x512xf32> to vector<8x512xf32>
    %494 = arith.mulf %491, %493 : vector<8x512xf32>
    %c336_442 = arith.constant 336 : index
    %c0_443 = arith.constant 0 : index
    %495 = vector.load %arg10[%c336_442, %c0_443] : memref<392x512xf32, #tpu.memory_space<vmem>>, vector<8x512xf32>
    tpu.vector_store %arg10[%c336_442, %c0_443], %494 {strides = array<i32>} : memref<392x512xf32, #tpu.memory_space<vmem>>, vector<8x512xf32>,
    %c0_444 = arith.constant 0 : index
    %c174_445 = arith.constant 174 : index
    %496 = vector.load %arg9[%c0_444, %c174_445] : memref<8x768xf32, #tpu.memory_space<vmem>>, vector<8x512xf32>
    %c43_446 = arith.constant 43 : index
    %c0_447 = arith.constant 0 : index
    %497 = vector.load %arg1[%c43_446, %c0_447] : memref<49x512xf32, #tpu.memory_space<vmem>>, vector<1x512xf32>
    %498 = vector.broadcast %497 : vector<1x512xf32> to vector<8x512xf32>
    %499 = arith.mulf %496, %498 : vector<8x512xf32>
    %c344_448 = arith.constant 344 : index
    %c0_449 = arith.constant 0 : index
    %500 = vector.load %arg10[%c344_448, %c0_449] : memref<392x512xf32, #tpu.memory_space<vmem>>, vector<8x512xf32>
    tpu.vector_store %arg10[%c344_448, %c0_449], %499 {strides = array<i32>} : memref<392x512xf32, #tpu.memory_space<vmem>>, vector<8x512xf32>,
    %c0_450 = arith.constant 0 : index
    %c175_451 = arith.constant 175 : index
    %501 = vector.load %arg9[%c0_450, %c175_451] : memref<8x768xf32, #tpu.memory_space<vmem>>, vector<8x512xf32>
    %c44_452 = arith.constant 44 : index
    %c0_453 = arith.constant 0 : index
    %502 = vector.load %arg1[%c44_452, %c0_453] : memref<49x512xf32, #tpu.memory_space<vmem>>, vector<1x512xf32>
    %503 = vector.broadcast %502 : vector<1x512xf32> to vector<8x512xf32>
    %504 = arith.mulf %501, %503 : vector<8x512xf32>
    %c352_454 = arith.constant 352 : index
    %c0_455 = arith.constant 0 : index
    %505 = vector.load %arg10[%c352_454, %c0_455] : memref<392x512xf32, #tpu.memory_space<vmem>>, vector<8x512xf32>
    tpu.vector_store %arg10[%c352_454, %c0_455], %504 {strides = array<i32>} : memref<392x512xf32, #tpu.memory_space<vmem>>, vector<8x512xf32>,
    %c0_456 = arith.constant 0 : index
    %c176_457 = arith.constant 176 : index
    %506 = vector.load %arg9[%c0_456, %c176_457] : memref<8x768xf32, #tpu.memory_space<vmem>>, vector<8x512xf32>
    %c45_458 = arith.constant 45 : index
    %c0_459 = arith.constant 0 : index
    %507 = vector.load %arg1[%c45_458, %c0_459] : memref<49x512xf32, #tpu.memory_space<vmem>>, vector<1x512xf32>
    %508 = vector.broadcast %507 : vector<1x512xf32> to vector<8x512xf32>
    %509 = arith.mulf %506, %508 : vector<8x512xf32>
    %c360_460 = arith.constant 360 : index
    %c0_461 = arith.constant 0 : index
    %510 = vector.load %arg10[%c360_460, %c0_461] : memref<392x512xf32, #tpu.memory_space<vmem>>, vector<8x512xf32>
    tpu.vector_store %arg10[%c360_460, %c0_461], %509 {strides = array<i32>} : memref<392x512xf32, #tpu.memory_space<vmem>>, vector<8x512xf32>,
    %c0_462 = arith.constant 0 : index
    %c177_463 = arith.constant 177 : index
    %511 = vector.load %arg9[%c0_462, %c177_463] : memref<8x768xf32, #tpu.memory_space<vmem>>, vector<8x512xf32>
    %c46_464 = arith.constant 46 : index
    %c0_465 = arith.constant 0 : index
    %512 = vector.load %arg1[%c46_464, %c0_465] : memref<49x512xf32, #tpu.memory_space<vmem>>, vector<1x512xf32>
    %513 = vector.broadcast %512 : vector<1x512xf32> to vector<8x512xf32>
    %514 = arith.mulf %511, %513 : vector<8x512xf32>
    %c368_466 = arith.constant 368 : index
    %c0_467 = arith.constant 0 : index
    %515 = vector.load %arg10[%c368_466, %c0_467] : memref<392x512xf32, #tpu.memory_space<vmem>>, vector<8x512xf32>
    tpu.vector_store %arg10[%c368_466, %c0_467], %514 {strides = array<i32>} : memref<392x512xf32, #tpu.memory_space<vmem>>, vector<8x512xf32>,
    %c0_468 = arith.constant 0 : index
    %c178_469 = arith.constant 178 : index
    %516 = vector.load %arg9[%c0_468, %c178_469] : memref<8x768xf32, #tpu.memory_space<vmem>>, vector<8x512xf32>
    %c47_470 = arith.constant 47 : index
    %c0_471 = arith.constant 0 : index
    %517 = vector.load %arg1[%c47_470, %c0_471] : memref<49x512xf32, #tpu.memory_space<vmem>>, vector<1x512xf32>
    %518 = vector.broadcast %517 : vector<1x512xf32> to vector<8x512xf32>
    %519 = arith.mulf %516, %518 : vector<8x512xf32>
    %c376_472 = arith.constant 376 : index
    %c0_473 = arith.constant 0 : index
    %520 = vector.load %arg10[%c376_472, %c0_473] : memref<392x512xf32, #tpu.memory_space<vmem>>, vector<8x512xf32>
    tpu.vector_store %arg10[%c376_472, %c0_473], %519 {strides = array<i32>} : memref<392x512xf32, #tpu.memory_space<vmem>>, vector<8x512xf32>,
    %c0_474 = arith.constant 0 : index
    %c179_475 = arith.constant 179 : index
    %521 = vector.load %arg9[%c0_474, %c179_475] : memref<8x768xf32, #tpu.memory_space<vmem>>, vector<8x512xf32>
    %c48_476 = arith.constant 48 : index
    %c0_477 = arith.constant 0 : index
    %522 = vector.load %arg1[%c48_476, %c0_477] : memref<49x512xf32, #tpu.memory_space<vmem>>, vector<1x512xf32>
    %523 = vector.broadcast %522 : vector<1x512xf32> to vector<8x512xf32>
    %524 = arith.mulf %521, %523 : vector<8x512xf32>
    %c384_478 = arith.constant 384 : index
    %c0_479 = arith.constant 0 : index
    %525 = vector.load %arg10[%c384_478, %c0_479] : memref<392x512xf32, #tpu.memory_space<vmem>>, vector<8x512xf32>
    tpu.vector_store %arg10[%c384_478, %c0_479], %524 {strides = array<i32>} : memref<392x512xf32, #tpu.memory_space<vmem>>, vector<8x512xf32>,
    %c0_480 = arith.constant 0 : index
    %c0_481 = arith.constant 0 : index
    %526 = vector.load %arg10[%c0_480, %c0_481] : memref<392x512xf32, #tpu.memory_space<vmem>>, vector<392x512xf32>
    %527 = arith.truncf %526 : vector<392x512xf32> to vector<392x512xbf16>
    %c0_482 = arith.constant 0 : index
    %c0_483 = arith.constant 0 : index
    %528 = vector.load %arg4[%c0_482, %c0_483] : memref<8x392xbf16, #tpu.memory_space<vmem>>, vector<8x392xbf16>
    %cst_484 = arith.constant dense<0.000000e+00> : vector<8x512xf32>
    %529 = tpu.matmul %528, %527, %cst_484 {dimension_numbers = #tpu.dot_dimension_numbers<[1], [0], [0], [1], [0, 0, 1, 1], [], []>} : vector<8x392xbf16>, vector<392x512xbf16>, vector<8x512xf32> -> vector<8x512xf32>
    %c0_485 = arith.constant 0 : index
    %c0_486 = arith.constant 0 : index
    %530 = vector.load %arg5[%c0_485, %c0_486] : memref<8x1xf32, #tpu.memory_space<vmem>>, vector<8x1xf32>
    %531 = vector.broadcast %530 : vector<8x1xf32> to vector<8x512xf32>
    %532 = arith.addf %529, %531 : vector<8x512xf32>
    %cst_487 = arith.constant 0.000000e+00 : f32
    %533 = vector.broadcast %cst_487 : f32 to vector<8x512xf32>
    %534 = arith.maximumf %532, %533 : vector<8x512xf32>
    %cst_488 = arith.constant dense<0.000000e+00> : vector<8xf32>
    %535 = vector.multi_reduction <add>, %534, %cst_488 [1] : vector<8x512xf32> to vector<8xf32>
    %536 = vector.shape_cast %535 : vector<8xf32> to vector<8x1xf32>
    %cst_489 = arith.constant 5.120000e+02 : f32
    %537 = vector.broadcast %cst_489 : f32 to vector<8x1xf32>
    %538 = arith.divf %536, %537 : vector<8x1xf32>
    %539 = vector.broadcast %538 : vector<8x1xf32> to vector<8x512xf32>
    %540 = arith.subf %534, %539 : vector<8x512xf32>
    %541 = arith.mulf %540, %540 : vector<8x512xf32>
    %cst_490 = arith.constant dense<0.000000e+00> : vector<8xf32>
    %542 = vector.multi_reduction <add>, %541, %cst_490 [1] : vector<8x512xf32> to vector<8xf32>
    %543 = vector.shape_cast %542 : vector<8xf32> to vector<8x1xf32>
    %cst_491 = arith.constant 5.120000e+02 : f32
    %544 = vector.broadcast %cst_491 : f32 to vector<8x1xf32>
    %545 = arith.divf %543, %544 : vector<8x1xf32>
    %cst_492 = arith.constant 9.99999974E-6 : f32
    %546 = vector.broadcast %cst_492 : f32 to vector<8x1xf32>
    %547 = arith.addf %545, %546 : vector<8x1xf32>
    %548 = math.rsqrt %547 : vector<8x1xf32>
    %549 = vector.broadcast %548 : vector<8x1xf32> to vector<8x512xf32>
    %550 = arith.mulf %540, %549 : vector<8x512xf32>
    %c0_493 = arith.constant 0 : index
    %c0_494 = arith.constant 0 : index
    %551 = vector.load %arg6[%c0_493, %c0_494] : memref<8x1xf32, #tpu.memory_space<vmem>>, vector<8x1xf32>
    %552 = vector.broadcast %551 : vector<8x1xf32> to vector<8x512xf32>
    %553 = arith.mulf %550, %552 : vector<8x512xf32>
    %c0_495 = arith.constant 0 : index
    %c0_496 = arith.constant 0 : index
    %554 = vector.load %arg7[%c0_495, %c0_496] : memref<8x1xf32, #tpu.memory_space<vmem>>, vector<8x1xf32>
    %555 = vector.broadcast %554 : vector<8x1xf32> to vector<8x512xf32>
    %556 = arith.addf %553, %555 : vector<8x512xf32>
    %c0_497 = arith.constant 0 : index
    %c0_498 = arith.constant 0 : index
    %557 = vector.load %arg8[%c0_497, %c0_498] : memref<8x512xf32, #tpu.memory_space<vmem>>, vector<8x512xf32>
    tpu.vector_store %arg8[%c0_497, %c0_498], %556 {strides = array<i32>} : memref<8x512xf32, #tpu.memory_space<vmem>>, vector<8x512xf32>,
    return
  }
}

</mosaic_0001>

<llo_original>
// kernel: tpu_custom_call.1
$region0: #{tpu_custom_call.1}
  #allocation0 [shape = 'u32[]', space=smem, size = 0x4, offset = 0x4, fixed_abs, tag = 'smem constant byte address 0x4 - core index']
  #allocation1 [shape = 'u32[72,128]{1,0:T(1,128)}', space=vmem, size = 0x9000, scoped, tag = 'internal scratch']
  #allocation2 [shape = 'f32[8,768]{1,0:T(8,128)}', space=vmem, size = 0x6000, scoped, tag = 'scratch operand']
  #allocation3 [shape = 'f32[392,512]{1,0:T(8,128)}', space=vmem, size = 0xc4000, scoped, tag = 'scratch operand']
  %s0 = inlined_call_operand.hbm [shape: f32[8,512], index: 0, kind: input, shape index: {}]
  %s1 = inlined_call_operand.hbm [shape: f32[49,512], index: 1, kind: input, shape index: {}]
  %s2 = inlined_call_operand.vmem [shape: bf16[8,392], index: 2, kind: input, shape index: {}]
  %s3 = inlined_call_operand.vmem [shape: f32[8,1], index: 3, kind: input, shape index: {}]
  %s4 = inlined_call_operand.vmem [shape: bf16[8,392], index: 4, kind: input, shape index: {}]
  %s5 = inlined_call_operand.vmem [shape: f32[8,1], index: 5, kind: input, shape index: {}]
  %s6 = inlined_call_operand.vmem [shape: f32[8,1], index: 6, kind: input, shape index: {}]
  %s7 = inlined_call_operand.vmem [shape: f32[8,1], index: 7, kind: input, shape index: {}]
  %s8 = inlined_call_operand.hbm [shape: f32[8,512], index: 8, kind: output, shape index: {}]
  %s9 = sld [smem:[#allocation0]]
  $region50: #{tpu_custom_call.1} parent=0
    _
  %s11 = ssub.s32 1, %s9
  %s12 = scalar_select 0, %s11, %s9
  $region1: #{tpu_custom_call.1} parent=0
    #allocation4 [shape = 'u8[16384]{0}', space=vmem, size = 0x4000, scoped, tag = 'input window, operand 0, single buffered']
    #allocation5 [shape = 's32[1]{0}', space=sflag, size = 0x4, scoped, tag = 'scoped memory for tpu_custom_call.1']
    #allocation6 [shape = 's32[1]{0}', space=sflag, size = 0x4, scoped, tag = 'scoped memory for tpu_custom_call.1']
    #allocation7 [shape = 'u8[114688]{0}', space=vmem, size = 0x1c000, scoped, tag = 'input window, operand 1, single buffered']
    #allocation8 [shape = 's32[1]{0}', space=sflag, size = 0x4, scoped, tag = 'scoped memory for tpu_custom_call.1']
    #allocation9 [shape = 'u8[16384]{0}', space=vmem, size = 0x4000, scoped, tag = 'output window, operand 0, single buffered']
    %13 = vsyncpa [#allocation5], 0
    %14 = vsyncpa [#allocation8], 0
    %15 = vsyncpa [#allocation6], 0
    // Predicated region
    $region2: #{tpu_custom_call.1} parent=1 // pred_check
      _
    $region3: #{tpu_custom_call.1} parent=1 // pred_check_branch
      %17 = sbr.rel (0) target = $region5
    $region4: #{tpu_custom_call.1} parent=1 // pred_region
      %19 = vsyncadd [#allocation5], 0
      %s21 = sshll.u32 %s0, 4
      %s22 = int_to_ptr.hbm [resolvable:$true] %s21
      %s23 = sshll.u32 [#allocation4], 4
      %s24 = int_to_ptr.vmem [resolvable:$true] %s23
      %26 = dma.hbm_to_vmem [thread:$0]  %s22, 512, %s24, [#allocation5]
    $region5: #{tpu_custom_call.1} parent=1 // pred_fallthru
      _
    // Predicated region
    $region6: #{tpu_custom_call.1} parent=1 // pred_check
      _
    $region7: #{tpu_custom_call.1} parent=1 // pred_check_branch
      %28 = sbr.rel (0) target = $region9
    $region8: #{tpu_custom_call.1} parent=1 // pred_region
      %30 = vsyncadd [#allocation8], 0
      %s31 = sshll.u32 %s1, 4
      %s32 = int_to_ptr.hbm [resolvable:$true] %s31
      %s33 = sshll.u32 [#allocation7], 4
      %s34 = int_to_ptr.vmem [resolvable:$true] %s33
      %39 = dma.hbm_to_vmem [thread:$0]  %s32, 3584, %s34, [#allocation8], 512, 512, 32
    $region9: #{tpu_custom_call.1} parent=1 // pred_fallthru
      _
    // Predicated region
    $region10: #{tpu_custom_call.1} parent=1 // pred_check
      _
    $region11: #{tpu_custom_call.1} parent=1 // pred_check_branch
      %41 = sbr.rel (0) target = $region13
    $region12: #{tpu_custom_call.1} parent=1 // pred_region
      _
    $region13: #{tpu_custom_call.1} parent=1 // pred_fallthru
      _
    // Predicated region
    $region14: #{tpu_custom_call.1} parent=1 // pred_check
      _
    $region15: #{tpu_custom_call.1} parent=1 // pred_check_branch
      %43 = sbr.rel (0) target = $region17
    $region16: #{tpu_custom_call.1} parent=1 // pred_region
      _
    $region17: #{tpu_custom_call.1} parent=1 // pred_fallthru
      _
    // Predicated region
    $region18: #{tpu_custom_call.1} parent=1 // pred_check
      _
    $region19: #{tpu_custom_call.1} parent=1 // pred_check_branch
      %45 = sbr.rel (0) target = $region21
    $region20: #{tpu_custom_call.1} parent=1 // pred_region
      _
    $region21: #{tpu_custom_call.1} parent=1 // pred_fallthru
      _
    // Predicated region
    $region22: #{tpu_custom_call.1} parent=1 // pred_check
      _
    $region23: #{tpu_custom_call.1} parent=1 // pred_check_branch
      %47 = sbr.rel (0) target = $region25
    $region24: #{tpu_custom_call.1} parent=1 // pred_region
      _
    $region25: #{tpu_custom_call.1} parent=1 // pred_fallthru
      _
    // Predicated region
    $region26: #{tpu_custom_call.1} parent=1 // pred_check
      _
    $region27: #{tpu_custom_call.1} parent=1 // pred_check_branch
      %49 = sbr.rel (0) target = $region29
    $region28: #{tpu_custom_call.1} parent=1 // pred_region
      _
    $region29: #{tpu_custom_call.1} parent=1 // pred_fallthru
      _
    // Predicated region
    $region30: #{tpu_custom_call.1} parent=1 // pred_check
      _
    $region31: #{tpu_custom_call.1} parent=1 // pred_check_branch
      %51 = sbr.rel (0) target = $region33
    $region32: #{tpu_custom_call.1} parent=1 // pred_region
      _
    $region33: #{tpu_custom_call.1} parent=1 // pred_fallthru
      _
    // Predicated region
    $region34: #{tpu_custom_call.1} parent=1 // pred_check
      _
    $region35: #{tpu_custom_call.1} parent=1 // pred_check_branch
      %53 = sbr.rel (0) target = $region37
    $region36: #{tpu_custom_call.1} parent=1 // pred_region
      %55 = dma.done [#allocation5], 512
    $region37: #{tpu_custom_call.1} parent=1 // pred_fallthru
      _
    // Predicated region
    $region38: #{tpu_custom_call.1} parent=1 // pred_check
      _
    $region39: #{tpu_custom_call.1} parent=1 // pred_check_branch
      %57 = sbr.rel (0) target = $region41
    $region40: #{tpu_custom_call.1} parent=1 // pred_region
      %59 = dma.done [#allocation8], 3584
    $region41: #{tpu_custom_call.1} parent=1 // pred_fallthru
      _
    %61 = vst [vmem:[#allocation2] sm:$0xff] 0.0
    %62 = vst [vmem:[#allocation2 + $0x8] sm:$0xff] 0.0
    %63 = vst [vmem:[#allocation2 + $0x10] sm:$0xff] 0.0
    %64 = vst [vmem:[#allocation2 + $0x18] sm:$0xff] 0.0
    %65 = vst [vmem:[#allocation2 + $0x20] sm:$0xff] 0.0
    %66 = vst [vmem:[#allocation2 + $0x28] sm:$0xff] 0.0
    %v67 = vld [vmem:[#allocation4] sm:$0xff]
    %v68 = vld [vmem:[#allocation4 + $0x8] sm:$0xff]
    %v69 = vld [vmem:[#allocation4 + $0x10] sm:$0xff]
    %v70 = vld [vmem:[#allocation4 + $0x18] sm:$0xff]
    %71 = vst [vmem:[#allocation2 + $0x8] sm:$0xff] %v67
    %72 = vst [vmem:[#allocation2 + $0x10] sm:$0xff] %v68
    %73 = vst [vmem:[#allocation2 + $0x18] sm:$0xff] %v69
    %74 = vst [vmem:[#allocation2 + $0x20] sm:$0xff] %v70
    %v75 = vld [vmem:[#allocation2] sm:$0xff]
    %v76 = vld [vmem:[#allocation2 + $0x8] sm:$0xff]
    %v77 = vld [vmem:[#allocation2 + $0x10] sm:$0xff]
    %v78 = vld [vmem:[#allocation2 + $0x18] sm:$0xff]
    %v79 = vld [vmem:[#allocation2 + $0x20] sm:$0xff]
    %v80 = vld [vmem:[#allocation7] ss:$8 sm:$0xf]
    %v82 = vperm.slane %v80, 0
    %v83 = vperm.slane %v80, 1
    %v84 = vperm.slane %v80, 2
    %v85 = vperm.slane %v80, 3
    %86 = vrot.lane.b32.xlu0 %v82, 77
    %v87 = vpop.permute.xlu0 %86
    %88 = vrot.lane.b32.xlu0 %v83, 77
    %v89 = vpop.permute.xlu0 %88
    %90 = vrot.lane.b32.xlu0 %v84, 77
    %v91 = vpop.permute.xlu0 %90
    %92 = vrot.lane.b32.xlu0 %v85, 77
    %v93 = vpop.permute.xlu0 %92
    %vm94 = vcmask 629760
    %v95 = vsel %vm94, %v87, %v89
    %v96 = vsel %vm94, %v89, %v91
    %v97 = vsel %vm94, %v91, %v93
    %v103 = vmul.f32 %v75, %v87
    %v104 = vmul.f32 %v76, %v95
    %v105 = vmul.f32 %v77, %v96
    %v106 = vmul.f32 %v78, %v97
    %v107 = vmul.f32 %v79, %v93
    %113 = vrot.lane.b32.xlu0 %v103, 51
    %v114 = vpop.permute.xlu0 %113
    %115 = vrot.lane.b32.xlu0 %v104, 51
    %v116 = vpop.permute.xlu0 %115
    %117 = vrot.lane.b32.xlu0 %v105, 51
    %v118 = vpop.permute.xlu0 %117
    %119 = vrot.lane.b32.xlu0 %v106, 51
    %v120 = vpop.permute.xlu0 %119
    %121 = vrot.lane.b32.xlu0 %v107, 51
    %v122 = vpop.permute.xlu0 %121
    %vm123 = vcmask 416768
    %v124 = vsel %vm123, %v114, %v116
    %v125 = vsel %vm123, %v116, %v118
    %v126 = vsel %vm123, %v118, %v120
    %v127 = vsel %vm123, %v120, %v122
    %132 = vst [vmem:[#allocation3] sm:$0xff] %v124
    %133 = vst [vmem:[#allocation3 + $0x8] sm:$0xff] %v125
    %134 = vst [vmem:[#allocation3 + $0x10] sm:$0xff] %v126
    %135 = vst [vmem:[#allocation3 + $0x18] sm:$0xff] %v127
    %v136 = vld [vmem:[#allocation2] sm:$0xff]
    %v137 = vld [vmem:[#allocation2 + $0x8] sm:$0xff]
    %v138 = vld [vmem:[#allocation2 + $0x10] sm:$0xff]
    %v139 = vld [vmem:[#allocation2 + $0x18] sm:$0xff]
    %v140 = vld [vmem:[#allocation2 + $0x20] sm:$0xff]
    %s141 = scalar_lea.vmem [#allocation7], 1
    %v142 = vld [vmem:[%s141] ss:$8 sm:$0xf]
    %v144 = vperm.slane %v142, 0
    %v145 = vperm.slane %v142, 1
    %v146 = vperm.slane %v142, 2
    %v147 = vperm.slane %v142, 3
    %148 = vrot.lane.b32.xlu0 %v144, 78
    %v149 = vpop.permute.xlu0 %148
    %150 = vrot.lane.b32.xlu0 %v145, 78
    %v151 = vpop.permute.xlu0 %150
    %152 = vrot.lane.b32.xlu0 %v146, 78
    %v153 = vpop.permute.xlu0 %152
    %154 = vrot.lane.b32.xlu0 %v147, 78
    %v155 = vpop.permute.xlu0 %154
    %vm156 = vcmask 637952
    %v157 = vsel %vm156, %v149, %v151
    %v158 = vsel %vm156, %v151, %v153
    %v159 = vsel %vm156, %v153, %v155
    %v165 = vmul.f32 %v136, %v149
    %v166 = vmul.f32 %v137, %v157
    %v167 = vmul.f32 %v138, %v158
    %v168 = vmul.f32 %v139, %v159
    %v169 = vmul.f32 %v140, %v155
    %175 = vrot.lane.b32.xlu0 %v165, 50
    %v176 = vpop.permute.xlu0 %175
    %177 = vrot.lane.b32.xlu0 %v166, 50
    %v178 = vpop.permute.xlu0 %177
    %179 = vrot.lane.b32.xlu0 %v167, 50
    %v180 = vpop.permute.xlu0 %179
    %181 = vrot.lane.b32.xlu0 %v168, 50
    %v182 = vpop.permute.xlu0 %181
    %183 = vrot.lane.b32.xlu0 %v169, 50
    %v184 = vpop.permute.xlu0 %183
    %vm185 = vcmask 408576
    %v186 = vsel %vm185, %v176, %v178
    %v187 = vsel %vm185, %v178, %v180
    %v188 = vsel %vm185, %v180, %v182
    %v189 = vsel %vm185, %v182, %v184
    %194 = vst [vmem:[#allocation3 + $0x20] sm:$0xff] %v186
    %195 = vst [vmem:[#allocation3 + $0x28] sm:$0xff] %v187
    %196 = vst [vmem:[#allocation3 + $0x30] sm:$0xff] %v188
    %197 = vst [vmem:[#allocation3 + $0x38] sm:$0xff] %v189
    %v198 = vld [vmem:[#allocation2] sm:$0xff]
    %v199 = vld [vmem:[#allocation2 + $0x8] sm:$0xff]
    %v200 = vld [vmem:[#allocation2 + $0x10] sm:$0xff]
    %v201 = vld [vmem:[#allocation2 + $0x18] sm:$0xff]
    %v202 = vld [vmem:[#allocation2 + $0x20] sm:$0xff]
    %s203 = scalar_lea.vmem [#allocation7], 2
    %v204 = vld [vmem:[%s203] ss:$8 sm:$0xf]
    %v206 = vperm.slane %v204, 0
    %v207 = vperm.slane %v204, 1
    %v208 = vperm.slane %v204, 2
    %v209 = vperm.slane %v204, 3
    %210 = vrot.lane.b32.xlu0 %v206, 79
    %v211 = vpop.permute.xlu0 %210
    %212 = vrot.lane.b32.xlu0 %v207, 79
    %v213 = vpop.permute.xlu0 %212
    %214 = vrot.lane.b32.xlu0 %v208, 79
    %v215 = vpop.permute.xlu0 %214
    %216 = vrot.lane.b32.xlu0 %v209, 79
    %v217 = vpop.permute.xlu0 %216
    %vm218 = vcmask 646144
    %v219 = vsel %vm218, %v211, %v213
    %v220 = vsel %vm218, %v213, %v215
    %v221 = vsel %vm218, %v215, %v217
    %v227 = vmul.f32 %v198, %v211
    %v228 = vmul.f32 %v199, %v219
    %v229 = vmul.f32 %v200, %v220
    %v230 = vmul.f32 %v201, %v221
    %v231 = vmul.f32 %v202, %v217
    %237 = vrot.lane.b32.xlu0 %v227, 49
    %v238 = vpop.permute.xlu0 %237
    %239 = vrot.lane.b32.xlu0 %v228, 49
    %v240 = vpop.permute.xlu0 %239
    %241 = vrot.lane.b32.xlu0 %v229, 49
    %v242 = vpop.permute.xlu0 %241
    %243 = vrot.lane.b32.xlu0 %v230, 49
    %v244 = vpop.permute.xlu0 %243
    %245 = vrot.lane.b32.xlu0 %v231, 49
    %v246 = vpop.permute.xlu0 %245
    %vm247 = vcmask 400384
    %v248 = vsel %vm247, %v238, %v240
    %v249 = vsel %vm247, %v240, %v242
    %v250 = vsel %vm247, %v242, %v244
    %v251 = vsel %vm247, %v244, %v246
    %256 = vst [vmem:[#allocation3 + $0x40] sm:$0xff] %v248
    %257 = vst [vmem:[#allocation3 + $0x48] sm:$0xff] %v249
    %258 = vst [vmem:[#allocation3 + $0x50] sm:$0xff] %v250
    %259 = vst [vmem:[#allocation3 + $0x58] sm:$0xff] %v251
    %v260 = vld [vmem:[#allocation2] sm:$0xff]
    %v261 = vld [vmem:[#allocation2 + $0x8] sm:$0xff]
    %v262 = vld [vmem:[#allocation2 + $0x10] sm:$0xff]
    %v263 = vld [vmem:[#allocation2 + $0x18] sm:$0xff]
    %v264 = vld [vmem:[#allocation2 + $0x20] sm:$0xff]
    %s265 = scalar_lea.vmem [#allocation7], 3
    %v266 = vld [vmem:[%s265] ss:$8 sm:$0xf]
    %v268 = vperm.slane %v266, 0
    %v269 = vperm.slane %v266, 1
    %v270 = vperm.slane %v266, 2
    %v271 = vperm.slane %v266, 3
    %272 = vrot.lane.b32.xlu0 %v268, 80
    %v273 = vpop.permute.xlu0 %272
    %274 = vrot.lane.b32.xlu0 %v269, 80
    %v275 = vpop.permute.xlu0 %274
    %276 = vrot.lane.b32.xlu0 %v270, 80
    %v277 = vpop.permute.xlu0 %276
    %278 = vrot.lane.b32.xlu0 %v271, 80
    %v279 = vpop.permute.xlu0 %278
    %vm280 = vcmask 654336
    %v281 = vsel %vm280, %v273, %v275
    %v282 = vsel %vm280, %v275, %v277
    %v283 = vsel %vm280, %v277, %v279
    %v289 = vmul.f32 %v260, %v273
    %v290 = vmul.f32 %v261, %v281
    %v291 = vmul.f32 %v262, %v282
    %v292 = vmul.f32 %v263, %v283
    %v293 = vmul.f32 %v264, %v279
    %299 = vrot.lane.b32.xlu0 %v289, 48
    %v300 = vpop.permute.xlu0 %299
    %301 = vrot.lane.b32.xlu0 %v290, 48
    %v302 = vpop.permute.xlu0 %301
    %303 = vrot.lane.b32.xlu0 %v291, 48
    %v304 = vpop.permute.xlu0 %303
    %305 = vrot.lane.b32.xlu0 %v292, 48
    %v306 = vpop.permute.xlu0 %305
    %307 = vrot.lane.b32.xlu0 %v293, 48
    %v308 = vpop.permute.xlu0 %307
    %vm309 = vcmask 392192
    %v310 = vsel %vm309, %v300, %v302
    %v311 = vsel %vm309, %v302, %v304
    %v312 = vsel %vm309, %v304, %v306
    %v313 = vsel %vm309, %v306, %v308
    %318 = vst [vmem:[#allocation3 + $0x60] sm:$0xff] %v310
    %319 = vst [vmem:[#allocation3 + $0x68] sm:$0xff] %v311
    %320 = vst [vmem:[#allocation3 + $0x70] sm:$0xff] %v312
    %321 = vst [vmem:[#allocation3 + $0x78] sm:$0xff] %v313
    %v322 = vld [vmem:[#allocation2] sm:$0xff]
    %v323 = vld [vmem:[#allocation2 + $0x8] sm:$0xff]
    %v324 = vld [vmem:[#allocation2 + $0x10] sm:$0xff]
    %v325 = vld [vmem:[#allocation2 + $0x18] sm:$0xff]
    %v326 = vld [vmem:[#allocation2 + $0x20] sm:$0xff]
    %s327 = scalar_lea.vmem [#allocation7], 4
    %v328 = vld [vmem:[%s327] ss:$8 sm:$0xf]
    %v330 = vperm.slane %v328, 0
    %v331 = vperm.slane %v328, 1
    %v332 = vperm.slane %v328, 2
    %v333 = vperm.slane %v328, 3
    %334 = vrot.lane.b32.xlu0 %v330, 81
    %v335 = vpop.permute.xlu0 %334
    %336 = vrot.lane.b32.xlu0 %v331, 81
    %v337 = vpop.permute.xlu0 %336
    %338 = vrot.lane.b32.xlu0 %v332, 81
    %v339 = vpop.permute.xlu0 %338
    %340 = vrot.lane.b32.xlu0 %v333, 81
    %v341 = vpop.permute.xlu0 %340
    %vm342 = vcmask 662528
    %v343 = vsel %vm342, %v335, %v337
    %v344 = vsel %vm342, %v337, %v339
    %v345 = vsel %vm342, %v339, %v341
    %v351 = vmul.f32 %v322, %v335
    %v352 = vmul.f32 %v323, %v343
    %v353 = vmul.f32 %v324, %v344
    %v354 = vmul.f32 %v325, %v345
    %v355 = vmul.f32 %v326, %v341
    %361 = vrot.lane.b32.xlu0 %v351, 47
    %v362 = vpop.permute.xlu0 %361
    %363 = vrot.lane.b32.xlu0 %v352, 47
    %v364 = vpop.permute.xlu0 %363
    %365 = vrot.lane.b32.xlu0 %v353, 47
    %v366 = vpop.permute.xlu0 %365
    %367 = vrot.lane.b32.xlu0 %v354, 47
    %v368 = vpop.permute.xlu0 %367
    %369 = vrot.lane.b32.xlu0 %v355, 47
    %v370 = vpop.permute.xlu0 %369
    %vm371 = vcmask 384000
    %v372 = vsel %vm371, %v362, %v364
    %v373 = vsel %vm371, %v364, %v366
    %v374 = vsel %vm371, %v366, %v368
    %v375 = vsel %vm371, %v368, %v370
    %380 = vst [vmem:[#allocation3 + $0x80] sm:$0xff] %v372
    %381 = vst [vmem:[#allocation3 + $0x88] sm:$0xff] %v373
    %382 = vst [vmem:[#allocation3 + $0x90] sm:$0xff] %v374
    %383 = vst [vmem:[#allocation3 + $0x98] sm:$0xff] %v375
    %v384 = vld [vmem:[#allocation2] sm:$0xff]
    %v385 = vld [vmem:[#allocation2 + $0x8] sm:$0xff]
    %v386 = vld [vmem:[#allocation2 + $0x10] sm:$0xff]
    %v387 = vld [vmem:[#allocation2 + $0x18] sm:$0xff]
    %v388 = vld [vmem:[#allocation2 + $0x20] sm:$0xff]
    %s389 = scalar_lea.vmem [#allocation7], 5
    %v390 = vld [vmem:[%s389] ss:$8 sm:$0xf]
    %v392 = vperm.slane %v390, 0
    %v393 = vperm.slane %v390, 1
    %v394 = vperm.slane %v390, 2
    %v395 = vperm.slane %v390, 3
    %396 = vrot.lane.b32.xlu0 %v392, 82
    %v397 = vpop.permute.xlu0 %396
    %398 = vrot.lane.b32.xlu0 %v393, 82
    %v399 = vpop.permute.xlu0 %398
    %400 = vrot.lane.b32.xlu0 %v394, 82
    %v401 = vpop.permute.xlu0 %400
    %402 = vrot.lane.b32.xlu0 %v395, 82
    %v403 = vpop.permute.xlu0 %402
    %vm404 = vcmask 670720
    %v405 = vsel %vm404, %v397, %v399
    %v406 = vsel %vm404, %v399, %v401
    %v407 = vsel %vm404, %v401, %v403
    %v413 = vmul.f32 %v384, %v397
    %v414 = vmul.f32 %v385, %v405
    %v415 = vmul.f32 %v386, %v406
    %v416 = vmul.f32 %v387, %v407
    %v417 = vmul.f32 %v388, %v403
    %423 = vrot.lane.b32.xlu0 %v413, 46
    %v424 = vpop.permute.xlu0 %423
    %425 = vrot.lane.b32.xlu0 %v414, 46
    %v426 = vpop.permute.xlu0 %425
    %427 = vrot.lane.b32.xlu0 %v415, 46
    %v428 = vpop.permute.xlu0 %427
    %429 = vrot.lane.b32.xlu0 %v416, 46
    %v430 = vpop.permute.xlu0 %429
    %431 = vrot.lane.b32.xlu0 %v417, 46
    %v432 = vpop.permute.xlu0 %431
    %vm433 = vcmask 375808
    %v434 = vsel %vm433, %v424, %v426
    %v435 = vsel %vm433, %v426, %v428
    %v436 = vsel %vm433, %v428, %v430
    %v437 = vsel %vm433, %v430, %v432
    %442 = vst [vmem:[#allocation3 + $0xa0] sm:$0xff] %v434
    %443 = vst [vmem:[#allocation3 + $0xa8] sm:$0xff] %v435
    %444 = vst [vmem:[#allocation3 + $0xb0] sm:$0xff] %v436
    %445 = vst [vmem:[#allocation3 + $0xb8] sm:$0xff] %v437
    %v446 = vld [vmem:[#allocation2] sm:$0xff]
    %v447 = vld [vmem:[#allocation2 + $0x8] sm:$0xff]
    %v448 = vld [vmem:[#allocation2 + $0x10] sm:$0xff]
    %v449 = vld [vmem:[#allocation2 + $0x18] sm:$0xff]
    %v450 = vld [vmem:[#allocation2 + $0x20] sm:$0xff]
    %s451 = scalar_lea.vmem [#allocation7], 6
    %v452 = vld [vmem:[%s451] ss:$8 sm:$0xf]
    %v454 = vperm.slane %v452, 0
    %v455 = vperm.slane %v452, 1
    %v456 = vperm.slane %v452, 2
    %v457 = vperm.slane %v452, 3
    %458 = vrot.lane.b32.xlu0 %v454, 83
    %v459 = vpop.permute.xlu0 %458
    %460 = vrot.lane.b32.xlu0 %v455, 83
    %v461 = vpop.permute.xlu0 %460
    %462 = vrot.lane.b32.xlu0 %v456, 83
    %v463 = vpop.permute.xlu0 %462
    %464 = vrot.lane.b32.xlu0 %v457, 83
    %v465 = vpop.permute.xlu0 %464
    %vm466 = vcmask 678912
    %v467 = vsel %vm466, %v459, %v461
    %v468 = vsel %vm466, %v461, %v463
    %v469 = vsel %vm466, %v463, %v465
    %v475 = vmul.f32 %v446, %v459
    %v476 = vmul.f32 %v447, %v467
    %v477 = vmul.f32 %v448, %v468
    %v478 = vmul.f32 %v449, %v469
    %v479 = vmul.f32 %v450, %v465
    %485 = vrot.lane.b32.xlu0 %v475, 45
    %v486 = vpop.permute.xlu0 %485
    %487 = vrot.lane.b32.xlu0 %v476, 45
    %v488 = vpop.permute.xlu0 %487
    %489 = vrot.lane.b32.xlu0 %v477, 45
    %v490 = vpop.permute.xlu0 %489
    %491 = vrot.lane.b32.xlu0 %v478, 45
    %v492 = vpop.permute.xlu0 %491
    %493 = vrot.lane.b32.xlu0 %v479, 45
    %v494 = vpop.permute.xlu0 %493
    %vm495 = vcmask 367616
    %v496 = vsel %vm495, %v486, %v488
    %v497 = vsel %vm495, %v488, %v490
    %v498 = vsel %vm495, %v490, %v492
    %v499 = vsel %vm495, %v492, %v494
    %504 = vst [vmem:[#allocation3 + $0xc0] sm:$0xff] %v496
    %505 = vst [vmem:[#allocation3 + $0xc8] sm:$0xff] %v497
    %506 = vst [vmem:[#allocation3 + $0xd0] sm:$0xff] %v498
    %507 = vst [vmem:[#allocation3 + $0xd8] sm:$0xff] %v499
    %v508 = vld [vmem:[#allocation2] sm:$0xff]
    %v509 = vld [vmem:[#allocation2 + $0x8] sm:$0xff]
    %v510 = vld [vmem:[#allocation2 + $0x10] sm:$0xff]
    %v511 = vld [vmem:[#allocation2 + $0x18] sm:$0xff]
    %v512 = vld [vmem:[#allocation2 + $0x20] sm:$0xff]
    %s513 = scalar_lea.vmem [#allocation7], 7
    %v514 = vld [vmem:[%s513] ss:$8 sm:$0xf]
    %v516 = vperm.slane %v514, 0
    %v517 = vperm.slane %v514, 1
    %v518 = vperm.slane %v514, 2
    %v519 = vperm.slane %v514, 3
    %520 = vrot.lane.b32.xlu0 %v516, 93
    %v521 = vpop.permute.xlu0 %520
    %522 = vrot.lane.b32.xlu0 %v517, 93
    %v523 = vpop.permute.xlu0 %522
    %524 = vrot.lane.b32.xlu0 %v518, 93
    %v525 = vpop.permute.xlu0 %524
    %526 = vrot.lane.b32.xlu0 %v519, 93
    %v527 = vpop.permute.xlu0 %526
    %vm528 = vcmask 760832
    %v529 = vsel %vm528, %v521, %v523
    %v530 = vsel %vm528, %v523, %v525
    %v531 = vsel %vm528, %v525, %v527
    %v537 = vmul.f32 %v508, %v521
    %v538 = vmul.f32 %v509, %v529
    %v539 = vmul.f32 %v510, %v530
    %v540 = vmul.f32 %v511, %v531
    %v541 = vmul.f32 %v512, %v527
    %547 = vrot.lane.b32.xlu0 %v537, 35
    %v548 = vpop.permute.xlu0 %547
    %549 = vrot.lane.b32.xlu0 %v538, 35
    %v550 = vpop.permute.xlu0 %549
    %551 = vrot.lane.b32.xlu0 %v539, 35
    %v552 = vpop.permute.xlu0 %551
    %553 = vrot.lane.b32.xlu0 %v540, 35
    %v554 = vpop.permute.xlu0 %553
    %555 = vrot.lane.b32.xlu0 %v541, 35
    %v556 = vpop.permute.xlu0 %555
    %vm557 = vcmask 285696
    %v558 = vsel %vm557, %v548, %v550
    %v559 = vsel %vm557, %v550, %v552
    %v560 = vsel %vm557, %v552, %v554
    %v561 = vsel %vm557, %v554, %v556
    %566 = vst [vmem:[#allocation3 + $0xe0] sm:$0xff] %v558
    %567 = vst [vmem:[#allocation3 + $0xe8] sm:$0xff] %v559
    %568 = vst [vmem:[#allocation3 + $0xf0] sm:$0xff] %v560
    %569 = vst [vmem:[#allocation3 + $0xf8] sm:$0xff] %v561
    %v570 = vld [vmem:[#allocation2] sm:$0xff]
    %v571 = vld [vmem:[#allocation2 + $0x8] sm:$0xff]
    %v572 = vld [vmem:[#allocation2 + $0x10] sm:$0xff]
    %v573 = vld [vmem:[#allocation2 + $0x18] sm:$0xff]
    %v574 = vld [vmem:[#allocation2 + $0x20] sm:$0xff]
    %s575 = scalar_lea.vmem [#allocation7], 32
    %v576 = vld [vmem:[%s575] ss:$8 sm:$0xf]
    %v578 = vperm.slane %v576, 0
    %v579 = vperm.slane %v576, 1
    %v580 = vperm.slane %v576, 2
    %v581 = vperm.slane %v576, 3
    %582 = vrot.lane.b32.xlu0 %v578, 94
    %v583 = vpop.permute.xlu0 %582
    %584 = vrot.lane.b32.xlu0 %v579, 94
    %v585 = vpop.permute.xlu0 %584
    %586 = vrot.lane.b32.xlu0 %v580, 94
    %v587 = vpop.permute.xlu0 %586
    %588 = vrot.lane.b32.xlu0 %v581, 94
    %v589 = vpop.permute.xlu0 %588
    %vm590 = vcmask 769024
    %v591 = vsel %vm590, %v583, %v585
    %v592 = vsel %vm590, %v585, %v587
    %v593 = vsel %vm590, %v587, %v589
    %v599 = vmul.f32 %v570, %v583
    %v600 = vmul.f32 %v571, %v591
    %v601 = vmul.f32 %v572, %v592
    %v602 = vmul.f32 %v573, %v593
    %v603 = vmul.f32 %v574, %v589
    %609 = vrot.lane.b32.xlu0 %v599, 34
    %v610 = vpop.permute.xlu0 %609
    %611 = vrot.lane.b32.xlu0 %v600, 34
    %v612 = vpop.permute.xlu0 %611
    %613 = vrot.lane.b32.xlu0 %v601, 34
    %v614 = vpop.permute.xlu0 %613
    %615 = vrot.lane.b32.xlu0 %v602, 34
    %v616 = vpop.permute.xlu0 %615
    %617 = vrot.lane.b32.xlu0 %v603, 34
    %v618 = vpop.permute.xlu0 %617
    %vm619 = vcmask 277504
    %v620 = vsel %vm619, %v610, %v612
    %v621 = vsel %vm619, %v612, %v614
    %v622 = vsel %vm619, %v614, %v616
    %v623 = vsel %vm619, %v616, %v618
    %628 = vst [vmem:[#allocation3 + $0x100] sm:$0xff] %v620
    %629 = vst [vmem:[#allocation3 + $0x108] sm:$0xff] %v621
    %630 = vst [vmem:[#allocation3 + $0x110] sm:$0xff] %v622
    %631 = vst [vmem:[#allocation3 + $0x118] sm:$0xff] %v623
    %v632 = vld [vmem:[#allocation2] sm:$0xff]
    %v633 = vld [vmem:[#allocation2 + $0x8] sm:$0xff]
    %v634 = vld [vmem:[#allocation2 + $0x10] sm:$0xff]
    %v635 = vld [vmem:[#allocation2 + $0x18] sm:$0xff]
    %v636 = vld [vmem:[#allocation2 + $0x20] sm:$0xff]
    %s637 = scalar_lea.vmem [#allocation7], 33
    %v638 = vld [vmem:[%s637] ss:$8 sm:$0xf]
    %v640 = vperm.slane %v638, 0
    %v641 = vperm.slane %v638, 1
    %v642 = vperm.slane %v638, 2
    %v643 = vperm.slane %v638, 3
    %644 = vrot.lane.b32.xlu0 %v640, 95
    %v645 = vpop.permute.xlu0 %644
    %646 = vrot.lane.b32.xlu0 %v641, 95
    %v647 = vpop.permute.xlu0 %646
    %648 = vrot.lane.b32.xlu0 %v642, 95
    %v649 = vpop.permute.xlu0 %648
    %650 = vrot.lane.b32.xlu0 %v643, 95
    %v651 = vpop.permute.xlu0 %650
    %vm652 = vcmask 777216
    %v653 = vsel %vm652, %v645, %v647
    %v654 = vsel %vm652, %v647, %v649
    %v655 = vsel %vm652, %v649, %v651
    %v661 = vmul.f32 %v632, %v645
    %v662 = vmul.f32 %v633, %v653
    %v663 = vmul.f32 %v634, %v654
    %v664 = vmul.f32 %v635, %v655
    %v665 = vmul.f32 %v636, %v651
    %671 = vrot.lane.b32.xlu0 %v661, 33
    %v672 = vpop.permute.xlu0 %671
    %673 = vrot.lane.b32.xlu0 %v662, 33
    %v674 = vpop.permute.xlu0 %673
    %675 = vrot.lane.b32.xlu0 %v663, 33
    %v676 = vpop.permute.xlu0 %675
    %677 = vrot.lane.b32.xlu0 %v664, 33
    %v678 = vpop.permute.xlu0 %677
    %679 = vrot.lane.b32.xlu0 %v665, 33
    %v680 = vpop.permute.xlu0 %679
    %vm681 = vcmask 269312
    %v682 = vsel %vm681, %v672, %v674
    %v683 = vsel %vm681, %v674, %v676
    %v684 = vsel %vm681, %v676, %v678
    %v685 = vsel %vm681, %v678, %v680
    %690 = vst [vmem:[#allocation3 + $0x120] sm:$0xff] %v682
    %691 = vst [vmem:[#allocation3 + $0x128] sm:$0xff] %v683
    %692 = vst [vmem:[#allocation3 + $0x130] sm:$0xff] %v684
    %693 = vst [vmem:[#allocation3 + $0x138] sm:$0xff] %v685
    %v694 = vld [vmem:[#allocation2] sm:$0xff]
    %v695 = vld [vmem:[#allocation2 + $0x8] sm:$0xff]
    %v696 = vld [vmem:[#allocation2 + $0x10] sm:$0xff]
    %v697 = vld [vmem:[#allocation2 + $0x18] sm:$0xff]
    %v698 = vld [vmem:[#allocation2 + $0x20] sm:$0xff]
    %s699 = scalar_lea.vmem [#allocation7], 34
    %v700 = vld [vmem:[%s699] ss:$8 sm:$0xf]
    %v702 = vperm.slane %v700, 0
    %v703 = vperm.slane %v700, 1
    %v704 = vperm.slane %v700, 2
    %v705 = vperm.slane %v700, 3
    %706 = vrot.lane.b32.xlu0 %v702, 96
    %v707 = vpop.permute.xlu0 %706
    %708 = vrot.lane.b32.xlu0 %v703, 96
    %v709 = vpop.permute.xlu0 %708
    %710 = vrot.lane.b32.xlu0 %v704, 96
    %v711 = vpop.permute.xlu0 %710
    %712 = vrot.lane.b32.xlu0 %v705, 96
    %v713 = vpop.permute.xlu0 %712
    %vm714 = vcmask 785408
    %v715 = vsel %vm714, %v707, %v709
    %v716 = vsel %vm714, %v709, %v711
    %v717 = vsel %vm714, %v711, %v713
    %v723 = vmul.f32 %v694, %v707
    %v724 = vmul.f32 %v695, %v715
    %v725 = vmul.f32 %v696, %v716
    %v726 = vmul.f32 %v697, %v717
    %v727 = vmul.f32 %v698, %v713
    %733 = vrot.lane.b32.xlu0 %v723, 32
    %v734 = vpop.permute.xlu0 %733
    %735 = vrot.lane.b32.xlu0 %v724, 32
    %v736 = vpop.permute.xlu0 %735
    %737 = vrot.lane.b32.xlu0 %v725, 32
    %v738 = vpop.permute.xlu0 %737
    %739 = vrot.lane.b32.xlu0 %v726, 32
    %v740 = vpop.permute.xlu0 %739
    %741 = vrot.lane.b32.xlu0 %v727, 32
    %v742 = vpop.permute.xlu0 %741
    %vm743 = vcmask 261120
    %v744 = vsel %vm743, %v734, %v736
    %v745 = vsel %vm743, %v736, %v738
    %v746 = vsel %vm743, %v738, %v740
    %v747 = vsel %vm743, %v740, %v742
    %752 = vst [vmem:[#allocation3 + $0x140] sm:$0xff] %v744
    %753 = vst [vmem:[#allocation3 + $0x148] sm:$0xff] %v745
    %754 = vst [vmem:[#allocation3 + $0x150] sm:$0xff] %v746
    %755 = vst [vmem:[#allocation3 + $0x158] sm:$0xff] %v747
    %v756 = vld [vmem:[#allocation2] sm:$0xff]
    %v757 = vld [vmem:[#allocation2 + $0x8] sm:$0xff]
    %v758 = vld [vmem:[#allocation2 + $0x10] sm:$0xff]
    %v759 = vld [vmem:[#allocation2 + $0x18] sm:$0xff]
    %v760 = vld [vmem:[#allocation2 + $0x20] sm:$0xff]
    %s761 = scalar_lea.vmem [#allocation7], 35
    %v762 = vld [vmem:[%s761] ss:$8 sm:$0xf]
    %v764 = vperm.slane %v762, 0
    %v765 = vperm.slane %v762, 1
    %v766 = vperm.slane %v762, 2
    %v767 = vperm.slane %v762, 3
    %768 = vrot.lane.b32.xlu0 %v764, 97
    %v769 = vpop.permute.xlu0 %768
    %770 = vrot.lane.b32.xlu0 %v765, 97
    %v771 = vpop.permute.xlu0 %770
    %772 = vrot.lane.b32.xlu0 %v766, 97
    %v773 = vpop.permute.xlu0 %772
    %774 = vrot.lane.b32.xlu0 %v767, 97
    %v775 = vpop.permute.xlu0 %774
    %vm776 = vcmask 793600
    %v777 = vsel %vm776, %v769, %v771
    %v778 = vsel %vm776, %v771, %v773
    %v779 = vsel %vm776, %v773, %v775
    %v785 = vmul.f32 %v756, %v769
    %v786 = vmul.f32 %v757, %v777
    %v787 = vmul.f32 %v758, %v778
    %v788 = vmul.f32 %v759, %v779
    %v789 = vmul.f32 %v760, %v775
    %795 = vrot.lane.b32.xlu0 %v785, 31
    %v796 = vpop.permute.xlu0 %795
    %797 = vrot.lane.b32.xlu0 %v786, 31
    %v798 = vpop.permute.xlu0 %797
    %799 = vrot.lane.b32.xlu0 %v787, 31
    %v800 = vpop.permute.xlu0 %799
    %801 = vrot.lane.b32.xlu0 %v788, 31
    %v802 = vpop.permute.xlu0 %801
    %803 = vrot.lane.b32.xlu0 %v789, 31
    %v804 = vpop.permute.xlu0 %803
    %vm805 = vcmask 252928
    %v806 = vsel %vm805, %v796, %v798
    %v807 = vsel %vm805, %v798, %v800
    %v808 = vsel %vm805, %v800, %v802
    %v809 = vsel %vm805, %v802, %v804
    %814 = vst [vmem:[#allocation3 + $0x160] sm:$0xff] %v806
    %815 = vst [vmem:[#allocation3 + $0x168] sm:$0xff] %v807
    %816 = vst [vmem:[#allocation3 + $0x170] sm:$0xff] %v808
    %817 = vst [vmem:[#allocation3 + $0x178] sm:$0xff] %v809
    %v818 = vld [vmem:[#allocation2] sm:$0xff]
    %v819 = vld [vmem:[#allocation2 + $0x8] sm:$0xff]
    %v820 = vld [vmem:[#allocation2 + $0x10] sm:$0xff]
    %v821 = vld [vmem:[#allocation2 + $0x18] sm:$0xff]
    %v822 = vld [vmem:[#allocation2 + $0x20] sm:$0xff]
    %s823 = scalar_lea.vmem [#allocation7], 36
    %v824 = vld [vmem:[%s823] ss:$8 sm:$0xf]
    %v826 = vperm.slane %v824, 0
    %v827 = vperm.slane %v824, 1
    %v828 = vperm.slane %v824, 2
    %v829 = vperm.slane %v824, 3
    %830 = vrot.lane.b32.xlu0 %v826, 98
    %v831 = vpop.permute.xlu0 %830
    %832 = vrot.lane.b32.xlu0 %v827, 98
    %v833 = vpop.permute.xlu0 %832
    %834 = vrot.lane.b32.xlu0 %v828, 98
    %v835 = vpop.permute.xlu0 %834
    %836 = vrot.lane.b32.xlu0 %v829, 98
    %v837 = vpop.permute.xlu0 %836
    %vm838 = vcmask 801792
    %v839 = vsel %vm838, %v831, %v833
    %v840 = vsel %vm838, %v833, %v835
    %v841 = vsel %vm838, %v835, %v837
    %v847 = vmul.f32 %v818, %v831
    %v848 = vmul.f32 %v819, %v839
    %v849 = vmul.f32 %v820, %v840
    %v850 = vmul.f32 %v821, %v841
    %v851 = vmul.f32 %v822, %v837
    %857 = vrot.lane.b32.xlu0 %v847, 30
    %v858 = vpop.permute.xlu0 %857
    %859 = vrot.lane.b32.xlu0 %v848, 30
    %v860 = vpop.permute.xlu0 %859
    %861 = vrot.lane.b32.xlu0 %v849, 30
    %v862 = vpop.permute.xlu0 %861
    %863 = vrot.lane.b32.xlu0 %v850, 30
    %v864 = vpop.permute.xlu0 %863
    %865 = vrot.lane.b32.xlu0 %v851, 30
    %v866 = vpop.permute.xlu0 %865
    %vm867 = vcmask 244736
    %v868 = vsel %vm867, %v858, %v860
    %v869 = vsel %vm867, %v860, %v862
    %v870 = vsel %vm867, %v862, %v864
    %v871 = vsel %vm867, %v864, %v866
    %876 = vst [vmem:[#allocation3 + $0x180] sm:$0xff] %v868
    %877 = vst [vmem:[#allocation3 + $0x188] sm:$0xff] %v869
    %878 = vst [vmem:[#allocation3 + $0x190] sm:$0xff] %v870
    %879 = vst [vmem:[#allocation3 + $0x198] sm:$0xff] %v871
    %v880 = vld [vmem:[#allocation2] sm:$0xff]
    %v881 = vld [vmem:[#allocation2 + $0x8] sm:$0xff]
    %v882 = vld [vmem:[#allocation2 + $0x10] sm:$0xff]
    %v883 = vld [vmem:[#allocation2 + $0x18] sm:$0xff]
    %v884 = vld [vmem:[#allocation2 + $0x20] sm:$0xff]
    %s885 = scalar_lea.vmem [#allocation7], 37
    %v886 = vld [vmem:[%s885] ss:$8 sm:$0xf]
    %v888 = vperm.slane %v886, 0
    %v889 = vperm.slane %v886, 1
    %v890 = vperm.slane %v886, 2
    %v891 = vperm.slane %v886, 3
    %892 = vrot.lane.b32.xlu0 %v888, 99
    %v893 = vpop.permute.xlu0 %892
    %894 = vrot.lane.b32.xlu0 %v889, 99
    %v895 = vpop.permute.xlu0 %894
    %896 = vrot.lane.b32.xlu0 %v890, 99
    %v897 = vpop.permute.xlu0 %896
    %898 = vrot.lane.b32.xlu0 %v891, 99
    %v899 = vpop.permute.xlu0 %898
    %vm900 = vcmask 809984
    %v901 = vsel %vm900, %v893, %v895
    %v902 = vsel %vm900, %v895, %v897
    %v903 = vsel %vm900, %v897, %v899
    %v909 = vmul.f32 %v880, %v893
    %v910 = vmul.f32 %v881, %v901
    %v911 = vmul.f32 %v882, %v902
    %v912 = vmul.f32 %v883, %v903
    %v913 = vmul.f32 %v884, %v899
    %919 = vrot.lane.b32.xlu0 %v909, 29
    %v920 = vpop.permute.xlu0 %919
    %921 = vrot.lane.b32.xlu0 %v910, 29
    %v922 = vpop.permute.xlu0 %921
    %923 = vrot.lane.b32.xlu0 %v911, 29
    %v924 = vpop.permute.xlu0 %923
    %925 = vrot.lane.b32.xlu0 %v912, 29
    %v926 = vpop.permute.xlu0 %925
    %927 = vrot.lane.b32.xlu0 %v913, 29
    %v928 = vpop.permute.xlu0 %927
    %vm929 = vcmask 236544
    %v930 = vsel %vm929, %v920, %v922
    %v931 = vsel %vm929, %v922, %v924
    %v932 = vsel %vm929, %v924, %v926
    %v933 = vsel %vm929, %v926, %v928
    %938 = vst [vmem:[#allocation3 + $0x1a0] sm:$0xff] %v930
    %939 = vst [vmem:[#allocation3 + $0x1a8] sm:$0xff] %v931
    %940 = vst [vmem:[#allocation3 + $0x1b0] sm:$0xff] %v932
    %941 = vst [vmem:[#allocation3 + $0x1b8] sm:$0xff] %v933
    %v942 = vld [vmem:[#allocation2] sm:$0xff]
    %v943 = vld [vmem:[#allocation2 + $0x8] sm:$0xff]
    %v944 = vld [vmem:[#allocation2 + $0x10] sm:$0xff]
    %v945 = vld [vmem:[#allocation2 + $0x18] sm:$0xff]
    %v946 = vld [vmem:[#allocation2 + $0x20] sm:$0xff]
    %s947 = scalar_lea.vmem [#allocation7], 38
    %v948 = vld [vmem:[%s947] ss:$8 sm:$0xf]
    %v950 = vperm.slane %v948, 0
    %v951 = vperm.slane %v948, 1
    %v952 = vperm.slane %v948, 2
    %v953 = vperm.slane %v948, 3
    %954 = vrot.lane.b32.xlu0 %v950, 109
    %v955 = vpop.permute.xlu0 %954
    %956 = vrot.lane.b32.xlu0 %v951, 109
    %v957 = vpop.permute.xlu0 %956
    %958 = vrot.lane.b32.xlu0 %v952, 109
    %v959 = vpop.permute.xlu0 %958
    %960 = vrot.lane.b32.xlu0 %v953, 109
    %v961 = vpop.permute.xlu0 %960
    %vm962 = vcmask 891904
    %v963 = vsel %vm962, %v955, %v957
    %v964 = vsel %vm962, %v957, %v959
    %v965 = vsel %vm962, %v959, %v961
    %v971 = vmul.f32 %v942, %v955
    %v972 = vmul.f32 %v943, %v963
    %v973 = vmul.f32 %v944, %v964
    %v974 = vmul.f32 %v945, %v965
    %v975 = vmul.f32 %v946, %v961
    %981 = vrot.lane.b32.xlu0 %v971, 19
    %v982 = vpop.permute.xlu0 %981
    %983 = vrot.lane.b32.xlu0 %v972, 19
    %v984 = vpop.permute.xlu0 %983
    %985 = vrot.lane.b32.xlu0 %v973, 19
    %v986 = vpop.permute.xlu0 %985
    %987 = vrot.lane.b32.xlu0 %v974, 19
    %v988 = vpop.permute.xlu0 %987
    %989 = vrot.lane.b32.xlu0 %v975, 19
    %v990 = vpop.permute.xlu0 %989
    %vm991 = vcmask 154624
    %v992 = vsel %vm991, %v982, %v984
    %v993 = vsel %vm991, %v984, %v986
    %v994 = vsel %vm991, %v986, %v988
    %v995 = vsel %vm991, %v988, %v990
    %1000 = vst [vmem:[#allocation3 + $0x1c0] sm:$0xff] %v992
    %1001 = vst [vmem:[#allocation3 + $0x1c8] sm:$0xff] %v993
    %1002 = vst [vmem:[#allocation3 + $0x1d0] sm:$0xff] %v994
    %1003 = vst [vmem:[#allocation3 + $0x1d8] sm:$0xff] %v995
    %v1004 = vld [vmem:[#allocation2] sm:$0xff]
    %v1005 = vld [vmem:[#allocation2 + $0x8] sm:$0xff]
    %v1006 = vld [vmem:[#allocation2 + $0x10] sm:$0xff]
    %v1007 = vld [vmem:[#allocation2 + $0x18] sm:$0xff]
    %v1008 = vld [vmem:[#allocation2 + $0x20] sm:$0xff]
    %s1009 = scalar_lea.vmem [#allocation7], 39
    %v1010 = vld [vmem:[%s1009] ss:$8 sm:$0xf]
    %v1012 = vperm.slane %v1010, 0
    %v1013 = vperm.slane %v1010, 1
    %v1014 = vperm.slane %v1010, 2
    %v1015 = vperm.slane %v1010, 3
    %1016 = vrot.lane.b32.xlu0 %v1012, 110
    %v1017 = vpop.permute.xlu0 %1016
    %1018 = vrot.lane.b32.xlu0 %v1013, 110
    %v1019 = vpop.permute.xlu0 %1018
    %1020 = vrot.lane.b32.xlu0 %v1014, 110
    %v1021 = vpop.permute.xlu0 %1020
    %1022 = vrot.lane.b32.xlu0 %v1015, 110
    %v1023 = vpop.permute.xlu0 %1022
    %vm1024 = vcmask 900096
    %v1025 = vsel %vm1024, %v1017, %v1019
    %v1026 = vsel %vm1024, %v1019, %v1021
    %v1027 = vsel %vm1024, %v1021, %v1023
    %v1033 = vmul.f32 %v1004, %v1017
    %v1034 = vmul.f32 %v1005, %v1025
    %v1035 = vmul.f32 %v1006, %v1026
    %v1036 = vmul.f32 %v1007, %v1027
    %v1037 = vmul.f32 %v1008, %v1023
    %1043 = vrot.lane.b32.xlu0 %v1033, 18
    %v1044 = vpop.permute.xlu0 %1043
    %1045 = vrot.lane.b32.xlu0 %v1034, 18
    %v1046 = vpop.permute.xlu0 %1045
    %1047 = vrot.lane.b32.xlu0 %v1035, 18
    %v1048 = vpop.permute.xlu0 %1047
    %1049 = vrot.lane.b32.xlu0 %v1036, 18
    %v1050 = vpop.permute.xlu0 %1049
    %1051 = vrot.lane.b32.xlu0 %v1037, 18
    %v1052 = vpop.permute.xlu0 %1051
    %vm1053 = vcmask 146432
    %v1054 = vsel %vm1053, %v1044, %v1046
    %v1055 = vsel %vm1053, %v1046, %v1048
    %v1056 = vsel %vm1053, %v1048, %v1050
    %v1057 = vsel %vm1053, %v1050, %v1052
    %1062 = vst [vmem:[#allocation3 + $0x1e0] sm:$0xff] %v1054
    %1063 = vst [vmem:[#allocation3 + $0x1e8] sm:$0xff] %v1055
    %1064 = vst [vmem:[#allocation3 + $0x1f0] sm:$0xff] %v1056
    %1065 = vst [vmem:[#allocation3 + $0x1f8] sm:$0xff] %v1057
    %v1066 = vld [vmem:[#allocation2] sm:$0xff]
    %v1067 = vld [vmem:[#allocation2 + $0x8] sm:$0xff]
    %v1068 = vld [vmem:[#allocation2 + $0x10] sm:$0xff]
    %v1069 = vld [vmem:[#allocation2 + $0x18] sm:$0xff]
    %v1070 = vld [vmem:[#allocation2 + $0x20] sm:$0xff]
    %s1071 = scalar_lea.vmem [#allocation7], 64
    %v1072 = vld [vmem:[%s1071] ss:$8 sm:$0xf]
    %v1074 = vperm.slane %v1072, 0
    %v1075 = vperm.slane %v1072, 1
    %v1076 = vperm.slane %v1072, 2
    %v1077 = vperm.slane %v1072, 3
    %1078 = vrot.lane.b32.xlu0 %v1074, 111
    %v1079 = vpop.permute.xlu0 %1078
    %1080 = vrot.lane.b32.xlu0 %v1075, 111
    %v1081 = vpop.permute.xlu0 %1080
    %1082 = vrot.lane.b32.xlu0 %v1076, 111
    %v1083 = vpop.permute.xlu0 %1082
    %1084 = vrot.lane.b32.xlu0 %v1077, 111
    %v1085 = vpop.permute.xlu0 %1084
    %vm1086 = vcmask 908288
    %v1087 = vsel %vm1086, %v1079, %v1081
    %v1088 = vsel %vm1086, %v1081, %v1083
    %v1089 = vsel %vm1086, %v1083, %v1085
    %v1095 = vmul.f32 %v1066, %v1079
    %v1096 = vmul.f32 %v1067, %v1087
    %v1097 = vmul.f32 %v1068, %v1088
    %v1098 = vmul.f32 %v1069, %v1089
    %v1099 = vmul.f32 %v1070, %v1085
    %1105 = vrot.lane.b32.xlu0 %v1095, 17
    %v1106 = vpop.permute.xlu0 %1105
    %1107 = vrot.lane.b32.xlu0 %v1096, 17
    %v1108 = vpop.permute.xlu0 %1107
    %1109 = vrot.lane.b32.xlu0 %v1097, 17
    %v1110 = vpop.permute.xlu0 %1109
    %1111 = vrot.lane.b32.xlu0 %v1098, 17
    %v1112 = vpop.permute.xlu0 %1111
    %1113 = vrot.lane.b32.xlu0 %v1099, 17
    %v1114 = vpop.permute.xlu0 %1113
    %vm1115 = vcmask 138240
    %v1116 = vsel %vm1115, %v1106, %v1108
    %v1117 = vsel %vm1115, %v1108, %v1110
    %v1118 = vsel %vm1115, %v1110, %v1112
    %v1119 = vsel %vm1115, %v1112, %v1114
    %1124 = vst [vmem:[#allocation3 + $0x200] sm:$0xff] %v1116
    %1125 = vst [vmem:[#allocation3 + $0x208] sm:$0xff] %v1117
    %1126 = vst [vmem:[#allocation3 + $0x210] sm:$0xff] %v1118
    %1127 = vst [vmem:[#allocation3 + $0x218] sm:$0xff] %v1119
    %v1128 = vld [vmem:[#allocation2] sm:$0xff]
    %v1129 = vld [vmem:[#allocation2 + $0x8] sm:$0xff]
    %v1130 = vld [vmem:[#allocation2 + $0x10] sm:$0xff]
    %v1131 = vld [vmem:[#allocation2 + $0x18] sm:$0xff]
    %v1132 = vld [vmem:[#allocation2 + $0x20] sm:$0xff]
    %s1133 = scalar_lea.vmem [#allocation7], 65
    %v1134 = vld [vmem:[%s1133] ss:$8 sm:$0xf]
    %v1136 = vperm.slane %v1134, 0
    %v1137 = vperm.slane %v1134, 1
    %v1138 = vperm.slane %v1134, 2
    %v1139 = vperm.slane %v1134, 3
    %1140 = vrot.lane.b32.xlu0 %v1136, 112
    %v1141 = vpop.permute.xlu0 %1140
    %1142 = vrot.lane.b32.xlu0 %v1137, 112
    %v1143 = vpop.permute.xlu0 %1142
    %1144 = vrot.lane.b32.xlu0 %v1138, 112
    %v1145 = vpop.permute.xlu0 %1144
    %1146 = vrot.lane.b32.xlu0 %v1139, 112
    %v1147 = vpop.permute.xlu0 %1146
    %vm1148 = vcmask 916480
    %v1149 = vsel %vm1148, %v1141, %v1143
    %v1150 = vsel %vm1148, %v1143, %v1145
    %v1151 = vsel %vm1148, %v1145, %v1147
    %v1157 = vmul.f32 %v1128, %v1141
    %v1158 = vmul.f32 %v1129, %v1149
    %v1159 = vmul.f32 %v1130, %v1150
    %v1160 = vmul.f32 %v1131, %v1151
    %v1161 = vmul.f32 %v1132, %v1147
    %1167 = vrot.lane.b32.xlu0 %v1157, 16
    %v1168 = vpop.permute.xlu0 %1167
    %1169 = vrot.lane.b32.xlu0 %v1158, 16
    %v1170 = vpop.permute.xlu0 %1169
    %1171 = vrot.lane.b32.xlu0 %v1159, 16
    %v1172 = vpop.permute.xlu0 %1171
    %1173 = vrot.lane.b32.xlu0 %v1160, 16
    %v1174 = vpop.permute.xlu0 %1173
    %1175 = vrot.lane.b32.xlu0 %v1161, 16
    %v1176 = vpop.permute.xlu0 %1175
    %vm1177 = vcmask 130048
    %v1178 = vsel %vm1177, %v1168, %v1170
    %v1179 = vsel %vm1177, %v1170, %v1172
    %v1180 = vsel %vm1177, %v1172, %v1174
    %v1181 = vsel %vm1177, %v1174, %v1176
    %1186 = vst [vmem:[#allocation3 + $0x220] sm:$0xff] %v1178
    %1187 = vst [vmem:[#allocation3 + $0x228] sm:$0xff] %v1179
    %1188 = vst [vmem:[#allocation3 + $0x230] sm:$0xff] %v1180
    %1189 = vst [vmem:[#allocation3 + $0x238] sm:$0xff] %v1181
    %v1190 = vld [vmem:[#allocation2] sm:$0xff]
    %v1191 = vld [vmem:[#allocation2 + $0x8] sm:$0xff]
    %v1192 = vld [vmem:[#allocation2 + $0x10] sm:$0xff]
    %v1193 = vld [vmem:[#allocation2 + $0x18] sm:$0xff]
    %v1194 = vld [vmem:[#allocation2 + $0x20] sm:$0xff]
    %s1195 = scalar_lea.vmem [#allocation7], 66
    %v1196 = vld [vmem:[%s1195] ss:$8 sm:$0xf]
    %v1198 = vperm.slane %v1196, 0
    %v1199 = vperm.slane %v1196, 1
    %v1200 = vperm.slane %v1196, 2
    %v1201 = vperm.slane %v1196, 3
    %1202 = vrot.lane.b32.xlu0 %v1198, 113
    %v1203 = vpop.permute.xlu0 %1202
    %1204 = vrot.lane.b32.xlu0 %v1199, 113
    %v1205 = vpop.permute.xlu0 %1204
    %1206 = vrot.lane.b32.xlu0 %v1200, 113
    %v1207 = vpop.permute.xlu0 %1206
    %1208 = vrot.lane.b32.xlu0 %v1201, 113
    %v1209 = vpop.permute.xlu0 %1208
    %vm1210 = vcmask 924672
    %v1211 = vsel %vm1210, %v1203, %v1205
    %v1212 = vsel %vm1210, %v1205, %v1207
    %v1213 = vsel %vm1210, %v1207, %v1209
    %v1219 = vmul.f32 %v1190, %v1203
    %v1220 = vmul.f32 %v1191, %v1211
    %v1221 = vmul.f32 %v1192, %v1212
    %v1222 = vmul.f32 %v1193, %v1213
    %v1223 = vmul.f32 %v1194, %v1209
    %1229 = vrot.lane.b32.xlu0 %v1219, 15
    %v1230 = vpop.permute.xlu0 %1229
    %1231 = vrot.lane.b32.xlu0 %v1220, 15
    %v1232 = vpop.permute.xlu0 %1231
    %1233 = vrot.lane.b32.xlu0 %v1221, 15
    %v1234 = vpop.permute.xlu0 %1233
    %1235 = vrot.lane.b32.xlu0 %v1222, 15
    %v1236 = vpop.permute.xlu0 %1235
    %1237 = vrot.lane.b32.xlu0 %v1223, 15
    %v1238 = vpop.permute.xlu0 %1237
    %vm1239 = vcmask 121856
    %v1240 = vsel %vm1239, %v1230, %v1232
    %v1241 = vsel %vm1239, %v1232, %v1234
    %v1242 = vsel %vm1239, %v1234, %v1236
    %v1243 = vsel %vm1239, %v1236, %v1238
    %1248 = vst [vmem:[#allocation3 + $0x240] sm:$0xff] %v1240
    %1249 = vst [vmem:[#allocation3 + $0x248] sm:$0xff] %v1241
    %1250 = vst [vmem:[#allocation3 + $0x250] sm:$0xff] %v1242
    %1251 = vst [vmem:[#allocation3 + $0x258] sm:$0xff] %v1243
    %v1252 = vld [vmem:[#allocation2] sm:$0xff]
    %v1253 = vld [vmem:[#allocation2 + $0x8] sm:$0xff]
    %v1254 = vld [vmem:[#allocation2 + $0x10] sm:$0xff]
    %v1255 = vld [vmem:[#allocation2 + $0x18] sm:$0xff]
    %v1256 = vld [vmem:[#allocation2 + $0x20] sm:$0xff]
    %s1257 = scalar_lea.vmem [#allocation7], 67
    %v1258 = vld [vmem:[%s1257] ss:$8 sm:$0xf]
    %v1260 = vperm.slane %v1258, 0
    %v1261 = vperm.slane %v1258, 1
    %v1262 = vperm.slane %v1258, 2
    %v1263 = vperm.slane %v1258, 3
    %1264 = vrot.lane.b32.xlu0 %v1260, 114
    %v1265 = vpop.permute.xlu0 %1264
    %1266 = vrot.lane.b32.xlu0 %v1261, 114
    %v1267 = vpop.permute.xlu0 %1266
    %1268 = vrot.lane.b32.xlu0 %v1262, 114
    %v1269 = vpop.permute.xlu0 %1268
    %1270 = vrot.lane.b32.xlu0 %v1263, 114
    %v1271 = vpop.permute.xlu0 %1270
    %vm1272 = vcmask 932864
    %v1273 = vsel %vm1272, %v1265, %v1267
    %v1274 = vsel %vm1272, %v1267, %v1269
    %v1275 = vsel %vm1272, %v1269, %v1271
    %v1281 = vmul.f32 %v1252, %v1265
    %v1282 = vmul.f32 %v1253, %v1273
    %v1283 = vmul.f32 %v1254, %v1274
    %v1284 = vmul.f32 %v1255, %v1275
    %v1285 = vmul.f32 %v1256, %v1271
    %1291 = vrot.lane.b32.xlu0 %v1281, 14
    %v1292 = vpop.permute.xlu0 %1291
    %1293 = vrot.lane.b32.xlu0 %v1282, 14
    %v1294 = vpop.permute.xlu0 %1293
    %1295 = vrot.lane.b32.xlu0 %v1283, 14
    %v1296 = vpop.permute.xlu0 %1295
    %1297 = vrot.lane.b32.xlu0 %v1284, 14
    %v1298 = vpop.permute.xlu0 %1297
    %1299 = vrot.lane.b32.xlu0 %v1285, 14
    %v1300 = vpop.permute.xlu0 %1299
    %vm1301 = vcmask 113664
    %v1302 = vsel %vm1301, %v1292, %v1294
    %v1303 = vsel %vm1301, %v1294, %v1296
    %v1304 = vsel %vm1301, %v1296, %v1298
    %v1305 = vsel %vm1301, %v1298, %v1300
    %1310 = vst [vmem:[#allocation3 + $0x260] sm:$0xff] %v1302
    %1311 = vst [vmem:[#allocation3 + $0x268] sm:$0xff] %v1303
    %1312 = vst [vmem:[#allocation3 + $0x270] sm:$0xff] %v1304
    %1313 = vst [vmem:[#allocation3 + $0x278] sm:$0xff] %v1305
    %v1314 = vld [vmem:[#allocation2] sm:$0xff]
    %v1315 = vld [vmem:[#allocation2 + $0x8] sm:$0xff]
    %v1316 = vld [vmem:[#allocation2 + $0x10] sm:$0xff]
    %v1317 = vld [vmem:[#allocation2 + $0x18] sm:$0xff]
    %v1318 = vld [vmem:[#allocation2 + $0x20] sm:$0xff]
    %s1319 = scalar_lea.vmem [#allocation7], 68
    %v1320 = vld [vmem:[%s1319] ss:$8 sm:$0xf]
    %v1322 = vperm.slane %v1320, 0
    %v1323 = vperm.slane %v1320, 1
    %v1324 = vperm.slane %v1320, 2
    %v1325 = vperm.slane %v1320, 3
    %1326 = vrot.lane.b32.xlu0 %v1322, 115
    %v1327 = vpop.permute.xlu0 %1326
    %1328 = vrot.lane.b32.xlu0 %v1323, 115
    %v1329 = vpop.permute.xlu0 %1328
    %1330 = vrot.lane.b32.xlu0 %v1324, 115
    %v1331 = vpop.permute.xlu0 %1330
    %1332 = vrot.lane.b32.xlu0 %v1325, 115
    %v1333 = vpop.permute.xlu0 %1332
    %vm1334 = vcmask 941056
    %v1335 = vsel %vm1334, %v1327, %v1329
    %v1336 = vsel %vm1334, %v1329, %v1331
    %v1337 = vsel %vm1334, %v1331, %v1333
    %v1343 = vmul.f32 %v1314, %v1327
    %v1344 = vmul.f32 %v1315, %v1335
    %v1345 = vmul.f32 %v1316, %v1336
    %v1346 = vmul.f32 %v1317, %v1337
    %v1347 = vmul.f32 %v1318, %v1333
    %1353 = vrot.lane.b32.xlu0 %v1343, 13
    %v1354 = vpop.permute.xlu0 %1353
    %1355 = vrot.lane.b32.xlu0 %v1344, 13
    %v1356 = vpop.permute.xlu0 %1355
    %1357 = vrot.lane.b32.xlu0 %v1345, 13
    %v1358 = vpop.permute.xlu0 %1357
    %1359 = vrot.lane.b32.xlu0 %v1346, 13
    %v1360 = vpop.permute.xlu0 %1359
    %1361 = vrot.lane.b32.xlu0 %v1347, 13
    %v1362 = vpop.permute.xlu0 %1361
    %vm1363 = vcmask 105472
    %v1364 = vsel %vm1363, %v1354, %v1356
    %v1365 = vsel %vm1363, %v1356, %v1358
    %v1366 = vsel %vm1363, %v1358, %v1360
    %v1367 = vsel %vm1363, %v1360, %v1362
    %1372 = vst [vmem:[#allocation3 + $0x280] sm:$0xff] %v1364
    %1373 = vst [vmem:[#allocation3 + $0x288] sm:$0xff] %v1365
    %1374 = vst [vmem:[#allocation3 + $0x290] sm:$0xff] %v1366
    %1375 = vst [vmem:[#allocation3 + $0x298] sm:$0xff] %v1367
    %v1376 = vld [vmem:[#allocation2] sm:$0xff]
    %v1377 = vld [vmem:[#allocation2 + $0x8] sm:$0xff]
    %v1378 = vld [vmem:[#allocation2 + $0x10] sm:$0xff]
    %v1379 = vld [vmem:[#allocation2 + $0x18] sm:$0xff]
    %v1380 = vld [vmem:[#allocation2 + $0x20] sm:$0xff]
    %s1381 = scalar_lea.vmem [#allocation7], 69
    %v1382 = vld [vmem:[%s1381] ss:$8 sm:$0xf]
    %v1384 = vperm.slane %v1382, 0
    %v1385 = vperm.slane %v1382, 1
    %v1386 = vperm.slane %v1382, 2
    %v1387 = vperm.slane %v1382, 3
    %1388 = vrot.lane.b32.xlu0 %v1384, 125
    %v1389 = vpop.permute.xlu0 %1388
    %1390 = vrot.lane.b32.xlu0 %v1385, 125
    %v1391 = vpop.permute.xlu0 %1390
    %1392 = vrot.lane.b32.xlu0 %v1386, 125
    %v1393 = vpop.permute.xlu0 %1392
    %1394 = vrot.lane.b32.xlu0 %v1387, 125
    %v1395 = vpop.permute.xlu0 %1394
    %vm1396 = vcmask 1022976
    %v1397 = vsel %vm1396, %v1389, %v1391
    %v1398 = vsel %vm1396, %v1391, %v1393
    %v1399 = vsel %vm1396, %v1393, %v1395
    %v1405 = vmul.f32 %v1376, %v1389
    %v1406 = vmul.f32 %v1377, %v1397
    %v1407 = vmul.f32 %v1378, %v1398
    %v1408 = vmul.f32 %v1379, %v1399
    %v1409 = vmul.f32 %v1380, %v1395
    %1415 = vrot.lane.b32.xlu0 %v1405, 3
    %v1416 = vpop.permute.xlu0 %1415
    %1417 = vrot.lane.b32.xlu0 %v1406, 3
    %v1418 = vpop.permute.xlu0 %1417
    %1419 = vrot.lane.b32.xlu0 %v1407, 3
    %v1420 = vpop.permute.xlu0 %1419
    %1421 = vrot.lane.b32.xlu0 %v1408, 3
    %v1422 = vpop.permute.xlu0 %1421
    %1423 = vrot.lane.b32.xlu0 %v1409, 3
    %v1424 = vpop.permute.xlu0 %1423
    %vm1425 = vcmask 23552
    %v1426 = vsel %vm1425, %v1416, %v1418
    %v1427 = vsel %vm1425, %v1418, %v1420
    %v1428 = vsel %vm1425, %v1420, %v1422
    %v1429 = vsel %vm1425, %v1422, %v1424
    %1434 = vst [vmem:[#allocation3 + $0x2a0] sm:$0xff] %v1426
    %1435 = vst [vmem:[#allocation3 + $0x2a8] sm:$0xff] %v1427
    %1436 = vst [vmem:[#allocation3 + $0x2b0] sm:$0xff] %v1428
    %1437 = vst [vmem:[#allocation3 + $0x2b8] sm:$0xff] %v1429
    %v1438 = vld [vmem:[#allocation2] sm:$0xff]
    %v1439 = vld [vmem:[#allocation2 + $0x8] sm:$0xff]
    %v1440 = vld [vmem:[#allocation2 + $0x10] sm:$0xff]
    %v1441 = vld [vmem:[#allocation2 + $0x18] sm:$0xff]
    %v1442 = vld [vmem:[#allocation2 + $0x20] sm:$0xff]
    %s1443 = scalar_lea.vmem [#allocation7], 70
    %v1444 = vld [vmem:[%s1443] ss:$8 sm:$0xf]
    %v1446 = vperm.slane %v1444, 0
    %v1447 = vperm.slane %v1444, 1
    %v1448 = vperm.slane %v1444, 2
    %v1449 = vperm.slane %v1444, 3
    %1450 = vrot.lane.b32.xlu0 %v1446, 126
    %v1451 = vpop.permute.xlu0 %1450
    %1452 = vrot.lane.b32.xlu0 %v1447, 126
    %v1453 = vpop.permute.xlu0 %1452
    %1454 = vrot.lane.b32.xlu0 %v1448, 126
    %v1455 = vpop.permute.xlu0 %1454
    %1456 = vrot.lane.b32.xlu0 %v1449, 126
    %v1457 = vpop.permute.xlu0 %1456
    %vm1458 = vcmask 1031168
    %v1459 = vsel %vm1458, %v1451, %v1453
    %v1460 = vsel %vm1458, %v1453, %v1455
    %v1461 = vsel %vm1458, %v1455, %v1457
    %v1467 = vmul.f32 %v1438, %v1451
    %v1468 = vmul.f32 %v1439, %v1459
    %v1469 = vmul.f32 %v1440, %v1460
    %v1470 = vmul.f32 %v1441, %v1461
    %v1471 = vmul.f32 %v1442, %v1457
    %1477 = vrot.lane.b32.xlu0 %v1467, 2
    %v1478 = vpop.permute.xlu0 %1477
    %1479 = vrot.lane.b32.xlu0 %v1468, 2
    %v1480 = vpop.permute.xlu0 %1479
    %1481 = vrot.lane.b32.xlu0 %v1469, 2
    %v1482 = vpop.permute.xlu0 %1481
    %1483 = vrot.lane.b32.xlu0 %v1470, 2
    %v1484 = vpop.permute.xlu0 %1483
    %1485 = vrot.lane.b32.xlu0 %v1471, 2
    %v1486 = vpop.permute.xlu0 %1485
    %vm1487 = vcmask 15360
    %v1488 = vsel %vm1487, %v1478, %v1480
    %v1489 = vsel %vm1487, %v1480, %v1482
    %v1490 = vsel %vm1487, %v1482, %v1484
    %v1491 = vsel %vm1487, %v1484, %v1486
    %1496 = vst [vmem:[#allocation3 + $0x2c0] sm:$0xff] %v1488
    %1497 = vst [vmem:[#allocation3 + $0x2c8] sm:$0xff] %v1489
    %1498 = vst [vmem:[#allocation3 + $0x2d0] sm:$0xff] %v1490
    %1499 = vst [vmem:[#allocation3 + $0x2d8] sm:$0xff] %v1491
    %v1500 = vld [vmem:[#allocation2] sm:$0xff]
    %v1501 = vld [vmem:[#allocation2 + $0x8] sm:$0xff]
    %v1502 = vld [vmem:[#allocation2 + $0x10] sm:$0xff]
    %v1503 = vld [vmem:[#allocation2 + $0x18] sm:$0xff]
    %v1504 = vld [vmem:[#allocation2 + $0x20] sm:$0xff]
    %s1505 = scalar_lea.vmem [#allocation7], 71
    %v1506 = vld [vmem:[%s1505] ss:$8 sm:$0xf]
    %v1508 = vperm.slane %v1506, 0
    %v1509 = vperm.slane %v1506, 1
    %v1510 = vperm.slane %v1506, 2
    %v1511 = vperm.slane %v1506, 3
    %1512 = vrot.lane.b32.xlu0 %v1508, 127
    %v1513 = vpop.permute.xlu0 %1512
    %1514 = vrot.lane.b32.xlu0 %v1509, 127
    %v1515 = vpop.permute.xlu0 %1514
    %1516 = vrot.lane.b32.xlu0 %v1510, 127
    %v1517 = vpop.permute.xlu0 %1516
    %1518 = vrot.lane.b32.xlu0 %v1511, 127
    %v1519 = vpop.permute.xlu0 %1518
    %vm1520 = vcmask 1039360
    %v1521 = vsel %vm1520, %v1513, %v1515
    %v1522 = vsel %vm1520, %v1515, %v1517
    %v1523 = vsel %vm1520, %v1517, %v1519
    %v1529 = vmul.f32 %v1500, %v1513
    %v1530 = vmul.f32 %v1501, %v1521
    %v1531 = vmul.f32 %v1502, %v1522
    %v1532 = vmul.f32 %v1503, %v1523
    %v1533 = vmul.f32 %v1504, %v1519
    %1539 = vrot.lane.b32.xlu0 %v1529, 1
    %v1540 = vpop.permute.xlu0 %1539
    %1541 = vrot.lane.b32.xlu0 %v1530, 1
    %v1542 = vpop.permute.xlu0 %1541
    %1543 = vrot.lane.b32.xlu0 %v1531, 1
    %v1544 = vpop.permute.xlu0 %1543
    %1545 = vrot.lane.b32.xlu0 %v1532, 1
    %v1546 = vpop.permute.xlu0 %1545
    %1547 = vrot.lane.b32.xlu0 %v1533, 1
    %v1548 = vpop.permute.xlu0 %1547
    %vm1549 = vcmask 7168
    %v1550 = vsel %vm1549, %v1540, %v1542
    %v1551 = vsel %vm1549, %v1542, %v1544
    %v1552 = vsel %vm1549, %v1544, %v1546
    %v1553 = vsel %vm1549, %v1546, %v1548
    %1558 = vst [vmem:[#allocation3 + $0x2e0] sm:$0xff] %v1550
    %1559 = vst [vmem:[#allocation3 + $0x2e8] sm:$0xff] %v1551
    %1560 = vst [vmem:[#allocation3 + $0x2f0] sm:$0xff] %v1552
    %1561 = vst [vmem:[#allocation3 + $0x2f8] sm:$0xff] %v1553
    %v1562 = vld [vmem:[#allocation2 + $0x8] sm:$0xff]
    %v1563 = vld [vmem:[#allocation2 + $0x10] sm:$0xff]
    %v1564 = vld [vmem:[#allocation2 + $0x18] sm:$0xff]
    %v1565 = vld [vmem:[#allocation2 + $0x20] sm:$0xff]
    %s1566 = scalar_lea.vmem [#allocation7], 96
    %v1567 = vld [vmem:[%s1566] ss:$8 sm:$0xf]
    %v1569 = vperm.slane %v1567, 0
    %v1570 = vperm.slane %v1567, 1
    %v1571 = vperm.slane %v1567, 2
    %v1572 = vperm.slane %v1567, 3
    %v1577 = vmul.f32 %v1562, %v1569
    %v1578 = vmul.f32 %v1563, %v1570
    %v1579 = vmul.f32 %v1564, %v1571
    %v1580 = vmul.f32 %v1565, %v1572
    %1581 = vst [vmem:[#allocation3 + $0x300] sm:$0xff] %v1577
    %1582 = vst [vmem:[#allocation3 + $0x308] sm:$0xff] %v1578
    %1583 = vst [vmem:[#allocation3 + $0x310] sm:$0xff] %v1579
    %1584 = vst [vmem:[#allocation3 + $0x318] sm:$0xff] %v1580
    %v1585 = vld [vmem:[#allocation2 + $0x8] sm:$0xff]
    %v1586 = vld [vmem:[#allocation2 + $0x10] sm:$0xff]
    %v1587 = vld [vmem:[#allocation2 + $0x18] sm:$0xff]
    %v1588 = vld [vmem:[#allocation2 + $0x20] sm:$0xff]
    %v1589 = vld [vmem:[#allocation2 + $0x28] sm:$0xff]
    %s1590 = scalar_lea.vmem [#allocation7], 97
    %v1591 = vld [vmem:[%s1590] ss:$8 sm:$0xf]
    %v1593 = vperm.slane %v1591, 0
    %v1594 = vperm.slane %v1591, 1
    %v1595 = vperm.slane %v1591, 2
    %v1596 = vperm.slane %v1591, 3
    %1597 = vrot.lane.b32.xlu0 %v1593, 1
    %v1598 = vpop.permute.xlu0 %1597
    %1599 = vrot.lane.b32.xlu0 %v1594, 1
    %v1600 = vpop.permute.xlu0 %1599
    %1601 = vrot.lane.b32.xlu0 %v1595, 1
    %v1602 = vpop.permute.xlu0 %1601
    %1603 = vrot.lane.b32.xlu0 %v1596, 1
    %v1604 = vpop.permute.xlu0 %1603
    %v1605 = vsel %vm1549, %v1598, %v1600
    %v1606 = vsel %vm1549, %v1600, %v1602
    %v1607 = vsel %vm1549, %v1602, %v1604
    %v1613 = vmul.f32 %v1585, %v1598
    %v1614 = vmul.f32 %v1586, %v1605
    %v1615 = vmul.f32 %v1587, %v1606
    %v1616 = vmul.f32 %v1588, %v1607
    %v1617 = vmul.f32 %v1589, %v1604
    %1623 = vrot.lane.b32.xlu0 %v1613, 127
    %v1624 = vpop.permute.xlu0 %1623
    %1625 = vrot.lane.b32.xlu0 %v1614, 127
    %v1626 = vpop.permute.xlu0 %1625
    %1627 = vrot.lane.b32.xlu0 %v1615, 127
    %v1628 = vpop.permute.xlu0 %1627
    %1629 = vrot.lane.b32.xlu0 %v1616, 127
    %v1630 = vpop.permute.xlu0 %1629
    %1631 = vrot.lane.b32.xlu0 %v1617, 127
    %v1632 = vpop.permute.xlu0 %1631
    %v1633 = vsel %vm1520, %v1624, %v1626
    %v1634 = vsel %vm1520, %v1626, %v1628
    %v1635 = vsel %vm1520, %v1628, %v1630
    %v1636 = vsel %vm1520, %v1630, %v1632
    %1641 = vst [vmem:[#allocation3 + $0x320] sm:$0xff] %v1633
    %1642 = vst [vmem:[#allocation3 + $0x328] sm:$0xff] %v1634
    %1643 = vst [vmem:[#allocation3 + $0x330] sm:$0xff] %v1635
    %1644 = vst [vmem:[#allocation3 + $0x338] sm:$0xff] %v1636
    %v1645 = vld [vmem:[#allocation2 + $0x8] sm:$0xff]
    %v1646 = vld [vmem:[#allocation2 + $0x10] sm:$0xff]
    %v1647 = vld [vmem:[#allocation2 + $0x18] sm:$0xff]
    %v1648 = vld [vmem:[#allocation2 + $0x20] sm:$0xff]
    %v1649 = vld [vmem:[#allocation2 + $0x28] sm:$0xff]
    %s1650 = scalar_lea.vmem [#allocation7], 98
    %v1651 = vld [vmem:[%s1650] ss:$8 sm:$0xf]
    %v1653 = vperm.slane %v1651, 0
    %v1654 = vperm.slane %v1651, 1
    %v1655 = vperm.slane %v1651, 2
    %v1656 = vperm.slane %v1651, 3
    %1657 = vrot.lane.b32.xlu0 %v1653, 2
    %v1658 = vpop.permute.xlu0 %1657
    %1659 = vrot.lane.b32.xlu0 %v1654, 2
    %v1660 = vpop.permute.xlu0 %1659
    %1661 = vrot.lane.b32.xlu0 %v1655, 2
    %v1662 = vpop.permute.xlu0 %1661
    %1663 = vrot.lane.b32.xlu0 %v1656, 2
    %v1664 = vpop.permute.xlu0 %1663
    %v1665 = vsel %vm1487, %v1658, %v1660
    %v1666 = vsel %vm1487, %v1660, %v1662
    %v1667 = vsel %vm1487, %v1662, %v1664
    %v1673 = vmul.f32 %v1645, %v1658
    %v1674 = vmul.f32 %v1646, %v1665
    %v1675 = vmul.f32 %v1647, %v1666
    %v1676 = vmul.f32 %v1648, %v1667
    %v1677 = vmul.f32 %v1649, %v1664
    %1683 = vrot.lane.b32.xlu0 %v1673, 126
    %v1684 = vpop.permute.xlu0 %1683
    %1685 = vrot.lane.b32.xlu0 %v1674, 126
    %v1686 = vpop.permute.xlu0 %1685
    %1687 = vrot.lane.b32.xlu0 %v1675, 126
    %v1688 = vpop.permute.xlu0 %1687
    %1689 = vrot.lane.b32.xlu0 %v1676, 126
    %v1690 = vpop.permute.xlu0 %1689
    %1691 = vrot.lane.b32.xlu0 %v1677, 126
    %v1692 = vpop.permute.xlu0 %1691
    %v1693 = vsel %vm1458, %v1684, %v1686
    %v1694 = vsel %vm1458, %v1686, %v1688
    %v1695 = vsel %vm1458, %v1688, %v1690
    %v1696 = vsel %vm1458, %v1690, %v1692
    %1701 = vst [vmem:[#allocation3 + $0x340] sm:$0xff] %v1693
    %1702 = vst [vmem:[#allocation3 + $0x348] sm:$0xff] %v1694
    %1703 = vst [vmem:[#allocation3 + $0x350] sm:$0xff] %v1695
    %1704 = vst [vmem:[#allocation3 + $0x358] sm:$0xff] %v1696
    %v1705 = vld [vmem:[#allocation2 + $0x8] sm:$0xff]
    %v1706 = vld [vmem:[#allocation2 + $0x10] sm:$0xff]
    %v1707 = vld [vmem:[#allocation2 + $0x18] sm:$0xff]
    %v1708 = vld [vmem:[#allocation2 + $0x20] sm:$0xff]
    %v1709 = vld [vmem:[#allocation2 + $0x28] sm:$0xff]
    %s1710 = scalar_lea.vmem [#allocation7], 99
    %v1711 = vld [vmem:[%s1710] ss:$8 sm:$0xf]
    %v1713 = vperm.slane %v1711, 0
    %v1714 = vperm.slane %v1711, 1
    %v1715 = vperm.slane %v1711, 2
    %v1716 = vperm.slane %v1711, 3
    %1717 = vrot.lane.b32.xlu0 %v1713, 3
    %v1718 = vpop.permute.xlu0 %1717
    %1719 = vrot.lane.b32.xlu0 %v1714, 3
    %v1720 = vpop.permute.xlu0 %1719
    %1721 = vrot.lane.b32.xlu0 %v1715, 3
    %v1722 = vpop.permute.xlu0 %1721
    %1723 = vrot.lane.b32.xlu0 %v1716, 3
    %v1724 = vpop.permute.xlu0 %1723
    %v1725 = vsel %vm1425, %v1718, %v1720
    %v1726 = vsel %vm1425, %v1720, %v1722
    %v1727 = vsel %vm1425, %v1722, %v1724
    %v1733 = vmul.f32 %v1705, %v1718
    %v1734 = vmul.f32 %v1706, %v1725
    %v1735 = vmul.f32 %v1707, %v1726
    %v1736 = vmul.f32 %v1708, %v1727
    %v1737 = vmul.f32 %v1709, %v1724
    %1743 = vrot.lane.b32.xlu0 %v1733, 125
    %v1744 = vpop.permute.xlu0 %1743
    %1745 = vrot.lane.b32.xlu0 %v1734, 125
    %v1746 = vpop.permute.xlu0 %1745
    %1747 = vrot.lane.b32.xlu0 %v1735, 125
    %v1748 = vpop.permute.xlu0 %1747
    %1749 = vrot.lane.b32.xlu0 %v1736, 125
    %v1750 = vpop.permute.xlu0 %1749
    %1751 = vrot.lane.b32.xlu0 %v1737, 125
    %v1752 = vpop.permute.xlu0 %1751
    %v1753 = vsel %vm1396, %v1744, %v1746
    %v1754 = vsel %vm1396, %v1746, %v1748
    %v1755 = vsel %vm1396, %v1748, %v1750
    %v1756 = vsel %vm1396, %v1750, %v1752
    %1761 = vst [vmem:[#allocation3 + $0x360] sm:$0xff] %v1753
    %1762 = vst [vmem:[#allocation3 + $0x368] sm:$0xff] %v1754
    %1763 = vst [vmem:[#allocation3 + $0x370] sm:$0xff] %v1755
    %1764 = vst [vmem:[#allocation3 + $0x378] sm:$0xff] %v1756
    %v1765 = vld [vmem:[#allocation2 + $0x8] sm:$0xff]
    %v1766 = vld [vmem:[#allocation2 + $0x10] sm:$0xff]
    %v1767 = vld [vmem:[#allocation2 + $0x18] sm:$0xff]
    %v1768 = vld [vmem:[#allocation2 + $0x20] sm:$0xff]
    %v1769 = vld [vmem:[#allocation2 + $0x28] sm:$0xff]
    %s1770 = scalar_lea.vmem [#allocation7], 100
    %v1771 = vld [vmem:[%s1770] ss:$8 sm:$0xf]
    %v1773 = vperm.slane %v1771, 0
    %v1774 = vperm.slane %v1771, 1
    %v1775 = vperm.slane %v1771, 2
    %v1776 = vperm.slane %v1771, 3
    %1777 = vrot.lane.b32.xlu0 %v1773, 13
    %v1778 = vpop.permute.xlu0 %1777
    %1779 = vrot.lane.b32.xlu0 %v1774, 13
    %v1780 = vpop.permute.xlu0 %1779
    %1781 = vrot.lane.b32.xlu0 %v1775, 13
    %v1782 = vpop.permute.xlu0 %1781
    %1783 = vrot.lane.b32.xlu0 %v1776, 13
    %v1784 = vpop.permute.xlu0 %1783
    %v1785 = vsel %vm1363, %v1778, %v1780
    %v1786 = vsel %vm1363, %v1780, %v1782
    %v1787 = vsel %vm1363, %v1782, %v1784
    %v1793 = vmul.f32 %v1765, %v1778
    %v1794 = vmul.f32 %v1766, %v1785
    %v1795 = vmul.f32 %v1767, %v1786
    %v1796 = vmul.f32 %v1768, %v1787
    %v1797 = vmul.f32 %v1769, %v1784
    %1803 = vrot.lane.b32.xlu0 %v1793, 115
    %v1804 = vpop.permute.xlu0 %1803
    %1805 = vrot.lane.b32.xlu0 %v1794, 115
    %v1806 = vpop.permute.xlu0 %1805
    %1807 = vrot.lane.b32.xlu0 %v1795, 115
    %v1808 = vpop.permute.xlu0 %1807
    %1809 = vrot.lane.b32.xlu0 %v1796, 115
    %v1810 = vpop.permute.xlu0 %1809
    %1811 = vrot.lane.b32.xlu0 %v1797, 115
    %v1812 = vpop.permute.xlu0 %1811
    %v1813 = vsel %vm1334, %v1804, %v1806
    %v1814 = vsel %vm1334, %v1806, %v1808
    %v1815 = vsel %vm1334, %v1808, %v1810
    %v1816 = vsel %vm1334, %v1810, %v1812
    %1821 = vst [vmem:[#allocation3 + $0x380] sm:$0xff] %v1813
    %1822 = vst [vmem:[#allocation3 + $0x388] sm:$0xff] %v1814
    %1823 = vst [vmem:[#allocation3 + $0x390] sm:$0xff] %v1815
    %1824 = vst [vmem:[#allocation3 + $0x398] sm:$0xff] %v1816
    %v1825 = vld [vmem:[#allocation2 + $0x8] sm:$0xff]
    %v1826 = vld [vmem:[#allocation2 + $0x10] sm:$0xff]
    %v1827 = vld [vmem:[#allocation2 + $0x18] sm:$0xff]
    %v1828 = vld [vmem:[#allocation2 + $0x20] sm:$0xff]
    %v1829 = vld [vmem:[#allocation2 + $0x28] sm:$0xff]
    %s1830 = scalar_lea.vmem [#allocation7], 101
    %v1831 = vld [vmem:[%s1830] ss:$8 sm:$0xf]
    %v1833 = vperm.slane %v1831, 0
    %v1834 = vperm.slane %v1831, 1
    %v1835 = vperm.slane %v1831, 2
    %v1836 = vperm.slane %v1831, 3
    %1837 = vrot.lane.b32.xlu0 %v1833, 14
    %v1838 = vpop.permute.xlu0 %1837
    %1839 = vrot.lane.b32.xlu0 %v1834, 14
    %v1840 = vpop.permute.xlu0 %1839
    %1841 = vrot.lane.b32.xlu0 %v1835, 14
    %v1842 = vpop.permute.xlu0 %1841
    %1843 = vrot.lane.b32.xlu0 %v1836, 14
    %v1844 = vpop.permute.xlu0 %1843
    %v1845 = vsel %vm1301, %v1838, %v1840
    %v1846 = vsel %vm1301, %v1840, %v1842
    %v1847 = vsel %vm1301, %v1842, %v1844
    %v1853 = vmul.f32 %v1825, %v1838
    %v1854 = vmul.f32 %v1826, %v1845
    %v1855 = vmul.f32 %v1827, %v1846
    %v1856 = vmul.f32 %v1828, %v1847
    %v1857 = vmul.f32 %v1829, %v1844
    %1863 = vrot.lane.b32.xlu0 %v1853, 114
    %v1864 = vpop.permute.xlu0 %1863
    %1865 = vrot.lane.b32.xlu0 %v1854, 114
    %v1866 = vpop.permute.xlu0 %1865
    %1867 = vrot.lane.b32.xlu0 %v1855, 114
    %v1868 = vpop.permute.xlu0 %1867
    %1869 = vrot.lane.b32.xlu0 %v1856, 114
    %v1870 = vpop.permute.xlu0 %1869
    %1871 = vrot.lane.b32.xlu0 %v1857, 114
    %v1872 = vpop.permute.xlu0 %1871
    %v1873 = vsel %vm1272, %v1864, %v1866
    %v1874 = vsel %vm1272, %v1866, %v1868
    %v1875 = vsel %vm1272, %v1868, %v1870
    %v1876 = vsel %vm1272, %v1870, %v1872
    %1881 = vst [vmem:[#allocation3 + $0x3a0] sm:$0xff] %v1873
    %1882 = vst [vmem:[#allocation3 + $0x3a8] sm:$0xff] %v1874
    %1883 = vst [vmem:[#allocation3 + $0x3b0] sm:$0xff] %v1875
    %1884 = vst [vmem:[#allocation3 + $0x3b8] sm:$0xff] %v1876
    %v1885 = vld [vmem:[#allocation2 + $0x8] sm:$0xff]
    %v1886 = vld [vmem:[#allocation2 + $0x10] sm:$0xff]
    %v1887 = vld [vmem:[#allocation2 + $0x18] sm:$0xff]
    %v1888 = vld [vmem:[#allocation2 + $0x20] sm:$0xff]
    %v1889 = vld [vmem:[#allocation2 + $0x28] sm:$0xff]
    %s1890 = scalar_lea.vmem [#allocation7], 102
    %v1891 = vld [vmem:[%s1890] ss:$8 sm:$0xf]
    %v1893 = vperm.slane %v1891, 0
    %v1894 = vperm.slane %v1891, 1
    %v1895 = vperm.slane %v1891, 2
    %v1896 = vperm.slane %v1891, 3
    %1897 = vrot.lane.b32.xlu0 %v1893, 15
    %v1898 = vpop.permute.xlu0 %1897
    %1899 = vrot.lane.b32.xlu0 %v1894, 15
    %v1900 = vpop.permute.xlu0 %1899
    %1901 = vrot.lane.b32.xlu0 %v1895, 15
    %v1902 = vpop.permute.xlu0 %1901
    %1903 = vrot.lane.b32.xlu0 %v1896, 15
    %v1904 = vpop.permute.xlu0 %1903
    %v1905 = vsel %vm1239, %v1898, %v1900
    %v1906 = vsel %vm1239, %v1900, %v1902
    %v1907 = vsel %vm1239, %v1902, %v1904
    %v1913 = vmul.f32 %v1885, %v1898
    %v1914 = vmul.f32 %v1886, %v1905
    %v1915 = vmul.f32 %v1887, %v1906
    %v1916 = vmul.f32 %v1888, %v1907
    %v1917 = vmul.f32 %v1889, %v1904
    %1923 = vrot.lane.b32.xlu0 %v1913, 113
    %v1924 = vpop.permute.xlu0 %1923
    %1925 = vrot.lane.b32.xlu0 %v1914, 113
    %v1926 = vpop.permute.xlu0 %1925
    %1927 = vrot.lane.b32.xlu0 %v1915, 113
    %v1928 = vpop.permute.xlu0 %1927
    %1929 = vrot.lane.b32.xlu0 %v1916, 113
    %v1930 = vpop.permute.xlu0 %1929
    %1931 = vrot.lane.b32.xlu0 %v1917, 113
    %v1932 = vpop.permute.xlu0 %1931
    %v1933 = vsel %vm1210, %v1924, %v1926
    %v1934 = vsel %vm1210, %v1926, %v1928
    %v1935 = vsel %vm1210, %v1928, %v1930
    %v1936 = vsel %vm1210, %v1930, %v1932
    %1941 = vst [vmem:[#allocation3 + $0x3c0] sm:$0xff] %v1933
    %1942 = vst [vmem:[#allocation3 + $0x3c8] sm:$0xff] %v1934
    %1943 = vst [vmem:[#allocation3 + $0x3d0] sm:$0xff] %v1935
    %1944 = vst [vmem:[#allocation3 + $0x3d8] sm:$0xff] %v1936
    %v1945 = vld [vmem:[#allocation2 + $0x8] sm:$0xff]
    %v1946 = vld [vmem:[#allocation2 + $0x10] sm:$0xff]
    %v1947 = vld [vmem:[#allocation2 + $0x18] sm:$0xff]
    %v1948 = vld [vmem:[#allocation2 + $0x20] sm:$0xff]
    %v1949 = vld [vmem:[#allocation2 + $0x28] sm:$0xff]
    %s1950 = scalar_lea.vmem [#allocation7], 103
    %v1951 = vld [vmem:[%s1950] ss:$8 sm:$0xf]
    %v1953 = vperm.slane %v1951, 0
    %v1954 = vperm.slane %v1951, 1
    %v1955 = vperm.slane %v1951, 2
    %v1956 = vperm.slane %v1951, 3
    %1957 = vrot.lane.b32.xlu0 %v1953, 16
    %v1958 = vpop.permute.xlu0 %1957
    %1959 = vrot.lane.b32.xlu0 %v1954, 16
    %v1960 = vpop.permute.xlu0 %1959
    %1961 = vrot.lane.b32.xlu0 %v1955, 16
    %v1962 = vpop.permute.xlu0 %1961
    %1963 = vrot.lane.b32.xlu0 %v1956, 16
    %v1964 = vpop.permute.xlu0 %1963
    %v1965 = vsel %vm1177, %v1958, %v1960
    %v1966 = vsel %vm1177, %v1960, %v1962
    %v1967 = vsel %vm1177, %v1962, %v1964
    %v1973 = vmul.f32 %v1945, %v1958
    %v1974 = vmul.f32 %v1946, %v1965
    %v1975 = vmul.f32 %v1947, %v1966
    %v1976 = vmul.f32 %v1948, %v1967
    %v1977 = vmul.f32 %v1949, %v1964
    %1983 = vrot.lane.b32.xlu0 %v1973, 112
    %v1984 = vpop.permute.xlu0 %1983
    %1985 = vrot.lane.b32.xlu0 %v1974, 112
    %v1986 = vpop.permute.xlu0 %1985
    %1987 = vrot.lane.b32.xlu0 %v1975, 112
    %v1988 = vpop.permute.xlu0 %1987
    %1989 = vrot.lane.b32.xlu0 %v1976, 112
    %v1990 = vpop.permute.xlu0 %1989
    %1991 = vrot.lane.b32.xlu0 %v1977, 112
    %v1992 = vpop.permute.xlu0 %1991
    %v1993 = vsel %vm1148, %v1984, %v1986
    %v1994 = vsel %vm1148, %v1986, %v1988
    %v1995 = vsel %vm1148, %v1988, %v1990
    %v1996 = vsel %vm1148, %v1990, %v1992
    %2001 = vst [vmem:[#allocation3 + $0x3e0] sm:$0xff] %v1993
    %2002 = vst [vmem:[#allocation3 + $0x3e8] sm:$0xff] %v1994
    %2003 = vst [vmem:[#allocation3 + $0x3f0] sm:$0xff] %v1995
    %2004 = vst [vmem:[#allocation3 + $0x3f8] sm:$0xff] %v1996
    %v2005 = vld [vmem:[#allocation2 + $0x8] sm:$0xff]
    %v2006 = vld [vmem:[#allocation2 + $0x10] sm:$0xff]
    %v2007 = vld [vmem:[#allocation2 + $0x18] sm:$0xff]
    %v2008 = vld [vmem:[#allocation2 + $0x20] sm:$0xff]
    %v2009 = vld [vmem:[#allocation2 + $0x28] sm:$0xff]
    %s2010 = scalar_lea.vmem [#allocation7], 128
    %v2011 = vld [vmem:[%s2010] ss:$8 sm:$0xf]
    %v2013 = vperm.slane %v2011, 0
    %v2014 = vperm.slane %v2011, 1
    %v2015 = vperm.slane %v2011, 2
    %v2016 = vperm.slane %v2011, 3
    %2017 = vrot.lane.b32.xlu0 %v2013, 17
    %v2018 = vpop.permute.xlu0 %2017
    %2019 = vrot.lane.b32.xlu0 %v2014, 17
    %v2020 = vpop.permute.xlu0 %2019
    %2021 = vrot.lane.b32.xlu0 %v2015, 17
    %v2022 = vpop.permute.xlu0 %2021
    %2023 = vrot.lane.b32.xlu0 %v2016, 17
    %v2024 = vpop.permute.xlu0 %2023
    %v2025 = vsel %vm1115, %v2018, %v2020
    %v2026 = vsel %vm1115, %v2020, %v2022
    %v2027 = vsel %vm1115, %v2022, %v2024
    %v2033 = vmul.f32 %v2005, %v2018
    %v2034 = vmul.f32 %v2006, %v2025
    %v2035 = vmul.f32 %v2007, %v2026
    %v2036 = vmul.f32 %v2008, %v2027
    %v2037 = vmul.f32 %v2009, %v2024
    %2043 = vrot.lane.b32.xlu0 %v2033, 111
    %v2044 = vpop.permute.xlu0 %2043
    %2045 = vrot.lane.b32.xlu0 %v2034, 111
    %v2046 = vpop.permute.xlu0 %2045
    %2047 = vrot.lane.b32.xlu0 %v2035, 111
    %v2048 = vpop.permute.xlu0 %2047
    %2049 = vrot.lane.b32.xlu0 %v2036, 111
    %v2050 = vpop.permute.xlu0 %2049
    %2051 = vrot.lane.b32.xlu0 %v2037, 111
    %v2052 = vpop.permute.xlu0 %2051
    %v2053 = vsel %vm1086, %v2044, %v2046
    %v2054 = vsel %vm1086, %v2046, %v2048
    %v2055 = vsel %vm1086, %v2048, %v2050
    %v2056 = vsel %vm1086, %v2050, %v2052
    %2061 = vst [vmem:[#allocation3 + $0x400] sm:$0xff] %v2053
    %2062 = vst [vmem:[#allocation3 + $0x408] sm:$0xff] %v2054
    %2063 = vst [vmem:[#allocation3 + $0x410] sm:$0xff] %v2055
    %2064 = vst [vmem:[#allocation3 + $0x418] sm:$0xff] %v2056
    %v2065 = vld [vmem:[#allocation2 + $0x8] sm:$0xff]
    %v2066 = vld [vmem:[#allocation2 + $0x10] sm:$0xff]
    %v2067 = vld [vmem:[#allocation2 + $0x18] sm:$0xff]
    %v2068 = vld [vmem:[#allocation2 + $0x20] sm:$0xff]
    %v2069 = vld [vmem:[#allocation2 + $0x28] sm:$0xff]
    %s2070 = scalar_lea.vmem [#allocation7], 129
    %v2071 = vld [vmem:[%s2070] ss:$8 sm:$0xf]
    %v2073 = vperm.slane %v2071, 0
    %v2074 = vperm.slane %v2071, 1
    %v2075 = vperm.slane %v2071, 2
    %v2076 = vperm.slane %v2071, 3
    %2077 = vrot.lane.b32.xlu0 %v2073, 18
    %v2078 = vpop.permute.xlu0 %2077
    %2079 = vrot.lane.b32.xlu0 %v2074, 18
    %v2080 = vpop.permute.xlu0 %2079
    %2081 = vrot.lane.b32.xlu0 %v2075, 18
    %v2082 = vpop.permute.xlu0 %2081
    %2083 = vrot.lane.b32.xlu0 %v2076, 18
    %v2084 = vpop.permute.xlu0 %2083
    %v2085 = vsel %vm1053, %v2078, %v2080
    %v2086 = vsel %vm1053, %v2080, %v2082
    %v2087 = vsel %vm1053, %v2082, %v2084
    %v2093 = vmul.f32 %v2065, %v2078
    %v2094 = vmul.f32 %v2066, %v2085
    %v2095 = vmul.f32 %v2067, %v2086
    %v2096 = vmul.f32 %v2068, %v2087
    %v2097 = vmul.f32 %v2069, %v2084
    %2103 = vrot.lane.b32.xlu0 %v2093, 110
    %v2104 = vpop.permute.xlu0 %2103
    %2105 = vrot.lane.b32.xlu0 %v2094, 110
    %v2106 = vpop.permute.xlu0 %2105
    %2107 = vrot.lane.b32.xlu0 %v2095, 110
    %v2108 = vpop.permute.xlu0 %2107
    %2109 = vrot.lane.b32.xlu0 %v2096, 110
    %v2110 = vpop.permute.xlu0 %2109
    %2111 = vrot.lane.b32.xlu0 %v2097, 110
    %v2112 = vpop.permute.xlu0 %2111
    %v2113 = vsel %vm1024, %v2104, %v2106
    %v2114 = vsel %vm1024, %v2106, %v2108
    %v2115 = vsel %vm1024, %v2108, %v2110
    %v2116 = vsel %vm1024, %v2110, %v2112
    %2121 = vst [vmem:[#allocation3 + $0x420] sm:$0xff] %v2113
    %2122 = vst [vmem:[#allocation3 + $0x428] sm:$0xff] %v2114
    %2123 = vst [vmem:[#allocation3 + $0x430] sm:$0xff] %v2115
    %2124 = vst [vmem:[#allocation3 + $0x438] sm:$0xff] %v2116
    %v2125 = vld [vmem:[#allocation2 + $0x8] sm:$0xff]
    %v2126 = vld [vmem:[#allocation2 + $0x10] sm:$0xff]
    %v2127 = vld [vmem:[#allocation2 + $0x18] sm:$0xff]
    %v2128 = vld [vmem:[#allocation2 + $0x20] sm:$0xff]
    %v2129 = vld [vmem:[#allocation2 + $0x28] sm:$0xff]
    %s2130 = scalar_lea.vmem [#allocation7], 130
    %v2131 = vld [vmem:[%s2130] ss:$8 sm:$0xf]
    %v2133 = vperm.slane %v2131, 0
    %v2134 = vperm.slane %v2131, 1
    %v2135 = vperm.slane %v2131, 2
    %v2136 = vperm.slane %v2131, 3
    %2137 = vrot.lane.b32.xlu0 %v2133, 19
    %v2138 = vpop.permute.xlu0 %2137
    %2139 = vrot.lane.b32.xlu0 %v2134, 19
    %v2140 = vpop.permute.xlu0 %2139
    %2141 = vrot.lane.b32.xlu0 %v2135, 19
    %v2142 = vpop.permute.xlu0 %2141
    %2143 = vrot.lane.b32.xlu0 %v2136, 19
    %v2144 = vpop.permute.xlu0 %2143
    %v2145 = vsel %vm991, %v2138, %v2140
    %v2146 = vsel %vm991, %v2140, %v2142
    %v2147 = vsel %vm991, %v2142, %v2144
    %v2153 = vmul.f32 %v2125, %v2138
    %v2154 = vmul.f32 %v2126, %v2145
    %v2155 = vmul.f32 %v2127, %v2146
    %v2156 = vmul.f32 %v2128, %v2147
    %v2157 = vmul.f32 %v2129, %v2144
    %2163 = vrot.lane.b32.xlu0 %v2153, 109
    %v2164 = vpop.permute.xlu0 %2163
    %2165 = vrot.lane.b32.xlu0 %v2154, 109
    %v2166 = vpop.permute.xlu0 %2165
    %2167 = vrot.lane.b32.xlu0 %v2155, 109
    %v2168 = vpop.permute.xlu0 %2167
    %2169 = vrot.lane.b32.xlu0 %v2156, 109
    %v2170 = vpop.permute.xlu0 %2169
    %2171 = vrot.lane.b32.xlu0 %v2157, 109
    %v2172 = vpop.permute.xlu0 %2171
    %v2173 = vsel %vm962, %v2164, %v2166
    %v2174 = vsel %vm962, %v2166, %v2168
    %v2175 = vsel %vm962, %v2168, %v2170
    %v2176 = vsel %vm962, %v2170, %v2172
    %2181 = vst [vmem:[#allocation3 + $0x440] sm:$0xff] %v2173
    %2182 = vst [vmem:[#allocation3 + $0x448] sm:$0xff] %v2174
    %2183 = vst [vmem:[#allocation3 + $0x450] sm:$0xff] %v2175
    %2184 = vst [vmem:[#allocation3 + $0x458] sm:$0xff] %v2176
    %v2185 = vld [vmem:[#allocation2 + $0x8] sm:$0xff]
    %v2186 = vld [vmem:[#allocation2 + $0x10] sm:$0xff]
    %v2187 = vld [vmem:[#allocation2 + $0x18] sm:$0xff]
    %v2188 = vld [vmem:[#allocation2 + $0x20] sm:$0xff]
    %v2189 = vld [vmem:[#allocation2 + $0x28] sm:$0xff]
    %s2190 = scalar_lea.vmem [#allocation7], 131
    %v2191 = vld [vmem:[%s2190] ss:$8 sm:$0xf]
    %v2193 = vperm.slane %v2191, 0
    %v2194 = vperm.slane %v2191, 1
    %v2195 = vperm.slane %v2191, 2
    %v2196 = vperm.slane %v2191, 3
    %2197 = vrot.lane.b32.xlu0 %v2193, 29
    %v2198 = vpop.permute.xlu0 %2197
    %2199 = vrot.lane.b32.xlu0 %v2194, 29
    %v2200 = vpop.permute.xlu0 %2199
    %2201 = vrot.lane.b32.xlu0 %v2195, 29
    %v2202 = vpop.permute.xlu0 %2201
    %2203 = vrot.lane.b32.xlu0 %v2196, 29
    %v2204 = vpop.permute.xlu0 %2203
    %v2205 = vsel %vm929, %v2198, %v2200
    %v2206 = vsel %vm929, %v2200, %v2202
    %v2207 = vsel %vm929, %v2202, %v2204
    %v2213 = vmul.f32 %v2185, %v2198
    %v2214 = vmul.f32 %v2186, %v2205
    %v2215 = vmul.f32 %v2187, %v2206
    %v2216 = vmul.f32 %v2188, %v2207
    %v2217 = vmul.f32 %v2189, %v2204
    %2223 = vrot.lane.b32.xlu0 %v2213, 99
    %v2224 = vpop.permute.xlu0 %2223
    %2225 = vrot.lane.b32.xlu0 %v2214, 99
    %v2226 = vpop.permute.xlu0 %2225
    %2227 = vrot.lane.b32.xlu0 %v2215, 99
    %v2228 = vpop.permute.xlu0 %2227
    %2229 = vrot.lane.b32.xlu0 %v2216, 99
    %v2230 = vpop.permute.xlu0 %2229
    %2231 = vrot.lane.b32.xlu0 %v2217, 99
    %v2232 = vpop.permute.xlu0 %2231
    %v2233 = vsel %vm900, %v2224, %v2226
    %v2234 = vsel %vm900, %v2226, %v2228
    %v2235 = vsel %vm900, %v2228, %v2230
    %v2236 = vsel %vm900, %v2230, %v2232
    %2241 = vst [vmem:[#allocation3 + $0x460] sm:$0xff] %v2233
    %2242 = vst [vmem:[#allocation3 + $0x468] sm:$0xff] %v2234
    %2243 = vst [vmem:[#allocation3 + $0x470] sm:$0xff] %v2235
    %2244 = vst [vmem:[#allocation3 + $0x478] sm:$0xff] %v2236
    %v2245 = vld [vmem:[#allocation2 + $0x8] sm:$0xff]
    %v2246 = vld [vmem:[#allocation2 + $0x10] sm:$0xff]
    %v2247 = vld [vmem:[#allocation2 + $0x18] sm:$0xff]
    %v2248 = vld [vmem:[#allocation2 + $0x20] sm:$0xff]
    %v2249 = vld [vmem:[#allocation2 + $0x28] sm:$0xff]
    %s2250 = scalar_lea.vmem [#allocation7], 132
    %v2251 = vld [vmem:[%s2250] ss:$8 sm:$0xf]
    %v2253 = vperm.slane %v2251, 0
    %v2254 = vperm.slane %v2251, 1
    %v2255 = vperm.slane %v2251, 2
    %v2256 = vperm.slane %v2251, 3
    %2257 = vrot.lane.b32.xlu0 %v2253, 30
    %v2258 = vpop.permute.xlu0 %2257
    %2259 = vrot.lane.b32.xlu0 %v2254, 30
    %v2260 = vpop.permute.xlu0 %2259
    %2261 = vrot.lane.b32.xlu0 %v2255, 30
    %v2262 = vpop.permute.xlu0 %2261
    %2263 = vrot.lane.b32.xlu0 %v2256, 30
    %v2264 = vpop.permute.xlu0 %2263
    %v2265 = vsel %vm867, %v2258, %v2260
    %v2266 = vsel %vm867, %v2260, %v2262
    %v2267 = vsel %vm867, %v2262, %v2264
    %v2273 = vmul.f32 %v2245, %v2258
    %v2274 = vmul.f32 %v2246, %v2265
    %v2275 = vmul.f32 %v2247, %v2266
    %v2276 = vmul.f32 %v2248, %v2267
    %v2277 = vmul.f32 %v2249, %v2264
    %2283 = vrot.lane.b32.xlu0 %v2273, 98
    %v2284 = vpop.permute.xlu0 %2283
    %2285 = vrot.lane.b32.xlu0 %v2274, 98
    %v2286 = vpop.permute.xlu0 %2285
    %2287 = vrot.lane.b32.xlu0 %v2275, 98
    %v2288 = vpop.permute.xlu0 %2287
    %2289 = vrot.lane.b32.xlu0 %v2276, 98
    %v2290 = vpop.permute.xlu0 %2289
    %2291 = vrot.lane.b32.xlu0 %v2277, 98
    %v2292 = vpop.permute.xlu0 %2291
    %v2293 = vsel %vm838, %v2284, %v2286
    %v2294 = vsel %vm838, %v2286, %v2288
    %v2295 = vsel %vm838, %v2288, %v2290
    %v2296 = vsel %vm838, %v2290, %v2292
    %2301 = vst [vmem:[#allocation3 + $0x480] sm:$0xff] %v2293
    %2302 = vst [vmem:[#allocation3 + $0x488] sm:$0xff] %v2294
    %2303 = vst [vmem:[#allocation3 + $0x490] sm:$0xff] %v2295
    %2304 = vst [vmem:[#allocation3 + $0x498] sm:$0xff] %v2296
    %v2305 = vld [vmem:[#allocation2 + $0x8] sm:$0xff]
    %v2306 = vld [vmem:[#allocation2 + $0x10] sm:$0xff]
    %v2307 = vld [vmem:[#allocation2 + $0x18] sm:$0xff]
    %v2308 = vld [vmem:[#allocation2 + $0x20] sm:$0xff]
    %v2309 = vld [vmem:[#allocation2 + $0x28] sm:$0xff]
    %s2310 = scalar_lea.vmem [#allocation7], 133
    %v2311 = vld [vmem:[%s2310] ss:$8 sm:$0xf]
    %v2313 = vperm.slane %v2311, 0
    %v2314 = vperm.slane %v2311, 1
    %v2315 = vperm.slane %v2311, 2
    %v2316 = vperm.slane %v2311, 3
    %2317 = vrot.lane.b32.xlu0 %v2313, 31
    %v2318 = vpop.permute.xlu0 %2317
    %2319 = vrot.lane.b32.xlu0 %v2314, 31
    %v2320 = vpop.permute.xlu0 %2319
    %2321 = vrot.lane.b32.xlu0 %v2315, 31
    %v2322 = vpop.permute.xlu0 %2321
    %2323 = vrot.lane.b32.xlu0 %v2316, 31
    %v2324 = vpop.permute.xlu0 %2323
    %v2325 = vsel %vm805, %v2318, %v2320
    %v2326 = vsel %vm805, %v2320, %v2322
    %v2327 = vsel %vm805, %v2322, %v2324
    %v2333 = vmul.f32 %v2305, %v2318
    %v2334 = vmul.f32 %v2306, %v2325
    %v2335 = vmul.f32 %v2307, %v2326
    %v2336 = vmul.f32 %v2308, %v2327
    %v2337 = vmul.f32 %v2309, %v2324
    %2343 = vrot.lane.b32.xlu0 %v2333, 97
    %v2344 = vpop.permute.xlu0 %2343
    %2345 = vrot.lane.b32.xlu0 %v2334, 97
    %v2346 = vpop.permute.xlu0 %2345
    %2347 = vrot.lane.b32.xlu0 %v2335, 97
    %v2348 = vpop.permute.xlu0 %2347
    %2349 = vrot.lane.b32.xlu0 %v2336, 97
    %v2350 = vpop.permute.xlu0 %2349
    %2351 = vrot.lane.b32.xlu0 %v2337, 97
    %v2352 = vpop.permute.xlu0 %2351
    %v2353 = vsel %vm776, %v2344, %v2346
    %v2354 = vsel %vm776, %v2346, %v2348
    %v2355 = vsel %vm776, %v2348, %v2350
    %v2356 = vsel %vm776, %v2350, %v2352
    %2361 = vst [vmem:[#allocation3 + $0x4a0] sm:$0xff] %v2353
    %2362 = vst [vmem:[#allocation3 + $0x4a8] sm:$0xff] %v2354
    %2363 = vst [vmem:[#allocation3 + $0x4b0] sm:$0xff] %v2355
    %2364 = vst [vmem:[#allocation3 + $0x4b8] sm:$0xff] %v2356
    %v2365 = vld [vmem:[#allocation2 + $0x8] sm:$0xff]
    %v2366 = vld [vmem:[#allocation2 + $0x10] sm:$0xff]
    %v2367 = vld [vmem:[#allocation2 + $0x18] sm:$0xff]
    %v2368 = vld [vmem:[#allocation2 + $0x20] sm:$0xff]
    %v2369 = vld [vmem:[#allocation2 + $0x28] sm:$0xff]
    %s2370 = scalar_lea.vmem [#allocation7], 134
    %v2371 = vld [vmem:[%s2370] ss:$8 sm:$0xf]
    %v2373 = vperm.slane %v2371, 0
    %v2374 = vperm.slane %v2371, 1
    %v2375 = vperm.slane %v2371, 2
    %v2376 = vperm.slane %v2371, 3
    %2377 = vrot.lane.b32.xlu0 %v2373, 32
    %v2378 = vpop.permute.xlu0 %2377
    %2379 = vrot.lane.b32.xlu0 %v2374, 32
    %v2380 = vpop.permute.xlu0 %2379
    %2381 = vrot.lane.b32.xlu0 %v2375, 32
    %v2382 = vpop.permute.xlu0 %2381
    %2383 = vrot.lane.b32.xlu0 %v2376, 32
    %v2384 = vpop.permute.xlu0 %2383
    %v2385 = vsel %vm743, %v2378, %v2380
    %v2386 = vsel %vm743, %v2380, %v2382
    %v2387 = vsel %vm743, %v2382, %v2384
    %v2393 = vmul.f32 %v2365, %v2378
    %v2394 = vmul.f32 %v2366, %v2385
    %v2395 = vmul.f32 %v2367, %v2386
    %v2396 = vmul.f32 %v2368, %v2387
    %v2397 = vmul.f32 %v2369, %v2384
    %2403 = vrot.lane.b32.xlu0 %v2393, 96
    %v2404 = vpop.permute.xlu0 %2403
    %2405 = vrot.lane.b32.xlu0 %v2394, 96
    %v2406 = vpop.permute.xlu0 %2405
    %2407 = vrot.lane.b32.xlu0 %v2395, 96
    %v2408 = vpop.permute.xlu0 %2407
    %2409 = vrot.lane.b32.xlu0 %v2396, 96
    %v2410 = vpop.permute.xlu0 %2409
    %2411 = vrot.lane.b32.xlu0 %v2397, 96
    %v2412 = vpop.permute.xlu0 %2411
    %v2413 = vsel %vm714, %v2404, %v2406
    %v2414 = vsel %vm714, %v2406, %v2408
    %v2415 = vsel %vm714, %v2408, %v2410
    %v2416 = vsel %vm714, %v2410, %v2412
    %2421 = vst [vmem:[#allocation3 + $0x4c0] sm:$0xff] %v2413
    %2422 = vst [vmem:[#allocation3 + $0x4c8] sm:$0xff] %v2414
    %2423 = vst [vmem:[#allocation3 + $0x4d0] sm:$0xff] %v2415
    %2424 = vst [vmem:[#allocation3 + $0x4d8] sm:$0xff] %v2416
    %v2425 = vld [vmem:[#allocation2 + $0x8] sm:$0xff]
    %v2426 = vld [vmem:[#allocation2 + $0x10] sm:$0xff]
    %v2427 = vld [vmem:[#allocation2 + $0x18] sm:$0xff]
    %v2428 = vld [vmem:[#allocation2 + $0x20] sm:$0xff]
    %v2429 = vld [vmem:[#allocation2 + $0x28] sm:$0xff]
    %s2430 = scalar_lea.vmem [#allocation7], 135
    %v2431 = vld [vmem:[%s2430] ss:$8 sm:$0xf]
    %v2433 = vperm.slane %v2431, 0
    %v2434 = vperm.slane %v2431, 1
    %v2435 = vperm.slane %v2431, 2
    %v2436 = vperm.slane %v2431, 3
    %2437 = vrot.lane.b32.xlu0 %v2433, 33
    %v2438 = vpop.permute.xlu0 %2437
    %2439 = vrot.lane.b32.xlu0 %v2434, 33
    %v2440 = vpop.permute.xlu0 %2439
    %2441 = vrot.lane.b32.xlu0 %v2435, 33
    %v2442 = vpop.permute.xlu0 %2441
    %2443 = vrot.lane.b32.xlu0 %v2436, 33
    %v2444 = vpop.permute.xlu0 %2443
    %v2445 = vsel %vm681, %v2438, %v2440
    %v2446 = vsel %vm681, %v2440, %v2442
    %v2447 = vsel %vm681, %v2442, %v2444
    %v2453 = vmul.f32 %v2425, %v2438
    %v2454 = vmul.f32 %v2426, %v2445
    %v2455 = vmul.f32 %v2427, %v2446
    %v2456 = vmul.f32 %v2428, %v2447
    %v2457 = vmul.f32 %v2429, %v2444
    %2463 = vrot.lane.b32.xlu0 %v2453, 95
    %v2464 = vpop.permute.xlu0 %2463
    %2465 = vrot.lane.b32.xlu0 %v2454, 95
    %v2466 = vpop.permute.xlu0 %2465
    %2467 = vrot.lane.b32.xlu0 %v2455, 95
    %v2468 = vpop.permute.xlu0 %2467
    %2469 = vrot.lane.b32.xlu0 %v2456, 95
    %v2470 = vpop.permute.xlu0 %2469
    %2471 = vrot.lane.b32.xlu0 %v2457, 95
    %v2472 = vpop.permute.xlu0 %2471
    %v2473 = vsel %vm652, %v2464, %v2466
    %v2474 = vsel %vm652, %v2466, %v2468
    %v2475 = vsel %vm652, %v2468, %v2470
    %v2476 = vsel %vm652, %v2470, %v2472
    %2481 = vst [vmem:[#allocation3 + $0x4e0] sm:$0xff] %v2473
    %2482 = vst [vmem:[#allocation3 + $0x4e8] sm:$0xff] %v2474
    %2483 = vst [vmem:[#allocation3 + $0x4f0] sm:$0xff] %v2475
    %2484 = vst [vmem:[#allocation3 + $0x4f8] sm:$0xff] %v2476
    %v2485 = vld [vmem:[#allocation2 + $0x8] sm:$0xff]
    %v2486 = vld [vmem:[#allocation2 + $0x10] sm:$0xff]
    %v2487 = vld [vmem:[#allocation2 + $0x18] sm:$0xff]
    %v2488 = vld [vmem:[#allocation2 + $0x20] sm:$0xff]
    %v2489 = vld [vmem:[#allocation2 + $0x28] sm:$0xff]
    %s2490 = scalar_lea.vmem [#allocation7], 160
    %v2491 = vld [vmem:[%s2490] ss:$8 sm:$0xf]
    %v2493 = vperm.slane %v2491, 0
    %v2494 = vperm.slane %v2491, 1
    %v2495 = vperm.slane %v2491, 2
    %v2496 = vperm.slane %v2491, 3
    %2497 = vrot.lane.b32.xlu0 %v2493, 34
    %v2498 = vpop.permute.xlu0 %2497
    %2499 = vrot.lane.b32.xlu0 %v2494, 34
    %v2500 = vpop.permute.xlu0 %2499
    %2501 = vrot.lane.b32.xlu0 %v2495, 34
    %v2502 = vpop.permute.xlu0 %2501
    %2503 = vrot.lane.b32.xlu0 %v2496, 34
    %v2504 = vpop.permute.xlu0 %2503
    %v2505 = vsel %vm619, %v2498, %v2500
    %v2506 = vsel %vm619, %v2500, %v2502
    %v2507 = vsel %vm619, %v2502, %v2504
    %v2513 = vmul.f32 %v2485, %v2498
    %v2514 = vmul.f32 %v2486, %v2505
    %v2515 = vmul.f32 %v2487, %v2506
    %v2516 = vmul.f32 %v2488, %v2507
    %v2517 = vmul.f32 %v2489, %v2504
    %2523 = vrot.lane.b32.xlu0 %v2513, 94
    %v2524 = vpop.permute.xlu0 %2523
    %2525 = vrot.lane.b32.xlu0 %v2514, 94
    %v2526 = vpop.permute.xlu0 %2525
    %2527 = vrot.lane.b32.xlu0 %v2515, 94
    %v2528 = vpop.permute.xlu0 %2527
    %2529 = vrot.lane.b32.xlu0 %v2516, 94
    %v2530 = vpop.permute.xlu0 %2529
    %2531 = vrot.lane.b32.xlu0 %v2517, 94
    %v2532 = vpop.permute.xlu0 %2531
    %v2533 = vsel %vm590, %v2524, %v2526
    %v2534 = vsel %vm590, %v2526, %v2528
    %v2535 = vsel %vm590, %v2528, %v2530
    %v2536 = vsel %vm590, %v2530, %v2532
    %2541 = vst [vmem:[#allocation3 + $0x500] sm:$0xff] %v2533
    %2542 = vst [vmem:[#allocation3 + $0x508] sm:$0xff] %v2534
    %2543 = vst [vmem:[#allocation3 + $0x510] sm:$0xff] %v2535
    %2544 = vst [vmem:[#allocation3 + $0x518] sm:$0xff] %v2536
    %v2545 = vld [vmem:[#allocation2 + $0x8] sm:$0xff]
    %v2546 = vld [vmem:[#allocation2 + $0x10] sm:$0xff]
    %v2547 = vld [vmem:[#allocation2 + $0x18] sm:$0xff]
    %v2548 = vld [vmem:[#allocation2 + $0x20] sm:$0xff]
    %v2549 = vld [vmem:[#allocation2 + $0x28] sm:$0xff]
    %s2550 = scalar_lea.vmem [#allocation7], 161
    %v2551 = vld [vmem:[%s2550] ss:$8 sm:$0xf]
    %v2553 = vperm.slane %v2551, 0
    %v2554 = vperm.slane %v2551, 1
    %v2555 = vperm.slane %v2551, 2
    %v2556 = vperm.slane %v2551, 3
    %2557 = vrot.lane.b32.xlu0 %v2553, 35
    %v2558 = vpop.permute.xlu0 %2557
    %2559 = vrot.lane.b32.xlu0 %v2554, 35
    %v2560 = vpop.permute.xlu0 %2559
    %2561 = vrot.lane.b32.xlu0 %v2555, 35
    %v2562 = vpop.permute.xlu0 %2561
    %2563 = vrot.lane.b32.xlu0 %v2556, 35
    %v2564 = vpop.permute.xlu0 %2563
    %v2565 = vsel %vm557, %v2558, %v2560
    %v2566 = vsel %vm557, %v2560, %v2562
    %v2567 = vsel %vm557, %v2562, %v2564
    %v2573 = vmul.f32 %v2545, %v2558
    %v2574 = vmul.f32 %v2546, %v2565
    %v2575 = vmul.f32 %v2547, %v2566
    %v2576 = vmul.f32 %v2548, %v2567
    %v2577 = vmul.f32 %v2549, %v2564
    %2583 = vrot.lane.b32.xlu0 %v2573, 93
    %v2584 = vpop.permute.xlu0 %2583
    %2585 = vrot.lane.b32.xlu0 %v2574, 93
    %v2586 = vpop.permute.xlu0 %2585
    %2587 = vrot.lane.b32.xlu0 %v2575, 93
    %v2588 = vpop.permute.xlu0 %2587
    %2589 = vrot.lane.b32.xlu0 %v2576, 93
    %v2590 = vpop.permute.xlu0 %2589
    %2591 = vrot.lane.b32.xlu0 %v2577, 93
    %v2592 = vpop.permute.xlu0 %2591
    %v2593 = vsel %vm528, %v2584, %v2586
    %v2594 = vsel %vm528, %v2586, %v2588
    %v2595 = vsel %vm528, %v2588, %v2590
    %v2596 = vsel %vm528, %v2590, %v2592
    %2601 = vst [vmem:[#allocation3 + $0x520] sm:$0xff] %v2593
    %2602 = vst [vmem:[#allocation3 + $0x528] sm:$0xff] %v2594
    %2603 = vst [vmem:[#allocation3 + $0x530] sm:$0xff] %v2595
    %2604 = vst [vmem:[#allocation3 + $0x538] sm:$0xff] %v2596
    %v2605 = vld [vmem:[#allocation2 + $0x8] sm:$0xff]
    %v2606 = vld [vmem:[#allocation2 + $0x10] sm:$0xff]
    %v2607 = vld [vmem:[#allocation2 + $0x18] sm:$0xff]
    %v2608 = vld [vmem:[#allocation2 + $0x20] sm:$0xff]
    %v2609 = vld [vmem:[#allocation2 + $0x28] sm:$0xff]
    %s2610 = scalar_lea.vmem [#allocation7], 162
    %v2611 = vld [vmem:[%s2610] ss:$8 sm:$0xf]
    %v2613 = vperm.slane %v2611, 0
    %v2614 = vperm.slane %v2611, 1
    %v2615 = vperm.slane %v2611, 2
    %v2616 = vperm.slane %v2611, 3
    %2617 = vrot.lane.b32.xlu0 %v2613, 45
    %v2618 = vpop.permute.xlu0 %2617
    %2619 = vrot.lane.b32.xlu0 %v2614, 45
    %v2620 = vpop.permute.xlu0 %2619
    %2621 = vrot.lane.b32.xlu0 %v2615, 45
    %v2622 = vpop.permute.xlu0 %2621
    %2623 = vrot.lane.b32.xlu0 %v2616, 45
    %v2624 = vpop.permute.xlu0 %2623
    %v2625 = vsel %vm495, %v2618, %v2620
    %v2626 = vsel %vm495, %v2620, %v2622
    %v2627 = vsel %vm495, %v2622, %v2624
    %v2633 = vmul.f32 %v2605, %v2618
    %v2634 = vmul.f32 %v2606, %v2625
    %v2635 = vmul.f32 %v2607, %v2626
    %v2636 = vmul.f32 %v2608, %v2627
    %v2637 = vmul.f32 %v2609, %v2624
    %2643 = vrot.lane.b32.xlu0 %v2633, 83
    %v2644 = vpop.permute.xlu0 %2643
    %2645 = vrot.lane.b32.xlu0 %v2634, 83
    %v2646 = vpop.permute.xlu0 %2645
    %2647 = vrot.lane.b32.xlu0 %v2635, 83
    %v2648 = vpop.permute.xlu0 %2647
    %2649 = vrot.lane.b32.xlu0 %v2636, 83
    %v2650 = vpop.permute.xlu0 %2649
    %2651 = vrot.lane.b32.xlu0 %v2637, 83
    %v2652 = vpop.permute.xlu0 %2651
    %v2653 = vsel %vm466, %v2644, %v2646
    %v2654 = vsel %vm466, %v2646, %v2648
    %v2655 = vsel %vm466, %v2648, %v2650
    %v2656 = vsel %vm466, %v2650, %v2652
    %2661 = vst [vmem:[#allocation3 + $0x540] sm:$0xff] %v2653
    %2662 = vst [vmem:[#allocation3 + $0x548] sm:$0xff] %v2654
    %2663 = vst [vmem:[#allocation3 + $0x550] sm:$0xff] %v2655
    %2664 = vst [vmem:[#allocation3 + $0x558] sm:$0xff] %v2656
    %v2665 = vld [vmem:[#allocation2 + $0x8] sm:$0xff]
    %v2666 = vld [vmem:[#allocation2 + $0x10] sm:$0xff]
    %v2667 = vld [vmem:[#allocation2 + $0x18] sm:$0xff]
    %v2668 = vld [vmem:[#allocation2 + $0x20] sm:$0xff]
    %v2669 = vld [vmem:[#allocation2 + $0x28] sm:$0xff]
    %s2670 = scalar_lea.vmem [#allocation7], 163
    %v2671 = vld [vmem:[%s2670] ss:$8 sm:$0xf]
    %v2673 = vperm.slane %v2671, 0
    %v2674 = vperm.slane %v2671, 1
    %v2675 = vperm.slane %v2671, 2
    %v2676 = vperm.slane %v2671, 3
    %2677 = vrot.lane.b32.xlu0 %v2673, 46
    %v2678 = vpop.permute.xlu0 %2677
    %2679 = vrot.lane.b32.xlu0 %v2674, 46
    %v2680 = vpop.permute.xlu0 %2679
    %2681 = vrot.lane.b32.xlu0 %v2675, 46
    %v2682 = vpop.permute.xlu0 %2681
    %2683 = vrot.lane.b32.xlu0 %v2676, 46
    %v2684 = vpop.permute.xlu0 %2683
    %v2685 = vsel %vm433, %v2678, %v2680
    %v2686 = vsel %vm433, %v2680, %v2682
    %v2687 = vsel %vm433, %v2682, %v2684
    %v2693 = vmul.f32 %v2665, %v2678
    %v2694 = vmul.f32 %v2666, %v2685
    %v2695 = vmul.f32 %v2667, %v2686
    %v2696 = vmul.f32 %v2668, %v2687
    %v2697 = vmul.f32 %v2669, %v2684
    %2703 = vrot.lane.b32.xlu0 %v2693, 82
    %v2704 = vpop.permute.xlu0 %2703
    %2705 = vrot.lane.b32.xlu0 %v2694, 82
    %v2706 = vpop.permute.xlu0 %2705
    %2707 = vrot.lane.b32.xlu0 %v2695, 82
    %v2708 = vpop.permute.xlu0 %2707
    %2709 = vrot.lane.b32.xlu0 %v2696, 82
    %v2710 = vpop.permute.xlu0 %2709
    %2711 = vrot.lane.b32.xlu0 %v2697, 82
    %v2712 = vpop.permute.xlu0 %2711
    %v2713 = vsel %vm404, %v2704, %v2706
    %v2714 = vsel %vm404, %v2706, %v2708
    %v2715 = vsel %vm404, %v2708, %v2710
    %v2716 = vsel %vm404, %v2710, %v2712
    %2721 = vst [vmem:[#allocation3 + $0x560] sm:$0xff] %v2713
    %2722 = vst [vmem:[#allocation3 + $0x568] sm:$0xff] %v2714
    %2723 = vst [vmem:[#allocation3 + $0x570] sm:$0xff] %v2715
    %2724 = vst [vmem:[#allocation3 + $0x578] sm:$0xff] %v2716
    %v2725 = vld [vmem:[#allocation2 + $0x8] sm:$0xff]
    %v2726 = vld [vmem:[#allocation2 + $0x10] sm:$0xff]
    %v2727 = vld [vmem:[#allocation2 + $0x18] sm:$0xff]
    %v2728 = vld [vmem:[#allocation2 + $0x20] sm:$0xff]
    %v2729 = vld [vmem:[#allocation2 + $0x28] sm:$0xff]
    %s2730 = scalar_lea.vmem [#allocation7], 164
    %v2731 = vld [vmem:[%s2730] ss:$8 sm:$0xf]
    %v2733 = vperm.slane %v2731, 0
    %v2734 = vperm.slane %v2731, 1
    %v2735 = vperm.slane %v2731, 2
    %v2736 = vperm.slane %v2731, 3
    %2737 = vrot.lane.b32.xlu0 %v2733, 47
    %v2738 = vpop.permute.xlu0 %2737
    %2739 = vrot.lane.b32.xlu0 %v2734, 47
    %v2740 = vpop.permute.xlu0 %2739
    %2741 = vrot.lane.b32.xlu0 %v2735, 47
    %v2742 = vpop.permute.xlu0 %2741
    %2743 = vrot.lane.b32.xlu0 %v2736, 47
    %v2744 = vpop.permute.xlu0 %2743
    %v2745 = vsel %vm371, %v2738, %v2740
    %v2746 = vsel %vm371, %v2740, %v2742
    %v2747 = vsel %vm371, %v2742, %v2744
    %v2753 = vmul.f32 %v2725, %v2738
    %v2754 = vmul.f32 %v2726, %v2745
    %v2755 = vmul.f32 %v2727, %v2746
    %v2756 = vmul.f32 %v2728, %v2747
    %v2757 = vmul.f32 %v2729, %v2744
    %2763 = vrot.lane.b32.xlu0 %v2753, 81
    %v2764 = vpop.permute.xlu0 %2763
    %2765 = vrot.lane.b32.xlu0 %v2754, 81
    %v2766 = vpop.permute.xlu0 %2765
    %2767 = vrot.lane.b32.xlu0 %v2755, 81
    %v2768 = vpop.permute.xlu0 %2767
    %2769 = vrot.lane.b32.xlu0 %v2756, 81
    %v2770 = vpop.permute.xlu0 %2769
    %2771 = vrot.lane.b32.xlu0 %v2757, 81
    %v2772 = vpop.permute.xlu0 %2771
    %v2773 = vsel %vm342, %v2764, %v2766
    %v2774 = vsel %vm342, %v2766, %v2768
    %v2775 = vsel %vm342, %v2768, %v2770
    %v2776 = vsel %vm342, %v2770, %v2772
    %2781 = vst [vmem:[#allocation3 + $0x580] sm:$0xff] %v2773
    %2782 = vst [vmem:[#allocation3 + $0x588] sm:$0xff] %v2774
    %2783 = vst [vmem:[#allocation3 + $0x590] sm:$0xff] %v2775
    %2784 = vst [vmem:[#allocation3 + $0x598] sm:$0xff] %v2776
    %v2785 = vld [vmem:[#allocation2 + $0x8] sm:$0xff]
    %v2786 = vld [vmem:[#allocation2 + $0x10] sm:$0xff]
    %v2787 = vld [vmem:[#allocation2 + $0x18] sm:$0xff]
    %v2788 = vld [vmem:[#allocation2 + $0x20] sm:$0xff]
    %v2789 = vld [vmem:[#allocation2 + $0x28] sm:$0xff]
    %s2790 = scalar_lea.vmem [#allocation7], 165
    %v2791 = vld [vmem:[%s2790] ss:$8 sm:$0xf]
    %v2793 = vperm.slane %v2791, 0
    %v2794 = vperm.slane %v2791, 1
    %v2795 = vperm.slane %v2791, 2
    %v2796 = vperm.slane %v2791, 3
    %2797 = vrot.lane.b32.xlu0 %v2793, 48
    %v2798 = vpop.permute.xlu0 %2797
    %2799 = vrot.lane.b32.xlu0 %v2794, 48
    %v2800 = vpop.permute.xlu0 %2799
    %2801 = vrot.lane.b32.xlu0 %v2795, 48
    %v2802 = vpop.permute.xlu0 %2801
    %2803 = vrot.lane.b32.xlu0 %v2796, 48
    %v2804 = vpop.permute.xlu0 %2803
    %v2805 = vsel %vm309, %v2798, %v2800
    %v2806 = vsel %vm309, %v2800, %v2802
    %v2807 = vsel %vm309, %v2802, %v2804
    %v2813 = vmul.f32 %v2785, %v2798
    %v2814 = vmul.f32 %v2786, %v2805
    %v2815 = vmul.f32 %v2787, %v2806
    %v2816 = vmul.f32 %v2788, %v2807
    %v2817 = vmul.f32 %v2789, %v2804
    %2823 = vrot.lane.b32.xlu0 %v2813, 80
    %v2824 = vpop.permute.xlu0 %2823
    %2825 = vrot.lane.b32.xlu0 %v2814, 80
    %v2826 = vpop.permute.xlu0 %2825
    %2827 = vrot.lane.b32.xlu0 %v2815, 80
    %v2828 = vpop.permute.xlu0 %2827
    %2829 = vrot.lane.b32.xlu0 %v2816, 80
    %v2830 = vpop.permute.xlu0 %2829
    %2831 = vrot.lane.b32.xlu0 %v2817, 80
    %v2832 = vpop.permute.xlu0 %2831
    %v2833 = vsel %vm280, %v2824, %v2826
    %v2834 = vsel %vm280, %v2826, %v2828
    %v2835 = vsel %vm280, %v2828, %v2830
    %v2836 = vsel %vm280, %v2830, %v2832
    %2841 = vst [vmem:[#allocation3 + $0x5a0] sm:$0xff] %v2833
    %2842 = vst [vmem:[#allocation3 + $0x5a8] sm:$0xff] %v2834
    %2843 = vst [vmem:[#allocation3 + $0x5b0] sm:$0xff] %v2835
    %2844 = vst [vmem:[#allocation3 + $0x5b8] sm:$0xff] %v2836
    %v2845 = vld [vmem:[#allocation2 + $0x8] sm:$0xff]
    %v2846 = vld [vmem:[#allocation2 + $0x10] sm:$0xff]
    %v2847 = vld [vmem:[#allocation2 + $0x18] sm:$0xff]
    %v2848 = vld [vmem:[#allocation2 + $0x20] sm:$0xff]
    %v2849 = vld [vmem:[#allocation2 + $0x28] sm:$0xff]
    %s2850 = scalar_lea.vmem [#allocation7], 166
    %v2851 = vld [vmem:[%s2850] ss:$8 sm:$0xf]
    %v2853 = vperm.slane %v2851, 0
    %v2854 = vperm.slane %v2851, 1
    %v2855 = vperm.slane %v2851, 2
    %v2856 = vperm.slane %v2851, 3
    %2857 = vrot.lane.b32.xlu0 %v2853, 49
    %v2858 = vpop.permute.xlu0 %2857
    %2859 = vrot.lane.b32.xlu0 %v2854, 49
    %v2860 = vpop.permute.xlu0 %2859
    %2861 = vrot.lane.b32.xlu0 %v2855, 49
    %v2862 = vpop.permute.xlu0 %2861
    %2863 = vrot.lane.b32.xlu0 %v2856, 49
    %v2864 = vpop.permute.xlu0 %2863
    %v2865 = vsel %vm247, %v2858, %v2860
    %v2866 = vsel %vm247, %v2860, %v2862
    %v2867 = vsel %vm247, %v2862, %v2864
    %v2873 = vmul.f32 %v2845, %v2858
    %v2874 = vmul.f32 %v2846, %v2865
    %v2875 = vmul.f32 %v2847, %v2866
    %v2876 = vmul.f32 %v2848, %v2867
    %v2877 = vmul.f32 %v2849, %v2864
    %2883 = vrot.lane.b32.xlu0 %v2873, 79
    %v2884 = vpop.permute.xlu0 %2883
    %2885 = vrot.lane.b32.xlu0 %v2874, 79
    %v2886 = vpop.permute.xlu0 %2885
    %2887 = vrot.lane.b32.xlu0 %v2875, 79
    %v2888 = vpop.permute.xlu0 %2887
    %2889 = vrot.lane.b32.xlu0 %v2876, 79
    %v2890 = vpop.permute.xlu0 %2889
    %2891 = vrot.lane.b32.xlu0 %v2877, 79
    %v2892 = vpop.permute.xlu0 %2891
    %v2893 = vsel %vm218, %v2884, %v2886
    %v2894 = vsel %vm218, %v2886, %v2888
    %v2895 = vsel %vm218, %v2888, %v2890
    %v2896 = vsel %vm218, %v2890, %v2892
    %2901 = vst [vmem:[#allocation3 + $0x5c0] sm:$0xff] %v2893
    %2902 = vst [vmem:[#allocation3 + $0x5c8] sm:$0xff] %v2894
    %2903 = vst [vmem:[#allocation3 + $0x5d0] sm:$0xff] %v2895
    %2904 = vst [vmem:[#allocation3 + $0x5d8] sm:$0xff] %v2896
    %v2905 = vld [vmem:[#allocation2 + $0x8] sm:$0xff]
    %v2906 = vld [vmem:[#allocation2 + $0x10] sm:$0xff]
    %v2907 = vld [vmem:[#allocation2 + $0x18] sm:$0xff]
    %v2908 = vld [vmem:[#allocation2 + $0x20] sm:$0xff]
    %v2909 = vld [vmem:[#allocation2 + $0x28] sm:$0xff]
    %s2910 = scalar_lea.vmem [#allocation7], 167
    %v2911 = vld [vmem:[%s2910] ss:$8 sm:$0xf]
    %v2913 = vperm.slane %v2911, 0
    %v2914 = vperm.slane %v2911, 1
    %v2915 = vperm.slane %v2911, 2
    %v2916 = vperm.slane %v2911, 3
    %2917 = vrot.lane.b32.xlu0 %v2913, 50
    %v2918 = vpop.permute.xlu0 %2917
    %2919 = vrot.lane.b32.xlu0 %v2914, 50
    %v2920 = vpop.permute.xlu0 %2919
    %2921 = vrot.lane.b32.xlu0 %v2915, 50
    %v2922 = vpop.permute.xlu0 %2921
    %2923 = vrot.lane.b32.xlu0 %v2916, 50
    %v2924 = vpop.permute.xlu0 %2923
    %v2925 = vsel %vm185, %v2918, %v2920
    %v2926 = vsel %vm185, %v2920, %v2922
    %v2927 = vsel %vm185, %v2922, %v2924
    %v2933 = vmul.f32 %v2905, %v2918
    %v2934 = vmul.f32 %v2906, %v2925
    %v2935 = vmul.f32 %v2907, %v2926
    %v2936 = vmul.f32 %v2908, %v2927
    %v2937 = vmul.f32 %v2909, %v2924
    %2943 = vrot.lane.b32.xlu0 %v2933, 78
    %v2944 = vpop.permute.xlu0 %2943
    %2945 = vrot.lane.b32.xlu0 %v2934, 78
    %v2946 = vpop.permute.xlu0 %2945
    %2947 = vrot.lane.b32.xlu0 %v2935, 78
    %v2948 = vpop.permute.xlu0 %2947
    %2949 = vrot.lane.b32.xlu0 %v2936, 78
    %v2950 = vpop.permute.xlu0 %2949
    %2951 = vrot.lane.b32.xlu0 %v2937, 78
    %v2952 = vpop.permute.xlu0 %2951
    %v2953 = vsel %vm156, %v2944, %v2946
    %v2954 = vsel %vm156, %v2946, %v2948
    %v2955 = vsel %vm156, %v2948, %v2950
    %v2956 = vsel %vm156, %v2950, %v2952
    %2961 = vst [vmem:[#allocation3 + $0x5e0] sm:$0xff] %v2953
    %2962 = vst [vmem:[#allocation3 + $0x5e8] sm:$0xff] %v2954
    %2963 = vst [vmem:[#allocation3 + $0x5f0] sm:$0xff] %v2955
    %2964 = vst [vmem:[#allocation3 + $0x5f8] sm:$0xff] %v2956
    %v2965 = vld [vmem:[#allocation2 + $0x8] sm:$0xff]
    %v2966 = vld [vmem:[#allocation2 + $0x10] sm:$0xff]
    %v2967 = vld [vmem:[#allocation2 + $0x18] sm:$0xff]
    %v2968 = vld [vmem:[#allocation2 + $0x20] sm:$0xff]
    %v2969 = vld [vmem:[#allocation2 + $0x28] sm:$0xff]
    %s2970 = scalar_lea.vmem [#allocation7], 192
    %v2971 = vld [vmem:[%s2970] ss:$8 sm:$0xf]
    %v2973 = vperm.slane %v2971, 0
    %v2974 = vperm.slane %v2971, 1
    %v2975 = vperm.slane %v2971, 2
    %v2976 = vperm.slane %v2971, 3
    %2977 = vrot.lane.b32.xlu0 %v2973, 51
    %v2978 = vpop.permute.xlu0 %2977
    %2979 = vrot.lane.b32.xlu0 %v2974, 51
    %v2980 = vpop.permute.xlu0 %2979
    %2981 = vrot.lane.b32.xlu0 %v2975, 51
    %v2982 = vpop.permute.xlu0 %2981
    %2983 = vrot.lane.b32.xlu0 %v2976, 51
    %v2984 = vpop.permute.xlu0 %2983
    %v2985 = vsel %vm123, %v2978, %v2980
    %v2986 = vsel %vm123, %v2980, %v2982
    %v2987 = vsel %vm123, %v2982, %v2984
    %v2993 = vmul.f32 %v2965, %v2978
    %v2994 = vmul.f32 %v2966, %v2985
    %v2995 = vmul.f32 %v2967, %v2986
    %v2996 = vmul.f32 %v2968, %v2987
    %v2997 = vmul.f32 %v2969, %v2984
    %3003 = vrot.lane.b32.xlu0 %v2993, 77
    %v3004 = vpop.permute.xlu0 %3003
    %3005 = vrot.lane.b32.xlu0 %v2994, 77
    %v3006 = vpop.permute.xlu0 %3005
    %3007 = vrot.lane.b32.xlu0 %v2995, 77
    %v3008 = vpop.permute.xlu0 %3007
    %3009 = vrot.lane.b32.xlu0 %v2996, 77
    %v3010 = vpop.permute.xlu0 %3009
    %3011 = vrot.lane.b32.xlu0 %v2997, 77
    %v3012 = vpop.permute.xlu0 %3011
    %v3013 = vsel %vm94, %v3004, %v3006
    %v3014 = vsel %vm94, %v3006, %v3008
    %v3015 = vsel %vm94, %v3008, %v3010
    %v3016 = vsel %vm94, %v3010, %v3012
    %3021 = vst [vmem:[#allocation3 + $0x600] sm:$0xff] %v3013
    %3022 = vst [vmem:[#allocation3 + $0x608] sm:$0xff] %v3014
    %3023 = vst [vmem:[#allocation3 + $0x610] sm:$0xff] %v3015
    %3024 = vst [vmem:[#allocation3 + $0x618] sm:$0xff] %v3016
    %v3025 = vld [vmem:[#allocation3] sm:$0xff]
    %v3026 = vld [vmem:[#allocation3 + $0x8] sm:$0xff]
    %v3027 = vld [vmem:[#allocation3 + $0x10] sm:$0xff]
    %v3028 = vld [vmem:[#allocation3 + $0x18] sm:$0xff]
    %v3029 = vld [vmem:[#allocation3 + $0x20] sm:$0xff]
    %v3030 = vld [vmem:[#allocation3 + $0x28] sm:$0xff]
    %v3031 = vld [vmem:[#allocation3 + $0x30] sm:$0xff]
    %v3032 = vld [vmem:[#allocation3 + $0x38] sm:$0xff]
    %v3033 = vld [vmem:[#allocation3 + $0x40] sm:$0xff]
    %v3034 = vld [vmem:[#allocation3 + $0x48] sm:$0xff]
    %v3035 = vld [vmem:[#allocation3 + $0x50] sm:$0xff]
    %v3036 = vld [vmem:[#allocation3 + $0x58] sm:$0xff]
    %v3037 = vld [vmem:[#allocation3 + $0x60] sm:$0xff]
    %v3038 = vld [vmem:[#allocation3 + $0x68] sm:$0xff]
    %v3039 = vld [vmem:[#allocation3 + $0x70] sm:$0xff]
    %v3040 = vld [vmem:[#allocation3 + $0x78] sm:$0xff]
    %v3041 = vld [vmem:[#allocation3 + $0x80] sm:$0xff]
    %v3042 = vld [vmem:[#allocation3 + $0x88] sm:$0xff]
    %v3043 = vld [vmem:[#allocation3 + $0x90] sm:$0xff]
    %v3044 = vld [vmem:[#allocation3 + $0x98] sm:$0xff]
    %v3045 = vld [vmem:[#allocation3 + $0xa0] sm:$0xff]
    %v3046 = vld [vmem:[#allocation3 + $0xa8] sm:$0xff]
    %v3047 = vld [vmem:[#allocation3 + $0xb0] sm:$0xff]
    %v3048 = vld [vmem:[#allocation3 + $0xb8] sm:$0xff]
    %v3049 = vld [vmem:[#allocation3 + $0xc0] sm:$0xff]
    %v3050 = vld [vmem:[#allocation3 + $0xc8] sm:$0xff]
    %v3051 = vld [vmem:[#allocation3 + $0xd0] sm:$0xff]
    %v3052 = vld [vmem:[#allocation3 + $0xd8] sm:$0xff]
    %v3053 = vld [vmem:[#allocation3 + $0xe0] sm:$0xff]
    %v3054 = vld [vmem:[#allocation3 + $0xe8] sm:$0xff]
    %v3055 = vld [vmem:[#allocation3 + $0xf0] sm:$0xff]
    %v3056 = vld [vmem:[#allocation3 + $0xf8] sm:$0xff]
    %v3057 = vld [vmem:[#allocation3 + $0x100] sm:$0xff]
    %v3058 = vld [vmem:[#allocation3 + $0x108] sm:$0xff]
    %v3059 = vld [vmem:[#allocation3 + $0x110] sm:$0xff]
    %v3060 = vld [vmem:[#allocation3 + $0x118] sm:$0xff]
    %v3061 = vld [vmem:[#allocation3 + $0x120] sm:$0xff]
    %v3062 = vld [vmem:[#allocation3 + $0x128] sm:$0xff]
    %v3063 = vld [vmem:[#allocation3 + $0x130] sm:$0xff]
    %v3064 = vld [vmem:[#allocation3 + $0x138] sm:$0xff]
    %v3065 = vld [vmem:[#allocation3 + $0x140] sm:$0xff]
    %v3066 = vld [vmem:[#allocation3 + $0x148] sm:$0xff]
    %v3067 = vld [vmem:[#allocation3 + $0x150] sm:$0xff]
    %v3068 = vld [vmem:[#allocation3 + $0x158] sm:$0xff]
    %v3069 = vld [vmem:[#allocation3 + $0x160] sm:$0xff]
    %v3070 = vld [vmem:[#allocation3 + $0x168] sm:$0xff]
    %v3071 = vld [vmem:[#allocation3 + $0x170] sm:$0xff]
    %v3072 = vld [vmem:[#allocation3 + $0x178] sm:$0xff]
    %v3073 = vld [vmem:[#allocation3 + $0x180] sm:$0xff]
    %v3074 = vld [vmem:[#allocation3 + $0x188] sm:$0xff]
    %v3075 = vld [vmem:[#allocation3 + $0x190] sm:$0xff]
    %v3076 = vld [vmem:[#allocation3 + $0x198] sm:$0xff]
    %v3077 = vld [vmem:[#allocation3 + $0x1a0] sm:$0xff]
    %v3078 = vld [vmem:[#allocation3 + $0x1a8] sm:$0xff]
    %v3079 = vld [vmem:[#allocation3 + $0x1b0] sm:$0xff]
    %v3080 = vld [vmem:[#allocation3 + $0x1b8] sm:$0xff]
    %v3081 = vld [vmem:[#allocation3 + $0x1c0] sm:$0xff]
    %v3082 = vld [vmem:[#allocation3 + $0x1c8] sm:$0xff]
    %v3083 = vld [vmem:[#allocation3 + $0x1d0] sm:$0xff]
    %v3084 = vld [vmem:[#allocation3 + $0x1d8] sm:$0xff]
    %v3085 = vld [vmem:[#allocation3 + $0x1e0] sm:$0xff]
    %v3086 = vld [vmem:[#allocation3 + $0x1e8] sm:$0xff]
    %v3087 = vld [vmem:[#allocation3 + $0x1f0] sm:$0xff]
    %v3088 = vld [vmem:[#allocation3 + $0x1f8] sm:$0xff]
    %v3089 = vld [vmem:[#allocation3 + $0x200] sm:$0xff]
    %v3090 = vld [vmem:[#allocation3 + $0x208] sm:$0xff]
    %v3091 = vld [vmem:[#allocation3 + $0x210] sm:$0xff]
    %v3092 = vld [vmem:[#allocation3 + $0x218] sm:$0xff]
    %v3093 = vld [vmem:[#allocation3 + $0x220] sm:$0xff]
    %v3094 = vld [vmem:[#allocation3 + $0x228] sm:$0xff]
    %v3095 = vld [vmem:[#allocation3 + $0x230] sm:$0xff]
    %v3096 = vld [vmem:[#allocation3 + $0x238] sm:$0xff]
    %v3097 = vld [vmem:[#allocation3 + $0x240] sm:$0xff]
    %v3098 = vld [vmem:[#allocation3 + $0x248] sm:$0xff]
    %v3099 = vld [vmem:[#allocation3 + $0x250] sm:$0xff]
    %v3100 = vld [vmem:[#allocation3 + $0x258] sm:$0xff]
    %v3101 = vld [vmem:[#allocation3 + $0x260] sm:$0xff]
    %v3102 = vld [vmem:[#allocation3 + $0x268] sm:$0xff]
    %v3103 = vld [vmem:[#allocation3 + $0x270] sm:$0xff]
    %v3104 = vld [vmem:[#allocation3 + $0x278] sm:$0xff]
    %v3105 = vld [vmem:[#allocation3 + $0x280] sm:$0xff]
    %v3106 = vld [vmem:[#allocation3 + $0x288] sm:$0xff]
    %v3107 = vld [vmem:[#allocation3 + $0x290] sm:$0xff]
    %v3108 = vld [vmem:[#allocation3 + $0x298] sm:$0xff]
    %v3109 = vld [vmem:[#allocation3 + $0x2a0] sm:$0xff]
    %v3110 = vld [vmem:[#allocation3 + $0x2a8] sm:$0xff]
    %v3111 = vld [vmem:[#allocation3 + $0x2b0] sm:$0xff]
    %v3112 = vld [vmem:[#allocation3 + $0x2b8] sm:$0xff]
    %v3113 = vld [vmem:[#allocation3 + $0x2c0] sm:$0xff]
    %v3114 = vld [vmem:[#allocation3 + $0x2c8] sm:$0xff]
    %v3115 = vld [vmem:[#allocation3 + $0x2d0] sm:$0xff]
    %v3116 = vld [vmem:[#allocation3 + $0x2d8] sm:$0xff]
    %v3117 = vld [vmem:[#allocation3 + $0x2e0] sm:$0xff]
    %v3118 = vld [vmem:[#allocation3 + $0x2e8] sm:$0xff]
    %v3119 = vld [vmem:[#allocation3 + $0x2f0] sm:$0xff]
    %v3120 = vld [vmem:[#allocation3 + $0x2f8] sm:$0xff]
    %v3121 = vld [vmem:[#allocation3 + $0x300] sm:$0xff]
    %v3122 = vld [vmem:[#allocation3 + $0x308] sm:$0xff]
    %v3123 = vld [vmem:[#allocation3 + $0x310] sm:$0xff]
    %v3124 = vld [vmem:[#allocation3 + $0x318] sm:$0xff]
    %v3125 = vld [vmem:[#allocation3 + $0x320] sm:$0xff]
    %v3126 = vld [vmem:[#allocation3 + $0x328] sm:$0xff]
    %v3127 = vld [vmem:[#allocation3 + $0x330] sm:$0xff]
    %v3128 = vld [vmem:[#allocation3 + $0x338] sm:$0xff]
    %v3129 = vld [vmem:[#allocation3 + $0x340] sm:$0xff]
    %v3130 = vld [vmem:[#allocation3 + $0x348] sm:$0xff]
    %v3131 = vld [vmem:[#allocation3 + $0x350] sm:$0xff]
    %v3132 = vld [vmem:[#allocation3 + $0x358] sm:$0xff]
    %v3133 = vld [vmem:[#allocation3 + $0x360] sm:$0xff]
    %v3134 = vld [vmem:[#allocation3 + $0x368] sm:$0xff]
    %v3135 = vld [vmem:[#allocation3 + $0x370] sm:$0xff]
    %v3136 = vld [vmem:[#allocation3 + $0x378] sm:$0xff]
    %v3137 = vld [vmem:[#allocation3 + $0x380] sm:$0xff]
    %v3138 = vld [vmem:[#allocation3 + $0x388] sm:$0xff]
    %v3139 = vld [vmem:[#allocation3 + $0x390] sm:$0xff]
    %v3140 = vld [vmem:[#allocation3 + $0x398] sm:$0xff]
    %v3141 = vld [vmem:[#allocation3 + $0x3a0] sm:$0xff]
    %v3142 = vld [vmem:[#allocation3 + $0x3a8] sm:$0xff]
    %v3143 = vld [vmem:[#allocation3 + $0x3b0] sm:$0xff]
    %v3144 = vld [vmem:[#allocation3 + $0x3b8] sm:$0xff]
    %v3145 = vld [vmem:[#allocation3 + $0x3c0] sm:$0xff]
    %v3146 = vld [vmem:[#allocation3 + $0x3c8] sm:$0xff]
    %v3147 = vld [vmem:[#allocation3 + $0x3d0] sm:$0xff]
    %v3148 = vld [vmem:[#allocation3 + $0x3d8] sm:$0xff]
    %v3149 = vld [vmem:[#allocation3 + $0x3e0] sm:$0xff]
    %v3150 = vld [vmem:[#allocation3 + $0x3e8] sm:$0xff]
    %v3151 = vld [vmem:[#allocation3 + $0x3f0] sm:$0xff]
    %v3152 = vld [vmem:[#allocation3 + $0x3f8] sm:$0xff]
    %v3153 = vld [vmem:[#allocation3 + $0x400] sm:$0xff]
    %v3154 = vld [vmem:[#allocation3 + $0x408] sm:$0xff]
    %v3155 = vld [vmem:[#allocation3 + $0x410] sm:$0xff]
    %v3156 = vld [vmem:[#allocation3 + $0x418] sm:$0xff]
    %v3157 = vld [vmem:[#allocation3 + $0x420] sm:$0xff]
    %v3158 = vld [vmem:[#allocation3 + $0x428] sm:$0xff]
    %v3159 = vld [vmem:[#allocation3 + $0x430] sm:$0xff]
    %v3160 = vld [vmem:[#allocation3 + $0x438] sm:$0xff]
    %v3161 = vld [vmem:[#allocation3 + $0x440] sm:$0xff]
    %v3162 = vld [vmem:[#allocation3 + $0x448] sm:$0xff]
    %v3163 = vld [vmem:[#allocation3 + $0x450] sm:$0xff]
    %v3164 = vld [vmem:[#allocation3 + $0x458] sm:$0xff]
    %v3165 = vld [vmem:[#allocation3 + $0x460] sm:$0xff]
    %v3166 = vld [vmem:[#allocation3 + $0x468] sm:$0xff]
    %v3167 = vld [vmem:[#allocation3 + $0x470] sm:$0xff]
    %v3168 = vld [vmem:[#allocation3 + $0x478] sm:$0xff]
    %v3169 = vld [vmem:[#allocation3 + $0x480] sm:$0xff]
    %v3170 = vld [vmem:[#allocation3 + $0x488] sm:$0xff]
    %v3171 = vld [vmem:[#allocation3 + $0x490] sm:$0xff]
    %v3172 = vld [vmem:[#allocation3 + $0x498] sm:$0xff]
    %v3173 = vld [vmem:[#allocation3 + $0x4a0] sm:$0xff]
    %v3174 = vld [vmem:[#allocation3 + $0x4a8] sm:$0xff]
    %v3175 = vld [vmem:[#allocation3 + $0x4b0] sm:$0xff]
    %v3176 = vld [vmem:[#allocation3 + $0x4b8] sm:$0xff]
    %v3177 = vld [vmem:[#allocation3 + $0x4c0] sm:$0xff]
    %v3178 = vld [vmem:[#allocation3 + $0x4c8] sm:$0xff]
    %v3179 = vld [vmem:[#allocation3 + $0x4d0] sm:$0xff]
    %v3180 = vld [vmem:[#allocation3 + $0x4d8] sm:$0xff]
    %v3181 = vld [vmem:[#allocation3 + $0x4e0] sm:$0xff]
    %v3182 = vld [vmem:[#allocation3 + $0x4e8] sm:$0xff]
    %v3183 = vld [vmem:[#allocation3 + $0x4f0] sm:$0xff]
    %v3184 = vld [vmem:[#allocation3 + $0x4f8] sm:$0xff]
    %v3185 = vld [vmem:[#allocation3 + $0x500] sm:$0xff]
    %v3186 = vld [vmem:[#allocation3 + $0x508] sm:$0xff]
    %v3187 = vld [vmem:[#allocation3 + $0x510] sm:$0xff]
    %v3188 = vld [vmem:[#allocation3 + $0x518] sm:$0xff]
    %v3189 = vld [vmem:[#allocation3 + $0x520] sm:$0xff]
    %v3190 = vld [vmem:[#allocation3 + $0x528] sm:$0xff]
    %v3191 = vld [vmem:[#allocation3 + $0x530] sm:$0xff]
    %v3192 = vld [vmem:[#allocation3 + $0x538] sm:$0xff]
    %v3193 = vld [vmem:[#allocation3 + $0x540] sm:$0xff]
    %v3194 = vld [vmem:[#allocation3 + $0x548] sm:$0xff]
    %v3195 = vld [vmem:[#allocation3 + $0x550] sm:$0xff]
    %v3196 = vld [vmem:[#allocation3 + $0x558] sm:$0xff]
    %v3197 = vld [vmem:[#allocation3 + $0x560] sm:$0xff]
    %v3198 = vld [vmem:[#allocation3 + $0x568] sm:$0xff]
    %v3199 = vld [vmem:[#allocation3 + $0x570] sm:$0xff]
    %v3200 = vld [vmem:[#allocation3 + $0x578] sm:$0xff]
    %v3201 = vld [vmem:[#allocation3 + $0x580] sm:$0xff]
    %v3202 = vld [vmem:[#allocation3 + $0x588] sm:$0xff]
    %v3203 = vld [vmem:[#allocation3 + $0x590] sm:$0xff]
    %v3204 = vld [vmem:[#allocation3 + $0x598] sm:$0xff]
    %v3205 = vld [vmem:[#allocation3 + $0x5a0] sm:$0xff]
    %v3206 = vld [vmem:[#allocation3 + $0x5a8] sm:$0xff]
    %v3207 = vld [vmem:[#allocation3 + $0x5b0] sm:$0xff]
    %v3208 = vld [vmem:[#allocation3 + $0x5b8] sm:$0xff]
    %v3209 = vld [vmem:[#allocation3 + $0x5c0] sm:$0xff]
    %v3210 = vld [vmem:[#allocation3 + $0x5c8] sm:$0xff]
    %v3211 = vld [vmem:[#allocation3 + $0x5d0] sm:$0xff]
    %v3212 = vld [vmem:[#allocation3 + $0x5d8] sm:$0xff]
    %v3213 = vld [vmem:[#allocation3 + $0x5e0] sm:$0xff]
    %v3214 = vld [vmem:[#allocation3 + $0x5e8] sm:$0xff]
    %v3215 = vld [vmem:[#allocation3 + $0x5f0] sm:$0xff]
    %v3216 = vld [vmem:[#allocation3 + $0x5f8] sm:$0xff]
    %v3217 = vld [vmem:[#allocation3 + $0x600] sm:$0xff]
    %v3218 = vld [vmem:[#allocation3 + $0x608] sm:$0xff]
    %v3219 = vld [vmem:[#allocation3 + $0x610] sm:$0xff]
    %v3220 = vld [vmem:[#allocation3 + $0x618] sm:$0xff]
    %v3221 = vpack.c.bf16 %v3029, %v3025
    %v3222 = vpack.c.bf16 %v3030, %v3026
    %v3223 = vpack.c.bf16 %v3031, %v3027
    %v3224 = vpack.c.bf16 %v3032, %v3028
    %v3225 = vpack.c.bf16 %v3037, %v3033
    %v3226 = vpack.c.bf16 %v3038, %v3034
    %v3227 = vpack.c.bf16 %v3039, %v3035
    %v3228 = vpack.c.bf16 %v3040, %v3036
    %v3229 = vpack.c.bf16 %v3045, %v3041
    %v3230 = vpack.c.bf16 %v3046, %v3042
    %v3231 = vpack.c.bf16 %v3047, %v3043
    %v3232 = vpack.c.bf16 %v3048, %v3044
    %v3233 = vpack.c.bf16 %v3053, %v3049
    %v3234 = vpack.c.bf16 %v3054, %v3050
    %v3235 = vpack.c.bf16 %v3055, %v3051
    %v3236 = vpack.c.bf16 %v3056, %v3052
    %v3237 = vpack.c.bf16 %v3061, %v3057
    %v3238 = vpack.c.bf16 %v3062, %v3058
    %v3239 = vpack.c.bf16 %v3063, %v3059
    %v3240 = vpack.c.bf16 %v3064, %v3060
    %v3241 = vpack.c.bf16 %v3069, %v3065
    %v3242 = vpack.c.bf16 %v3070, %v3066
    %v3243 = vpack.c.bf16 %v3071, %v3067
    %v3244 = vpack.c.bf16 %v3072, %v3068
    %v3245 = vpack.c.bf16 %v3077, %v3073
    %v3246 = vpack.c.bf16 %v3078, %v3074
    %v3247 = vpack.c.bf16 %v3079, %v3075
    %v3248 = vpack.c.bf16 %v3080, %v3076
    %v3249 = vpack.c.bf16 %v3085, %v3081
    %v3250 = vpack.c.bf16 %v3086, %v3082
    %v3251 = vpack.c.bf16 %v3087, %v3083
    %v3252 = vpack.c.bf16 %v3088, %v3084
    %v3253 = vpack.c.bf16 %v3093, %v3089
    %v3254 = vpack.c.bf16 %v3094, %v3090
    %v3255 = vpack.c.bf16 %v3095, %v3091
    %v3256 = vpack.c.bf16 %v3096, %v3092
    %v3257 = vpack.c.bf16 %v3101, %v3097
    %v3258 = vpack.c.bf16 %v3102, %v3098
    %v3259 = vpack.c.bf16 %v3103, %v3099
    %v3260 = vpack.c.bf16 %v3104, %v3100
    %v3261 = vpack.c.bf16 %v3109, %v3105
    %v3262 = vpack.c.bf16 %v3110, %v3106
    %v3263 = vpack.c.bf16 %v3111, %v3107
    %v3264 = vpack.c.bf16 %v3112, %v3108
    %v3265 = vpack.c.bf16 %v3117, %v3113
    %v3266 = vpack.c.bf16 %v3118, %v3114
    %v3267 = vpack.c.bf16 %v3119, %v3115
    %v3268 = vpack.c.bf16 %v3120, %v3116
    %v3269 = vpack.c.bf16 %v3125, %v3121
    %v3270 = vpack.c.bf16 %v3126, %v3122
    %v3271 = vpack.c.bf16 %v3127, %v3123
    %v3272 = vpack.c.bf16 %v3128, %v3124
    %v3273 = vpack.c.bf16 %v3133, %v3129
    %v3274 = vpack.c.bf16 %v3134, %v3130
    %v3275 = vpack.c.bf16 %v3135, %v3131
    %v3276 = vpack.c.bf16 %v3136, %v3132
    %v3277 = vpack.c.bf16 %v3141, %v3137
    %v3278 = vpack.c.bf16 %v3142, %v3138
    %v3279 = vpack.c.bf16 %v3143, %v3139
    %v3280 = vpack.c.bf16 %v3144, %v3140
    %v3281 = vpack.c.bf16 %v3149, %v3145
    %v3282 = vpack.c.bf16 %v3150, %v3146
    %v3283 = vpack.c.bf16 %v3151, %v3147
    %v3284 = vpack.c.bf16 %v3152, %v3148
    %v3285 = vpack.c.bf16 %v3157, %v3153
    %v3286 = vpack.c.bf16 %v3158, %v3154
    %v3287 = vpack.c.bf16 %v3159, %v3155
    %v3288 = vpack.c.bf16 %v3160, %v3156
    %v3289 = vpack.c.bf16 %v3165, %v3161
    %v3290 = vpack.c.bf16 %v3166, %v3162
    %v3291 = vpack.c.bf16 %v3167, %v3163
    %v3292 = vpack.c.bf16 %v3168, %v3164
    %v3293 = vpack.c.bf16 %v3173, %v3169
    %v3294 = vpack.c.bf16 %v3174, %v3170
    %v3295 = vpack.c.bf16 %v3175, %v3171
    %v3296 = vpack.c.bf16 %v3176, %v3172
    %v3297 = vpack.c.bf16 %v3181, %v3177
    %v3298 = vpack.c.bf16 %v3182, %v3178
    %v3299 = vpack.c.bf16 %v3183, %v3179
    %v3300 = vpack.c.bf16 %v3184, %v3180
    %v3301 = vpack.c.bf16 %v3189, %v3185
    %v3302 = vpack.c.bf16 %v3190, %v3186
    %v3303 = vpack.c.bf16 %v3191, %v3187
    %v3304 = vpack.c.bf16 %v3192, %v3188
    %v3305 = vpack.c.bf16 %v3197, %v3193
    %v3306 = vpack.c.bf16 %v3198, %v3194
    %v3307 = vpack.c.bf16 %v3199, %v3195
    %v3308 = vpack.c.bf16 %v3200, %v3196
    %v3309 = vpack.c.bf16 %v3205, %v3201
    %v3310 = vpack.c.bf16 %v3206, %v3202
    %v3311 = vpack.c.bf16 %v3207, %v3203
    %v3312 = vpack.c.bf16 %v3208, %v3204
    %v3313 = vpack.c.bf16 %v3213, %v3209
    %v3314 = vpack.c.bf16 %v3214, %v3210
    %v3315 = vpack.c.bf16 %v3215, %v3211
    %v3316 = vpack.c.bf16 %v3216, %v3212
    %v3317 = vpack.c.bf16 %v3217, %v3217
    %v3318 = vpack.c.bf16 %v3218, %v3218
    %v3319 = vpack.c.bf16 %v3219, %v3219
    %v3320 = vpack.c.bf16 %v3220, %v3220
    %v3321 = vld [vmem:[%s2] sm:$0xff]
    %v3322 = vld [vmem:[%s2 + $0x8] sm:$0xff]
    %v3323 = vld [vmem:[%s3] sm:$0xff]
    %3325 = vset.pattern.permute.xlu0 0
    %3326 = vperm.xlu0 %3325, %v3323
    %v3327 = vpop.permute.xlu0 %3326
    %v3331 = vunpack.c.l.b16 %v3321
    %v3332 = vunpack.c.h.b16 %v3321
    %v3333 = vunpack.c.l.b16 %v3322
    %v3334 = vunpack.c.h.b16 %v3322
    %v3335 = vpack.c.b16 %v3331, %v3331
    %v3336 = vpack.c.b16 %v3332, %v3332
    %v3337 = vpack.c.b16 %v3333, %v3333
    %v3338 = vpack.c.b16 %v3334, %v3334
    %vm3342 = vcmask 64512
    %v3344 = vsel %vm3342, %v3338, 0
    %vm3346 = vcmask 1043456
    %v3348 = vsel %vm3346, %v3317, 0
    %v3351 = vsel %vm3346, %v3318, 0
    %v3354 = vsel %vm3346, %v3319, 0
    %v3357 = vsel %vm3346, %v3320, 0
    %3359 = vmatpush.bf16.msra.mxu0 %v3249
    %3360 = vmatpush.bf16.msra.mxu0 %v3245
    %3361 = vmatpush.bf16.msra.mxu0 %v3241
    %3362 = vmatpush.bf16.msra.mxu0 %v3237
    %3363 = vmatpush.bf16.msra.mxu0 %v3233
    %3364 = vmatpush.bf16.msra.mxu0 %v3229
    %3365 = vmatpush.bf16.msra.mxu0 %v3225
    %3366 = vmatpush.bf16.msra.mxu0 %v3221
    %3367 = vmatmul.bf16.gmra.mxu0 %v3335
    %v3368 = vpop.f32.mrf.mxu0
    %v3369 = vadd.f32 %v3327, %v3368
    %v3370 = vpop.f32.mrf.mxu0
    %3371 = vdwg.mxu0
    %3372 = vmatpush.bf16.msra.mxu0 %v3281
    %3373 = vmatpush.bf16.msra.mxu0 %v3277
    %3374 = vmatpush.bf16.msra.mxu0 %v3273
    %3375 = vmatpush.bf16.msra.mxu0 %v3269
    %3376 = vmatpush.bf16.msra.mxu0 %v3265
    %3377 = vmatpush.bf16.msra.mxu0 %v3261
    %3378 = vmatpush.bf16.msra.mxu0 %v3257
    %3379 = vmatpush.bf16.msra.mxu0 %v3253
    %3380 = vmatmul.bf16.gmra.mxu0 %v3336
    %v3381 = vpop.f32.mrf.mxu0
    %v3382 = vadd.f32 %v3369, %v3381
    %v3383 = vpop.f32.mrf.mxu0
    %3384 = vdwg.mxu0
    %3385 = vmatpush.bf16.msra.mxu0 %v3313
    %3386 = vmatpush.bf16.msra.mxu0 %v3309
    %3387 = vmatpush.bf16.msra.mxu0 %v3305
    %3388 = vmatpush.bf16.msra.mxu0 %v3301
    %3389 = vmatpush.bf16.msra.mxu0 %v3297
    %3390 = vmatpush.bf16.msra.mxu0 %v3293
    %3391 = vmatpush.bf16.msra.mxu0 %v3289
    %3392 = vmatpush.bf16.msra.mxu0 %v3285
    %3393 = vmatmul.bf16.gmra.mxu0 %v3337
    %v3394 = vpop.f32.mrf.mxu0
    %v3395 = vadd.f32 %v3382, %v3394
    %v3396 = vpop.f32.mrf.mxu0
    %3397 = vdwg.mxu0
    %3398 = vmatpush.bf16.msra.mxu0 0
    %3399 = vmatpush.bf16.msra.mxu0 0
    %3400 = vmatpush.bf16.msra.mxu0 0
    %3401 = vmatpush.bf16.msra.mxu0 0
    %3402 = vmatpush.bf16.msra.mxu0 0
    %3403 = vmatpush.bf16.msra.mxu0 0
    %3404 = vmatpush.bf16.msra.mxu0 0
    %3405 = vmatpush.bf16.msra.mxu0 %v3348
    %3406 = vmatmul.bf16.gmra.mxu0 %v3344
    %v3407 = vpop.f32.mrf.mxu0
    %v3408 = vadd.f32 %v3395, %v3407
    %v3409 = vpop.f32.mrf.mxu0
    %3410 = vdwg.mxu0
    %3411 = vmatpush.bf16.msra.mxu0 %v3250
    %3412 = vmatpush.bf16.msra.mxu0 %v3246
    %3413 = vmatpush.bf16.msra.mxu0 %v3242
    %3414 = vmatpush.bf16.msra.mxu0 %v3238
    %3415 = vmatpush.bf16.msra.mxu0 %v3234
    %3416 = vmatpush.bf16.msra.mxu0 %v3230
    %3417 = vmatpush.bf16.msra.mxu0 %v3226
    %3418 = vmatpush.bf16.msra.mxu0 %v3222
    %3419 = vmatmul.bf16.gmra.mxu0 %v3335
    %v3420 = vpop.f32.mrf.mxu0
    %v3421 = vadd.f32 %v3327, %v3420
    %v3422 = vpop.f32.mrf.mxu0
    %3423 = vdwg.mxu0
    %3424 = vmatpush.bf16.msra.mxu0 %v3282
    %3425 = vmatpush.bf16.msra.mxu0 %v3278
    %3426 = vmatpush.bf16.msra.mxu0 %v3274
    %3427 = vmatpush.bf16.msra.mxu0 %v3270
    %3428 = vmatpush.bf16.msra.mxu0 %v3266
    %3429 = vmatpush.bf16.msra.mxu0 %v3262
    %3430 = vmatpush.bf16.msra.mxu0 %v3258
    %3431 = vmatpush.bf16.msra.mxu0 %v3254
    %3432 = vmatmul.bf16.gmra.mxu0 %v3336
    %v3433 = vpop.f32.mrf.mxu0
    %v3434 = vadd.f32 %v3421, %v3433
    %v3435 = vpop.f32.mrf.mxu0
    %3436 = vdwg.mxu0
    %3437 = vmatpush.bf16.msra.mxu0 %v3314
    %3438 = vmatpush.bf16.msra.mxu0 %v3310
    %3439 = vmatpush.bf16.msra.mxu0 %v3306
    %3440 = vmatpush.bf16.msra.mxu0 %v3302
    %3441 = vmatpush.bf16.msra.mxu0 %v3298
    %3442 = vmatpush.bf16.msra.mxu0 %v3294
    %3443 = vmatpush.bf16.msra.mxu0 %v3290
    %3444 = vmatpush.bf16.msra.mxu0 %v3286
    %3445 = vmatmul.bf16.gmra.mxu0 %v3337
    %v3446 = vpop.f32.mrf.mxu0
    %v3447 = vadd.f32 %v3434, %v3446
    %v3448 = vpop.f32.mrf.mxu0
    %3449 = vdwg.mxu0
    %3450 = vmatpush.bf16.msra.mxu0 0
    %3451 = vmatpush.bf16.msra.mxu0 0
    %3452 = vmatpush.bf16.msra.mxu0 0
    %3453 = vmatpush.bf16.msra.mxu0 0
    %3454 = vmatpush.bf16.msra.mxu0 0
    %3455 = vmatpush.bf16.msra.mxu0 0
    %3456 = vmatpush.bf16.msra.mxu0 0
    %3457 = vmatpush.bf16.msra.mxu0 %v3351
    %3458 = vmatmul.bf16.gmra.mxu0 %v3344
    %v3459 = vpop.f32.mrf.mxu0
    %v3460 = vadd.f32 %v3447, %v3459
    %v3461 = vpop.f32.mrf.mxu0
    %3462 = vdwg.mxu0
    %3463 = vmatpush.bf16.msra.mxu0 %v3251
    %3464 = vmatpush.bf16.msra.mxu0 %v3247
    %3465 = vmatpush.bf16.msra.mxu0 %v3243
    %3466 = vmatpush.bf16.msra.mxu0 %v3239
    %3467 = vmatpush.bf16.msra.mxu0 %v3235
    %3468 = vmatpush.bf16.msra.mxu0 %v3231
    %3469 = vmatpush.bf16.msra.mxu0 %v3227
    %3470 = vmatpush.bf16.msra.mxu0 %v3223
    %3471 = vmatmul.bf16.gmra.mxu0 %v3335
    %v3472 = vpop.f32.mrf.mxu0
    %v3473 = vadd.f32 %v3327, %v3472
    %v3474 = vpop.f32.mrf.mxu0
    %3475 = vdwg.mxu0
    %3476 = vmatpush.bf16.msra.mxu0 %v3283
    %3477 = vmatpush.bf16.msra.mxu0 %v3279
    %3478 = vmatpush.bf16.msra.mxu0 %v3275
    %3479 = vmatpush.bf16.msra.mxu0 %v3271
    %3480 = vmatpush.bf16.msra.mxu0 %v3267
    %3481 = vmatpush.bf16.msra.mxu0 %v3263
    %3482 = vmatpush.bf16.msra.mxu0 %v3259
    %3483 = vmatpush.bf16.msra.mxu0 %v3255
    %3484 = vmatmul.bf16.gmra.mxu0 %v3336
    %v3485 = vpop.f32.mrf.mxu0
    %v3486 = vadd.f32 %v3473, %v3485
    %v3487 = vpop.f32.mrf.mxu0
    %3488 = vdwg.mxu0
    %3489 = vmatpush.bf16.msra.mxu0 %v3315
    %3490 = vmatpush.bf16.msra.mxu0 %v3311
    %3491 = vmatpush.bf16.msra.mxu0 %v3307
    %3492 = vmatpush.bf16.msra.mxu0 %v3303
    %3493 = vmatpush.bf16.msra.mxu0 %v3299
    %3494 = vmatpush.bf16.msra.mxu0 %v3295
    %3495 = vmatpush.bf16.msra.mxu0 %v3291
    %3496 = vmatpush.bf16.msra.mxu0 %v3287
    %3497 = vmatmul.bf16.gmra.mxu0 %v3337
    %v3498 = vpop.f32.mrf.mxu0
    %v3499 = vadd.f32 %v3486, %v3498
    %v3500 = vpop.f32.mrf.mxu0
    %3501 = vdwg.mxu0
    %3502 = vmatpush.bf16.msra.mxu0 0
    %3503 = vmatpush.bf16.msra.mxu0 0
    %3504 = vmatpush.bf16.msra.mxu0 0
    %3505 = vmatpush.bf16.msra.mxu0 0
    %3506 = vmatpush.bf16.msra.mxu0 0
    %3507 = vmatpush.bf16.msra.mxu0 0
    %3508 = vmatpush.bf16.msra.mxu0 0
    %3509 = vmatpush.bf16.msra.mxu0 %v3354
    %3510 = vmatmul.bf16.gmra.mxu0 %v3344
    %v3511 = vpop.f32.mrf.mxu0
    %v3512 = vadd.f32 %v3499, %v3511
    %v3513 = vpop.f32.mrf.mxu0
    %3514 = vdwg.mxu0
    %3515 = vmatpush.bf16.msra.mxu0 %v3252
    %3516 = vmatpush.bf16.msra.mxu0 %v3248
    %3517 = vmatpush.bf16.msra.mxu0 %v3244
    %3518 = vmatpush.bf16.msra.mxu0 %v3240
    %3519 = vmatpush.bf16.msra.mxu0 %v3236
    %3520 = vmatpush.bf16.msra.mxu0 %v3232
    %3521 = vmatpush.bf16.msra.mxu0 %v3228
    %3522 = vmatpush.bf16.msra.mxu0 %v3224
    %3523 = vmatmul.bf16.gmra.mxu0 %v3335
    %v3524 = vpop.f32.mrf.mxu0
    %v3525 = vadd.f32 %v3327, %v3524
    %v3526 = vpop.f32.mrf.mxu0
    %3527 = vdwg.mxu0
    %3528 = vmatpush.bf16.msra.mxu0 %v3284
    %3529 = vmatpush.bf16.msra.mxu0 %v3280
    %3530 = vmatpush.bf16.msra.mxu0 %v3276
    %3531 = vmatpush.bf16.msra.mxu0 %v3272
    %3532 = vmatpush.bf16.msra.mxu0 %v3268
    %3533 = vmatpush.bf16.msra.mxu0 %v3264
    %3534 = vmatpush.bf16.msra.mxu0 %v3260
    %3535 = vmatpush.bf16.msra.mxu0 %v3256
    %3536 = vmatmul.bf16.gmra.mxu0 %v3336
    %v3537 = vpop.f32.mrf.mxu0
    %v3538 = vadd.f32 %v3525, %v3537
    %v3539 = vpop.f32.mrf.mxu0
    %3540 = vdwg.mxu0
    %3541 = vmatpush.bf16.msra.mxu0 %v3316
    %3542 = vmatpush.bf16.msra.mxu0 %v3312
    %3543 = vmatpush.bf16.msra.mxu0 %v3308
    %3544 = vmatpush.bf16.msra.mxu0 %v3304
    %3545 = vmatpush.bf16.msra.mxu0 %v3300
    %3546 = vmatpush.bf16.msra.mxu0 %v3296
    %3547 = vmatpush.bf16.msra.mxu0 %v3292
    %3548 = vmatpush.bf16.msra.mxu0 %v3288
    %3549 = vmatmul.bf16.gmra.mxu0 %v3337
    %v3550 = vpop.f32.mrf.mxu0
    %v3551 = vadd.f32 %v3538, %v3550
    %v3552 = vpop.f32.mrf.mxu0
    %3553 = vdwg.mxu0
    %3554 = vmatpush.bf16.msra.mxu0 0
    %3555 = vmatpush.bf16.msra.mxu0 0
    %3556 = vmatpush.bf16.msra.mxu0 0
    %3557 = vmatpush.bf16.msra.mxu0 0
    %3558 = vmatpush.bf16.msra.mxu0 0
    %3559 = vmatpush.bf16.msra.mxu0 0
    %3560 = vmatpush.bf16.msra.mxu0 0
    %3561 = vmatpush.bf16.msra.mxu0 %v3357
    %3562 = vmatmul.bf16.gmra.mxu0 %v3344
    %v3563 = vpop.f32.mrf.mxu0
    %v3564 = vadd.f32 %v3551, %v3563
    %v3565 = vpop.f32.mrf.mxu0
    %3566 = vdwg.mxu0
    %v3567 = vmax.f32 %v3408, 0.0
    %v3568 = vmax.f32 %v3460, 0.0
    %v3569 = vmax.f32 %v3512, 0.0
    %v3570 = vmax.f32 %v3564, 0.0
    %v3571 = vadd.f32 %v3567, %v3568
    %v3572 = vadd.f32 %v3571, %v3569
    %v3573 = vadd.f32 %v3572, %v3570
    %3574 = vadd.xlane.f32.xlu0 %v3573
    %v3575 = vpop.xlane.xlu0 %3574
    %v3576 = vrcp.pop 512.0
    %v3577 = vmul.f32 512.0, %v3576
    %v3578 = vsub.f32 1.0, %v3577
    %v3579 = vmul.f32 %v3576, %v3578
    %v3580 = vadd.f32 %v3576, %v3579
    %vm3581 = vweird.f32 %v3576
    %v3582 = vsel %vm3581, %v3576, %v3580
    %v3583 = vmul.f32 %v3575, %v3582
    %v3584 = vsub.f32 %v3567, %v3583
    %v3585 = vsub.f32 %v3568, %v3583
    %v3586 = vsub.f32 %v3569, %v3583
    %v3587 = vsub.f32 %v3570, %v3583
    %v3588 = vmul.f32 %v3584, %v3584
    %v3589 = vmul.f32 %v3585, %v3585
    %v3590 = vmul.f32 %v3586, %v3586
    %v3591 = vmul.f32 %v3587, %v3587
    %v3592 = vadd.f32 %v3588, %v3589
    %v3593 = vadd.f32 %v3592, %v3590
    %v3594 = vadd.f32 %v3593, %v3591
    %3595 = vadd.xlane.f32.xlu0 %v3594
    %v3596 = vpop.xlane.xlu0 %3595
    %v3597 = vmul.f32 %v3596, %v3582
    %v3598 = vadd.f32 %v3597, 1e-05
    %v3599 = vrsqrt.pop %v3598
    %v3600 = vmul.f32 %v3599, %v3598
    %v3601 = vmul.f32 %v3600, %v3599
    %v3602 = vmul.f32 0.5, %v3601
    %v3603 = vsub.f32 1.5, %v3602
    %v3604 = vmul.f32 %v3599, %v3603
    %vm3605 = vweird.f32 %v3598
    %vm3606 = vweird.f32 %v3599
    %vm3607 = vmor %vm3605, %vm3606
    %v3608 = vsel %vm3607, %v3599, %v3604
    %v3609 = vmul.f32 %v3584, %v3608
    %v3610 = vmul.f32 %v3585, %v3608
    %v3611 = vmul.f32 %v3586, %v3608
    %v3612 = vmul.f32 %v3587, %v3608
    %v3613 = vld [vmem:[%s6] sm:$0xff]
    %3615 = vset.pattern.permute.xlu0 0
    %3616 = vperm.xlu0 %3615, %v3613
    %v3617 = vpop.permute.xlu0 %3616
    %v3619 = vmul.f32 %v3609, %v3617
    %v3620 = vmul.f32 %v3610, %v3617
    %v3621 = vmul.f32 %v3611, %v3617
    %v3622 = vmul.f32 %v3612, %v3617
    %v3623 = vld [vmem:[%s7] sm:$0xff]
    %3625 = vset.pattern.permute.xlu0 0
    %3626 = vperm.xlu0 %3625, %v3623
    %v3627 = vpop.permute.xlu0 %3626
    %v3629 = vadd.f32 %v3619, %v3627
    %v3630 = vadd.f32 %v3620, %v3627
    %v3631 = vadd.f32 %v3621, %v3627
    %v3632 = vadd.f32 %v3622, %v3627
    %3633 = vst [vmem:[#allocation2 + $0x8] sm:$0xff] %v3629
    %3634 = vst [vmem:[#allocation2 + $0x10] sm:$0xff] %v3630
    %3635 = vst [vmem:[#allocation2 + $0x18] sm:$0xff] %v3631
    %3636 = vst [vmem:[#allocation2 + $0x20] sm:$0xff] %v3632
    %v3637 = vld [vmem:[#allocation2] sm:$0xff]
    %v3638 = vld [vmem:[#allocation2 + $0x8] sm:$0xff]
    %v3639 = vld [vmem:[#allocation2 + $0x10] sm:$0xff]
    %v3640 = vld [vmem:[#allocation2 + $0x18] sm:$0xff]
    %v3641 = vld [vmem:[#allocation2 + $0x20] sm:$0xff]
    %v3642 = vld [vmem:[#allocation7] ss:$8 sm:$0xf]
    %v3644 = vperm.slane %v3642, 0
    %v3645 = vperm.slane %v3642, 1
    %v3646 = vperm.slane %v3642, 2
    %v3647 = vperm.slane %v3642, 3
    %3648 = vrot.lane.b32.xlu0 %v3644, 77
    %v3649 = vpop.permute.xlu0 %3648
    %3650 = vrot.lane.b32.xlu0 %v3645, 77
    %v3651 = vpop.permute.xlu0 %3650
    %3652 = vrot.lane.b32.xlu0 %v3646, 77
    %v3653 = vpop.permute.xlu0 %3652
    %3654 = vrot.lane.b32.xlu0 %v3647, 77
    %v3655 = vpop.permute.xlu0 %3654
    %v3656 = vsel %vm94, %v3649, %v3651
    %v3657 = vsel %vm94, %v3651, %v3653
    %v3658 = vsel %vm94, %v3653, %v3655
    %v3664 = vmul.f32 %v3637, %v3649
    %v3665 = vmul.f32 %v3638, %v3656
    %v3666 = vmul.f32 %v3639, %v3657
    %v3667 = vmul.f32 %v3640, %v3658
    %v3668 = vmul.f32 %v3641, %v3655
    %3674 = vrot.lane.b32.xlu0 %v3664, 51
    %v3675 = vpop.permute.xlu0 %3674
    %3676 = vrot.lane.b32.xlu0 %v3665, 51
    %v3677 = vpop.permute.xlu0 %3676
    %3678 = vrot.lane.b32.xlu0 %v3666, 51
    %v3679 = vpop.permute.xlu0 %3678
    %3680 = vrot.lane.b32.xlu0 %v3667, 51
    %v3681 = vpop.permute.xlu0 %3680
    %3682 = vrot.lane.b32.xlu0 %v3668, 51
    %v3683 = vpop.permute.xlu0 %3682
    %v3684 = vsel %vm123, %v3675, %v3677
    %v3685 = vsel %vm123, %v3677, %v3679
    %v3686 = vsel %vm123, %v3679, %v3681
    %v3687 = vsel %vm123, %v3681, %v3683
    %3692 = vst [vmem:[#allocation3] sm:$0xff] %v3684
    %3693 = vst [vmem:[#allocation3 + $0x8] sm:$0xff] %v3685
    %3694 = vst [vmem:[#allocation3 + $0x10] sm:$0xff] %v3686
    %3695 = vst [vmem:[#allocation3 + $0x18] sm:$0xff] %v3687
    %v3696 = vld [vmem:[#allocation2] sm:$0xff]
    %v3697 = vld [vmem:[#allocation2 + $0x8] sm:$0xff]
    %v3698 = vld [vmem:[#allocation2 + $0x10] sm:$0xff]
    %v3699 = vld [vmem:[#allocation2 + $0x18] sm:$0xff]
    %v3700 = vld [vmem:[#allocation2 + $0x20] sm:$0xff]
    %v3701 = vld [vmem:[%s141] ss:$8 sm:$0xf]
    %v3703 = vperm.slane %v3701, 0
    %v3704 = vperm.slane %v3701, 1
    %v3705 = vperm.slane %v3701, 2
    %v3706 = vperm.slane %v3701, 3
    %3707 = vrot.lane.b32.xlu0 %v3703, 78
    %v3708 = vpop.permute.xlu0 %3707
    %3709 = vrot.lane.b32.xlu0 %v3704, 78
    %v3710 = vpop.permute.xlu0 %3709
    %3711 = vrot.lane.b32.xlu0 %v3705, 78
    %v3712 = vpop.permute.xlu0 %3711
    %3713 = vrot.lane.b32.xlu0 %v3706, 78
    %v3714 = vpop.permute.xlu0 %3713
    %v3715 = vsel %vm156, %v3708, %v3710
    %v3716 = vsel %vm156, %v3710, %v3712
    %v3717 = vsel %vm156, %v3712, %v3714
    %v3723 = vmul.f32 %v3696, %v3708
    %v3724 = vmul.f32 %v3697, %v3715
    %v3725 = vmul.f32 %v3698, %v3716
    %v3726 = vmul.f32 %v3699, %v3717
    %v3727 = vmul.f32 %v3700, %v3714
    %3733 = vrot.lane.b32.xlu0 %v3723, 50
    %v3734 = vpop.permute.xlu0 %3733
    %3735 = vrot.lane.b32.xlu0 %v3724, 50
    %v3736 = vpop.permute.xlu0 %3735
    %3737 = vrot.lane.b32.xlu0 %v3725, 50
    %v3738 = vpop.permute.xlu0 %3737
    %3739 = vrot.lane.b32.xlu0 %v3726, 50
    %v3740 = vpop.permute.xlu0 %3739
    %3741 = vrot.lane.b32.xlu0 %v3727, 50
    %v3742 = vpop.permute.xlu0 %3741
    %v3743 = vsel %vm185, %v3734, %v3736
    %v3744 = vsel %vm185, %v3736, %v3738
    %v3745 = vsel %vm185, %v3738, %v3740
    %v3746 = vsel %vm185, %v3740, %v3742
    %3751 = vst [vmem:[#allocation3 + $0x20] sm:$0xff] %v3743
    %3752 = vst [vmem:[#allocation3 + $0x28] sm:$0xff] %v3744
    %3753 = vst [vmem:[#allocation3 + $0x30] sm:$0xff] %v3745
    %3754 = vst [vmem:[#allocation3 + $0x38] sm:$0xff] %v3746
    %v3755 = vld [vmem:[#allocation2] sm:$0xff]
    %v3756 = vld [vmem:[#allocation2 + $0x8] sm:$0xff]
    %v3757 = vld [vmem:[#allocation2 + $0x10] sm:$0xff]
    %v3758 = vld [vmem:[#allocation2 + $0x18] sm:$0xff]
    %v3759 = vld [vmem:[#allocation2 + $0x20] sm:$0xff]
    %v3760 = vld [vmem:[%s203] ss:$8 sm:$0xf]
    %v3762 = vperm.slane %v3760, 0
    %v3763 = vperm.slane %v3760, 1
    %v3764 = vperm.slane %v3760, 2
    %v3765 = vperm.slane %v3760, 3
    %3766 = vrot.lane.b32.xlu0 %v3762, 79
    %v3767 = vpop.permute.xlu0 %3766
    %3768 = vrot.lane.b32.xlu0 %v3763, 79
    %v3769 = vpop.permute.xlu0 %3768
    %3770 = vrot.lane.b32.xlu0 %v3764, 79
    %v3771 = vpop.permute.xlu0 %3770
    %3772 = vrot.lane.b32.xlu0 %v3765, 79
    %v3773 = vpop.permute.xlu0 %3772
    %v3774 = vsel %vm218, %v3767, %v3769
    %v3775 = vsel %vm218, %v3769, %v3771
    %v3776 = vsel %vm218, %v3771, %v3773
    %v3782 = vmul.f32 %v3755, %v3767
    %v3783 = vmul.f32 %v3756, %v3774
    %v3784 = vmul.f32 %v3757, %v3775
    %v3785 = vmul.f32 %v3758, %v3776
    %v3786 = vmul.f32 %v3759, %v3773
    %3792 = vrot.lane.b32.xlu0 %v3782, 49
    %v3793 = vpop.permute.xlu0 %3792
    %3794 = vrot.lane.b32.xlu0 %v3783, 49
    %v3795 = vpop.permute.xlu0 %3794
    %3796 = vrot.lane.b32.xlu0 %v3784, 49
    %v3797 = vpop.permute.xlu0 %3796
    %3798 = vrot.lane.b32.xlu0 %v3785, 49
    %v3799 = vpop.permute.xlu0 %3798
    %3800 = vrot.lane.b32.xlu0 %v3786, 49
    %v3801 = vpop.permute.xlu0 %3800
    %v3802 = vsel %vm247, %v3793, %v3795
    %v3803 = vsel %vm247, %v3795, %v3797
    %v3804 = vsel %vm247, %v3797, %v3799
    %v3805 = vsel %vm247, %v3799, %v3801
    %3810 = vst [vmem:[#allocation3 + $0x40] sm:$0xff] %v3802
    %3811 = vst [vmem:[#allocation3 + $0x48] sm:$0xff] %v3803
    %3812 = vst [vmem:[#allocation3 + $0x50] sm:$0xff] %v3804
    %3813 = vst [vmem:[#allocation3 + $0x58] sm:$0xff] %v3805
    %v3814 = vld [vmem:[#allocation2] sm:$0xff]
    %v3815 = vld [vmem:[#allocation2 + $0x8] sm:$0xff]
    %v3816 = vld [vmem:[#allocation2 + $0x10] sm:$0xff]
    %v3817 = vld [vmem:[#allocation2 + $0x18] sm:$0xff]
    %v3818 = vld [vmem:[#allocation2 + $0x20] sm:$0xff]
    %v3819 = vld [vmem:[%s265] ss:$8 sm:$0xf]
    %v3821 = vperm.slane %v3819, 0
    %v3822 = vperm.slane %v3819, 1
    %v3823 = vperm.slane %v3819, 2
    %v3824 = vperm.slane %v3819, 3
    %3825 = vrot.lane.b32.xlu0 %v3821, 80
    %v3826 = vpop.permute.xlu0 %3825
    %3827 = vrot.lane.b32.xlu0 %v3822, 80
    %v3828 = vpop.permute.xlu0 %3827
    %3829 = vrot.lane.b32.xlu0 %v3823, 80
    %v3830 = vpop.permute.xlu0 %3829
    %3831 = vrot.lane.b32.xlu0 %v3824, 80
    %v3832 = vpop.permute.xlu0 %3831
    %v3833 = vsel %vm280, %v3826, %v3828
    %v3834 = vsel %vm280, %v3828, %v3830
    %v3835 = vsel %vm280, %v3830, %v3832
    %v3841 = vmul.f32 %v3814, %v3826
    %v3842 = vmul.f32 %v3815, %v3833
    %v3843 = vmul.f32 %v3816, %v3834
    %v3844 = vmul.f32 %v3817, %v3835
    %v3845 = vmul.f32 %v3818, %v3832
    %3851 = vrot.lane.b32.xlu0 %v3841, 48
    %v3852 = vpop.permute.xlu0 %3851
    %3853 = vrot.lane.b32.xlu0 %v3842, 48
    %v3854 = vpop.permute.xlu0 %3853
    %3855 = vrot.lane.b32.xlu0 %v3843, 48
    %v3856 = vpop.permute.xlu0 %3855
    %3857 = vrot.lane.b32.xlu0 %v3844, 48
    %v3858 = vpop.permute.xlu0 %3857
    %3859 = vrot.lane.b32.xlu0 %v3845, 48
    %v3860 = vpop.permute.xlu0 %3859
    %v3861 = vsel %vm309, %v3852, %v3854
    %v3862 = vsel %vm309, %v3854, %v3856
    %v3863 = vsel %vm309, %v3856, %v3858
    %v3864 = vsel %vm309, %v3858, %v3860
    %3869 = vst [vmem:[#allocation3 + $0x60] sm:$0xff] %v3861
    %3870 = vst [vmem:[#allocation3 + $0x68] sm:$0xff] %v3862
    %3871 = vst [vmem:[#allocation3 + $0x70] sm:$0xff] %v3863
    %3872 = vst [vmem:[#allocation3 + $0x78] sm:$0xff] %v3864
    %v3873 = vld [vmem:[#allocation2] sm:$0xff]
    %v3874 = vld [vmem:[#allocation2 + $0x8] sm:$0xff]
    %v3875 = vld [vmem:[#allocation2 + $0x10] sm:$0xff]
    %v3876 = vld [vmem:[#allocation2 + $0x18] sm:$0xff]
    %v3877 = vld [vmem:[#allocation2 + $0x20] sm:$0xff]
    %v3878 = vld [vmem:[%s327] ss:$8 sm:$0xf]
    %v3880 = vperm.slane %v3878, 0
    %v3881 = vperm.slane %v3878, 1
    %v3882 = vperm.slane %v3878, 2
    %v3883 = vperm.slane %v3878, 3
    %3884 = vrot.lane.b32.xlu0 %v3880, 81
    %v3885 = vpop.permute.xlu0 %3884
    %3886 = vrot.lane.b32.xlu0 %v3881, 81
    %v3887 = vpop.permute.xlu0 %3886
    %3888 = vrot.lane.b32.xlu0 %v3882, 81
    %v3889 = vpop.permute.xlu0 %3888
    %3890 = vrot.lane.b32.xlu0 %v3883, 81
    %v3891 = vpop.permute.xlu0 %3890
    %v3892 = vsel %vm342, %v3885, %v3887
    %v3893 = vsel %vm342, %v3887, %v3889
    %v3894 = vsel %vm342, %v3889, %v3891
    %v3900 = vmul.f32 %v3873, %v3885
    %v3901 = vmul.f32 %v3874, %v3892
    %v3902 = vmul.f32 %v3875, %v3893
    %v3903 = vmul.f32 %v3876, %v3894
    %v3904 = vmul.f32 %v3877, %v3891
    %3910 = vrot.lane.b32.xlu0 %v3900, 47
    %v3911 = vpop.permute.xlu0 %3910
    %3912 = vrot.lane.b32.xlu0 %v3901, 47
    %v3913 = vpop.permute.xlu0 %3912
    %3914 = vrot.lane.b32.xlu0 %v3902, 47
    %v3915 = vpop.permute.xlu0 %3914
    %3916 = vrot.lane.b32.xlu0 %v3903, 47
    %v3917 = vpop.permute.xlu0 %3916
    %3918 = vrot.lane.b32.xlu0 %v3904, 47
    %v3919 = vpop.permute.xlu0 %3918
    %v3920 = vsel %vm371, %v3911, %v3913
    %v3921 = vsel %vm371, %v3913, %v3915
    %v3922 = vsel %vm371, %v3915, %v3917
    %v3923 = vsel %vm371, %v3917, %v3919
    %3928 = vst [vmem:[#allocation3 + $0x80] sm:$0xff] %v3920
    %3929 = vst [vmem:[#allocation3 + $0x88] sm:$0xff] %v3921
    %3930 = vst [vmem:[#allocation3 + $0x90] sm:$0xff] %v3922
    %3931 = vst [vmem:[#allocation3 + $0x98] sm:$0xff] %v3923
    %v3932 = vld [vmem:[#allocation2] sm:$0xff]
    %v3933 = vld [vmem:[#allocation2 + $0x8] sm:$0xff]
    %v3934 = vld [vmem:[#allocation2 + $0x10] sm:$0xff]
    %v3935 = vld [vmem:[#allocation2 + $0x18] sm:$0xff]
    %v3936 = vld [vmem:[#allocation2 + $0x20] sm:$0xff]
    %v3937 = vld [vmem:[%s389] ss:$8 sm:$0xf]
    %v3939 = vperm.slane %v3937, 0
    %v3940 = vperm.slane %v3937, 1
    %v3941 = vperm.slane %v3937, 2
    %v3942 = vperm.slane %v3937, 3
    %3943 = vrot.lane.b32.xlu0 %v3939, 82
    %v3944 = vpop.permute.xlu0 %3943
    %3945 = vrot.lane.b32.xlu0 %v3940, 82
    %v3946 = vpop.permute.xlu0 %3945
    %3947 = vrot.lane.b32.xlu0 %v3941, 82
    %v3948 = vpop.permute.xlu0 %3947
    %3949 = vrot.lane.b32.xlu0 %v3942, 82
    %v3950 = vpop.permute.xlu0 %3949
    %v3951 = vsel %vm404, %v3944, %v3946
    %v3952 = vsel %vm404, %v3946, %v3948
    %v3953 = vsel %vm404, %v3948, %v3950
    %v3959 = vmul.f32 %v3932, %v3944
    %v3960 = vmul.f32 %v3933, %v3951
    %v3961 = vmul.f32 %v3934, %v3952
    %v3962 = vmul.f32 %v3935, %v3953
    %v3963 = vmul.f32 %v3936, %v3950
    %3969 = vrot.lane.b32.xlu0 %v3959, 46
    %v3970 = vpop.permute.xlu0 %3969
    %3971 = vrot.lane.b32.xlu0 %v3960, 46
    %v3972 = vpop.permute.xlu0 %3971
    %3973 = vrot.lane.b32.xlu0 %v3961, 46
    %v3974 = vpop.permute.xlu0 %3973
    %3975 = vrot.lane.b32.xlu0 %v3962, 46
    %v3976 = vpop.permute.xlu0 %3975
    %3977 = vrot.lane.b32.xlu0 %v3963, 46
    %v3978 = vpop.permute.xlu0 %3977
    %v3979 = vsel %vm433, %v3970, %v3972
    %v3980 = vsel %vm433, %v3972, %v3974
    %v3981 = vsel %vm433, %v3974, %v3976
    %v3982 = vsel %vm433, %v3976, %v3978
    %3987 = vst [vmem:[#allocation3 + $0xa0] sm:$0xff] %v3979
    %3988 = vst [vmem:[#allocation3 + $0xa8] sm:$0xff] %v3980
    %3989 = vst [vmem:[#allocation3 + $0xb0] sm:$0xff] %v3981
    %3990 = vst [vmem:[#allocation3 + $0xb8] sm:$0xff] %v3982
    %v3991 = vld [vmem:[#allocation2] sm:$0xff]
    %v3992 = vld [vmem:[#allocation2 + $0x8] sm:$0xff]
    %v3993 = vld [vmem:[#allocation2 + $0x10] sm:$0xff]
    %v3994 = vld [vmem:[#allocation2 + $0x18] sm:$0xff]
    %v3995 = vld [vmem:[#allocation2 + $0x20] sm:$0xff]
    %v3996 = vld [vmem:[%s451] ss:$8 sm:$0xf]
    %v3998 = vperm.slane %v3996, 0
    %v3999 = vperm.slane %v3996, 1
    %v4000 = vperm.slane %v3996, 2
    %v4001 = vperm.slane %v3996, 3
    %4002 = vrot.lane.b32.xlu0 %v3998, 83
    %v4003 = vpop.permute.xlu0 %4002
    %4004 = vrot.lane.b32.xlu0 %v3999, 83
    %v4005 = vpop.permute.xlu0 %4004
    %4006 = vrot.lane.b32.xlu0 %v4000, 83
    %v4007 = vpop.permute.xlu0 %4006
    %4008 = vrot.lane.b32.xlu0 %v4001, 83
    %v4009 = vpop.permute.xlu0 %4008
    %v4010 = vsel %vm466, %v4003, %v4005
    %v4011 = vsel %vm466, %v4005, %v4007
    %v4012 = vsel %vm466, %v4007, %v4009
    %v4018 = vmul.f32 %v3991, %v4003
    %v4019 = vmul.f32 %v3992, %v4010
    %v4020 = vmul.f32 %v3993, %v4011
    %v4021 = vmul.f32 %v3994, %v4012
    %v4022 = vmul.f32 %v3995, %v4009
    %4028 = vrot.lane.b32.xlu0 %v4018, 45
    %v4029 = vpop.permute.xlu0 %4028
    %4030 = vrot.lane.b32.xlu0 %v4019, 45
    %v4031 = vpop.permute.xlu0 %4030
    %4032 = vrot.lane.b32.xlu0 %v4020, 45
    %v4033 = vpop.permute.xlu0 %4032
    %4034 = vrot.lane.b32.xlu0 %v4021, 45
    %v4035 = vpop.permute.xlu0 %4034
    %4036 = vrot.lane.b32.xlu0 %v4022, 45
    %v4037 = vpop.permute.xlu0 %4036
    %v4038 = vsel %vm495, %v4029, %v4031
    %v4039 = vsel %vm495, %v4031, %v4033
    %v4040 = vsel %vm495, %v4033, %v4035
    %v4041 = vsel %vm495, %v4035, %v4037
    %4046 = vst [vmem:[#allocation3 + $0xc0] sm:$0xff] %v4038
    %4047 = vst [vmem:[#allocation3 + $0xc8] sm:$0xff] %v4039
    %4048 = vst [vmem:[#allocation3 + $0xd0] sm:$0xff] %v4040
    %4049 = vst [vmem:[#allocation3 + $0xd8] sm:$0xff] %v4041
    %v4050 = vld [vmem:[#allocation2] sm:$0xff]
    %v4051 = vld [vmem:[#allocation2 + $0x8] sm:$0xff]
    %v4052 = vld [vmem:[#allocation2 + $0x10] sm:$0xff]
    %v4053 = vld [vmem:[#allocation2 + $0x18] sm:$0xff]
    %v4054 = vld [vmem:[#allocation2 + $0x20] sm:$0xff]
    %v4055 = vld [vmem:[%s513] ss:$8 sm:$0xf]
    %v4057 = vperm.slane %v4055, 0
    %v4058 = vperm.slane %v4055, 1
    %v4059 = vperm.slane %v4055, 2
    %v4060 = vperm.slane %v4055, 3
    %4061 = vrot.lane.b32.xlu0 %v4057, 93
    %v4062 = vpop.permute.xlu0 %4061
    %4063 = vrot.lane.b32.xlu0 %v4058, 93
    %v4064 = vpop.permute.xlu0 %4063
    %4065 = vrot.lane.b32.xlu0 %v4059, 93
    %v4066 = vpop.permute.xlu0 %4065
    %4067 = vrot.lane.b32.xlu0 %v4060, 93
    %v4068 = vpop.permute.xlu0 %4067
    %v4069 = vsel %vm528, %v4062, %v4064
    %v4070 = vsel %vm528, %v4064, %v4066
    %v4071 = vsel %vm528, %v4066, %v4068
    %v4077 = vmul.f32 %v4050, %v4062
    %v4078 = vmul.f32 %v4051, %v4069
    %v4079 = vmul.f32 %v4052, %v4070
    %v4080 = vmul.f32 %v4053, %v4071
    %v4081 = vmul.f32 %v4054, %v4068
    %4087 = vrot.lane.b32.xlu0 %v4077, 35
    %v4088 = vpop.permute.xlu0 %4087
    %4089 = vrot.lane.b32.xlu0 %v4078, 35
    %v4090 = vpop.permute.xlu0 %4089
    %4091 = vrot.lane.b32.xlu0 %v4079, 35
    %v4092 = vpop.permute.xlu0 %4091
    %4093 = vrot.lane.b32.xlu0 %v4080, 35
    %v4094 = vpop.permute.xlu0 %4093
    %4095 = vrot.lane.b32.xlu0 %v4081, 35
    %v4096 = vpop.permute.xlu0 %4095
    %v4097 = vsel %vm557, %v4088, %v4090
    %v4098 = vsel %vm557, %v4090, %v4092
    %v4099 = vsel %vm557, %v4092, %v4094
    %v4100 = vsel %vm557, %v4094, %v4096
    %4105 = vst [vmem:[#allocation3 + $0xe0] sm:$0xff] %v4097
    %4106 = vst [vmem:[#allocation3 + $0xe8] sm:$0xff] %v4098
    %4107 = vst [vmem:[#allocation3 + $0xf0] sm:$0xff] %v4099
    %4108 = vst [vmem:[#allocation3 + $0xf8] sm:$0xff] %v4100
    %v4109 = vld [vmem:[#allocation2] sm:$0xff]
    %v4110 = vld [vmem:[#allocation2 + $0x8] sm:$0xff]
    %v4111 = vld [vmem:[#allocation2 + $0x10] sm:$0xff]
    %v4112 = vld [vmem:[#allocation2 + $0x18] sm:$0xff]
    %v4113 = vld [vmem:[#allocation2 + $0x20] sm:$0xff]
    %v4114 = vld [vmem:[%s575] ss:$8 sm:$0xf]
    %v4116 = vperm.slane %v4114, 0
    %v4117 = vperm.slane %v4114, 1
    %v4118 = vperm.slane %v4114, 2
    %v4119 = vperm.slane %v4114, 3
    %4120 = vrot.lane.b32.xlu0 %v4116, 94
    %v4121 = vpop.permute.xlu0 %4120
    %4122 = vrot.lane.b32.xlu0 %v4117, 94
    %v4123 = vpop.permute.xlu0 %4122
    %4124 = vrot.lane.b32.xlu0 %v4118, 94
    %v4125 = vpop.permute.xlu0 %4124
    %4126 = vrot.lane.b32.xlu0 %v4119, 94
    %v4127 = vpop.permute.xlu0 %4126
    %v4128 = vsel %vm590, %v4121, %v4123
    %v4129 = vsel %vm590, %v4123, %v4125
    %v4130 = vsel %vm590, %v4125, %v4127
    %v4136 = vmul.f32 %v4109, %v4121
    %v4137 = vmul.f32 %v4110, %v4128
    %v4138 = vmul.f32 %v4111, %v4129
    %v4139 = vmul.f32 %v4112, %v4130
    %v4140 = vmul.f32 %v4113, %v4127
    %4146 = vrot.lane.b32.xlu0 %v4136, 34
    %v4147 = vpop.permute.xlu0 %4146
    %4148 = vrot.lane.b32.xlu0 %v4137, 34
    %v4149 = vpop.permute.xlu0 %4148
    %4150 = vrot.lane.b32.xlu0 %v4138, 34
    %v4151 = vpop.permute.xlu0 %4150
    %4152 = vrot.lane.b32.xlu0 %v4139, 34
    %v4153 = vpop.permute.xlu0 %4152
    %4154 = vrot.lane.b32.xlu0 %v4140, 34
    %v4155 = vpop.permute.xlu0 %4154
    %v4156 = vsel %vm619, %v4147, %v4149
    %v4157 = vsel %vm619, %v4149, %v4151
    %v4158 = vsel %vm619, %v4151, %v4153
    %v4159 = vsel %vm619, %v4153, %v4155
    %4164 = vst [vmem:[#allocation3 + $0x100] sm:$0xff] %v4156
    %4165 = vst [vmem:[#allocation3 + $0x108] sm:$0xff] %v4157
    %4166 = vst [vmem:[#allocation3 + $0x110] sm:$0xff] %v4158
    %4167 = vst [vmem:[#allocation3 + $0x118] sm:$0xff] %v4159
    %v4168 = vld [vmem:[#allocation2] sm:$0xff]
    %v4169 = vld [vmem:[#allocation2 + $0x8] sm:$0xff]
    %v4170 = vld [vmem:[#allocation2 + $0x10] sm:$0xff]
    %v4171 = vld [vmem:[#allocation2 + $0x18] sm:$0xff]
    %v4172 = vld [vmem:[#allocation2 + $0x20] sm:$0xff]
    %v4173 = vld [vmem:[%s637] ss:$8 sm:$0xf]
    %v4175 = vperm.slane %v4173, 0
    %v4176 = vperm.slane %v4173, 1
    %v4177 = vperm.slane %v4173, 2
    %v4178 = vperm.slane %v4173, 3
    %4179 = vrot.lane.b32.xlu0 %v4175, 95
    %v4180 = vpop.permute.xlu0 %4179
    %4181 = vrot.lane.b32.xlu0 %v4176, 95
    %v4182 = vpop.permute.xlu0 %4181
    %4183 = vrot.lane.b32.xlu0 %v4177, 95
    %v4184 = vpop.permute.xlu0 %4183
    %4185 = vrot.lane.b32.xlu0 %v4178, 95
    %v4186 = vpop.permute.xlu0 %4185
    %v4187 = vsel %vm652, %v4180, %v4182
    %v4188 = vsel %vm652, %v4182, %v4184
    %v4189 = vsel %vm652, %v4184, %v4186
    %v4195 = vmul.f32 %v4168, %v4180
    %v4196 = vmul.f32 %v4169, %v4187
    %v4197 = vmul.f32 %v4170, %v4188
    %v4198 = vmul.f32 %v4171, %v4189
    %v4199 = vmul.f32 %v4172, %v4186
    %4205 = vrot.lane.b32.xlu0 %v4195, 33
    %v4206 = vpop.permute.xlu0 %4205
    %4207 = vrot.lane.b32.xlu0 %v4196, 33
    %v4208 = vpop.permute.xlu0 %4207
    %4209 = vrot.lane.b32.xlu0 %v4197, 33
    %v4210 = vpop.permute.xlu0 %4209
    %4211 = vrot.lane.b32.xlu0 %v4198, 33
    %v4212 = vpop.permute.xlu0 %4211
    %4213 = vrot.lane.b32.xlu0 %v4199, 33
    %v4214 = vpop.permute.xlu0 %4213
    %v4215 = vsel %vm681, %v4206, %v4208
    %v4216 = vsel %vm681, %v4208, %v4210
    %v4217 = vsel %vm681, %v4210, %v4212
    %v4218 = vsel %vm681, %v4212, %v4214
    %4223 = vst [vmem:[#allocation3 + $0x120] sm:$0xff] %v4215
    %4224 = vst [vmem:[#allocation3 + $0x128] sm:$0xff] %v4216
    %4225 = vst [vmem:[#allocation3 + $0x130] sm:$0xff] %v4217
    %4226 = vst [vmem:[#allocation3 + $0x138] sm:$0xff] %v4218
    %v4227 = vld [vmem:[#allocation2] sm:$0xff]
    %v4228 = vld [vmem:[#allocation2 + $0x8] sm:$0xff]
    %v4229 = vld [vmem:[#allocation2 + $0x10] sm:$0xff]
    %v4230 = vld [vmem:[#allocation2 + $0x18] sm:$0xff]
    %v4231 = vld [vmem:[#allocation2 + $0x20] sm:$0xff]
    %v4232 = vld [vmem:[%s699] ss:$8 sm:$0xf]
    %v4234 = vperm.slane %v4232, 0
    %v4235 = vperm.slane %v4232, 1
    %v4236 = vperm.slane %v4232, 2
    %v4237 = vperm.slane %v4232, 3
    %4238 = vrot.lane.b32.xlu0 %v4234, 96
    %v4239 = vpop.permute.xlu0 %4238
    %4240 = vrot.lane.b32.xlu0 %v4235, 96
    %v4241 = vpop.permute.xlu0 %4240
    %4242 = vrot.lane.b32.xlu0 %v4236, 96
    %v4243 = vpop.permute.xlu0 %4242
    %4244 = vrot.lane.b32.xlu0 %v4237, 96
    %v4245 = vpop.permute.xlu0 %4244
    %v4246 = vsel %vm714, %v4239, %v4241
    %v4247 = vsel %vm714, %v4241, %v4243
    %v4248 = vsel %vm714, %v4243, %v4245
    %v4254 = vmul.f32 %v4227, %v4239
    %v4255 = vmul.f32 %v4228, %v4246
    %v4256 = vmul.f32 %v4229, %v4247
    %v4257 = vmul.f32 %v4230, %v4248
    %v4258 = vmul.f32 %v4231, %v4245
    %4264 = vrot.lane.b32.xlu0 %v4254, 32
    %v4265 = vpop.permute.xlu0 %4264
    %4266 = vrot.lane.b32.xlu0 %v4255, 32
    %v4267 = vpop.permute.xlu0 %4266
    %4268 = vrot.lane.b32.xlu0 %v4256, 32
    %v4269 = vpop.permute.xlu0 %4268
    %4270 = vrot.lane.b32.xlu0 %v4257, 32
    %v4271 = vpop.permute.xlu0 %4270
    %4272 = vrot.lane.b32.xlu0 %v4258, 32
    %v4273 = vpop.permute.xlu0 %4272
    %v4274 = vsel %vm743, %v4265, %v4267
    %v4275 = vsel %vm743, %v4267, %v4269
    %v4276 = vsel %vm743, %v4269, %v4271
    %v4277 = vsel %vm743, %v4271, %v4273
    %4282 = vst [vmem:[#allocation3 + $0x140] sm:$0xff] %v4274
    %4283 = vst [vmem:[#allocation3 + $0x148] sm:$0xff] %v4275
    %4284 = vst [vmem:[#allocation3 + $0x150] sm:$0xff] %v4276
    %4285 = vst [vmem:[#allocation3 + $0x158] sm:$0xff] %v4277
    %v4286 = vld [vmem:[#allocation2] sm:$0xff]
    %v4287 = vld [vmem:[#allocation2 + $0x8] sm:$0xff]
    %v4288 = vld [vmem:[#allocation2 + $0x10] sm:$0xff]
    %v4289 = vld [vmem:[#allocation2 + $0x18] sm:$0xff]
    %v4290 = vld [vmem:[#allocation2 + $0x20] sm:$0xff]
    %v4291 = vld [vmem:[%s761] ss:$8 sm:$0xf]
    %v4293 = vperm.slane %v4291, 0
    %v4294 = vperm.slane %v4291, 1
    %v4295 = vperm.slane %v4291, 2
    %v4296 = vperm.slane %v4291, 3
    %4297 = vrot.lane.b32.xlu0 %v4293, 97
    %v4298 = vpop.permute.xlu0 %4297
    %4299 = vrot.lane.b32.xlu0 %v4294, 97
    %v4300 = vpop.permute.xlu0 %4299
    %4301 = vrot.lane.b32.xlu0 %v4295, 97
    %v4302 = vpop.permute.xlu0 %4301
    %4303 = vrot.lane.b32.xlu0 %v4296, 97
    %v4304 = vpop.permute.xlu0 %4303
    %v4305 = vsel %vm776, %v4298, %v4300
    %v4306 = vsel %vm776, %v4300, %v4302
    %v4307 = vsel %vm776, %v4302, %v4304
    %v4313 = vmul.f32 %v4286, %v4298
    %v4314 = vmul.f32 %v4287, %v4305
    %v4315 = vmul.f32 %v4288, %v4306
    %v4316 = vmul.f32 %v4289, %v4307
    %v4317 = vmul.f32 %v4290, %v4304
    %4323 = vrot.lane.b32.xlu0 %v4313, 31
    %v4324 = vpop.permute.xlu0 %4323
    %4325 = vrot.lane.b32.xlu0 %v4314, 31
    %v4326 = vpop.permute.xlu0 %4325
    %4327 = vrot.lane.b32.xlu0 %v4315, 31
    %v4328 = vpop.permute.xlu0 %4327
    %4329 = vrot.lane.b32.xlu0 %v4316, 31
    %v4330 = vpop.permute.xlu0 %4329
    %4331 = vrot.lane.b32.xlu0 %v4317, 31
    %v4332 = vpop.permute.xlu0 %4331
    %v4333 = vsel %vm805, %v4324, %v4326
    %v4334 = vsel %vm805, %v4326, %v4328
    %v4335 = vsel %vm805, %v4328, %v4330
    %v4336 = vsel %vm805, %v4330, %v4332
    %4341 = vst [vmem:[#allocation3 + $0x160] sm:$0xff] %v4333
    %4342 = vst [vmem:[#allocation3 + $0x168] sm:$0xff] %v4334
    %4343 = vst [vmem:[#allocation3 + $0x170] sm:$0xff] %v4335
    %4344 = vst [vmem:[#allocation3 + $0x178] sm:$0xff] %v4336
    %v4345 = vld [vmem:[#allocation2] sm:$0xff]
    %v4346 = vld [vmem:[#allocation2 + $0x8] sm:$0xff]
    %v4347 = vld [vmem:[#allocation2 + $0x10] sm:$0xff]
    %v4348 = vld [vmem:[#allocation2 + $0x18] sm:$0xff]
    %v4349 = vld [vmem:[#allocation2 + $0x20] sm:$0xff]
    %v4350 = vld [vmem:[%s823] ss:$8 sm:$0xf]
    %v4352 = vperm.slane %v4350, 0
    %v4353 = vperm.slane %v4350, 1
    %v4354 = vperm.slane %v4350, 2
    %v4355 = vperm.slane %v4350, 3
    %4356 = vrot.lane.b32.xlu0 %v4352, 98
    %v4357 = vpop.permute.xlu0 %4356
    %4358 = vrot.lane.b32.xlu0 %v4353, 98
    %v4359 = vpop.permute.xlu0 %4358
    %4360 = vrot.lane.b32.xlu0 %v4354, 98
    %v4361 = vpop.permute.xlu0 %4360
    %4362 = vrot.lane.b32.xlu0 %v4355, 98
    %v4363 = vpop.permute.xlu0 %4362
    %v4364 = vsel %vm838, %v4357, %v4359
    %v4365 = vsel %vm838, %v4359, %v4361
    %v4366 = vsel %vm838, %v4361, %v4363
    %v4372 = vmul.f32 %v4345, %v4357
    %v4373 = vmul.f32 %v4346, %v4364
    %v4374 = vmul.f32 %v4347, %v4365
    %v4375 = vmul.f32 %v4348, %v4366
    %v4376 = vmul.f32 %v4349, %v4363
    %4382 = vrot.lane.b32.xlu0 %v4372, 30
    %v4383 = vpop.permute.xlu0 %4382
    %4384 = vrot.lane.b32.xlu0 %v4373, 30
    %v4385 = vpop.permute.xlu0 %4384
    %4386 = vrot.lane.b32.xlu0 %v4374, 30
    %v4387 = vpop.permute.xlu0 %4386
    %4388 = vrot.lane.b32.xlu0 %v4375, 30
    %v4389 = vpop.permute.xlu0 %4388
    %4390 = vrot.lane.b32.xlu0 %v4376, 30
    %v4391 = vpop.permute.xlu0 %4390
    %v4392 = vsel %vm867, %v4383, %v4385
    %v4393 = vsel %vm867, %v4385, %v4387
    %v4394 = vsel %vm867, %v4387, %v4389
    %v4395 = vsel %vm867, %v4389, %v4391
    %4400 = vst [vmem:[#allocation3 + $0x180] sm:$0xff] %v4392
    %4401 = vst [vmem:[#allocation3 + $0x188] sm:$0xff] %v4393
    %4402 = vst [vmem:[#allocation3 + $0x190] sm:$0xff] %v4394
    %4403 = vst [vmem:[#allocation3 + $0x198] sm:$0xff] %v4395
    %v4404 = vld [vmem:[#allocation2] sm:$0xff]
    %v4405 = vld [vmem:[#allocation2 + $0x8] sm:$0xff]
    %v4406 = vld [vmem:[#allocation2 + $0x10] sm:$0xff]
    %v4407 = vld [vmem:[#allocation2 + $0x18] sm:$0xff]
    %v4408 = vld [vmem:[#allocation2 + $0x20] sm:$0xff]
    %v4409 = vld [vmem:[%s885] ss:$8 sm:$0xf]
    %v4411 = vperm.slane %v4409, 0
    %v4412 = vperm.slane %v4409, 1
    %v4413 = vperm.slane %v4409, 2
    %v4414 = vperm.slane %v4409, 3
    %4415 = vrot.lane.b32.xlu0 %v4411, 99
    %v4416 = vpop.permute.xlu0 %4415
    %4417 = vrot.lane.b32.xlu0 %v4412, 99
    %v4418 = vpop.permute.xlu0 %4417
    %4419 = vrot.lane.b32.xlu0 %v4413, 99
    %v4420 = vpop.permute.xlu0 %4419
    %4421 = vrot.lane.b32.xlu0 %v4414, 99
    %v4422 = vpop.permute.xlu0 %4421
    %v4423 = vsel %vm900, %v4416, %v4418
    %v4424 = vsel %vm900, %v4418, %v4420
    %v4425 = vsel %vm900, %v4420, %v4422
    %v4431 = vmul.f32 %v4404, %v4416
    %v4432 = vmul.f32 %v4405, %v4423
    %v4433 = vmul.f32 %v4406, %v4424
    %v4434 = vmul.f32 %v4407, %v4425
    %v4435 = vmul.f32 %v4408, %v4422
    %4441 = vrot.lane.b32.xlu0 %v4431, 29
    %v4442 = vpop.permute.xlu0 %4441
    %4443 = vrot.lane.b32.xlu0 %v4432, 29
    %v4444 = vpop.permute.xlu0 %4443
    %4445 = vrot.lane.b32.xlu0 %v4433, 29
    %v4446 = vpop.permute.xlu0 %4445
    %4447 = vrot.lane.b32.xlu0 %v4434, 29
    %v4448 = vpop.permute.xlu0 %4447
    %4449 = vrot.lane.b32.xlu0 %v4435, 29
    %v4450 = vpop.permute.xlu0 %4449
    %v4451 = vsel %vm929, %v4442, %v4444
    %v4452 = vsel %vm929, %v4444, %v4446
    %v4453 = vsel %vm929, %v4446, %v4448
    %v4454 = vsel %vm929, %v4448, %v4450
    %4459 = vst [vmem:[#allocation3 + $0x1a0] sm:$0xff] %v4451
    %4460 = vst [vmem:[#allocation3 + $0x1a8] sm:$0xff] %v4452
    %4461 = vst [vmem:[#allocation3 + $0x1b0] sm:$0xff] %v4453
    %4462 = vst [vmem:[#allocation3 + $0x1b8] sm:$0xff] %v4454
    %v4463 = vld [vmem:[#allocation2] sm:$0xff]
    %v4464 = vld [vmem:[#allocation2 + $0x8] sm:$0xff]
    %v4465 = vld [vmem:[#allocation2 + $0x10] sm:$0xff]
    %v4466 = vld [vmem:[#allocation2 + $0x18] sm:$0xff]
    %v4467 = vld [vmem:[#allocation2 + $0x20] sm:$0xff]
    %v4468 = vld [vmem:[%s947] ss:$8 sm:$0xf]
    %v4470 = vperm.slane %v4468, 0
    %v4471 = vperm.slane %v4468, 1
    %v4472 = vperm.slane %v4468, 2
    %v4473 = vperm.slane %v4468, 3
    %4474 = vrot.lane.b32.xlu0 %v4470, 109
    %v4475 = vpop.permute.xlu0 %4474
    %4476 = vrot.lane.b32.xlu0 %v4471, 109
    %v4477 = vpop.permute.xlu0 %4476
    %4478 = vrot.lane.b32.xlu0 %v4472, 109
    %v4479 = vpop.permute.xlu0 %4478
    %4480 = vrot.lane.b32.xlu0 %v4473, 109
    %v4481 = vpop.permute.xlu0 %4480
    %v4482 = vsel %vm962, %v4475, %v4477
    %v4483 = vsel %vm962, %v4477, %v4479
    %v4484 = vsel %vm962, %v4479, %v4481
    %v4490 = vmul.f32 %v4463, %v4475
    %v4491 = vmul.f32 %v4464, %v4482
    %v4492 = vmul.f32 %v4465, %v4483
    %v4493 = vmul.f32 %v4466, %v4484
    %v4494 = vmul.f32 %v4467, %v4481
    %4500 = vrot.lane.b32.xlu0 %v4490, 19
    %v4501 = vpop.permute.xlu0 %4500
    %4502 = vrot.lane.b32.xlu0 %v4491, 19
    %v4503 = vpop.permute.xlu0 %4502
    %4504 = vrot.lane.b32.xlu0 %v4492, 19
    %v4505 = vpop.permute.xlu0 %4504
    %4506 = vrot.lane.b32.xlu0 %v4493, 19
    %v4507 = vpop.permute.xlu0 %4506
    %4508 = vrot.lane.b32.xlu0 %v4494, 19
    %v4509 = vpop.permute.xlu0 %4508
    %v4510 = vsel %vm991, %v4501, %v4503
    %v4511 = vsel %vm991, %v4503, %v4505
    %v4512 = vsel %vm991, %v4505, %v4507
    %v4513 = vsel %vm991, %v4507, %v4509
    %4518 = vst [vmem:[#allocation3 + $0x1c0] sm:$0xff] %v4510
    %4519 = vst [vmem:[#allocation3 + $0x1c8] sm:$0xff] %v4511
    %4520 = vst [vmem:[#allocation3 + $0x1d0] sm:$0xff] %v4512
    %4521 = vst [vmem:[#allocation3 + $0x1d8] sm:$0xff] %v4513
    %v4522 = vld [vmem:[#allocation2] sm:$0xff]
    %v4523 = vld [vmem:[#allocation2 + $0x8] sm:$0xff]
    %v4524 = vld [vmem:[#allocation2 + $0x10] sm:$0xff]
    %v4525 = vld [vmem:[#allocation2 + $0x18] sm:$0xff]
    %v4526 = vld [vmem:[#allocation2 + $0x20] sm:$0xff]
    %v4527 = vld [vmem:[%s1009] ss:$8 sm:$0xf]
    %v4529 = vperm.slane %v4527, 0
    %v4530 = vperm.slane %v4527, 1
    %v4531 = vperm.slane %v4527, 2
    %v4532 = vperm.slane %v4527, 3
    %4533 = vrot.lane.b32.xlu0 %v4529, 110
    %v4534 = vpop.permute.xlu0 %4533
    %4535 = vrot.lane.b32.xlu0 %v4530, 110
    %v4536 = vpop.permute.xlu0 %4535
    %4537 = vrot.lane.b32.xlu0 %v4531, 110
    %v4538 = vpop.permute.xlu0 %4537
    %4539 = vrot.lane.b32.xlu0 %v4532, 110
    %v4540 = vpop.permute.xlu0 %4539
    %v4541 = vsel %vm1024, %v4534, %v4536
    %v4542 = vsel %vm1024, %v4536, %v4538
    %v4543 = vsel %vm1024, %v4538, %v4540
    %v4549 = vmul.f32 %v4522, %v4534
    %v4550 = vmul.f32 %v4523, %v4541
    %v4551 = vmul.f32 %v4524, %v4542
    %v4552 = vmul.f32 %v4525, %v4543
    %v4553 = vmul.f32 %v4526, %v4540
    %4559 = vrot.lane.b32.xlu0 %v4549, 18
    %v4560 = vpop.permute.xlu0 %4559
    %4561 = vrot.lane.b32.xlu0 %v4550, 18
    %v4562 = vpop.permute.xlu0 %4561
    %4563 = vrot.lane.b32.xlu0 %v4551, 18
    %v4564 = vpop.permute.xlu0 %4563
    %4565 = vrot.lane.b32.xlu0 %v4552, 18
    %v4566 = vpop.permute.xlu0 %4565
    %4567 = vrot.lane.b32.xlu0 %v4553, 18
    %v4568 = vpop.permute.xlu0 %4567
    %v4569 = vsel %vm1053, %v4560, %v4562
    %v4570 = vsel %vm1053, %v4562, %v4564
    %v4571 = vsel %vm1053, %v4564, %v4566
    %v4572 = vsel %vm1053, %v4566, %v4568
    %4577 = vst [vmem:[#allocation3 + $0x1e0] sm:$0xff] %v4569
    %4578 = vst [vmem:[#allocation3 + $0x1e8] sm:$0xff] %v4570
    %4579 = vst [vmem:[#allocation3 + $0x1f0] sm:$0xff] %v4571
    %4580 = vst [vmem:[#allocation3 + $0x1f8] sm:$0xff] %v4572
    %v4581 = vld [vmem:[#allocation2] sm:$0xff]
    %v4582 = vld [vmem:[#allocation2 + $0x8] sm:$0xff]
    %v4583 = vld [vmem:[#allocation2 + $0x10] sm:$0xff]
    %v4584 = vld [vmem:[#allocation2 + $0x18] sm:$0xff]
    %v4585 = vld [vmem:[#allocation2 + $0x20] sm:$0xff]
    %v4586 = vld [vmem:[%s1071] ss:$8 sm:$0xf]
    %v4588 = vperm.slane %v4586, 0
    %v4589 = vperm.slane %v4586, 1
    %v4590 = vperm.slane %v4586, 2
    %v4591 = vperm.slane %v4586, 3
    %4592 = vrot.lane.b32.xlu0 %v4588, 111
    %v4593 = vpop.permute.xlu0 %4592
    %4594 = vrot.lane.b32.xlu0 %v4589, 111
    %v4595 = vpop.permute.xlu0 %4594
    %4596 = vrot.lane.b32.xlu0 %v4590, 111
    %v4597 = vpop.permute.xlu0 %4596
    %4598 = vrot.lane.b32.xlu0 %v4591, 111
    %v4599 = vpop.permute.xlu0 %4598
    %v4600 = vsel %vm1086, %v4593, %v4595
    %v4601 = vsel %vm1086, %v4595, %v4597
    %v4602 = vsel %vm1086, %v4597, %v4599
    %v4608 = vmul.f32 %v4581, %v4593
    %v4609 = vmul.f32 %v4582, %v4600
    %v4610 = vmul.f32 %v4583, %v4601
    %v4611 = vmul.f32 %v4584, %v4602
    %v4612 = vmul.f32 %v4585, %v4599
    %4618 = vrot.lane.b32.xlu0 %v4608, 17
    %v4619 = vpop.permute.xlu0 %4618
    %4620 = vrot.lane.b32.xlu0 %v4609, 17
    %v4621 = vpop.permute.xlu0 %4620
    %4622 = vrot.lane.b32.xlu0 %v4610, 17
    %v4623 = vpop.permute.xlu0 %4622
    %4624 = vrot.lane.b32.xlu0 %v4611, 17
    %v4625 = vpop.permute.xlu0 %4624
    %4626 = vrot.lane.b32.xlu0 %v4612, 17
    %v4627 = vpop.permute.xlu0 %4626
    %v4628 = vsel %vm1115, %v4619, %v4621
    %v4629 = vsel %vm1115, %v4621, %v4623
    %v4630 = vsel %vm1115, %v4623, %v4625
    %v4631 = vsel %vm1115, %v4625, %v4627
    %4636 = vst [vmem:[#allocation3 + $0x200] sm:$0xff] %v4628
    %4637 = vst [vmem:[#allocation3 + $0x208] sm:$0xff] %v4629
    %4638 = vst [vmem:[#allocation3 + $0x210] sm:$0xff] %v4630
    %4639 = vst [vmem:[#allocation3 + $0x218] sm:$0xff] %v4631
    %v4640 = vld [vmem:[#allocation2] sm:$0xff]
    %v4641 = vld [vmem:[#allocation2 + $0x8] sm:$0xff]
    %v4642 = vld [vmem:[#allocation2 + $0x10] sm:$0xff]
    %v4643 = vld [vmem:[#allocation2 + $0x18] sm:$0xff]
    %v4644 = vld [vmem:[#allocation2 + $0x20] sm:$0xff]
    %v4645 = vld [vmem:[%s1133] ss:$8 sm:$0xf]
    %v4647 = vperm.slane %v4645, 0
    %v4648 = vperm.slane %v4645, 1
    %v4649 = vperm.slane %v4645, 2
    %v4650 = vperm.slane %v4645, 3
    %4651 = vrot.lane.b32.xlu0 %v4647, 112
    %v4652 = vpop.permute.xlu0 %4651
    %4653 = vrot.lane.b32.xlu0 %v4648, 112
    %v4654 = vpop.permute.xlu0 %4653
    %4655 = vrot.lane.b32.xlu0 %v4649, 112
    %v4656 = vpop.permute.xlu0 %4655
    %4657 = vrot.lane.b32.xlu0 %v4650, 112
    %v4658 = vpop.permute.xlu0 %4657
    %v4659 = vsel %vm1148, %v4652, %v4654
    %v4660 = vsel %vm1148, %v4654, %v4656
    %v4661 = vsel %vm1148, %v4656, %v4658
    %v4667 = vmul.f32 %v4640, %v4652
    %v4668 = vmul.f32 %v4641, %v4659
    %v4669 = vmul.f32 %v4642, %v4660
    %v4670 = vmul.f32 %v4643, %v4661
    %v4671 = vmul.f32 %v4644, %v4658
    %4677 = vrot.lane.b32.xlu0 %v4667, 16
    %v4678 = vpop.permute.xlu0 %4677
    %4679 = vrot.lane.b32.xlu0 %v4668, 16
    %v4680 = vpop.permute.xlu0 %4679
    %4681 = vrot.lane.b32.xlu0 %v4669, 16
    %v4682 = vpop.permute.xlu0 %4681
    %4683 = vrot.lane.b32.xlu0 %v4670, 16
    %v4684 = vpop.permute.xlu0 %4683
    %4685 = vrot.lane.b32.xlu0 %v4671, 16
    %v4686 = vpop.permute.xlu0 %4685
    %v4687 = vsel %vm1177, %v4678, %v4680
    %v4688 = vsel %vm1177, %v4680, %v4682
    %v4689 = vsel %vm1177, %v4682, %v4684
    %v4690 = vsel %vm1177, %v4684, %v4686
    %4695 = vst [vmem:[#allocation3 + $0x220] sm:$0xff] %v4687
    %4696 = vst [vmem:[#allocation3 + $0x228] sm:$0xff] %v4688
    %4697 = vst [vmem:[#allocation3 + $0x230] sm:$0xff] %v4689
    %4698 = vst [vmem:[#allocation3 + $0x238] sm:$0xff] %v4690
    %v4699 = vld [vmem:[#allocation2] sm:$0xff]
    %v4700 = vld [vmem:[#allocation2 + $0x8] sm:$0xff]
    %v4701 = vld [vmem:[#allocation2 + $0x10] sm:$0xff]
    %v4702 = vld [vmem:[#allocation2 + $0x18] sm:$0xff]
    %v4703 = vld [vmem:[#allocation2 + $0x20] sm:$0xff]
    %v4704 = vld [vmem:[%s1195] ss:$8 sm:$0xf]
    %v4706 = vperm.slane %v4704, 0
    %v4707 = vperm.slane %v4704, 1
    %v4708 = vperm.slane %v4704, 2
    %v4709 = vperm.slane %v4704, 3
    %4710 = vrot.lane.b32.xlu0 %v4706, 113
    %v4711 = vpop.permute.xlu0 %4710
    %4712 = vrot.lane.b32.xlu0 %v4707, 113
    %v4713 = vpop.permute.xlu0 %4712
    %4714 = vrot.lane.b32.xlu0 %v4708, 113
    %v4715 = vpop.permute.xlu0 %4714
    %4716 = vrot.lane.b32.xlu0 %v4709, 113
    %v4717 = vpop.permute.xlu0 %4716
    %v4718 = vsel %vm1210, %v4711, %v4713
    %v4719 = vsel %vm1210, %v4713, %v4715
    %v4720 = vsel %vm1210, %v4715, %v4717
    %v4726 = vmul.f32 %v4699, %v4711
    %v4727 = vmul.f32 %v4700, %v4718
    %v4728 = vmul.f32 %v4701, %v4719
    %v4729 = vmul.f32 %v4702, %v4720
    %v4730 = vmul.f32 %v4703, %v4717
    %4736 = vrot.lane.b32.xlu0 %v4726, 15
    %v4737 = vpop.permute.xlu0 %4736
    %4738 = vrot.lane.b32.xlu0 %v4727, 15
    %v4739 = vpop.permute.xlu0 %4738
    %4740 = vrot.lane.b32.xlu0 %v4728, 15
    %v4741 = vpop.permute.xlu0 %4740
    %4742 = vrot.lane.b32.xlu0 %v4729, 15
    %v4743 = vpop.permute.xlu0 %4742
    %4744 = vrot.lane.b32.xlu0 %v4730, 15
    %v4745 = vpop.permute.xlu0 %4744
    %v4746 = vsel %vm1239, %v4737, %v4739
    %v4747 = vsel %vm1239, %v4739, %v4741
    %v4748 = vsel %vm1239, %v4741, %v4743
    %v4749 = vsel %vm1239, %v4743, %v4745
    %4754 = vst [vmem:[#allocation3 + $0x240] sm:$0xff] %v4746
    %4755 = vst [vmem:[#allocation3 + $0x248] sm:$0xff] %v4747
    %4756 = vst [vmem:[#allocation3 + $0x250] sm:$0xff] %v4748
    %4757 = vst [vmem:[#allocation3 + $0x258] sm:$0xff] %v4749
    %v4758 = vld [vmem:[#allocation2] sm:$0xff]
    %v4759 = vld [vmem:[#allocation2 + $0x8] sm:$0xff]
    %v4760 = vld [vmem:[#allocation2 + $0x10] sm:$0xff]
    %v4761 = vld [vmem:[#allocation2 + $0x18] sm:$0xff]
    %v4762 = vld [vmem:[#allocation2 + $0x20] sm:$0xff]
    %v4763 = vld [vmem:[%s1257] ss:$8 sm:$0xf]
    %v4765 = vperm.slane %v4763, 0
    %v4766 = vperm.slane %v4763, 1
    %v4767 = vperm.slane %v4763, 2
    %v4768 = vperm.slane %v4763, 3
    %4769 = vrot.lane.b32.xlu0 %v4765, 114
    %v4770 = vpop.permute.xlu0 %4769
    %4771 = vrot.lane.b32.xlu0 %v4766, 114
    %v4772 = vpop.permute.xlu0 %4771
    %4773 = vrot.lane.b32.xlu0 %v4767, 114
    %v4774 = vpop.permute.xlu0 %4773
    %4775 = vrot.lane.b32.xlu0 %v4768, 114
    %v4776 = vpop.permute.xlu0 %4775
    %v4777 = vsel %vm1272, %v4770, %v4772
    %v4778 = vsel %vm1272, %v4772, %v4774
    %v4779 = vsel %vm1272, %v4774, %v4776
    %v4785 = vmul.f32 %v4758, %v4770
    %v4786 = vmul.f32 %v4759, %v4777
    %v4787 = vmul.f32 %v4760, %v4778
    %v4788 = vmul.f32 %v4761, %v4779
    %v4789 = vmul.f32 %v4762, %v4776
    %4795 = vrot.lane.b32.xlu0 %v4785, 14
    %v4796 = vpop.permute.xlu0 %4795
    %4797 = vrot.lane.b32.xlu0 %v4786, 14
    %v4798 = vpop.permute.xlu0 %4797
    %4799 = vrot.lane.b32.xlu0 %v4787, 14
    %v4800 = vpop.permute.xlu0 %4799
    %4801 = vrot.lane.b32.xlu0 %v4788, 14
    %v4802 = vpop.permute.xlu0 %4801
    %4803 = vrot.lane.b32.xlu0 %v4789, 14
    %v4804 = vpop.permute.xlu0 %4803
    %v4805 = vsel %vm1301, %v4796, %v4798
    %v4806 = vsel %vm1301, %v4798, %v4800
    %v4807 = vsel %vm1301, %v4800, %v4802
    %v4808 = vsel %vm1301, %v4802, %v4804
    %4813 = vst [vmem:[#allocation3 + $0x260] sm:$0xff] %v4805
    %4814 = vst [vmem:[#allocation3 + $0x268] sm:$0xff] %v4806
    %4815 = vst [vmem:[#allocation3 + $0x270] sm:$0xff] %v4807
    %4816 = vst [vmem:[#allocation3 + $0x278] sm:$0xff] %v4808
    %v4817 = vld [vmem:[#allocation2] sm:$0xff]
    %v4818 = vld [vmem:[#allocation2 + $0x8] sm:$0xff]
    %v4819 = vld [vmem:[#allocation2 + $0x10] sm:$0xff]
    %v4820 = vld [vmem:[#allocation2 + $0x18] sm:$0xff]
    %v4821 = vld [vmem:[#allocation2 + $0x20] sm:$0xff]
    %v4822 = vld [vmem:[%s1319] ss:$8 sm:$0xf]
    %v4824 = vperm.slane %v4822, 0
    %v4825 = vperm.slane %v4822, 1
    %v4826 = vperm.slane %v4822, 2
    %v4827 = vperm.slane %v4822, 3
    %4828 = vrot.lane.b32.xlu0 %v4824, 115
    %v4829 = vpop.permute.xlu0 %4828
    %4830 = vrot.lane.b32.xlu0 %v4825, 115
    %v4831 = vpop.permute.xlu0 %4830
    %4832 = vrot.lane.b32.xlu0 %v4826, 115
    %v4833 = vpop.permute.xlu0 %4832
    %4834 = vrot.lane.b32.xlu0 %v4827, 115
    %v4835 = vpop.permute.xlu0 %4834
    %v4836 = vsel %vm1334, %v4829, %v4831
    %v4837 = vsel %vm1334, %v4831, %v4833
    %v4838 = vsel %vm1334, %v4833, %v4835
    %v4844 = vmul.f32 %v4817, %v4829
    %v4845 = vmul.f32 %v4818, %v4836
    %v4846 = vmul.f32 %v4819, %v4837
    %v4847 = vmul.f32 %v4820, %v4838
    %v4848 = vmul.f32 %v4821, %v4835
    %4854 = vrot.lane.b32.xlu0 %v4844, 13
    %v4855 = vpop.permute.xlu0 %4854
    %4856 = vrot.lane.b32.xlu0 %v4845, 13
    %v4857 = vpop.permute.xlu0 %4856
    %4858 = vrot.lane.b32.xlu0 %v4846, 13
    %v4859 = vpop.permute.xlu0 %4858
    %4860 = vrot.lane.b32.xlu0 %v4847, 13
    %v4861 = vpop.permute.xlu0 %4860
    %4862 = vrot.lane.b32.xlu0 %v4848, 13
    %v4863 = vpop.permute.xlu0 %4862
    %v4864 = vsel %vm1363, %v4855, %v4857
    %v4865 = vsel %vm1363, %v4857, %v4859
    %v4866 = vsel %vm1363, %v4859, %v4861
    %v4867 = vsel %vm1363, %v4861, %v4863
    %4872 = vst [vmem:[#allocation3 + $0x280] sm:$0xff] %v4864
    %4873 = vst [vmem:[#allocation3 + $0x288] sm:$0xff] %v4865
    %4874 = vst [vmem:[#allocation3 + $0x290] sm:$0xff] %v4866
    %4875 = vst [vmem:[#allocation3 + $0x298] sm:$0xff] %v4867
    %v4876 = vld [vmem:[#allocation2] sm:$0xff]
    %v4877 = vld [vmem:[#allocation2 + $0x8] sm:$0xff]
    %v4878 = vld [vmem:[#allocation2 + $0x10] sm:$0xff]
    %v4879 = vld [vmem:[#allocation2 + $0x18] sm:$0xff]
    %v4880 = vld [vmem:[#allocation2 + $0x20] sm:$0xff]
    %v4881 = vld [vmem:[%s1381] ss:$8 sm:$0xf]
    %v4883 = vperm.slane %v4881, 0
    %v4884 = vperm.slane %v4881, 1
    %v4885 = vperm.slane %v4881, 2
    %v4886 = vperm.slane %v4881, 3
    %4887 = vrot.lane.b32.xlu0 %v4883, 125
    %v4888 = vpop.permute.xlu0 %4887
    %4889 = vrot.lane.b32.xlu0 %v4884, 125
    %v4890 = vpop.permute.xlu0 %4889
    %4891 = vrot.lane.b32.xlu0 %v4885, 125
    %v4892 = vpop.permute.xlu0 %4891
    %4893 = vrot.lane.b32.xlu0 %v4886, 125
    %v4894 = vpop.permute.xlu0 %4893
    %v4895 = vsel %vm1396, %v4888, %v4890
    %v4896 = vsel %vm1396, %v4890, %v4892
    %v4897 = vsel %vm1396, %v4892, %v4894
    %v4903 = vmul.f32 %v4876, %v4888
    %v4904 = vmul.f32 %v4877, %v4895
    %v4905 = vmul.f32 %v4878, %v4896
    %v4906 = vmul.f32 %v4879, %v4897
    %v4907 = vmul.f32 %v4880, %v4894
    %4913 = vrot.lane.b32.xlu0 %v4903, 3
    %v4914 = vpop.permute.xlu0 %4913
    %4915 = vrot.lane.b32.xlu0 %v4904, 3
    %v4916 = vpop.permute.xlu0 %4915
    %4917 = vrot.lane.b32.xlu0 %v4905, 3
    %v4918 = vpop.permute.xlu0 %4917
    %4919 = vrot.lane.b32.xlu0 %v4906, 3
    %v4920 = vpop.permute.xlu0 %4919
    %4921 = vrot.lane.b32.xlu0 %v4907, 3
    %v4922 = vpop.permute.xlu0 %4921
    %v4923 = vsel %vm1425, %v4914, %v4916
    %v4924 = vsel %vm1425, %v4916, %v4918
    %v4925 = vsel %vm1425, %v4918, %v4920
    %v4926 = vsel %vm1425, %v4920, %v4922
    %4931 = vst [vmem:[#allocation3 + $0x2a0] sm:$0xff] %v4923
    %4932 = vst [vmem:[#allocation3 + $0x2a8] sm:$0xff] %v4924
    %4933 = vst [vmem:[#allocation3 + $0x2b0] sm:$0xff] %v4925
    %4934 = vst [vmem:[#allocation3 + $0x2b8] sm:$0xff] %v4926
    %v4935 = vld [vmem:[#allocation2] sm:$0xff]
    %v4936 = vld [vmem:[#allocation2 + $0x8] sm:$0xff]
    %v4937 = vld [vmem:[#allocation2 + $0x10] sm:$0xff]
    %v4938 = vld [vmem:[#allocation2 + $0x18] sm:$0xff]
    %v4939 = vld [vmem:[#allocation2 + $0x20] sm:$0xff]
    %v4940 = vld [vmem:[%s1443] ss:$8 sm:$0xf]
    %v4942 = vperm.slane %v4940, 0
    %v4943 = vperm.slane %v4940, 1
    %v4944 = vperm.slane %v4940, 2
    %v4945 = vperm.slane %v4940, 3
    %4946 = vrot.lane.b32.xlu0 %v4942, 126
    %v4947 = vpop.permute.xlu0 %4946
    %4948 = vrot.lane.b32.xlu0 %v4943, 126
    %v4949 = vpop.permute.xlu0 %4948
    %4950 = vrot.lane.b32.xlu0 %v4944, 126
    %v4951 = vpop.permute.xlu0 %4950
    %4952 = vrot.lane.b32.xlu0 %v4945, 126
    %v4953 = vpop.permute.xlu0 %4952
    %v4954 = vsel %vm1458, %v4947, %v4949
    %v4955 = vsel %vm1458, %v4949, %v4951
    %v4956 = vsel %vm1458, %v4951, %v4953
    %v4962 = vmul.f32 %v4935, %v4947
    %v4963 = vmul.f32 %v4936, %v4954
    %v4964 = vmul.f32 %v4937, %v4955
    %v4965 = vmul.f32 %v4938, %v4956
    %v4966 = vmul.f32 %v4939, %v4953
    %4972 = vrot.lane.b32.xlu0 %v4962, 2
    %v4973 = vpop.permute.xlu0 %4972
    %4974 = vrot.lane.b32.xlu0 %v4963, 2
    %v4975 = vpop.permute.xlu0 %4974
    %4976 = vrot.lane.b32.xlu0 %v4964, 2
    %v4977 = vpop.permute.xlu0 %4976
    %4978 = vrot.lane.b32.xlu0 %v4965, 2
    %v4979 = vpop.permute.xlu0 %4978
    %4980 = vrot.lane.b32.xlu0 %v4966, 2
    %v4981 = vpop.permute.xlu0 %4980
    %v4982 = vsel %vm1487, %v4973, %v4975
    %v4983 = vsel %vm1487, %v4975, %v4977
    %v4984 = vsel %vm1487, %v4977, %v4979
    %v4985 = vsel %vm1487, %v4979, %v4981
    %4990 = vst [vmem:[#allocation3 + $0x2c0] sm:$0xff] %v4982
    %4991 = vst [vmem:[#allocation3 + $0x2c8] sm:$0xff] %v4983
    %4992 = vst [vmem:[#allocation3 + $0x2d0] sm:$0xff] %v4984
    %4993 = vst [vmem:[#allocation3 + $0x2d8] sm:$0xff] %v4985
    %v4994 = vld [vmem:[#allocation2] sm:$0xff]
    %v4995 = vld [vmem:[#allocation2 + $0x8] sm:$0xff]
    %v4996 = vld [vmem:[#allocation2 + $0x10] sm:$0xff]
    %v4997 = vld [vmem:[#allocation2 + $0x18] sm:$0xff]
    %v4998 = vld [vmem:[#allocation2 + $0x20] sm:$0xff]
    %v4999 = vld [vmem:[%s1505] ss:$8 sm:$0xf]
    %v5001 = vperm.slane %v4999, 0
    %v5002 = vperm.slane %v4999, 1
    %v5003 = vperm.slane %v4999, 2
    %v5004 = vperm.slane %v4999, 3
    %5005 = vrot.lane.b32.xlu0 %v5001, 127
    %v5006 = vpop.permute.xlu0 %5005
    %5007 = vrot.lane.b32.xlu0 %v5002, 127
    %v5008 = vpop.permute.xlu0 %5007
    %5009 = vrot.lane.b32.xlu0 %v5003, 127
    %v5010 = vpop.permute.xlu0 %5009
    %5011 = vrot.lane.b32.xlu0 %v5004, 127
    %v5012 = vpop.permute.xlu0 %5011
    %v5013 = vsel %vm1520, %v5006, %v5008
    %v5014 = vsel %vm1520, %v5008, %v5010
    %v5015 = vsel %vm1520, %v5010, %v5012
    %v5021 = vmul.f32 %v4994, %v5006
    %v5022 = vmul.f32 %v4995, %v5013
    %v5023 = vmul.f32 %v4996, %v5014
    %v5024 = vmul.f32 %v4997, %v5015
    %v5025 = vmul.f32 %v4998, %v5012
    %5031 = vrot.lane.b32.xlu0 %v5021, 1
    %v5032 = vpop.permute.xlu0 %5031
    %5033 = vrot.lane.b32.xlu0 %v5022, 1
    %v5034 = vpop.permute.xlu0 %5033
    %5035 = vrot.lane.b32.xlu0 %v5023, 1
    %v5036 = vpop.permute.xlu0 %5035
    %5037 = vrot.lane.b32.xlu0 %v5024, 1
    %v5038 = vpop.permute.xlu0 %5037
    %5039 = vrot.lane.b32.xlu0 %v5025, 1
    %v5040 = vpop.permute.xlu0 %5039
    %v5041 = vsel %vm1549, %v5032, %v5034
    %v5042 = vsel %vm1549, %v5034, %v5036
    %v5043 = vsel %vm1549, %v5036, %v5038
    %v5044 = vsel %vm1549, %v5038, %v5040
    %5049 = vst [vmem:[#allocation3 + $0x2e0] sm:$0xff] %v5041
    %5050 = vst [vmem:[#allocation3 + $0x2e8] sm:$0xff] %v5042
    %5051 = vst [vmem:[#allocation3 + $0x2f0] sm:$0xff] %v5043
    %5052 = vst [vmem:[#allocation3 + $0x2f8] sm:$0xff] %v5044
    %v5053 = vld [vmem:[#allocation2 + $0x8] sm:$0xff]
    %v5054 = vld [vmem:[#allocation2 + $0x10] sm:$0xff]
    %v5055 = vld [vmem:[#allocation2 + $0x18] sm:$0xff]
    %v5056 = vld [vmem:[#allocation2 + $0x20] sm:$0xff]
    %v5057 = vld [vmem:[%s1566] ss:$8 sm:$0xf]
    %v5059 = vperm.slane %v5057, 0
    %v5060 = vperm.slane %v5057, 1
    %v5061 = vperm.slane %v5057, 2
    %v5062 = vperm.slane %v5057, 3
    %v5067 = vmul.f32 %v5053, %v5059
    %v5068 = vmul.f32 %v5054, %v5060
    %v5069 = vmul.f32 %v5055, %v5061
    %v5070 = vmul.f32 %v5056, %v5062
    %5071 = vst [vmem:[#allocation3 + $0x300] sm:$0xff] %v5067
    %5072 = vst [vmem:[#allocation3 + $0x308] sm:$0xff] %v5068
    %5073 = vst [vmem:[#allocation3 + $0x310] sm:$0xff] %v5069
    %5074 = vst [vmem:[#allocation3 + $0x318] sm:$0xff] %v5070
    %v5075 = vld [vmem:[#allocation2 + $0x8] sm:$0xff]
    %v5076 = vld [vmem:[#allocation2 + $0x10] sm:$0xff]
    %v5077 = vld [vmem:[#allocation2 + $0x18] sm:$0xff]
    %v5078 = vld [vmem:[#allocation2 + $0x20] sm:$0xff]
    %v5079 = vld [vmem:[#allocation2 + $0x28] sm:$0xff]
    %v5080 = vld [vmem:[%s1590] ss:$8 sm:$0xf]
    %v5082 = vperm.slane %v5080, 0
    %v5083 = vperm.slane %v5080, 1
    %v5084 = vperm.slane %v5080, 2
    %v5085 = vperm.slane %v5080, 3
    %5086 = vrot.lane.b32.xlu0 %v5082, 1
    %v5087 = vpop.permute.xlu0 %5086
    %5088 = vrot.lane.b32.xlu0 %v5083, 1
    %v5089 = vpop.permute.xlu0 %5088
    %5090 = vrot.lane.b32.xlu0 %v5084, 1
    %v5091 = vpop.permute.xlu0 %5090
    %5092 = vrot.lane.b32.xlu0 %v5085, 1
    %v5093 = vpop.permute.xlu0 %5092
    %v5094 = vsel %vm1549, %v5087, %v5089
    %v5095 = vsel %vm1549, %v5089, %v5091
    %v5096 = vsel %vm1549, %v5091, %v5093
    %v5102 = vmul.f32 %v5075, %v5087
    %v5103 = vmul.f32 %v5076, %v5094
    %v5104 = vmul.f32 %v5077, %v5095
    %v5105 = vmul.f32 %v5078, %v5096
    %v5106 = vmul.f32 %v5079, %v5093
    %5112 = vrot.lane.b32.xlu0 %v5102, 127
    %v5113 = vpop.permute.xlu0 %5112
    %5114 = vrot.lane.b32.xlu0 %v5103, 127
    %v5115 = vpop.permute.xlu0 %5114
    %5116 = vrot.lane.b32.xlu0 %v5104, 127
    %v5117 = vpop.permute.xlu0 %5116
    %5118 = vrot.lane.b32.xlu0 %v5105, 127
    %v5119 = vpop.permute.xlu0 %5118
    %5120 = vrot.lane.b32.xlu0 %v5106, 127
    %v5121 = vpop.permute.xlu0 %5120
    %v5122 = vsel %vm1520, %v5113, %v5115
    %v5123 = vsel %vm1520, %v5115, %v5117
    %v5124 = vsel %vm1520, %v5117, %v5119
    %v5125 = vsel %vm1520, %v5119, %v5121
    %5130 = vst [vmem:[#allocation3 + $0x320] sm:$0xff] %v5122
    %5131 = vst [vmem:[#allocation3 + $0x328] sm:$0xff] %v5123
    %5132 = vst [vmem:[#allocation3 + $0x330] sm:$0xff] %v5124
    %5133 = vst [vmem:[#allocation3 + $0x338] sm:$0xff] %v5125
    %v5134 = vld [vmem:[#allocation2 + $0x8] sm:$0xff]
    %v5135 = vld [vmem:[#allocation2 + $0x10] sm:$0xff]
    %v5136 = vld [vmem:[#allocation2 + $0x18] sm:$0xff]
    %v5137 = vld [vmem:[#allocation2 + $0x20] sm:$0xff]
    %v5138 = vld [vmem:[#allocation2 + $0x28] sm:$0xff]
    %v5139 = vld [vmem:[%s1650] ss:$8 sm:$0xf]
    %v5141 = vperm.slane %v5139, 0
    %v5142 = vperm.slane %v5139, 1
    %v5143 = vperm.slane %v5139, 2
    %v5144 = vperm.slane %v5139, 3
    %5145 = vrot.lane.b32.xlu0 %v5141, 2
    %v5146 = vpop.permute.xlu0 %5145
    %5147 = vrot.lane.b32.xlu0 %v5142, 2
    %v5148 = vpop.permute.xlu0 %5147
    %5149 = vrot.lane.b32.xlu0 %v5143, 2
    %v5150 = vpop.permute.xlu0 %5149
    %5151 = vrot.lane.b32.xlu0 %v5144, 2
    %v5152 = vpop.permute.xlu0 %5151
    %v5153 = vsel %vm1487, %v5146, %v5148
    %v5154 = vsel %vm1487, %v5148, %v5150
    %v5155 = vsel %vm1487, %v5150, %v5152
    %v5161 = vmul.f32 %v5134, %v5146
    %v5162 = vmul.f32 %v5135, %v5153
    %v5163 = vmul.f32 %v5136, %v5154
    %v5164 = vmul.f32 %v5137, %v5155
    %v5165 = vmul.f32 %v5138, %v5152
    %5171 = vrot.lane.b32.xlu0 %v5161, 126
    %v5172 = vpop.permute.xlu0 %5171
    %5173 = vrot.lane.b32.xlu0 %v5162, 126
    %v5174 = vpop.permute.xlu0 %5173
    %5175 = vrot.lane.b32.xlu0 %v5163, 126
    %v5176 = vpop.permute.xlu0 %5175
    %5177 = vrot.lane.b32.xlu0 %v5164, 126
    %v5178 = vpop.permute.xlu0 %5177
    %5179 = vrot.lane.b32.xlu0 %v5165, 126
    %v5180 = vpop.permute.xlu0 %5179
    %v5181 = vsel %vm1458, %v5172, %v5174
    %v5182 = vsel %vm1458, %v5174, %v5176
    %v5183 = vsel %vm1458, %v5176, %v5178
    %v5184 = vsel %vm1458, %v5178, %v5180
    %5189 = vst [vmem:[#allocation3 + $0x340] sm:$0xff] %v5181
    %5190 = vst [vmem:[#allocation3 + $0x348] sm:$0xff] %v5182
    %5191 = vst [vmem:[#allocation3 + $0x350] sm:$0xff] %v5183
    %5192 = vst [vmem:[#allocation3 + $0x358] sm:$0xff] %v5184
    %v5193 = vld [vmem:[#allocation2 + $0x8] sm:$0xff]
    %v5194 = vld [vmem:[#allocation2 + $0x10] sm:$0xff]
    %v5195 = vld [vmem:[#allocation2 + $0x18] sm:$0xff]
    %v5196 = vld [vmem:[#allocation2 + $0x20] sm:$0xff]
    %v5197 = vld [vmem:[#allocation2 + $0x28] sm:$0xff]
    %v5198 = vld [vmem:[%s1710] ss:$8 sm:$0xf]
    %v5200 = vperm.slane %v5198, 0
    %v5201 = vperm.slane %v5198, 1
    %v5202 = vperm.slane %v5198, 2
    %v5203 = vperm.slane %v5198, 3
    %5204 = vrot.lane.b32.xlu0 %v5200, 3
    %v5205 = vpop.permute.xlu0 %5204
    %5206 = vrot.lane.b32.xlu0 %v5201, 3
    %v5207 = vpop.permute.xlu0 %5206
    %5208 = vrot.lane.b32.xlu0 %v5202, 3
    %v5209 = vpop.permute.xlu0 %5208
    %5210 = vrot.lane.b32.xlu0 %v5203, 3
    %v5211 = vpop.permute.xlu0 %5210
    %v5212 = vsel %vm1425, %v5205, %v5207
    %v5213 = vsel %vm1425, %v5207, %v5209
    %v5214 = vsel %vm1425, %v5209, %v5211
    %v5220 = vmul.f32 %v5193, %v5205
    %v5221 = vmul.f32 %v5194, %v5212
    %v5222 = vmul.f32 %v5195, %v5213
    %v5223 = vmul.f32 %v5196, %v5214
    %v5224 = vmul.f32 %v5197, %v5211
    %5230 = vrot.lane.b32.xlu0 %v5220, 125
    %v5231 = vpop.permute.xlu0 %5230
    %5232 = vrot.lane.b32.xlu0 %v5221, 125
    %v5233 = vpop.permute.xlu0 %5232
    %5234 = vrot.lane.b32.xlu0 %v5222, 125
    %v5235 = vpop.permute.xlu0 %5234
    %5236 = vrot.lane.b32.xlu0 %v5223, 125
    %v5237 = vpop.permute.xlu0 %5236
    %5238 = vrot.lane.b32.xlu0 %v5224, 125
    %v5239 = vpop.permute.xlu0 %5238
    %v5240 = vsel %vm1396, %v5231, %v5233
    %v5241 = vsel %vm1396, %v5233, %v5235
    %v5242 = vsel %vm1396, %v5235, %v5237
    %v5243 = vsel %vm1396, %v5237, %v5239
    %5248 = vst [vmem:[#allocation3 + $0x360] sm:$0xff] %v5240
    %5249 = vst [vmem:[#allocation3 + $0x368] sm:$0xff] %v5241
    %5250 = vst [vmem:[#allocation3 + $0x370] sm:$0xff] %v5242
    %5251 = vst [vmem:[#allocation3 + $0x378] sm:$0xff] %v5243
    %v5252 = vld [vmem:[#allocation2 + $0x8] sm:$0xff]
    %v5253 = vld [vmem:[#allocation2 + $0x10] sm:$0xff]
    %v5254 = vld [vmem:[#allocation2 + $0x18] sm:$0xff]
    %v5255 = vld [vmem:[#allocation2 + $0x20] sm:$0xff]
    %v5256 = vld [vmem:[#allocation2 + $0x28] sm:$0xff]
    %v5257 = vld [vmem:[%s1770] ss:$8 sm:$0xf]
    %v5259 = vperm.slane %v5257, 0
    %v5260 = vperm.slane %v5257, 1
    %v5261 = vperm.slane %v5257, 2
    %v5262 = vperm.slane %v5257, 3
    %5263 = vrot.lane.b32.xlu0 %v5259, 13
    %v5264 = vpop.permute.xlu0 %5263
    %5265 = vrot.lane.b32.xlu0 %v5260, 13
    %v5266 = vpop.permute.xlu0 %5265
    %5267 = vrot.lane.b32.xlu0 %v5261, 13
    %v5268 = vpop.permute.xlu0 %5267
    %5269 = vrot.lane.b32.xlu0 %v5262, 13
    %v5270 = vpop.permute.xlu0 %5269
    %v5271 = vsel %vm1363, %v5264, %v5266
    %v5272 = vsel %vm1363, %v5266, %v5268
    %v5273 = vsel %vm1363, %v5268, %v5270
    %v5279 = vmul.f32 %v5252, %v5264
    %v5280 = vmul.f32 %v5253, %v5271
    %v5281 = vmul.f32 %v5254, %v5272
    %v5282 = vmul.f32 %v5255, %v5273
    %v5283 = vmul.f32 %v5256, %v5270
    %5289 = vrot.lane.b32.xlu0 %v5279, 115
    %v5290 = vpop.permute.xlu0 %5289
    %5291 = vrot.lane.b32.xlu0 %v5280, 115
    %v5292 = vpop.permute.xlu0 %5291
    %5293 = vrot.lane.b32.xlu0 %v5281, 115
    %v5294 = vpop.permute.xlu0 %5293
    %5295 = vrot.lane.b32.xlu0 %v5282, 115
    %v5296 = vpop.permute.xlu0 %5295
    %5297 = vrot.lane.b32.xlu0 %v5283, 115
    %v5298 = vpop.permute.xlu0 %5297
    %v5299 = vsel %vm1334, %v5290, %v5292
    %v5300 = vsel %vm1334, %v5292, %v5294
    %v5301 = vsel %vm1334, %v5294, %v5296
    %v5302 = vsel %vm1334, %v5296, %v5298
    %5307 = vst [vmem:[#allocation3 + $0x380] sm:$0xff] %v5299
    %5308 = vst [vmem:[#allocation3 + $0x388] sm:$0xff] %v5300
    %5309 = vst [vmem:[#allocation3 + $0x390] sm:$0xff] %v5301
    %5310 = vst [vmem:[#allocation3 + $0x398] sm:$0xff] %v5302
    %v5311 = vld [vmem:[#allocation2 + $0x8] sm:$0xff]
    %v5312 = vld [vmem:[#allocation2 + $0x10] sm:$0xff]
    %v5313 = vld [vmem:[#allocation2 + $0x18] sm:$0xff]
    %v5314 = vld [vmem:[#allocation2 + $0x20] sm:$0xff]
    %v5315 = vld [vmem:[#allocation2 + $0x28] sm:$0xff]
    %v5316 = vld [vmem:[%s1830] ss:$8 sm:$0xf]
    %v5318 = vperm.slane %v5316, 0
    %v5319 = vperm.slane %v5316, 1
    %v5320 = vperm.slane %v5316, 2
    %v5321 = vperm.slane %v5316, 3
    %5322 = vrot.lane.b32.xlu0 %v5318, 14
    %v5323 = vpop.permute.xlu0 %5322
    %5324 = vrot.lane.b32.xlu0 %v5319, 14
    %v5325 = vpop.permute.xlu0 %5324
    %5326 = vrot.lane.b32.xlu0 %v5320, 14
    %v5327 = vpop.permute.xlu0 %5326
    %5328 = vrot.lane.b32.xlu0 %v5321, 14
    %v5329 = vpop.permute.xlu0 %5328
    %v5330 = vsel %vm1301, %v5323, %v5325
    %v5331 = vsel %vm1301, %v5325, %v5327
    %v5332 = vsel %vm1301, %v5327, %v5329
    %v5338 = vmul.f32 %v5311, %v5323
    %v5339 = vmul.f32 %v5312, %v5330
    %v5340 = vmul.f32 %v5313, %v5331
    %v5341 = vmul.f32 %v5314, %v5332
    %v5342 = vmul.f32 %v5315, %v5329
    %5348 = vrot.lane.b32.xlu0 %v5338, 114
    %v5349 = vpop.permute.xlu0 %5348
    %5350 = vrot.lane.b32.xlu0 %v5339, 114
    %v5351 = vpop.permute.xlu0 %5350
    %5352 = vrot.lane.b32.xlu0 %v5340, 114
    %v5353 = vpop.permute.xlu0 %5352
    %5354 = vrot.lane.b32.xlu0 %v5341, 114
    %v5355 = vpop.permute.xlu0 %5354
    %5356 = vrot.lane.b32.xlu0 %v5342, 114
    %v5357 = vpop.permute.xlu0 %5356
    %v5358 = vsel %vm1272, %v5349, %v5351
    %v5359 = vsel %vm1272, %v5351, %v5353
    %v5360 = vsel %vm1272, %v5353, %v5355
    %v5361 = vsel %vm1272, %v5355, %v5357
    %5366 = vst [vmem:[#allocation3 + $0x3a0] sm:$0xff] %v5358
    %5367 = vst [vmem:[#allocation3 + $0x3a8] sm:$0xff] %v5359
    %5368 = vst [vmem:[#allocation3 + $0x3b0] sm:$0xff] %v5360
    %5369 = vst [vmem:[#allocation3 + $0x3b8] sm:$0xff] %v5361
    %v5370 = vld [vmem:[#allocation2 + $0x8] sm:$0xff]
    %v5371 = vld [vmem:[#allocation2 + $0x10] sm:$0xff]
    %v5372 = vld [vmem:[#allocation2 + $0x18] sm:$0xff]
    %v5373 = vld [vmem:[#allocation2 + $0x20] sm:$0xff]
    %v5374 = vld [vmem:[#allocation2 + $0x28] sm:$0xff]
    %v5375 = vld [vmem:[%s1890] ss:$8 sm:$0xf]
    %v5377 = vperm.slane %v5375, 0
    %v5378 = vperm.slane %v5375, 1
    %v5379 = vperm.slane %v5375, 2
    %v5380 = vperm.slane %v5375, 3
    %5381 = vrot.lane.b32.xlu0 %v5377, 15
    %v5382 = vpop.permute.xlu0 %5381
    %5383 = vrot.lane.b32.xlu0 %v5378, 15
    %v5384 = vpop.permute.xlu0 %5383
    %5385 = vrot.lane.b32.xlu0 %v5379, 15
    %v5386 = vpop.permute.xlu0 %5385
    %5387 = vrot.lane.b32.xlu0 %v5380, 15
    %v5388 = vpop.permute.xlu0 %5387
    %v5389 = vsel %vm1239, %v5382, %v5384
    %v5390 = vsel %vm1239, %v5384, %v5386
    %v5391 = vsel %vm1239, %v5386, %v5388
    %v5397 = vmul.f32 %v5370, %v5382
    %v5398 = vmul.f32 %v5371, %v5389
    %v5399 = vmul.f32 %v5372, %v5390
    %v5400 = vmul.f32 %v5373, %v5391
    %v5401 = vmul.f32 %v5374, %v5388
    %5407 = vrot.lane.b32.xlu0 %v5397, 113
    %v5408 = vpop.permute.xlu0 %5407
    %5409 = vrot.lane.b32.xlu0 %v5398, 113
    %v5410 = vpop.permute.xlu0 %5409
    %5411 = vrot.lane.b32.xlu0 %v5399, 113
    %v5412 = vpop.permute.xlu0 %5411
    %5413 = vrot.lane.b32.xlu0 %v5400, 113
    %v5414 = vpop.permute.xlu0 %5413
    %5415 = vrot.lane.b32.xlu0 %v5401, 113
    %v5416 = vpop.permute.xlu0 %5415
    %v5417 = vsel %vm1210, %v5408, %v5410
    %v5418 = vsel %vm1210, %v5410, %v5412
    %v5419 = vsel %vm1210, %v5412, %v5414
    %v5420 = vsel %vm1210, %v5414, %v5416
    %5425 = vst [vmem:[#allocation3 + $0x3c0] sm:$0xff] %v5417
    %5426 = vst [vmem:[#allocation3 + $0x3c8] sm:$0xff] %v5418
    %5427 = vst [vmem:[#allocation3 + $0x3d0] sm:$0xff] %v5419
    %5428 = vst [vmem:[#allocation3 + $0x3d8] sm:$0xff] %v5420
    %v5429 = vld [vmem:[#allocation2 + $0x8] sm:$0xff]
    %v5430 = vld [vmem:[#allocation2 + $0x10] sm:$0xff]
    %v5431 = vld [vmem:[#allocation2 + $0x18] sm:$0xff]
    %v5432 = vld [vmem:[#allocation2 + $0x20] sm:$0xff]
    %v5433 = vld [vmem:[#allocation2 + $0x28] sm:$0xff]
    %v5434 = vld [vmem:[%s1950] ss:$8 sm:$0xf]
    %v5436 = vperm.slane %v5434, 0
    %v5437 = vperm.slane %v5434, 1
    %v5438 = vperm.slane %v5434, 2
    %v5439 = vperm.slane %v5434, 3
    %5440 = vrot.lane.b32.xlu0 %v5436, 16
    %v5441 = vpop.permute.xlu0 %5440
    %5442 = vrot.lane.b32.xlu0 %v5437, 16
    %v5443 = vpop.permute.xlu0 %5442
    %5444 = vrot.lane.b32.xlu0 %v5438, 16
    %v5445 = vpop.permute.xlu0 %5444
    %5446 = vrot.lane.b32.xlu0 %v5439, 16
    %v5447 = vpop.permute.xlu0 %5446
    %v5448 = vsel %vm1177, %v5441, %v5443
    %v5449 = vsel %vm1177, %v5443, %v5445
    %v5450 = vsel %vm1177, %v5445, %v5447
    %v5456 = vmul.f32 %v5429, %v5441
    %v5457 = vmul.f32 %v5430, %v5448
    %v5458 = vmul.f32 %v5431, %v5449
    %v5459 = vmul.f32 %v5432, %v5450
    %v5460 = vmul.f32 %v5433, %v5447
    %5466 = vrot.lane.b32.xlu0 %v5456, 112
    %v5467 = vpop.permute.xlu0 %5466
    %5468 = vrot.lane.b32.xlu0 %v5457, 112
    %v5469 = vpop.permute.xlu0 %5468
    %5470 = vrot.lane.b32.xlu0 %v5458, 112
    %v5471 = vpop.permute.xlu0 %5470
    %5472 = vrot.lane.b32.xlu0 %v5459, 112
    %v5473 = vpop.permute.xlu0 %5472
    %5474 = vrot.lane.b32.xlu0 %v5460, 112
    %v5475 = vpop.permute.xlu0 %5474
    %v5476 = vsel %vm1148, %v5467, %v5469
    %v5477 = vsel %vm1148, %v5469, %v5471
    %v5478 = vsel %vm1148, %v5471, %v5473
    %v5479 = vsel %vm1148, %v5473, %v5475
    %5484 = vst [vmem:[#allocation3 + $0x3e0] sm:$0xff] %v5476
    %5485 = vst [vmem:[#allocation3 + $0x3e8] sm:$0xff] %v5477
    %5486 = vst [vmem:[#allocation3 + $0x3f0] sm:$0xff] %v5478
    %5487 = vst [vmem:[#allocation3 + $0x3f8] sm:$0xff] %v5479
    %v5488 = vld [vmem:[#allocation2 + $0x8] sm:$0xff]
    %v5489 = vld [vmem:[#allocation2 + $0x10] sm:$0xff]
    %v5490 = vld [vmem:[#allocation2 + $0x18] sm:$0xff]
    %v5491 = vld [vmem:[#allocation2 + $0x20] sm:$0xff]
    %v5492 = vld [vmem:[#allocation2 + $0x28] sm:$0xff]
    %v5493 = vld [vmem:[%s2010] ss:$8 sm:$0xf]
    %v5495 = vperm.slane %v5493, 0
    %v5496 = vperm.slane %v5493, 1
    %v5497 = vperm.slane %v5493, 2
    %v5498 = vperm.slane %v5493, 3
    %5499 = vrot.lane.b32.xlu0 %v5495, 17
    %v5500 = vpop.permute.xlu0 %5499
    %5501 = vrot.lane.b32.xlu0 %v5496, 17
    %v5502 = vpop.permute.xlu0 %5501
    %5503 = vrot.lane.b32.xlu0 %v5497, 17
    %v5504 = vpop.permute.xlu0 %5503
    %5505 = vrot.lane.b32.xlu0 %v5498, 17
    %v5506 = vpop.permute.xlu0 %5505
    %v5507 = vsel %vm1115, %v5500, %v5502
    %v5508 = vsel %vm1115, %v5502, %v5504
    %v5509 = vsel %vm1115, %v5504, %v5506
    %v5515 = vmul.f32 %v5488, %v5500
    %v5516 = vmul.f32 %v5489, %v5507
    %v5517 = vmul.f32 %v5490, %v5508
    %v5518 = vmul.f32 %v5491, %v5509
    %v5519 = vmul.f32 %v5492, %v5506
    %5525 = vrot.lane.b32.xlu0 %v5515, 111
    %v5526 = vpop.permute.xlu0 %5525
    %5527 = vrot.lane.b32.xlu0 %v5516, 111
    %v5528 = vpop.permute.xlu0 %5527
    %5529 = vrot.lane.b32.xlu0 %v5517, 111
    %v5530 = vpop.permute.xlu0 %5529
    %5531 = vrot.lane.b32.xlu0 %v5518, 111
    %v5532 = vpop.permute.xlu0 %5531
    %5533 = vrot.lane.b32.xlu0 %v5519, 111
    %v5534 = vpop.permute.xlu0 %5533
    %v5535 = vsel %vm1086, %v5526, %v5528
    %v5536 = vsel %vm1086, %v5528, %v5530
    %v5537 = vsel %vm1086, %v5530, %v5532
    %v5538 = vsel %vm1086, %v5532, %v5534
    %5543 = vst [vmem:[#allocation3 + $0x400] sm:$0xff] %v5535
    %5544 = vst [vmem:[#allocation3 + $0x408] sm:$0xff] %v5536
    %5545 = vst [vmem:[#allocation3 + $0x410] sm:$0xff] %v5537
    %5546 = vst [vmem:[#allocation3 + $0x418] sm:$0xff] %v5538
    %v5547 = vld [vmem:[#allocation2 + $0x8] sm:$0xff]
    %v5548 = vld [vmem:[#allocation2 + $0x10] sm:$0xff]
    %v5549 = vld [vmem:[#allocation2 + $0x18] sm:$0xff]
    %v5550 = vld [vmem:[#allocation2 + $0x20] sm:$0xff]
    %v5551 = vld [vmem:[#allocation2 + $0x28] sm:$0xff]
    %v5552 = vld [vmem:[%s2070] ss:$8 sm:$0xf]
    %v5554 = vperm.slane %v5552, 0
    %v5555 = vperm.slane %v5552, 1
    %v5556 = vperm.slane %v5552, 2
    %v5557 = vperm.slane %v5552, 3
    %5558 = vrot.lane.b32.xlu0 %v5554, 18
    %v5559 = vpop.permute.xlu0 %5558
    %5560 = vrot.lane.b32.xlu0 %v5555, 18
    %v5561 = vpop.permute.xlu0 %5560
    %5562 = vrot.lane.b32.xlu0 %v5556, 18
    %v5563 = vpop.permute.xlu0 %5562
    %5564 = vrot.lane.b32.xlu0 %v5557, 18
    %v5565 = vpop.permute.xlu0 %5564
    %v5566 = vsel %vm1053, %v5559, %v5561
    %v5567 = vsel %vm1053, %v5561, %v5563
    %v5568 = vsel %vm1053, %v5563, %v5565
    %v5574 = vmul.f32 %v5547, %v5559
    %v5575 = vmul.f32 %v5548, %v5566
    %v5576 = vmul.f32 %v5549, %v5567
    %v5577 = vmul.f32 %v5550, %v5568
    %v5578 = vmul.f32 %v5551, %v5565
    %5584 = vrot.lane.b32.xlu0 %v5574, 110
    %v5585 = vpop.permute.xlu0 %5584
    %5586 = vrot.lane.b32.xlu0 %v5575, 110
    %v5587 = vpop.permute.xlu0 %5586
    %5588 = vrot.lane.b32.xlu0 %v5576, 110
    %v5589 = vpop.permute.xlu0 %5588
    %5590 = vrot.lane.b32.xlu0 %v5577, 110
    %v5591 = vpop.permute.xlu0 %5590
    %5592 = vrot.lane.b32.xlu0 %v5578, 110
    %v5593 = vpop.permute.xlu0 %5592
    %v5594 = vsel %vm1024, %v5585, %v5587
    %v5595 = vsel %vm1024, %v5587, %v5589
    %v5596 = vsel %vm1024, %v5589, %v5591
    %v5597 = vsel %vm1024, %v5591, %v5593
    %5602 = vst [vmem:[#allocation3 + $0x420] sm:$0xff] %v5594
    %5603 = vst [vmem:[#allocation3 + $0x428] sm:$0xff] %v5595
    %5604 = vst [vmem:[#allocation3 + $0x430] sm:$0xff] %v5596
    %5605 = vst [vmem:[#allocation3 + $0x438] sm:$0xff] %v5597
    %v5606 = vld [vmem:[#allocation2 + $0x8] sm:$0xff]
    %v5607 = vld [vmem:[#allocation2 + $0x10] sm:$0xff]
    %v5608 = vld [vmem:[#allocation2 + $0x18] sm:$0xff]
    %v5609 = vld [vmem:[#allocation2 + $0x20] sm:$0xff]
    %v5610 = vld [vmem:[#allocation2 + $0x28] sm:$0xff]
    %v5611 = vld [vmem:[%s2130] ss:$8 sm:$0xf]
    %v5613 = vperm.slane %v5611, 0
    %v5614 = vperm.slane %v5611, 1
    %v5615 = vperm.slane %v5611, 2
    %v5616 = vperm.slane %v5611, 3
    %5617 = vrot.lane.b32.xlu0 %v5613, 19
    %v5618 = vpop.permute.xlu0 %5617
    %5619 = vrot.lane.b32.xlu0 %v5614, 19
    %v5620 = vpop.permute.xlu0 %5619
    %5621 = vrot.lane.b32.xlu0 %v5615, 19
    %v5622 = vpop.permute.xlu0 %5621
    %5623 = vrot.lane.b32.xlu0 %v5616, 19
    %v5624 = vpop.permute.xlu0 %5623
    %v5625 = vsel %vm991, %v5618, %v5620
    %v5626 = vsel %vm991, %v5620, %v5622
    %v5627 = vsel %vm991, %v5622, %v5624
    %v5633 = vmul.f32 %v5606, %v5618
    %v5634 = vmul.f32 %v5607, %v5625
    %v5635 = vmul.f32 %v5608, %v5626
    %v5636 = vmul.f32 %v5609, %v5627
    %v5637 = vmul.f32 %v5610, %v5624
    %5643 = vrot.lane.b32.xlu0 %v5633, 109
    %v5644 = vpop.permute.xlu0 %5643
    %5645 = vrot.lane.b32.xlu0 %v5634, 109
    %v5646 = vpop.permute.xlu0 %5645
    %5647 = vrot.lane.b32.xlu0 %v5635, 109
    %v5648 = vpop.permute.xlu0 %5647
    %5649 = vrot.lane.b32.xlu0 %v5636, 109
    %v5650 = vpop.permute.xlu0 %5649
    %5651 = vrot.lane.b32.xlu0 %v5637, 109
    %v5652 = vpop.permute.xlu0 %5651
    %v5653 = vsel %vm962, %v5644, %v5646
    %v5654 = vsel %vm962, %v5646, %v5648
    %v5655 = vsel %vm962, %v5648, %v5650
    %v5656 = vsel %vm962, %v5650, %v5652
    %5661 = vst [vmem:[#allocation3 + $0x440] sm:$0xff] %v5653
    %5662 = vst [vmem:[#allocation3 + $0x448] sm:$0xff] %v5654
    %5663 = vst [vmem:[#allocation3 + $0x450] sm:$0xff] %v5655
    %5664 = vst [vmem:[#allocation3 + $0x458] sm:$0xff] %v5656
    %v5665 = vld [vmem:[#allocation2 + $0x8] sm:$0xff]
    %v5666 = vld [vmem:[#allocation2 + $0x10] sm:$0xff]
    %v5667 = vld [vmem:[#allocation2 + $0x18] sm:$0xff]
    %v5668 = vld [vmem:[#allocation2 + $0x20] sm:$0xff]
    %v5669 = vld [vmem:[#allocation2 + $0x28] sm:$0xff]
    %v5670 = vld [vmem:[%s2190] ss:$8 sm:$0xf]
    %v5672 = vperm.slane %v5670, 0
    %v5673 = vperm.slane %v5670, 1
    %v5674 = vperm.slane %v5670, 2
    %v5675 = vperm.slane %v5670, 3
    %5676 = vrot.lane.b32.xlu0 %v5672, 29
    %v5677 = vpop.permute.xlu0 %5676
    %5678 = vrot.lane.b32.xlu0 %v5673, 29
    %v5679 = vpop.permute.xlu0 %5678
    %5680 = vrot.lane.b32.xlu0 %v5674, 29
    %v5681 = vpop.permute.xlu0 %5680
    %5682 = vrot.lane.b32.xlu0 %v5675, 29
    %v5683 = vpop.permute.xlu0 %5682
    %v5684 = vsel %vm929, %v5677, %v5679
    %v5685 = vsel %vm929, %v5679, %v5681
    %v5686 = vsel %vm929, %v5681, %v5683
    %v5692 = vmul.f32 %v5665, %v5677
    %v5693 = vmul.f32 %v5666, %v5684
    %v5694 = vmul.f32 %v5667, %v5685
    %v5695 = vmul.f32 %v5668, %v5686
    %v5696 = vmul.f32 %v5669, %v5683
    %5702 = vrot.lane.b32.xlu0 %v5692, 99
    %v5703 = vpop.permute.xlu0 %5702
    %5704 = vrot.lane.b32.xlu0 %v5693, 99
    %v5705 = vpop.permute.xlu0 %5704
    %5706 = vrot.lane.b32.xlu0 %v5694, 99
    %v5707 = vpop.permute.xlu0 %5706
    %5708 = vrot.lane.b32.xlu0 %v5695, 99
    %v5709 = vpop.permute.xlu0 %5708
    %5710 = vrot.lane.b32.xlu0 %v5696, 99
    %v5711 = vpop.permute.xlu0 %5710
    %v5712 = vsel %vm900, %v5703, %v5705
    %v5713 = vsel %vm900, %v5705, %v5707
    %v5714 = vsel %vm900, %v5707, %v5709
    %v5715 = vsel %vm900, %v5709, %v5711
    %5720 = vst [vmem:[#allocation3 + $0x460] sm:$0xff] %v5712
    %5721 = vst [vmem:[#allocation3 + $0x468] sm:$0xff] %v5713
    %5722 = vst [vmem:[#allocation3 + $0x470] sm:$0xff] %v5714
    %5723 = vst [vmem:[#allocation3 + $0x478] sm:$0xff] %v5715
    %v5724 = vld [vmem:[#allocation2 + $0x8] sm:$0xff]
    %v5725 = vld [vmem:[#allocation2 + $0x10] sm:$0xff]
    %v5726 = vld [vmem:[#allocation2 + $0x18] sm:$0xff]
    %v5727 = vld [vmem:[#allocation2 + $0x20] sm:$0xff]
    %v5728 = vld [vmem:[#allocation2 + $0x28] sm:$0xff]
    %v5729 = vld [vmem:[%s2250] ss:$8 sm:$0xf]
    %v5731 = vperm.slane %v5729, 0
    %v5732 = vperm.slane %v5729, 1
    %v5733 = vperm.slane %v5729, 2
    %v5734 = vperm.slane %v5729, 3
    %5735 = vrot.lane.b32.xlu0 %v5731, 30
    %v5736 = vpop.permute.xlu0 %5735
    %5737 = vrot.lane.b32.xlu0 %v5732, 30
    %v5738 = vpop.permute.xlu0 %5737
    %5739 = vrot.lane.b32.xlu0 %v5733, 30
    %v5740 = vpop.permute.xlu0 %5739
    %5741 = vrot.lane.b32.xlu0 %v5734, 30
    %v5742 = vpop.permute.xlu0 %5741
    %v5743 = vsel %vm867, %v5736, %v5738
    %v5744 = vsel %vm867, %v5738, %v5740
    %v5745 = vsel %vm867, %v5740, %v5742
    %v5751 = vmul.f32 %v5724, %v5736
    %v5752 = vmul.f32 %v5725, %v5743
    %v5753 = vmul.f32 %v5726, %v5744
    %v5754 = vmul.f32 %v5727, %v5745
    %v5755 = vmul.f32 %v5728, %v5742
    %5761 = vrot.lane.b32.xlu0 %v5751, 98
    %v5762 = vpop.permute.xlu0 %5761
    %5763 = vrot.lane.b32.xlu0 %v5752, 98
    %v5764 = vpop.permute.xlu0 %5763
    %5765 = vrot.lane.b32.xlu0 %v5753, 98
    %v5766 = vpop.permute.xlu0 %5765
    %5767 = vrot.lane.b32.xlu0 %v5754, 98
    %v5768 = vpop.permute.xlu0 %5767
    %5769 = vrot.lane.b32.xlu0 %v5755, 98
    %v5770 = vpop.permute.xlu0 %5769
    %v5771 = vsel %vm838, %v5762, %v5764
    %v5772 = vsel %vm838, %v5764, %v5766
    %v5773 = vsel %vm838, %v5766, %v5768
    %v5774 = vsel %vm838, %v5768, %v5770
    %5779 = vst [vmem:[#allocation3 + $0x480] sm:$0xff] %v5771
    %5780 = vst [vmem:[#allocation3 + $0x488] sm:$0xff] %v5772
    %5781 = vst [vmem:[#allocation3 + $0x490] sm:$0xff] %v5773
    %5782 = vst [vmem:[#allocation3 + $0x498] sm:$0xff] %v5774
    %v5783 = vld [vmem:[#allocation2 + $0x8] sm:$0xff]
    %v5784 = vld [vmem:[#allocation2 + $0x10] sm:$0xff]
    %v5785 = vld [vmem:[#allocation2 + $0x18] sm:$0xff]
    %v5786 = vld [vmem:[#allocation2 + $0x20] sm:$0xff]
    %v5787 = vld [vmem:[#allocation2 + $0x28] sm:$0xff]
    %v5788 = vld [vmem:[%s2310] ss:$8 sm:$0xf]
    %v5790 = vperm.slane %v5788, 0
    %v5791 = vperm.slane %v5788, 1
    %v5792 = vperm.slane %v5788, 2
    %v5793 = vperm.slane %v5788, 3
    %5794 = vrot.lane.b32.xlu0 %v5790, 31
    %v5795 = vpop.permute.xlu0 %5794
    %5796 = vrot.lane.b32.xlu0 %v5791, 31
    %v5797 = vpop.permute.xlu0 %5796
    %5798 = vrot.lane.b32.xlu0 %v5792, 31
    %v5799 = vpop.permute.xlu0 %5798
    %5800 = vrot.lane.b32.xlu0 %v5793, 31
    %v5801 = vpop.permute.xlu0 %5800
    %v5802 = vsel %vm805, %v5795, %v5797
    %v5803 = vsel %vm805, %v5797, %v5799
    %v5804 = vsel %vm805, %v5799, %v5801
    %v5810 = vmul.f32 %v5783, %v5795
    %v5811 = vmul.f32 %v5784, %v5802
    %v5812 = vmul.f32 %v5785, %v5803
    %v5813 = vmul.f32 %v5786, %v5804
    %v5814 = vmul.f32 %v5787, %v5801
    %5820 = vrot.lane.b32.xlu0 %v5810, 97
    %v5821 = vpop.permute.xlu0 %5820
    %5822 = vrot.lane.b32.xlu0 %v5811, 97
    %v5823 = vpop.permute.xlu0 %5822
    %5824 = vrot.lane.b32.xlu0 %v5812, 97
    %v5825 = vpop.permute.xlu0 %5824
    %5826 = vrot.lane.b32.xlu0 %v5813, 97
    %v5827 = vpop.permute.xlu0 %5826
    %5828 = vrot.lane.b32.xlu0 %v5814, 97
    %v5829 = vpop.permute.xlu0 %5828
    %v5830 = vsel %vm776, %v5821, %v5823
    %v5831 = vsel %vm776, %v5823, %v5825
    %v5832 = vsel %vm776, %v5825, %v5827
    %v5833 = vsel %vm776, %v5827, %v5829
    %5838 = vst [vmem:[#allocation3 + $0x4a0] sm:$0xff] %v5830
    %5839 = vst [vmem:[#allocation3 + $0x4a8] sm:$0xff] %v5831
    %5840 = vst [vmem:[#allocation3 + $0x4b0] sm:$0xff] %v5832
    %5841 = vst [vmem:[#allocation3 + $0x4b8] sm:$0xff] %v5833
    %v5842 = vld [vmem:[#allocation2 + $0x8] sm:$0xff]
    %v5843 = vld [vmem:[#allocation2 + $0x10] sm:$0xff]
    %v5844 = vld [vmem:[#allocation2 + $0x18] sm:$0xff]
    %v5845 = vld [vmem:[#allocation2 + $0x20] sm:$0xff]
    %v5846 = vld [vmem:[#allocation2 + $0x28] sm:$0xff]
    %v5847 = vld [vmem:[%s2370] ss:$8 sm:$0xf]
    %v5849 = vperm.slane %v5847, 0
    %v5850 = vperm.slane %v5847, 1
    %v5851 = vperm.slane %v5847, 2
    %v5852 = vperm.slane %v5847, 3
    %5853 = vrot.lane.b32.xlu0 %v5849, 32
    %v5854 = vpop.permute.xlu0 %5853
    %5855 = vrot.lane.b32.xlu0 %v5850, 32
    %v5856 = vpop.permute.xlu0 %5855
    %5857 = vrot.lane.b32.xlu0 %v5851, 32
    %v5858 = vpop.permute.xlu0 %5857
    %5859 = vrot.lane.b32.xlu0 %v5852, 32
    %v5860 = vpop.permute.xlu0 %5859
    %v5861 = vsel %vm743, %v5854, %v5856
    %v5862 = vsel %vm743, %v5856, %v5858
    %v5863 = vsel %vm743, %v5858, %v5860
    %v5869 = vmul.f32 %v5842, %v5854
    %v5870 = vmul.f32 %v5843, %v5861
    %v5871 = vmul.f32 %v5844, %v5862
    %v5872 = vmul.f32 %v5845, %v5863
    %v5873 = vmul.f32 %v5846, %v5860
    %5879 = vrot.lane.b32.xlu0 %v5869, 96
    %v5880 = vpop.permute.xlu0 %5879
    %5881 = vrot.lane.b32.xlu0 %v5870, 96
    %v5882 = vpop.permute.xlu0 %5881
    %5883 = vrot.lane.b32.xlu0 %v5871, 96
    %v5884 = vpop.permute.xlu0 %5883
    %5885 = vrot.lane.b32.xlu0 %v5872, 96
    %v5886 = vpop.permute.xlu0 %5885
    %5887 = vrot.lane.b32.xlu0 %v5873, 96
    %v5888 = vpop.permute.xlu0 %5887
    %v5889 = vsel %vm714, %v5880, %v5882
    %v5890 = vsel %vm714, %v5882, %v5884
    %v5891 = vsel %vm714, %v5884, %v5886
    %v5892 = vsel %vm714, %v5886, %v5888
    %5897 = vst [vmem:[#allocation3 + $0x4c0] sm:$0xff] %v5889
    %5898 = vst [vmem:[#allocation3 + $0x4c8] sm:$0xff] %v5890
    %5899 = vst [vmem:[#allocation3 + $0x4d0] sm:$0xff] %v5891
    %5900 = vst [vmem:[#allocation3 + $0x4d8] sm:$0xff] %v5892
    %v5901 = vld [vmem:[#allocation2 + $0x8] sm:$0xff]
    %v5902 = vld [vmem:[#allocation2 + $0x10] sm:$0xff]
    %v5903 = vld [vmem:[#allocation2 + $0x18] sm:$0xff]
    %v5904 = vld [vmem:[#allocation2 + $0x20] sm:$0xff]
    %v5905 = vld [vmem:[#allocation2 + $0x28] sm:$0xff]
    %v5906 = vld [vmem:[%s2430] ss:$8 sm:$0xf]
    %v5908 = vperm.slane %v5906, 0
    %v5909 = vperm.slane %v5906, 1
    %v5910 = vperm.slane %v5906, 2
    %v5911 = vperm.slane %v5906, 3
    %5912 = vrot.lane.b32.xlu0 %v5908, 33
    %v5913 = vpop.permute.xlu0 %5912
    %5914 = vrot.lane.b32.xlu0 %v5909, 33
    %v5915 = vpop.permute.xlu0 %5914
    %5916 = vrot.lane.b32.xlu0 %v5910, 33
    %v5917 = vpop.permute.xlu0 %5916
    %5918 = vrot.lane.b32.xlu0 %v5911, 33
    %v5919 = vpop.permute.xlu0 %5918
    %v5920 = vsel %vm681, %v5913, %v5915
    %v5921 = vsel %vm681, %v5915, %v5917
    %v5922 = vsel %vm681, %v5917, %v5919
    %v5928 = vmul.f32 %v5901, %v5913
    %v5929 = vmul.f32 %v5902, %v5920
    %v5930 = vmul.f32 %v5903, %v5921
    %v5931 = vmul.f32 %v5904, %v5922
    %v5932 = vmul.f32 %v5905, %v5919
    %5938 = vrot.lane.b32.xlu0 %v5928, 95
    %v5939 = vpop.permute.xlu0 %5938
    %5940 = vrot.lane.b32.xlu0 %v5929, 95
    %v5941 = vpop.permute.xlu0 %5940
    %5942 = vrot.lane.b32.xlu0 %v5930, 95
    %v5943 = vpop.permute.xlu0 %5942
    %5944 = vrot.lane.b32.xlu0 %v5931, 95
    %v5945 = vpop.permute.xlu0 %5944
    %5946 = vrot.lane.b32.xlu0 %v5932, 95
    %v5947 = vpop.permute.xlu0 %5946
    %v5948 = vsel %vm652, %v5939, %v5941
    %v5949 = vsel %vm652, %v5941, %v5943
    %v5950 = vsel %vm652, %v5943, %v5945
    %v5951 = vsel %vm652, %v5945, %v5947
    %5956 = vst [vmem:[#allocation3 + $0x4e0] sm:$0xff] %v5948
    %5957 = vst [vmem:[#allocation3 + $0x4e8] sm:$0xff] %v5949
    %5958 = vst [vmem:[#allocation3 + $0x4f0] sm:$0xff] %v5950
    %5959 = vst [vmem:[#allocation3 + $0x4f8] sm:$0xff] %v5951
    %v5960 = vld [vmem:[#allocation2 + $0x8] sm:$0xff]
    %v5961 = vld [vmem:[#allocation2 + $0x10] sm:$0xff]
    %v5962 = vld [vmem:[#allocation2 + $0x18] sm:$0xff]
    %v5963 = vld [vmem:[#allocation2 + $0x20] sm:$0xff]
    %v5964 = vld [vmem:[#allocation2 + $0x28] sm:$0xff]
    %v5965 = vld [vmem:[%s2490] ss:$8 sm:$0xf]
    %v5967 = vperm.slane %v5965, 0
    %v5968 = vperm.slane %v5965, 1
    %v5969 = vperm.slane %v5965, 2
    %v5970 = vperm.slane %v5965, 3
    %5971 = vrot.lane.b32.xlu0 %v5967, 34
    %v5972 = vpop.permute.xlu0 %5971
    %5973 = vrot.lane.b32.xlu0 %v5968, 34
    %v5974 = vpop.permute.xlu0 %5973
    %5975 = vrot.lane.b32.xlu0 %v5969, 34
    %v5976 = vpop.permute.xlu0 %5975
    %5977 = vrot.lane.b32.xlu0 %v5970, 34
    %v5978 = vpop.permute.xlu0 %5977
    %v5979 = vsel %vm619, %v5972, %v5974
    %v5980 = vsel %vm619, %v5974, %v5976
    %v5981 = vsel %vm619, %v5976, %v5978
    %v5987 = vmul.f32 %v5960, %v5972
    %v5988 = vmul.f32 %v5961, %v5979
    %v5989 = vmul.f32 %v5962, %v5980
    %v5990 = vmul.f32 %v5963, %v5981
    %v5991 = vmul.f32 %v5964, %v5978
    %5997 = vrot.lane.b32.xlu0 %v5987, 94
    %v5998 = vpop.permute.xlu0 %5997
    %5999 = vrot.lane.b32.xlu0 %v5988, 94
    %v6000 = vpop.permute.xlu0 %5999
    %6001 = vrot.lane.b32.xlu0 %v5989, 94
    %v6002 = vpop.permute.xlu0 %6001
    %6003 = vrot.lane.b32.xlu0 %v5990, 94
    %v6004 = vpop.permute.xlu0 %6003
    %6005 = vrot.lane.b32.xlu0 %v5991, 94
    %v6006 = vpop.permute.xlu0 %6005
    %v6007 = vsel %vm590, %v5998, %v6000
    %v6008 = vsel %vm590, %v6000, %v6002
    %v6009 = vsel %vm590, %v6002, %v6004
    %v6010 = vsel %vm590, %v6004, %v6006
    %6015 = vst [vmem:[#allocation3 + $0x500] sm:$0xff] %v6007
    %6016 = vst [vmem:[#allocation3 + $0x508] sm:$0xff] %v6008
    %6017 = vst [vmem:[#allocation3 + $0x510] sm:$0xff] %v6009
    %6018 = vst [vmem:[#allocation3 + $0x518] sm:$0xff] %v6010
    %v6019 = vld [vmem:[#allocation2 + $0x8] sm:$0xff]
    %v6020 = vld [vmem:[#allocation2 + $0x10] sm:$0xff]
    %v6021 = vld [vmem:[#allocation2 + $0x18] sm:$0xff]
    %v6022 = vld [vmem:[#allocation2 + $0x20] sm:$0xff]
    %v6023 = vld [vmem:[#allocation2 + $0x28] sm:$0xff]
    %v6024 = vld [vmem:[%s2550] ss:$8 sm:$0xf]
    %v6026 = vperm.slane %v6024, 0
    %v6027 = vperm.slane %v6024, 1
    %v6028 = vperm.slane %v6024, 2
    %v6029 = vperm.slane %v6024, 3
    %6030 = vrot.lane.b32.xlu0 %v6026, 35
    %v6031 = vpop.permute.xlu0 %6030
    %6032 = vrot.lane.b32.xlu0 %v6027, 35
    %v6033 = vpop.permute.xlu0 %6032
    %6034 = vrot.lane.b32.xlu0 %v6028, 35
    %v6035 = vpop.permute.xlu0 %6034
    %6036 = vrot.lane.b32.xlu0 %v6029, 35
    %v6037 = vpop.permute.xlu0 %6036
    %v6038 = vsel %vm557, %v6031, %v6033
    %v6039 = vsel %vm557, %v6033, %v6035
    %v6040 = vsel %vm557, %v6035, %v6037
    %v6046 = vmul.f32 %v6019, %v6031
    %v6047 = vmul.f32 %v6020, %v6038
    %v6048 = vmul.f32 %v6021, %v6039
    %v6049 = vmul.f32 %v6022, %v6040
    %v6050 = vmul.f32 %v6023, %v6037
    %6056 = vrot.lane.b32.xlu0 %v6046, 93
    %v6057 = vpop.permute.xlu0 %6056
    %6058 = vrot.lane.b32.xlu0 %v6047, 93
    %v6059 = vpop.permute.xlu0 %6058
    %6060 = vrot.lane.b32.xlu0 %v6048, 93
    %v6061 = vpop.permute.xlu0 %6060
    %6062 = vrot.lane.b32.xlu0 %v6049, 93
    %v6063 = vpop.permute.xlu0 %6062
    %6064 = vrot.lane.b32.xlu0 %v6050, 93
    %v6065 = vpop.permute.xlu0 %6064
    %v6066 = vsel %vm528, %v6057, %v6059
    %v6067 = vsel %vm528, %v6059, %v6061
    %v6068 = vsel %vm528, %v6061, %v6063
    %v6069 = vsel %vm528, %v6063, %v6065
    %6074 = vst [vmem:[#allocation3 + $0x520] sm:$0xff] %v6066
    %6075 = vst [vmem:[#allocation3 + $0x528] sm:$0xff] %v6067
    %6076 = vst [vmem:[#allocation3 + $0x530] sm:$0xff] %v6068
    %6077 = vst [vmem:[#allocation3 + $0x538] sm:$0xff] %v6069
    %v6078 = vld [vmem:[#allocation2 + $0x8] sm:$0xff]
    %v6079 = vld [vmem:[#allocation2 + $0x10] sm:$0xff]
    %v6080 = vld [vmem:[#allocation2 + $0x18] sm:$0xff]
    %v6081 = vld [vmem:[#allocation2 + $0x20] sm:$0xff]
    %v6082 = vld [vmem:[#allocation2 + $0x28] sm:$0xff]
    %v6083 = vld [vmem:[%s2610] ss:$8 sm:$0xf]
    %v6085 = vperm.slane %v6083, 0
    %v6086 = vperm.slane %v6083, 1
    %v6087 = vperm.slane %v6083, 2
    %v6088 = vperm.slane %v6083, 3
    %6089 = vrot.lane.b32.xlu0 %v6085, 45
    %v6090 = vpop.permute.xlu0 %6089
    %6091 = vrot.lane.b32.xlu0 %v6086, 45
    %v6092 = vpop.permute.xlu0 %6091
    %6093 = vrot.lane.b32.xlu0 %v6087, 45
    %v6094 = vpop.permute.xlu0 %6093
    %6095 = vrot.lane.b32.xlu0 %v6088, 45
    %v6096 = vpop.permute.xlu0 %6095
    %v6097 = vsel %vm495, %v6090, %v6092
    %v6098 = vsel %vm495, %v6092, %v6094
    %v6099 = vsel %vm495, %v6094, %v6096
    %v6105 = vmul.f32 %v6078, %v6090
    %v6106 = vmul.f32 %v6079, %v6097
    %v6107 = vmul.f32 %v6080, %v6098
    %v6108 = vmul.f32 %v6081, %v6099
    %v6109 = vmul.f32 %v6082, %v6096
    %6115 = vrot.lane.b32.xlu0 %v6105, 83
    %v6116 = vpop.permute.xlu0 %6115
    %6117 = vrot.lane.b32.xlu0 %v6106, 83
    %v6118 = vpop.permute.xlu0 %6117
    %6119 = vrot.lane.b32.xlu0 %v6107, 83
    %v6120 = vpop.permute.xlu0 %6119
    %6121 = vrot.lane.b32.xlu0 %v6108, 83
    %v6122 = vpop.permute.xlu0 %6121
    %6123 = vrot.lane.b32.xlu0 %v6109, 83
    %v6124 = vpop.permute.xlu0 %6123
    %v6125 = vsel %vm466, %v6116, %v6118
    %v6126 = vsel %vm466, %v6118, %v6120
    %v6127 = vsel %vm466, %v6120, %v6122
    %v6128 = vsel %vm466, %v6122, %v6124
    %6133 = vst [vmem:[#allocation3 + $0x540] sm:$0xff] %v6125
    %6134 = vst [vmem:[#allocation3 + $0x548] sm:$0xff] %v6126
    %6135 = vst [vmem:[#allocation3 + $0x550] sm:$0xff] %v6127
    %6136 = vst [vmem:[#allocation3 + $0x558] sm:$0xff] %v6128
    %v6137 = vld [vmem:[#allocation2 + $0x8] sm:$0xff]
    %v6138 = vld [vmem:[#allocation2 + $0x10] sm:$0xff]
    %v6139 = vld [vmem:[#allocation2 + $0x18] sm:$0xff]
    %v6140 = vld [vmem:[#allocation2 + $0x20] sm:$0xff]
    %v6141 = vld [vmem:[#allocation2 + $0x28] sm:$0xff]
    %v6142 = vld [vmem:[%s2670] ss:$8 sm:$0xf]
    %v6144 = vperm.slane %v6142, 0
    %v6145 = vperm.slane %v6142, 1
    %v6146 = vperm.slane %v6142, 2
    %v6147 = vperm.slane %v6142, 3
    %6148 = vrot.lane.b32.xlu0 %v6144, 46
    %v6149 = vpop.permute.xlu0 %6148
    %6150 = vrot.lane.b32.xlu0 %v6145, 46
    %v6151 = vpop.permute.xlu0 %6150
    %6152 = vrot.lane.b32.xlu0 %v6146, 46
    %v6153 = vpop.permute.xlu0 %6152
    %6154 = vrot.lane.b32.xlu0 %v6147, 46
    %v6155 = vpop.permute.xlu0 %6154
    %v6156 = vsel %vm433, %v6149, %v6151
    %v6157 = vsel %vm433, %v6151, %v6153
    %v6158 = vsel %vm433, %v6153, %v6155
    %v6164 = vmul.f32 %v6137, %v6149
    %v6165 = vmul.f32 %v6138, %v6156
    %v6166 = vmul.f32 %v6139, %v6157
    %v6167 = vmul.f32 %v6140, %v6158
    %v6168 = vmul.f32 %v6141, %v6155
    %6174 = vrot.lane.b32.xlu0 %v6164, 82
    %v6175 = vpop.permute.xlu0 %6174
    %6176 = vrot.lane.b32.xlu0 %v6165, 82
    %v6177 = vpop.permute.xlu0 %6176
    %6178 = vrot.lane.b32.xlu0 %v6166, 82
    %v6179 = vpop.permute.xlu0 %6178
    %6180 = vrot.lane.b32.xlu0 %v6167, 82
    %v6181 = vpop.permute.xlu0 %6180
    %6182 = vrot.lane.b32.xlu0 %v6168, 82
    %v6183 = vpop.permute.xlu0 %6182
    %v6184 = vsel %vm404, %v6175, %v6177
    %v6185 = vsel %vm404, %v6177, %v6179
    %v6186 = vsel %vm404, %v6179, %v6181
    %v6187 = vsel %vm404, %v6181, %v6183
    %6192 = vst [vmem:[#allocation3 + $0x560] sm:$0xff] %v6184
    %6193 = vst [vmem:[#allocation3 + $0x568] sm:$0xff] %v6185
    %6194 = vst [vmem:[#allocation3 + $0x570] sm:$0xff] %v6186
    %6195 = vst [vmem:[#allocation3 + $0x578] sm:$0xff] %v6187
    %v6196 = vld [vmem:[#allocation2 + $0x8] sm:$0xff]
    %v6197 = vld [vmem:[#allocation2 + $0x10] sm:$0xff]
    %v6198 = vld [vmem:[#allocation2 + $0x18] sm:$0xff]
    %v6199 = vld [vmem:[#allocation2 + $0x20] sm:$0xff]
    %v6200 = vld [vmem:[#allocation2 + $0x28] sm:$0xff]
    %v6201 = vld [vmem:[%s2730] ss:$8 sm:$0xf]
    %v6203 = vperm.slane %v6201, 0
    %v6204 = vperm.slane %v6201, 1
    %v6205 = vperm.slane %v6201, 2
    %v6206 = vperm.slane %v6201, 3
    %6207 = vrot.lane.b32.xlu0 %v6203, 47
    %v6208 = vpop.permute.xlu0 %6207
    %6209 = vrot.lane.b32.xlu0 %v6204, 47
    %v6210 = vpop.permute.xlu0 %6209
    %6211 = vrot.lane.b32.xlu0 %v6205, 47
    %v6212 = vpop.permute.xlu0 %6211
    %6213 = vrot.lane.b32.xlu0 %v6206, 47
    %v6214 = vpop.permute.xlu0 %6213
    %v6215 = vsel %vm371, %v6208, %v6210
    %v6216 = vsel %vm371, %v6210, %v6212
    %v6217 = vsel %vm371, %v6212, %v6214
    %v6223 = vmul.f32 %v6196, %v6208
    %v6224 = vmul.f32 %v6197, %v6215
    %v6225 = vmul.f32 %v6198, %v6216
    %v6226 = vmul.f32 %v6199, %v6217
    %v6227 = vmul.f32 %v6200, %v6214
    %6233 = vrot.lane.b32.xlu0 %v6223, 81
    %v6234 = vpop.permute.xlu0 %6233
    %6235 = vrot.lane.b32.xlu0 %v6224, 81
    %v6236 = vpop.permute.xlu0 %6235
    %6237 = vrot.lane.b32.xlu0 %v6225, 81
    %v6238 = vpop.permute.xlu0 %6237
    %6239 = vrot.lane.b32.xlu0 %v6226, 81
    %v6240 = vpop.permute.xlu0 %6239
    %6241 = vrot.lane.b32.xlu0 %v6227, 81
    %v6242 = vpop.permute.xlu0 %6241
    %v6243 = vsel %vm342, %v6234, %v6236
    %v6244 = vsel %vm342, %v6236, %v6238
    %v6245 = vsel %vm342, %v6238, %v6240
    %v6246 = vsel %vm342, %v6240, %v6242
    %6251 = vst [vmem:[#allocation3 + $0x580] sm:$0xff] %v6243
    %6252 = vst [vmem:[#allocation3 + $0x588] sm:$0xff] %v6244
    %6253 = vst [vmem:[#allocation3 + $0x590] sm:$0xff] %v6245
    %6254 = vst [vmem:[#allocation3 + $0x598] sm:$0xff] %v6246
    %v6255 = vld [vmem:[#allocation2 + $0x8] sm:$0xff]
    %v6256 = vld [vmem:[#allocation2 + $0x10] sm:$0xff]
    %v6257 = vld [vmem:[#allocation2 + $0x18] sm:$0xff]
    %v6258 = vld [vmem:[#allocation2 + $0x20] sm:$0xff]
    %v6259 = vld [vmem:[#allocation2 + $0x28] sm:$0xff]
    %v6260 = vld [vmem:[%s2790] ss:$8 sm:$0xf]
    %v6262 = vperm.slane %v6260, 0
    %v6263 = vperm.slane %v6260, 1
    %v6264 = vperm.slane %v6260, 2
    %v6265 = vperm.slane %v6260, 3
    %6266 = vrot.lane.b32.xlu0 %v6262, 48
    %v6267 = vpop.permute.xlu0 %6266
    %6268 = vrot.lane.b32.xlu0 %v6263, 48
    %v6269 = vpop.permute.xlu0 %6268
    %6270 = vrot.lane.b32.xlu0 %v6264, 48
    %v6271 = vpop.permute.xlu0 %6270
    %6272 = vrot.lane.b32.xlu0 %v6265, 48
    %v6273 = vpop.permute.xlu0 %6272
    %v6274 = vsel %vm309, %v6267, %v6269
    %v6275 = vsel %vm309, %v6269, %v6271
    %v6276 = vsel %vm309, %v6271, %v6273
    %v6282 = vmul.f32 %v6255, %v6267
    %v6283 = vmul.f32 %v6256, %v6274
    %v6284 = vmul.f32 %v6257, %v6275
    %v6285 = vmul.f32 %v6258, %v6276
    %v6286 = vmul.f32 %v6259, %v6273
    %6292 = vrot.lane.b32.xlu0 %v6282, 80
    %v6293 = vpop.permute.xlu0 %6292
    %6294 = vrot.lane.b32.xlu0 %v6283, 80
    %v6295 = vpop.permute.xlu0 %6294
    %6296 = vrot.lane.b32.xlu0 %v6284, 80
    %v6297 = vpop.permute.xlu0 %6296
    %6298 = vrot.lane.b32.xlu0 %v6285, 80
    %v6299 = vpop.permute.xlu0 %6298
    %6300 = vrot.lane.b32.xlu0 %v6286, 80
    %v6301 = vpop.permute.xlu0 %6300
    %v6302 = vsel %vm280, %v6293, %v6295
    %v6303 = vsel %vm280, %v6295, %v6297
    %v6304 = vsel %vm280, %v6297, %v6299
    %v6305 = vsel %vm280, %v6299, %v6301
    %6310 = vst [vmem:[#allocation3 + $0x5a0] sm:$0xff] %v6302
    %6311 = vst [vmem:[#allocation3 + $0x5a8] sm:$0xff] %v6303
    %6312 = vst [vmem:[#allocation3 + $0x5b0] sm:$0xff] %v6304
    %6313 = vst [vmem:[#allocation3 + $0x5b8] sm:$0xff] %v6305
    %v6314 = vld [vmem:[#allocation2 + $0x8] sm:$0xff]
    %v6315 = vld [vmem:[#allocation2 + $0x10] sm:$0xff]
    %v6316 = vld [vmem:[#allocation2 + $0x18] sm:$0xff]
    %v6317 = vld [vmem:[#allocation2 + $0x20] sm:$0xff]
    %v6318 = vld [vmem:[#allocation2 + $0x28] sm:$0xff]
    %v6319 = vld [vmem:[%s2850] ss:$8 sm:$0xf]
    %v6321 = vperm.slane %v6319, 0
    %v6322 = vperm.slane %v6319, 1
    %v6323 = vperm.slane %v6319, 2
    %v6324 = vperm.slane %v6319, 3
    %6325 = vrot.lane.b32.xlu0 %v6321, 49
    %v6326 = vpop.permute.xlu0 %6325
    %6327 = vrot.lane.b32.xlu0 %v6322, 49
    %v6328 = vpop.permute.xlu0 %6327
    %6329 = vrot.lane.b32.xlu0 %v6323, 49
    %v6330 = vpop.permute.xlu0 %6329
    %6331 = vrot.lane.b32.xlu0 %v6324, 49
    %v6332 = vpop.permute.xlu0 %6331
    %v6333 = vsel %vm247, %v6326, %v6328
    %v6334 = vsel %vm247, %v6328, %v6330
    %v6335 = vsel %vm247, %v6330, %v6332
    %v6341 = vmul.f32 %v6314, %v6326
    %v6342 = vmul.f32 %v6315, %v6333
    %v6343 = vmul.f32 %v6316, %v6334
    %v6344 = vmul.f32 %v6317, %v6335
    %v6345 = vmul.f32 %v6318, %v6332
    %6351 = vrot.lane.b32.xlu0 %v6341, 79
    %v6352 = vpop.permute.xlu0 %6351
    %6353 = vrot.lane.b32.xlu0 %v6342, 79
    %v6354 = vpop.permute.xlu0 %6353
    %6355 = vrot.lane.b32.xlu0 %v6343, 79
    %v6356 = vpop.permute.xlu0 %6355
    %6357 = vrot.lane.b32.xlu0 %v6344, 79
    %v6358 = vpop.permute.xlu0 %6357
    %6359 = vrot.lane.b32.xlu0 %v6345, 79
    %v6360 = vpop.permute.xlu0 %6359
    %v6361 = vsel %vm218, %v6352, %v6354
    %v6362 = vsel %vm218, %v6354, %v6356
    %v6363 = vsel %vm218, %v6356, %v6358
    %v6364 = vsel %vm218, %v6358, %v6360
    %6369 = vst [vmem:[#allocation3 + $0x5c0] sm:$0xff] %v6361
    %6370 = vst [vmem:[#allocation3 + $0x5c8] sm:$0xff] %v6362
    %6371 = vst [vmem:[#allocation3 + $0x5d0] sm:$0xff] %v6363
    %6372 = vst [vmem:[#allocation3 + $0x5d8] sm:$0xff] %v6364
    %v6373 = vld [vmem:[#allocation2 + $0x8] sm:$0xff]
    %v6374 = vld [vmem:[#allocation2 + $0x10] sm:$0xff]
    %v6375 = vld [vmem:[#allocation2 + $0x18] sm:$0xff]
    %v6376 = vld [vmem:[#allocation2 + $0x20] sm:$0xff]
    %v6377 = vld [vmem:[#allocation2 + $0x28] sm:$0xff]
    %v6378 = vld [vmem:[%s2910] ss:$8 sm:$0xf]
    %v6380 = vperm.slane %v6378, 0
    %v6381 = vperm.slane %v6378, 1
    %v6382 = vperm.slane %v6378, 2
    %v6383 = vperm.slane %v6378, 3
    %6384 = vrot.lane.b32.xlu0 %v6380, 50
    %v6385 = vpop.permute.xlu0 %6384
    %6386 = vrot.lane.b32.xlu0 %v6381, 50
    %v6387 = vpop.permute.xlu0 %6386
    %6388 = vrot.lane.b32.xlu0 %v6382, 50
    %v6389 = vpop.permute.xlu0 %6388
    %6390 = vrot.lane.b32.xlu0 %v6383, 50
    %v6391 = vpop.permute.xlu0 %6390
    %v6392 = vsel %vm185, %v6385, %v6387
    %v6393 = vsel %vm185, %v6387, %v6389
    %v6394 = vsel %vm185, %v6389, %v6391
    %v6400 = vmul.f32 %v6373, %v6385
    %v6401 = vmul.f32 %v6374, %v6392
    %v6402 = vmul.f32 %v6375, %v6393
    %v6403 = vmul.f32 %v6376, %v6394
    %v6404 = vmul.f32 %v6377, %v6391
    %6410 = vrot.lane.b32.xlu0 %v6400, 78
    %v6411 = vpop.permute.xlu0 %6410
    %6412 = vrot.lane.b32.xlu0 %v6401, 78
    %v6413 = vpop.permute.xlu0 %6412
    %6414 = vrot.lane.b32.xlu0 %v6402, 78
    %v6415 = vpop.permute.xlu0 %6414
    %6416 = vrot.lane.b32.xlu0 %v6403, 78
    %v6417 = vpop.permute.xlu0 %6416
    %6418 = vrot.lane.b32.xlu0 %v6404, 78
    %v6419 = vpop.permute.xlu0 %6418
    %v6420 = vsel %vm156, %v6411, %v6413
    %v6421 = vsel %vm156, %v6413, %v6415
    %v6422 = vsel %vm156, %v6415, %v6417
    %v6423 = vsel %vm156, %v6417, %v6419
    %6428 = vst [vmem:[#allocation3 + $0x5e0] sm:$0xff] %v6420
    %6429 = vst [vmem:[#allocation3 + $0x5e8] sm:$0xff] %v6421
    %6430 = vst [vmem:[#allocation3 + $0x5f0] sm:$0xff] %v6422
    %6431 = vst [vmem:[#allocation3 + $0x5f8] sm:$0xff] %v6423
    %v6432 = vld [vmem:[#allocation2 + $0x8] sm:$0xff]
    %v6433 = vld [vmem:[#allocation2 + $0x10] sm:$0xff]
    %v6434 = vld [vmem:[#allocation2 + $0x18] sm:$0xff]
    %v6435 = vld [vmem:[#allocation2 + $0x20] sm:$0xff]
    %v6436 = vld [vmem:[#allocation2 + $0x28] sm:$0xff]
    %v6437 = vld [vmem:[%s2970] ss:$8 sm:$0xf]
    %v6439 = vperm.slane %v6437, 0
    %v6440 = vperm.slane %v6437, 1
    %v6441 = vperm.slane %v6437, 2
    %v6442 = vperm.slane %v6437, 3
    %6443 = vrot.lane.b32.xlu0 %v6439, 51
    %v6444 = vpop.permute.xlu0 %6443
    %6445 = vrot.lane.b32.xlu0 %v6440, 51
    %v6446 = vpop.permute.xlu0 %6445
    %6447 = vrot.lane.b32.xlu0 %v6441, 51
    %v6448 = vpop.permute.xlu0 %6447
    %6449 = vrot.lane.b32.xlu0 %v6442, 51
    %v6450 = vpop.permute.xlu0 %6449
    %v6451 = vsel %vm123, %v6444, %v6446
    %v6452 = vsel %vm123, %v6446, %v6448
    %v6453 = vsel %vm123, %v6448, %v6450
    %v6459 = vmul.f32 %v6432, %v6444
    %v6460 = vmul.f32 %v6433, %v6451
    %v6461 = vmul.f32 %v6434, %v6452
    %v6462 = vmul.f32 %v6435, %v6453
    %v6463 = vmul.f32 %v6436, %v6450
    %6469 = vrot.lane.b32.xlu0 %v6459, 77
    %v6470 = vpop.permute.xlu0 %6469
    %6471 = vrot.lane.b32.xlu0 %v6460, 77
    %v6472 = vpop.permute.xlu0 %6471
    %6473 = vrot.lane.b32.xlu0 %v6461, 77
    %v6474 = vpop.permute.xlu0 %6473
    %6475 = vrot.lane.b32.xlu0 %v6462, 77
    %v6476 = vpop.permute.xlu0 %6475
    %6477 = vrot.lane.b32.xlu0 %v6463, 77
    %v6478 = vpop.permute.xlu0 %6477
    %v6479 = vsel %vm94, %v6470, %v6472
    %v6480 = vsel %vm94, %v6472, %v6474
    %v6481 = vsel %vm94, %v6474, %v6476
    %v6482 = vsel %vm94, %v6476, %v6478
    %6487 = vst [vmem:[#allocation3 + $0x600] sm:$0xff] %v6479
    %6488 = vst [vmem:[#allocation3 + $0x608] sm:$0xff] %v6480
    %6489 = vst [vmem:[#allocation3 + $0x610] sm:$0xff] %v6481
    %6490 = vst [vmem:[#allocation3 + $0x618] sm:$0xff] %v6482
    %v6491 = vld [vmem:[#allocation3] sm:$0xff]
    %v6492 = vld [vmem:[#allocation3 + $0x8] sm:$0xff]
    %v6493 = vld [vmem:[#allocation3 + $0x10] sm:$0xff]
    %v6494 = vld [vmem:[#allocation3 + $0x18] sm:$0xff]
    %v6495 = vld [vmem:[#allocation3 + $0x20] sm:$0xff]
    %v6496 = vld [vmem:[#allocation3 + $0x28] sm:$0xff]
    %v6497 = vld [vmem:[#allocation3 + $0x30] sm:$0xff]
    %v6498 = vld [vmem:[#allocation3 + $0x38] sm:$0xff]
    %v6499 = vld [vmem:[#allocation3 + $0x40] sm:$0xff]
    %v6500 = vld [vmem:[#allocation3 + $0x48] sm:$0xff]
    %v6501 = vld [vmem:[#allocation3 + $0x50] sm:$0xff]
    %v6502 = vld [vmem:[#allocation3 + $0x58] sm:$0xff]
    %v6503 = vld [vmem:[#allocation3 + $0x60] sm:$0xff]
    %v6504 = vld [vmem:[#allocation3 + $0x68] sm:$0xff]
    %v6505 = vld [vmem:[#allocation3 + $0x70] sm:$0xff]
    %v6506 = vld [vmem:[#allocation3 + $0x78] sm:$0xff]
    %v6507 = vld [vmem:[#allocation3 + $0x80] sm:$0xff]
    %v6508 = vld [vmem:[#allocation3 + $0x88] sm:$0xff]
    %v6509 = vld [vmem:[#allocation3 + $0x90] sm:$0xff]
    %v6510 = vld [vmem:[#allocation3 + $0x98] sm:$0xff]
    %v6511 = vld [vmem:[#allocation3 + $0xa0] sm:$0xff]
    %v6512 = vld [vmem:[#allocation3 + $0xa8] sm:$0xff]
    %v6513 = vld [vmem:[#allocation3 + $0xb0] sm:$0xff]
    %v6514 = vld [vmem:[#allocation3 + $0xb8] sm:$0xff]
    %v6515 = vld [vmem:[#allocation3 + $0xc0] sm:$0xff]
    %v6516 = vld [vmem:[#allocation3 + $0xc8] sm:$0xff]
    %v6517 = vld [vmem:[#allocation3 + $0xd0] sm:$0xff]
    %v6518 = vld [vmem:[#allocation3 + $0xd8] sm:$0xff]
    %v6519 = vld [vmem:[#allocation3 + $0xe0] sm:$0xff]
    %v6520 = vld [vmem:[#allocation3 + $0xe8] sm:$0xff]
    %v6521 = vld [vmem:[#allocation3 + $0xf0] sm:$0xff]
    %v6522 = vld [vmem:[#allocation3 + $0xf8] sm:$0xff]
    %v6523 = vld [vmem:[#allocation3 + $0x100] sm:$0xff]
    %v6524 = vld [vmem:[#allocation3 + $0x108] sm:$0xff]
    %v6525 = vld [vmem:[#allocation3 + $0x110] sm:$0xff]
    %v6526 = vld [vmem:[#allocation3 + $0x118] sm:$0xff]
    %v6527 = vld [vmem:[#allocation3 + $0x120] sm:$0xff]
    %v6528 = vld [vmem:[#allocation3 + $0x128] sm:$0xff]
    %v6529 = vld [vmem:[#allocation3 + $0x130] sm:$0xff]
    %v6530 = vld [vmem:[#allocation3 + $0x138] sm:$0xff]
    %v6531 = vld [vmem:[#allocation3 + $0x140] sm:$0xff]
    %v6532 = vld [vmem:[#allocation3 + $0x148] sm:$0xff]
    %v6533 = vld [vmem:[#allocation3 + $0x150] sm:$0xff]
    %v6534 = vld [vmem:[#allocation3 + $0x158] sm:$0xff]
    %v6535 = vld [vmem:[#allocation3 + $0x160] sm:$0xff]
    %v6536 = vld [vmem:[#allocation3 + $0x168] sm:$0xff]
    %v6537 = vld [vmem:[#allocation3 + $0x170] sm:$0xff]
    %v6538 = vld [vmem:[#allocation3 + $0x178] sm:$0xff]
    %v6539 = vld [vmem:[#allocation3 + $0x180] sm:$0xff]
    %v6540 = vld [vmem:[#allocation3 + $0x188] sm:$0xff]
    %v6541 = vld [vmem:[#allocation3 + $0x190] sm:$0xff]
    %v6542 = vld [vmem:[#allocation3 + $0x198] sm:$0xff]
    %v6543 = vld [vmem:[#allocation3 + $0x1a0] sm:$0xff]
    %v6544 = vld [vmem:[#allocation3 + $0x1a8] sm:$0xff]
    %v6545 = vld [vmem:[#allocation3 + $0x1b0] sm:$0xff]
    %v6546 = vld [vmem:[#allocation3 + $0x1b8] sm:$0xff]
    %v6547 = vld [vmem:[#allocation3 + $0x1c0] sm:$0xff]
    %v6548 = vld [vmem:[#allocation3 + $0x1c8] sm:$0xff]
    %v6549 = vld [vmem:[#allocation3 + $0x1d0] sm:$0xff]
    %v6550 = vld [vmem:[#allocation3 + $0x1d8] sm:$0xff]
    %v6551 = vld [vmem:[#allocation3 + $0x1e0] sm:$0xff]
    %v6552 = vld [vmem:[#allocation3 + $0x1e8] sm:$0xff]
    %v6553 = vld [vmem:[#allocation3 + $0x1f0] sm:$0xff]
    %v6554 = vld [vmem:[#allocation3 + $0x1f8] sm:$0xff]
    %v6555 = vld [vmem:[#allocation3 + $0x200] sm:$0xff]
    %v6556 = vld [vmem:[#allocation3 + $0x208] sm:$0xff]
    %v6557 = vld [vmem:[#allocation3 + $0x210] sm:$0xff]
    %v6558 = vld [vmem:[#allocation3 + $0x218] sm:$0xff]
    %v6559 = vld [vmem:[#allocation3 + $0x220] sm:$0xff]
    %v6560 = vld [vmem:[#allocation3 + $0x228] sm:$0xff]
    %v6561 = vld [vmem:[#allocation3 + $0x230] sm:$0xff]
    %v6562 = vld [vmem:[#allocation3 + $0x238] sm:$0xff]
    %v6563 = vld [vmem:[#allocation3 + $0x240] sm:$0xff]
    %v6564 = vld [vmem:[#allocation3 + $0x248] sm:$0xff]
    %v6565 = vld [vmem:[#allocation3 + $0x250] sm:$0xff]
    %v6566 = vld [vmem:[#allocation3 + $0x258] sm:$0xff]
    %v6567 = vld [vmem:[#allocation3 + $0x260] sm:$0xff]
    %v6568 = vld [vmem:[#allocation3 + $0x268] sm:$0xff]
    %v6569 = vld [vmem:[#allocation3 + $0x270] sm:$0xff]
    %v6570 = vld [vmem:[#allocation3 + $0x278] sm:$0xff]
    %v6571 = vld [vmem:[#allocation3 + $0x280] sm:$0xff]
    %v6572 = vld [vmem:[#allocation3 + $0x288] sm:$0xff]
    %v6573 = vld [vmem:[#allocation3 + $0x290] sm:$0xff]
    %v6574 = vld [vmem:[#allocation3 + $0x298] sm:$0xff]
    %v6575 = vld [vmem:[#allocation3 + $0x2a0] sm:$0xff]
    %v6576 = vld [vmem:[#allocation3 + $0x2a8] sm:$0xff]
    %v6577 = vld [vmem:[#allocation3 + $0x2b0] sm:$0xff]
    %v6578 = vld [vmem:[#allocation3 + $0x2b8] sm:$0xff]
    %v6579 = vld [vmem:[#allocation3 + $0x2c0] sm:$0xff]
    %v6580 = vld [vmem:[#allocation3 + $0x2c8] sm:$0xff]
    %v6581 = vld [vmem:[#allocation3 + $0x2d0] sm:$0xff]
    %v6582 = vld [vmem:[#allocation3 + $0x2d8] sm:$0xff]
    %v6583 = vld [vmem:[#allocation3 + $0x2e0] sm:$0xff]
    %v6584 = vld [vmem:[#allocation3 + $0x2e8] sm:$0xff]
    %v6585 = vld [vmem:[#allocation3 + $0x2f0] sm:$0xff]
    %v6586 = vld [vmem:[#allocation3 + $0x2f8] sm:$0xff]
    %v6587 = vld [vmem:[#allocation3 + $0x300] sm:$0xff]
    %v6588 = vld [vmem:[#allocation3 + $0x308] sm:$0xff]
    %v6589 = vld [vmem:[#allocation3 + $0x310] sm:$0xff]
    %v6590 = vld [vmem:[#allocation3 + $0x318] sm:$0xff]
    %v6591 = vld [vmem:[#allocation3 + $0x320] sm:$0xff]
    %v6592 = vld [vmem:[#allocation3 + $0x328] sm:$0xff]
    %v6593 = vld [vmem:[#allocation3 + $0x330] sm:$0xff]
    %v6594 = vld [vmem:[#allocation3 + $0x338] sm:$0xff]
    %v6595 = vld [vmem:[#allocation3 + $0x340] sm:$0xff]
    %v6596 = vld [vmem:[#allocation3 + $0x348] sm:$0xff]
    %v6597 = vld [vmem:[#allocation3 + $0x350] sm:$0xff]
    %v6598 = vld [vmem:[#allocation3 + $0x358] sm:$0xff]
    %v6599 = vld [vmem:[#allocation3 + $0x360] sm:$0xff]
    %v6600 = vld [vmem:[#allocation3 + $0x368] sm:$0xff]
    %v6601 = vld [vmem:[#allocation3 + $0x370] sm:$0xff]
    %v6602 = vld [vmem:[#allocation3 + $0x378] sm:$0xff]
    %v6603 = vld [vmem:[#allocation3 + $0x380] sm:$0xff]
    %v6604 = vld [vmem:[#allocation3 + $0x388] sm:$0xff]
    %v6605 = vld [vmem:[#allocation3 + $0x390] sm:$0xff]
    %v6606 = vld [vmem:[#allocation3 + $0x398] sm:$0xff]
    %v6607 = vld [vmem:[#allocation3 + $0x3a0] sm:$0xff]
    %v6608 = vld [vmem:[#allocation3 + $0x3a8] sm:$0xff]
    %v6609 = vld [vmem:[#allocation3 + $0x3b0] sm:$0xff]
    %v6610 = vld [vmem:[#allocation3 + $0x3b8] sm:$0xff]
    %v6611 = vld [vmem:[#allocation3 + $0x3c0] sm:$0xff]
    %v6612 = vld [vmem:[#allocation3 + $0x3c8] sm:$0xff]
    %v6613 = vld [vmem:[#allocation3 + $0x3d0] sm:$0xff]
    %v6614 = vld [vmem:[#allocation3 + $0x3d8] sm:$0xff]
    %v6615 = vld [vmem:[#allocation3 + $0x3e0] sm:$0xff]
    %v6616 = vld [vmem:[#allocation3 + $0x3e8] sm:$0xff]
    %v6617 = vld [vmem:[#allocation3 + $0x3f0] sm:$0xff]
    %v6618 = vld [vmem:[#allocation3 + $0x3f8] sm:$0xff]
    %v6619 = vld [vmem:[#allocation3 + $0x400] sm:$0xff]
    %v6620 = vld [vmem:[#allocation3 + $0x408] sm:$0xff]
    %v6621 = vld [vmem:[#allocation3 + $0x410] sm:$0xff]
    %v6622 = vld [vmem:[#allocation3 + $0x418] sm:$0xff]
    %v6623 = vld [vmem:[#allocation3 + $0x420] sm:$0xff]
    %v6624 = vld [vmem:[#allocation3 + $0x428] sm:$0xff]
    %v6625 = vld [vmem:[#allocation3 + $0x430] sm:$0xff]
    %v6626 = vld [vmem:[#allocation3 + $0x438] sm:$0xff]
    %v6627 = vld [vmem:[#allocation3 + $0x440] sm:$0xff]
    %v6628 = vld [vmem:[#allocation3 + $0x448] sm:$0xff]
    %v6629 = vld [vmem:[#allocation3 + $0x450] sm:$0xff]
    %v6630 = vld [vmem:[#allocation3 + $0x458] sm:$0xff]
    %v6631 = vld [vmem:[#allocation3 + $0x460] sm:$0xff]
    %v6632 = vld [vmem:[#allocation3 + $0x468] sm:$0xff]
    %v6633 = vld [vmem:[#allocation3 + $0x470] sm:$0xff]
    %v6634 = vld [vmem:[#allocation3 + $0x478] sm:$0xff]
    %v6635 = vld [vmem:[#allocation3 + $0x480] sm:$0xff]
    %v6636 = vld [vmem:[#allocation3 + $0x488] sm:$0xff]
    %v6637 = vld [vmem:[#allocation3 + $0x490] sm:$0xff]
    %v6638 = vld [vmem:[#allocation3 + $0x498] sm:$0xff]
    %v6639 = vld [vmem:[#allocation3 + $0x4a0] sm:$0xff]
    %v6640 = vld [vmem:[#allocation3 + $0x4a8] sm:$0xff]
    %v6641 = vld [vmem:[#allocation3 + $0x4b0] sm:$0xff]
    %v6642 = vld [vmem:[#allocation3 + $0x4b8] sm:$0xff]
    %v6643 = vld [vmem:[#allocation3 + $0x4c0] sm:$0xff]
    %v6644 = vld [vmem:[#allocation3 + $0x4c8] sm:$0xff]
    %v6645 = vld [vmem:[#allocation3 + $0x4d0] sm:$0xff]
    %v6646 = vld [vmem:[#allocation3 + $0x4d8] sm:$0xff]
    %v6647 = vld [vmem:[#allocation3 + $0x4e0] sm:$0xff]
    %v6648 = vld [vmem:[#allocation3 + $0x4e8] sm:$0xff]
    %v6649 = vld [vmem:[#allocation3 + $0x4f0] sm:$0xff]
    %v6650 = vld [vmem:[#allocation3 + $0x4f8] sm:$0xff]
    %v6651 = vld [vmem:[#allocation3 + $0x500] sm:$0xff]
    %v6652 = vld [vmem:[#allocation3 + $0x508] sm:$0xff]
    %v6653 = vld [vmem:[#allocation3 + $0x510] sm:$0xff]
    %v6654 = vld [vmem:[#allocation3 + $0x518] sm:$0xff]
    %v6655 = vld [vmem:[#allocation3 + $0x520] sm:$0xff]
    %v6656 = vld [vmem:[#allocation3 + $0x528] sm:$0xff]
    %v6657 = vld [vmem:[#allocation3 + $0x530] sm:$0xff]
    %v6658 = vld [vmem:[#allocation3 + $0x538] sm:$0xff]
    %v6659 = vld [vmem:[#allocation3 + $0x540] sm:$0xff]
    %v6660 = vld [vmem:[#allocation3 + $0x548] sm:$0xff]
    %v6661 = vld [vmem:[#allocation3 + $0x550] sm:$0xff]
    %v6662 = vld [vmem:[#allocation3 + $0x558] sm:$0xff]
    %v6663 = vld [vmem:[#allocation3 + $0x560] sm:$0xff]
    %v6664 = vld [vmem:[#allocation3 + $0x568] sm:$0xff]
    %v6665 = vld [vmem:[#allocation3 + $0x570] sm:$0xff]
    %v6666 = vld [vmem:[#allocation3 + $0x578] sm:$0xff]
    %v6667 = vld [vmem:[#allocation3 + $0x580] sm:$0xff]
    %v6668 = vld [vmem:[#allocation3 + $0x588] sm:$0xff]
    %v6669 = vld [vmem:[#allocation3 + $0x590] sm:$0xff]
    %v6670 = vld [vmem:[#allocation3 + $0x598] sm:$0xff]
    %v6671 = vld [vmem:[#allocation3 + $0x5a0] sm:$0xff]
    %v6672 = vld [vmem:[#allocation3 + $0x5a8] sm:$0xff]
    %v6673 = vld [vmem:[#allocation3 + $0x5b0] sm:$0xff]
    %v6674 = vld [vmem:[#allocation3 + $0x5b8] sm:$0xff]
    %v6675 = vld [vmem:[#allocation3 + $0x5c0] sm:$0xff]
    %v6676 = vld [vmem:[#allocation3 + $0x5c8] sm:$0xff]
    %v6677 = vld [vmem:[#allocation3 + $0x5d0] sm:$0xff]
    %v6678 = vld [vmem:[#allocation3 + $0x5d8] sm:$0xff]
    %v6679 = vld [vmem:[#allocation3 + $0x5e0] sm:$0xff]
    %v6680 = vld [vmem:[#allocation3 + $0x5e8] sm:$0xff]
    %v6681 = vld [vmem:[#allocation3 + $0x5f0] sm:$0xff]
    %v6682 = vld [vmem:[#allocation3 + $0x5f8] sm:$0xff]
    %v6683 = vld [vmem:[#allocation3 + $0x600] sm:$0xff]
    %v6684 = vld [vmem:[#allocation3 + $0x608] sm:$0xff]
    %v6685 = vld [vmem:[#allocation3 + $0x610] sm:$0xff]
    %v6686 = vld [vmem:[#allocation3 + $0x618] sm:$0xff]
    %v6687 = vpack.c.bf16 %v6495, %v6491
    %v6688 = vpack.c.bf16 %v6496, %v6492
    %v6689 = vpack.c.bf16 %v6497, %v6493
    %v6690 = vpack.c.bf16 %v6498, %v6494
    %v6691 = vpack.c.bf16 %v6503, %v6499
    %v6692 = vpack.c.bf16 %v6504, %v6500
    %v6693 = vpack.c.bf16 %v6505, %v6501
    %v6694 = vpack.c.bf16 %v6506, %v6502
    %v6695 = vpack.c.bf16 %v6511, %v6507
    %v6696 = vpack.c.bf16 %v6512, %v6508
    %v6697 = vpack.c.bf16 %v6513, %v6509
    %v6698 = vpack.c.bf16 %v6514, %v6510
    %v6699 = vpack.c.bf16 %v6519, %v6515
    %v6700 = vpack.c.bf16 %v6520, %v6516
    %v6701 = vpack.c.bf16 %v6521, %v6517
    %v6702 = vpack.c.bf16 %v6522, %v6518
    %v6703 = vpack.c.bf16 %v6527, %v6523
    %v6704 = vpack.c.bf16 %v6528, %v6524
    %v6705 = vpack.c.bf16 %v6529, %v6525
    %v6706 = vpack.c.bf16 %v6530, %v6526
    %v6707 = vpack.c.bf16 %v6535, %v6531
    %v6708 = vpack.c.bf16 %v6536, %v6532
    %v6709 = vpack.c.bf16 %v6537, %v6533
    %v6710 = vpack.c.bf16 %v6538, %v6534
    %v6711 = vpack.c.bf16 %v6543, %v6539
    %v6712 = vpack.c.bf16 %v6544, %v6540
    %v6713 = vpack.c.bf16 %v6545, %v6541
    %v6714 = vpack.c.bf16 %v6546, %v6542
    %v6715 = vpack.c.bf16 %v6551, %v6547
    %v6716 = vpack.c.bf16 %v6552, %v6548
    %v6717 = vpack.c.bf16 %v6553, %v6549
    %v6718 = vpack.c.bf16 %v6554, %v6550
    %v6719 = vpack.c.bf16 %v6559, %v6555
    %v6720 = vpack.c.bf16 %v6560, %v6556
    %v6721 = vpack.c.bf16 %v6561, %v6557
    %v6722 = vpack.c.bf16 %v6562, %v6558
    %v6723 = vpack.c.bf16 %v6567, %v6563
    %v6724 = vpack.c.bf16 %v6568, %v6564
    %v6725 = vpack.c.bf16 %v6569, %v6565
    %v6726 = vpack.c.bf16 %v6570, %v6566
    %v6727 = vpack.c.bf16 %v6575, %v6571
    %v6728 = vpack.c.bf16 %v6576, %v6572
    %v6729 = vpack.c.bf16 %v6577, %v6573
    %v6730 = vpack.c.bf16 %v6578, %v6574
    %v6731 = vpack.c.bf16 %v6583, %v6579
    %v6732 = vpack.c.bf16 %v6584, %v6580
    %v6733 = vpack.c.bf16 %v6585, %v6581
    %v6734 = vpack.c.bf16 %v6586, %v6582
    %v6735 = vpack.c.bf16 %v6591, %v6587
    %v6736 = vpack.c.bf16 %v6592, %v6588
    %v6737 = vpack.c.bf16 %v6593, %v6589
    %v6738 = vpack.c.bf16 %v6594, %v6590
    %v6739 = vpack.c.bf16 %v6599, %v6595
    %v6740 = vpack.c.bf16 %v6600, %v6596
    %v6741 = vpack.c.bf16 %v6601, %v6597
    %v6742 = vpack.c.bf16 %v6602, %v6598
    %v6743 = vpack.c.bf16 %v6607, %v6603
    %v6744 = vpack.c.bf16 %v6608, %v6604
    %v6745 = vpack.c.bf16 %v6609, %v6605
    %v6746 = vpack.c.bf16 %v6610, %v6606
    %v6747 = vpack.c.bf16 %v6615, %v6611
    %v6748 = vpack.c.bf16 %v6616, %v6612
    %v6749 = vpack.c.bf16 %v6617, %v6613
    %v6750 = vpack.c.bf16 %v6618, %v6614
    %v6751 = vpack.c.bf16 %v6623, %v6619
    %v6752 = vpack.c.bf16 %v6624, %v6620
    %v6753 = vpack.c.bf16 %v6625, %v6621
    %v6754 = vpack.c.bf16 %v6626, %v6622
    %v6755 = vpack.c.bf16 %v6631, %v6627
    %v6756 = vpack.c.bf16 %v6632, %v6628
    %v6757 = vpack.c.bf16 %v6633, %v6629
    %v6758 = vpack.c.bf16 %v6634, %v6630
    %v6759 = vpack.c.bf16 %v6639, %v6635
    %v6760 = vpack.c.bf16 %v6640, %v6636
    %v6761 = vpack.c.bf16 %v6641, %v6637
    %v6762 = vpack.c.bf16 %v6642, %v6638
    %v6763 = vpack.c.bf16 %v6647, %v6643
    %v6764 = vpack.c.bf16 %v6648, %v6644
    %v6765 = vpack.c.bf16 %v6649, %v6645
    %v6766 = vpack.c.bf16 %v6650, %v6646
    %v6767 = vpack.c.bf16 %v6655, %v6651
    %v6768 = vpack.c.bf16 %v6656, %v6652
    %v6769 = vpack.c.bf16 %v6657, %v6653
    %v6770 = vpack.c.bf16 %v6658, %v6654
    %v6771 = vpack.c.bf16 %v6663, %v6659
    %v6772 = vpack.c.bf16 %v6664, %v6660
    %v6773 = vpack.c.bf16 %v6665, %v6661
    %v6774 = vpack.c.bf16 %v6666, %v6662
    %v6775 = vpack.c.bf16 %v6671, %v6667
    %v6776 = vpack.c.bf16 %v6672, %v6668
    %v6777 = vpack.c.bf16 %v6673, %v6669
    %v6778 = vpack.c.bf16 %v6674, %v6670
    %v6779 = vpack.c.bf16 %v6679, %v6675
    %v6780 = vpack.c.bf16 %v6680, %v6676
    %v6781 = vpack.c.bf16 %v6681, %v6677
    %v6782 = vpack.c.bf16 %v6682, %v6678
    %v6783 = vpack.c.bf16 %v6683, %v6683
    %v6784 = vpack.c.bf16 %v6684, %v6684
    %v6785 = vpack.c.bf16 %v6685, %v6685
    %v6786 = vpack.c.bf16 %v6686, %v6686
    %v6787 = vld [vmem:[%s4] sm:$0xff]
    %v6788 = vld [vmem:[%s4 + $0x8] sm:$0xff]
    %v6789 = vld [vmem:[%s5] sm:$0xff]
    %6791 = vset.pattern.permute.xlu0 0
    %6792 = vperm.xlu0 %6791, %v6789
    %v6793 = vpop.permute.xlu0 %6792
    %v6797 = vunpack.c.l.b16 %v6787
    %v6798 = vunpack.c.h.b16 %v6787
    %v6799 = vunpack.c.l.b16 %v6788
    %v6800 = vunpack.c.h.b16 %v6788
    %v6801 = vpack.c.b16 %v6797, %v6797
    %v6802 = vpack.c.b16 %v6798, %v6798
    %v6803 = vpack.c.b16 %v6799, %v6799
    %v6804 = vpack.c.b16 %v6800, %v6800
    %v6809 = vsel %vm3342, %v6804, 0
    %v6812 = vsel %vm3346, %v6783, 0
    %v6815 = vsel %vm3346, %v6784, 0
    %v6818 = vsel %vm3346, %v6785, 0
    %v6821 = vsel %vm3346, %v6786, 0
    %6823 = vmatpush.bf16.msra.mxu0 %v6715
    %6824 = vmatpush.bf16.msra.mxu0 %v6711
    %6825 = vmatpush.bf16.msra.mxu0 %v6707
    %6826 = vmatpush.bf16.msra.mxu0 %v6703
    %6827 = vmatpush.bf16.msra.mxu0 %v6699
    %6828 = vmatpush.bf16.msra.mxu0 %v6695
    %6829 = vmatpush.bf16.msra.mxu0 %v6691
    %6830 = vmatpush.bf16.msra.mxu0 %v6687
    %6831 = vmatmul.bf16.gmra.mxu0 %v6801
    %v6832 = vpop.f32.mrf.mxu0
    %v6833 = vadd.f32 %v6793, %v6832
    %v6834 = vpop.f32.mrf.mxu0
    %6835 = vdwg.mxu0
    %6836 = vmatpush.bf16.msra.mxu0 %v6747
    %6837 = vmatpush.bf16.msra.mxu0 %v6743
    %6838 = vmatpush.bf16.msra.mxu0 %v6739
    %6839 = vmatpush.bf16.msra.mxu0 %v6735
    %6840 = vmatpush.bf16.msra.mxu0 %v6731
    %6841 = vmatpush.bf16.msra.mxu0 %v6727
    %6842 = vmatpush.bf16.msra.mxu0 %v6723
    %6843 = vmatpush.bf16.msra.mxu0 %v6719
    %6844 = vmatmul.bf16.gmra.mxu0 %v6802
    %v6845 = vpop.f32.mrf.mxu0
    %v6846 = vadd.f32 %v6833, %v6845
    %v6847 = vpop.f32.mrf.mxu0
    %6848 = vdwg.mxu0
    %6849 = vmatpush.bf16.msra.mxu0 %v6779
    %6850 = vmatpush.bf16.msra.mxu0 %v6775
    %6851 = vmatpush.bf16.msra.mxu0 %v6771
    %6852 = vmatpush.bf16.msra.mxu0 %v6767
    %6853 = vmatpush.bf16.msra.mxu0 %v6763
    %6854 = vmatpush.bf16.msra.mxu0 %v6759
    %6855 = vmatpush.bf16.msra.mxu0 %v6755
    %6856 = vmatpush.bf16.msra.mxu0 %v6751
    %6857 = vmatmul.bf16.gmra.mxu0 %v6803
    %v6858 = vpop.f32.mrf.mxu0
    %v6859 = vadd.f32 %v6846, %v6858
    %v6860 = vpop.f32.mrf.mxu0
    %6861 = vdwg.mxu0
    %6862 = vmatpush.bf16.msra.mxu0 0
    %6863 = vmatpush.bf16.msra.mxu0 0
    %6864 = vmatpush.bf16.msra.mxu0 0
    %6865 = vmatpush.bf16.msra.mxu0 0
    %6866 = vmatpush.bf16.msra.mxu0 0
    %6867 = vmatpush.bf16.msra.mxu0 0
    %6868 = vmatpush.bf16.msra.mxu0 0
    %6869 = vmatpush.bf16.msra.mxu0 %v6812
    %6870 = vmatmul.bf16.gmra.mxu0 %v6809
    %v6871 = vpop.f32.mrf.mxu0
    %v6872 = vadd.f32 %v6859, %v6871
    %v6873 = vpop.f32.mrf.mxu0
    %6874 = vdwg.mxu0
    %6875 = vmatpush.bf16.msra.mxu0 %v6716
    %6876 = vmatpush.bf16.msra.mxu0 %v6712
    %6877 = vmatpush.bf16.msra.mxu0 %v6708
    %6878 = vmatpush.bf16.msra.mxu0 %v6704
    %6879 = vmatpush.bf16.msra.mxu0 %v6700
    %6880 = vmatpush.bf16.msra.mxu0 %v6696
    %6881 = vmatpush.bf16.msra.mxu0 %v6692
    %6882 = vmatpush.bf16.msra.mxu0 %v6688
    %6883 = vmatmul.bf16.gmra.mxu0 %v6801
    %v6884 = vpop.f32.mrf.mxu0
    %v6885 = vadd.f32 %v6793, %v6884
    %v6886 = vpop.f32.mrf.mxu0
    %6887 = vdwg.mxu0
    %6888 = vmatpush.bf16.msra.mxu0 %v6748
    %6889 = vmatpush.bf16.msra.mxu0 %v6744
    %6890 = vmatpush.bf16.msra.mxu0 %v6740
    %6891 = vmatpush.bf16.msra.mxu0 %v6736
    %6892 = vmatpush.bf16.msra.mxu0 %v6732
    %6893 = vmatpush.bf16.msra.mxu0 %v6728
    %6894 = vmatpush.bf16.msra.mxu0 %v6724
    %6895 = vmatpush.bf16.msra.mxu0 %v6720
    %6896 = vmatmul.bf16.gmra.mxu0 %v6802
    %v6897 = vpop.f32.mrf.mxu0
    %v6898 = vadd.f32 %v6885, %v6897
    %v6899 = vpop.f32.mrf.mxu0
    %6900 = vdwg.mxu0
    %6901 = vmatpush.bf16.msra.mxu0 %v6780
    %6902 = vmatpush.bf16.msra.mxu0 %v6776
    %6903 = vmatpush.bf16.msra.mxu0 %v6772
    %6904 = vmatpush.bf16.msra.mxu0 %v6768
    %6905 = vmatpush.bf16.msra.mxu0 %v6764
    %6906 = vmatpush.bf16.msra.mxu0 %v6760
    %6907 = vmatpush.bf16.msra.mxu0 %v6756
    %6908 = vmatpush.bf16.msra.mxu0 %v6752
    %6909 = vmatmul.bf16.gmra.mxu0 %v6803
    %v6910 = vpop.f32.mrf.mxu0
    %v6911 = vadd.f32 %v6898, %v6910
    %v6912 = vpop.f32.mrf.mxu0
    %6913 = vdwg.mxu0
    %6914 = vmatpush.bf16.msra.mxu0 0
    %6915 = vmatpush.bf16.msra.mxu0 0
    %6916 = vmatpush.bf16.msra.mxu0 0
    %6917 = vmatpush.bf16.msra.mxu0 0
    %6918 = vmatpush.bf16.msra.mxu0 0
    %6919 = vmatpush.bf16.msra.mxu0 0
    %6920 = vmatpush.bf16.msra.mxu0 0
    %6921 = vmatpush.bf16.msra.mxu0 %v6815
    %6922 = vmatmul.bf16.gmra.mxu0 %v6809
    %v6923 = vpop.f32.mrf.mxu0
    %v6924 = vadd.f32 %v6911, %v6923
    %v6925 = vpop.f32.mrf.mxu0
    %6926 = vdwg.mxu0
    %6927 = vmatpush.bf16.msra.mxu0 %v6717
    %6928 = vmatpush.bf16.msra.mxu0 %v6713
    %6929 = vmatpush.bf16.msra.mxu0 %v6709
    %6930 = vmatpush.bf16.msra.mxu0 %v6705
    %6931 = vmatpush.bf16.msra.mxu0 %v6701
    %6932 = vmatpush.bf16.msra.mxu0 %v6697
    %6933 = vmatpush.bf16.msra.mxu0 %v6693
    %6934 = vmatpush.bf16.msra.mxu0 %v6689
    %6935 = vmatmul.bf16.gmra.mxu0 %v6801
    %v6936 = vpop.f32.mrf.mxu0
    %v6937 = vadd.f32 %v6793, %v6936
    %v6938 = vpop.f32.mrf.mxu0
    %6939 = vdwg.mxu0
    %6940 = vmatpush.bf16.msra.mxu0 %v6749
    %6941 = vmatpush.bf16.msra.mxu0 %v6745
    %6942 = vmatpush.bf16.msra.mxu0 %v6741
    %6943 = vmatpush.bf16.msra.mxu0 %v6737
    %6944 = vmatpush.bf16.msra.mxu0 %v6733
    %6945 = vmatpush.bf16.msra.mxu0 %v6729
    %6946 = vmatpush.bf16.msra.mxu0 %v6725
    %6947 = vmatpush.bf16.msra.mxu0 %v6721
    %6948 = vmatmul.bf16.gmra.mxu0 %v6802
    %v6949 = vpop.f32.mrf.mxu0
    %v6950 = vadd.f32 %v6937, %v6949
    %v6951 = vpop.f32.mrf.mxu0
    %6952 = vdwg.mxu0
    %6953 = vmatpush.bf16.msra.mxu0 %v6781
    %6954 = vmatpush.bf16.msra.mxu0 %v6777
    %6955 = vmatpush.bf16.msra.mxu0 %v6773
    %6956 = vmatpush.bf16.msra.mxu0 %v6769
    %6957 = vmatpush.bf16.msra.mxu0 %v6765
    %6958 = vmatpush.bf16.msra.mxu0 %v6761
    %6959 = vmatpush.bf16.msra.mxu0 %v6757
    %6960 = vmatpush.bf16.msra.mxu0 %v6753
    %6961 = vmatmul.bf16.gmra.mxu0 %v6803
    %v6962 = vpop.f32.mrf.mxu0
    %v6963 = vadd.f32 %v6950, %v6962
    %v6964 = vpop.f32.mrf.mxu0
    %6965 = vdwg.mxu0
    %6966 = vmatpush.bf16.msra.mxu0 0
    %6967 = vmatpush.bf16.msra.mxu0 0
    %6968 = vmatpush.bf16.msra.mxu0 0
    %6969 = vmatpush.bf16.msra.mxu0 0
    %6970 = vmatpush.bf16.msra.mxu0 0
    %6971 = vmatpush.bf16.msra.mxu0 0
    %6972 = vmatpush.bf16.msra.mxu0 0
    %6973 = vmatpush.bf16.msra.mxu0 %v6818
    %6974 = vmatmul.bf16.gmra.mxu0 %v6809
    %v6975 = vpop.f32.mrf.mxu0
    %v6976 = vadd.f32 %v6963, %v6975
    %v6977 = vpop.f32.mrf.mxu0
    %6978 = vdwg.mxu0
    %6979 = vmatpush.bf16.msra.mxu0 %v6718
    %6980 = vmatpush.bf16.msra.mxu0 %v6714
    %6981 = vmatpush.bf16.msra.mxu0 %v6710
    %6982 = vmatpush.bf16.msra.mxu0 %v6706
    %6983 = vmatpush.bf16.msra.mxu0 %v6702
    %6984 = vmatpush.bf16.msra.mxu0 %v6698
    %6985 = vmatpush.bf16.msra.mxu0 %v6694
    %6986 = vmatpush.bf16.msra.mxu0 %v6690
    %6987 = vmatmul.bf16.gmra.mxu0 %v6801
    %v6988 = vpop.f32.mrf.mxu0
    %v6989 = vadd.f32 %v6793, %v6988
    %v6990 = vpop.f32.mrf.mxu0
    %6991 = vdwg.mxu0
    %6992 = vmatpush.bf16.msra.mxu0 %v6750
    %6993 = vmatpush.bf16.msra.mxu0 %v6746
    %6994 = vmatpush.bf16.msra.mxu0 %v6742
    %6995 = vmatpush.bf16.msra.mxu0 %v6738
    %6996 = vmatpush.bf16.msra.mxu0 %v6734
    %6997 = vmatpush.bf16.msra.mxu0 %v6730
    %6998 = vmatpush.bf16.msra.mxu0 %v6726
    %6999 = vmatpush.bf16.msra.mxu0 %v6722
    %7000 = vmatmul.bf16.gmra.mxu0 %v6802
    %v7001 = vpop.f32.mrf.mxu0
    %v7002 = vadd.f32 %v6989, %v7001
    %v7003 = vpop.f32.mrf.mxu0
    %7004 = vdwg.mxu0
    %7005 = vmatpush.bf16.msra.mxu0 %v6782
    %7006 = vmatpush.bf16.msra.mxu0 %v6778
    %7007 = vmatpush.bf16.msra.mxu0 %v6774
    %7008 = vmatpush.bf16.msra.mxu0 %v6770
    %7009 = vmatpush.bf16.msra.mxu0 %v6766
    %7010 = vmatpush.bf16.msra.mxu0 %v6762
    %7011 = vmatpush.bf16.msra.mxu0 %v6758
    %7012 = vmatpush.bf16.msra.mxu0 %v6754
    %7013 = vmatmul.bf16.gmra.mxu0 %v6803
    %v7014 = vpop.f32.mrf.mxu0
    %v7015 = vadd.f32 %v7002, %v7014
    %v7016 = vpop.f32.mrf.mxu0
    %7017 = vdwg.mxu0
    %7018 = vmatpush.bf16.msra.mxu0 0
    %7019 = vmatpush.bf16.msra.mxu0 0
    %7020 = vmatpush.bf16.msra.mxu0 0
    %7021 = vmatpush.bf16.msra.mxu0 0
    %7022 = vmatpush.bf16.msra.mxu0 0
    %7023 = vmatpush.bf16.msra.mxu0 0
    %7024 = vmatpush.bf16.msra.mxu0 0
    %7025 = vmatpush.bf16.msra.mxu0 %v6821
    %7026 = vmatmul.bf16.gmra.mxu0 %v6809
    %v7027 = vpop.f32.mrf.mxu0
    %v7028 = vadd.f32 %v7015, %v7027
    %v7029 = vpop.f32.mrf.mxu0
    %7030 = vdwg.mxu0
    %v7031 = vmax.f32 %v6872, 0.0
    %v7032 = vmax.f32 %v6924, 0.0
    %v7033 = vmax.f32 %v6976, 0.0
    %v7034 = vmax.f32 %v7028, 0.0
    %v7035 = vadd.f32 %v7031, %v7032
    %v7036 = vadd.f32 %v7035, %v7033
    %v7037 = vadd.f32 %v7036, %v7034
    %7038 = vadd.xlane.f32.xlu0 %v7037
    %v7039 = vpop.xlane.xlu0 %7038
    %v7040 = vmul.f32 %v7039, %v3582
    %v7041 = vsub.f32 %v7031, %v7040
    %v7042 = vsub.f32 %v7032, %v7040
    %v7043 = vsub.f32 %v7033, %v7040
    %v7044 = vsub.f32 %v7034, %v7040
    %v7045 = vmul.f32 %v7041, %v7041
    %v7046 = vmul.f32 %v7042, %v7042
    %v7047 = vmul.f32 %v7043, %v7043
    %v7048 = vmul.f32 %v7044, %v7044
    %v7049 = vadd.f32 %v7045, %v7046
    %v7050 = vadd.f32 %v7049, %v7047
    %v7051 = vadd.f32 %v7050, %v7048
    %7052 = vadd.xlane.f32.xlu0 %v7051
    %v7053 = vpop.xlane.xlu0 %7052
    %v7054 = vmul.f32 %v7053, %v3582
    %v7055 = vadd.f32 %v7054, 1e-05
    %v7056 = vrsqrt.pop %v7055
    %v7057 = vmul.f32 %v7056, %v7055
    %v7058 = vmul.f32 %v7057, %v7056
    %v7059 = vmul.f32 0.5, %v7058
    %v7060 = vsub.f32 1.5, %v7059
    %v7061 = vmul.f32 %v7056, %v7060
    %vm7062 = vweird.f32 %v7055
    %vm7063 = vweird.f32 %v7056
    %vm7064 = vmor %vm7062, %vm7063
    %v7065 = vsel %vm7064, %v7056, %v7061
    %v7066 = vmul.f32 %v7041, %v7065
    %v7067 = vmul.f32 %v7042, %v7065
    %v7068 = vmul.f32 %v7043, %v7065
    %v7069 = vmul.f32 %v7044, %v7065
    %v7070 = vld [vmem:[%s6] sm:$0xff]
    %7072 = vset.pattern.permute.xlu0 0
    %7073 = vperm.xlu0 %7072, %v7070
    %v7074 = vpop.permute.xlu0 %7073
    %v7076 = vmul.f32 %v7066, %v7074
    %v7077 = vmul.f32 %v7067, %v7074
    %v7078 = vmul.f32 %v7068, %v7074
    %v7079 = vmul.f32 %v7069, %v7074
    %v7080 = vld [vmem:[%s7] sm:$0xff]
    %7082 = vset.pattern.permute.xlu0 0
    %7083 = vperm.xlu0 %7082, %v7080
    %v7084 = vpop.permute.xlu0 %7083
    %v7086 = vadd.f32 %v7076, %v7084
    %v7087 = vadd.f32 %v7077, %v7084
    %v7088 = vadd.f32 %v7078, %v7084
    %v7089 = vadd.f32 %v7079, %v7084
    %7090 = vst [vmem:[#allocation9] sm:$0xff] %v7086
    %7091 = vst [vmem:[#allocation9 + $0x8] sm:$0xff] %v7087
    %7092 = vst [vmem:[#allocation9 + $0x10] sm:$0xff] %v7088
    %7093 = vst [vmem:[#allocation9 + $0x18] sm:$0xff] %v7089
    // Predicated region
    $region42: #{tpu_custom_call.1} parent=1 // pred_check
      _
    $region43: #{tpu_custom_call.1} parent=1 // pred_check_branch
      %7095 = sbr.rel (0) target = $region45
    $region44: #{tpu_custom_call.1} parent=1 // pred_region
      %7097 = vsyncadd [#allocation6], 0
      %s7099 = sshll.u32 [#allocation9], 4
      %s7100 = int_to_ptr.vmem [resolvable:$true] %s7099
      %s7101 = sshll.u32 %s8, 4
      %s7102 = int_to_ptr.hbm [resolvable:$true] %s7101
      %7104 = dma.vmem_to_hbm [thread:$0]  %s7100, 512, %s7102, [#allocation6]
    $region45: #{tpu_custom_call.1} parent=1 // pred_fallthru
      _
    // Predicated region
    $region46: #{tpu_custom_call.1} parent=1 // pred_check
      _
    $region47: #{tpu_custom_call.1} parent=1 // pred_check_branch
      %7106 = sbr.rel (0) target = $region49
    $region48: #{tpu_custom_call.1} parent=1 // pred_region
      %7108 = dma.done [#allocation6], 512
    $region49: #{tpu_custom_call.1} parent=1 // pred_fallthru
      _
    %7109 = vsyncpa [#allocation5], 1
    %7110 = vsyncpa [#allocation8], 1
    %7111 = vsyncpa [#allocation6], 1

</llo_original>
